<compile_context>
chip_gen: v6e
topology: v6e:2x2x1
jax: 0.10.0
libtpu: 0.0.40
codegen_flags: <defaults>
</compile_context>

<pallas_src>
import jax
import jax.numpy as jnp
from jax.experimental import pallas as pl
from jax.experimental.pallas import tpu as pltpu

LANE = 128
BN_EPS = 1e-5


def _round_up(x, m):
    return (x + m - 1) // m * m


def _row_tile(m, kd):
    """Row tile: as large as possible (<=1024) while keeping the bf16 A block
    (double-buffered) modest so realistic channel widths still fit VMEM."""
    tm = min(1024, _round_up(m, 8))
    cap = max(8, ((4 << 20) // max(2 * kd, 1)) // 8 * 8)
    return max(8, min(tm, cap))


# ----------------------------- Pallas kernels -------------------------------

def _matmul_stats_kernel(a_ref, w_ref, y_ref, sum_ref, sq_ref):
    """(tm, Kd)bf16 @ (Kd, Cp)bf16 with f32 MXU accumulation; tile stored as
    bf16.  Per-column sum / sum-of-squares (f32) are accumulated across the M
    grid axis (axis 1, 'arbitrary') for fused training-mode BN statistics."""
    @pl.when(pl.program_id(1) == 0)
    def _():
        sum_ref[...] = jnp.zeros_like(sum_ref)
        sq_ref[...] = jnp.zeros_like(sq_ref)

    y = jnp.dot(a_ref[...], w_ref[...], preferred_element_type=jnp.float32)
    y_ref[...] = y.astype(y_ref.dtype)
    # TODO(synk): E[y^2] - E[y]^2 can cancel for very large means; a two-pass
    # centered variance would be safer if activations develop large means.
    sum_ref[...] += jnp.broadcast_to(
        jnp.sum(y, axis=0, keepdims=True), sum_ref.shape)
    sq_ref[...] += jnp.broadcast_to(
        jnp.sum(y * y, axis=0, keepdims=True), sq_ref.shape)


def _matmul_kernel(a_ref, w_ref, y_ref):
    y = jnp.dot(a_ref[...], w_ref[...], preferred_element_type=jnp.float32)
    y_ref[...] = y.astype(y_ref.dtype)


def _bn_relu_kernel(y_ref, scale_ref, shift_ref, o_ref):
    # bf16 in / bf16 out; compute in f32 (v5e has no bf16 VPU path).
    y = y_ref[...].astype(jnp.float32)
    o_ref[...] = jnp.maximum(
        y * scale_ref[...] + shift_ref[...], 0.0).astype(o_ref.dtype)


# ----------------------------- Pallas wrappers -------------------------------

def _mosaic_params(dim_sem):
    return pltpu.CompilerParams(dimension_semantics=dim_sem,
                                vmem_limit_bytes=48 * 1024 * 1024)


def pallas_matmul_stats(a, w, tm):
    """a: (P, Mp, Kd) bf16, w: (P, Kd, Cp) bf16 ->
       y: (P, Mp, Cp) bf16, sums/sqsums: (P, 8, Cp) f32 (8 identical rows)."""
    P, Mp, Kd = a.shape
    Cp = w.shape[2]
    return pl.pallas_call(
        _matmul_stats_kernel,
        out_shape=(
            jax.ShapeDtypeStruct((P, Mp, Cp), jnp.bfloat16),
            jax.ShapeDtypeStruct((P, 8, Cp), jnp.float32),
            jax.ShapeDtypeStruct((P, 8, Cp), jnp.float32),
        ),
        grid=(P, Mp // tm),
        in_specs=[
            pl.BlockSpec((None, tm, Kd), lambda p, i: (p, i, 0)),
            pl.BlockSpec((None, Kd, Cp), lambda p, i: (p, 0, 0)),
        ],
        out_specs=(
            pl.BlockSpec((None, tm, Cp), lambda p, i: (p, i, 0)),
            pl.BlockSpec((None, 8, Cp), lambda p, i: (p, 0, 0)),
            pl.BlockSpec((None, 8, Cp), lambda p, i: (p, 0, 0)),
        ),
        compiler_params=_mosaic_params(("parallel", "arbitrary")),
    )(a, w)


def pallas_matmul(a, w, tm):
    P, Mp, Kd = a.shape
    Cp = w.shape[2]
    return pl.pallas_call(
        _matmul_kernel,
        out_shape=jax.ShapeDtypeStruct((P, Mp, Cp), jnp.bfloat16),
        grid=(P, Mp // tm),
        in_specs=[
            pl.BlockSpec((None, tm, Kd), lambda p, i: (p, i, 0)),
            pl.BlockSpec((None, Kd, Cp), lambda p, i: (p, 0, 0)),
        ],
        out_specs=pl.BlockSpec((None, tm, Cp), lambda p, i: (p, i, 0)),
        compiler_params=_mosaic_params(("parallel", "parallel")),
    )(a, w)


def pallas_bn_relu(y, scale, shift, tm):
    Mtot, Cp = y.shape
    return pl.pallas_call(
        _bn_relu_kernel,
        out_shape=jax.ShapeDtypeStruct((Mtot, Cp), jnp.bfloat16),
        grid=(Mtot // tm,),
        in_specs=[
            pl.BlockSpec((tm, Cp), lambda i: (i, 0)),
            pl.BlockSpec((1, Cp), lambda i: (0, 0)),
            pl.BlockSpec((1, Cp), lambda i: (0, 0)),
        ],
        out_specs=pl.BlockSpec((tm, Cp), lambda i: (i, 0)),
        compiler_params=_mosaic_params(("parallel",)),
    )(y, scale, shift)


# ------------------ stride-2 ConvTranspose2d phase lowering ------------------

def _phase_patches(x):
    """x: (N, H, W, Cin) bf16 -> A: (4, N*H*W, 4*Cin) bf16.
    Output phase p = 2*r + c of a K=4 / stride=2 / pad=1 ConvTranspose2d only
    touches input rows {i-1+r, i+r} and cols {j-1+c, j+c}; tap (dh, dw) pairs
    with kernel element (3-r-2*dh, 3-c-2*dw)."""
    N, H, W, Cin = x.shape
    xp = jnp.pad(x, ((0, 0), (1, 1), (1, 1), (0, 0)))
    phases = []
    for r in (0, 1):
        for c in (0, 1):
            taps = [xp[:, r + dh:r + dh + H, c + dw:c + dw + W, :]
                    for dh in (0, 1) for dw in (0, 1)]
            phases.append(
                jnp.concatenate(taps, axis=-1).reshape(N * H * W, 4 * Cin))
    return jnp.stack(phases, axis=0)


def _phase_weights(w, c_pad):
    """PyTorch ConvTranspose2d weight (Cin, Cout, 4, 4) -> per-phase matmul
    weights (4, 4*Cin, c_pad) bf16; row order (dh, dw, ci) matches
    _phase_patches; Cout zero-padded to the lane-dense width."""
    Cin, Cout = w.shape[0], w.shape[1]
    mats = []
    for r in (0, 1):
        for c in (0, 1):
            wsub = w[:, :, [3 - r, 1 - r], :][:, :, :, [3 - c, 1 - c]]
            mats.append(wsub.transpose(2, 3, 0, 1).reshape(4 * Cin, Cout))
    w_all = jnp.stack(mats, axis=0)
    w_all = jnp.pad(w_all, ((0, 0), (0, 0), (0, c_pad - Cout)))
    return w_all.astype(jnp.bfloat16)


def _interleave_phases(y, N, H, W, Cout):
    """y: (4, N*H*W, Cout) -> (N, 2H, 2W, Cout); out[n,2i+r,2j+c]=y[2r+c,nij]."""
    y = y.reshape(2, 2, N, H, W, Cout)
    return y.transpose(2, 3, 0, 4, 1, 5).reshape(N, 2 * H, 2 * W, Cout)


def _bn_scale_shift(s_c, sq_c, count, gamma, beta):
    mean = s_c / count
    var = jnp.maximum(sq_c / count - mean * mean, 0.0)  # biased (training BN)
    scale = gamma * jax.lax.rsqrt(var + BN_EPS)
    shift = beta - mean * scale
    return scale, shift


# --------------------------------- layers -----------------------------------

def _convT_first_bn_relu(z, w, gamma, beta):
    # 1x1 spatial, stride 1, pad 0: out[n,kh,kw,co] = sum_ci z[n,ci] W[ci,co,kh,kw]
    N, Cin = z.shape[0], z.shape[1]
    Cout, K = w.shape[1], w.shape[2]
    ncols = K * K * Cout
    n_pad = _round_up(ncols, LANE)
    m_pad = _round_up(N, 8)

    a = z.reshape(N, Cin).astype(jnp.bfloat16)
    if m_pad != N:
        a = jnp.pad(a, ((0, m_pad - N), (0, 0)))
    a = a[None]                                            # (1, Mp, Cin)
    w_mat = w.transpose(0, 2, 3, 1).reshape(Cin, ncols)    # col=(kh*K+kw)*Cout+co
    w_mat = jnp.pad(w_mat, ((0, 0), (0, n_pad - ncols))).astype(jnp.bfloat16)[None]

    tm = m_pad
    y, s, sq = pallas_matmul_stats(a, w_mat, tm)

    count = float(N * K * K)
    s_c = s[0, 0, :ncols].reshape(K * K, Cout).sum(axis=0)
    sq_c = sq[0, 0, :ncols].reshape(K * K, Cout).sum(axis=0)
    scale, shift = _bn_scale_shift(s_c, sq_c, count, gamma, beta)
    scale = jnp.pad(jnp.tile(scale, K * K), (0, n_pad - ncols)).reshape(1, n_pad)
    shift = jnp.pad(jnp.tile(shift, K * K), (0, n_pad - ncols)).reshape(1, n_pad)

    yb = pallas_bn_relu(y.reshape(m_pad, n_pad), scale, shift, tm)
    return yb[:N, :ncols].reshape(N, K, K, Cout)           # (N, 4, 4, Cout) bf16


def _convT_s2_bn_relu(x, w, gamma, beta):
    N, H, W, Cin = x.shape
    Cout = w.shape[1]
    c_pad = _round_up(Cout, LANE)
    M = N * H * W
    Kd = 4 * Cin
    tm = _row_tile(M, Kd)
    Mp = _round_up(M, tm)

    a = _phase_patches(x.astype(jnp.bfloat16))
    if Mp != M:
        # Zero rows: exact no-op for the bias-free fused BN statistics.
        a = jnp.pad(a, ((0, 0), (0, Mp - M), (0, 0)))
    w_all = _phase_weights(w, c_pad)

    y, s, sq = pallas_matmul_stats(a, w_all, tm)            # y bf16

    count = 4.0 * M                                         # = N * 2H * 2W
    s_c = jnp.sum(s[:, 0, :Cout], axis=0)
    sq_c = jnp.sum(sq[:, 0, :Cout], axis=0)
    scale, shift = _bn_scale_shift(s_c, sq_c, count, gamma, beta)
    scale = jnp.pad(scale, (0, c_pad - Cout)).reshape(1, c_pad)
    shift = jnp.pad(shift, (0, c_pad - Cout)).reshape(1, c_pad)

    yb = pallas_bn_relu(y.reshape(4 * Mp, c_pad), scale, shift, tm)
    yb = yb.reshape(4, Mp, c_pad)[:, :M, :Cout]
    return _interleave_phases(yb, N, H, W, Cout)            # (N,2H,2W,Cout) bf16


def _convT_s2_tanh(x, w, b):
    N, H, W, Cin = x.shape
    Cout = w.shape[1]
    c_pad = _round_up(Cout, LANE)
    M = N * H * W
    Kd = 4 * Cin
    tm = _row_tile(M, Kd)
    Mp = _round_up(M, tm)

    a = _phase_patches(x.astype(jnp.bfloat16))
    if Mp != M:
        a = jnp.pad(a, ((0, 0), (0, Mp - M), (0, 0)))
    w_all = _phase_weights(w, c_pad)

    y = pallas_matmul(a, w_all, tm)                          # (4, Mp, c_pad) bf16
    # Bias + tanh on the 3 real channels only (padded lanes would waste ~40x
    # of the EUP / store work) -- cheap XLA epilogue after the slice.
    y = y[:, :M, :Cout].astype(jnp.float32) + b.reshape(1, 1, Cout)
    y = jnp.tanh(y)
    return _interleave_phases(y, N, H, W, Cout)              # (N,2H,2W,Cout) f32


# ------------------------------ generator model ------------------------------

def init_generator_params(key, latent_dim, img_channels, g_features):
    chans = [latent_dim, g_features * 16, g_features * 8, g_features * 4,
             g_features * 2, img_channels]
    params = []
    for li in range(5):
        cin, cout = chans[li], chans[li + 1]
        key, kw, kb = jax.random.split(key, 3)
        w = 0.02 * jax.random.normal(kw, (cin, cout, 4, 4), jnp.float32)
        if li < 4:
            # bias=False effectively: it is absorbed by training-mode BN.
            params.append(dict(w=w, b=None,
                               gamma=jnp.ones((cout,), jnp.float32),
                               beta=jnp.zeros((cout,), jnp.float32)))
        else:
            b = 0.01 * jax.random.normal(kb, (cout,), jnp.float32)
            params.append(dict(w=w, b=b, gamma=None, beta=None))
    return params


@jax.jit
def generator_forward(z, params):
    p0 = params[0]
    x = _convT_first_bn_relu(z, p0["w"], p0["gamma"], p0["beta"])   # (N,4,4,C)
    for li in range(1, 4):
        p = params[li]
        x = _convT_s2_bn_relu(x, p["w"], p["gamma"], p["beta"])
    p4 = params[4]
    x = _convT_s2_tanh(x, p4["w"], p4["b"])                         # f32
    return jnp.transpose(x, (0, 3, 1, 2))                           # NHWC -> NCHW


if __name__ == "__main__":
    latent_dim, img_channels, g_features, batch = 32, 3, 4, 2

    key = jax.random.PRNGKey(0)
    k_params, k_z = jax.random.split(key)
    params = init_generator_params(k_params, latent_dim, img_channels, g_features)

    z = jax.random.normal(k_z, (batch, latent_dim, 1, 1), jnp.float32)

    out = jax.block_until_ready(generator_forward(z, params))

    expected = (batch, img_channels, 64, 64)
    assert out.shape == expected, (out.shape, expected)
    assert out.dtype == jnp.float32
    assert bool(jnp.all(jnp.isfinite(out)))
    assert bool(jnp.all(jnp.abs(out) <= 1.0))  # tanh range

    print("KERNEL_OK")
</pallas_src>

<mosaic_0001>
module attributes {stable_mosaic.version = 11 : i64} {
  func.func @_matmul_stats_kernel(%arg0: i32, %arg1: i32, %arg2: memref<1x8x32xbf16, #tpu.memory_space<vmem>>, %arg3: memref<1x32x1024xbf16, #tpu.memory_space<vmem>>, %arg4: memref<1x8x1024xbf16, #tpu.memory_space<vmem>>, %arg5: memref<1x8x1024xf32, #tpu.memory_space<vmem>>, %arg6: memref<1x8x1024xf32, #tpu.memory_space<vmem>>) attributes {dimension_semantics = [#tpu.dimension_semantics<parallel>, #tpu.dimension_semantics<arbitrary>], iteration_bounds = array<i64: 1, 1>, scalar_prefetch = 0 : i64, scratch_operands = 0 : i64, tpu.core_type = #tpu.core_type<tc>, window_params = [{transform_indices = @transform_0, window_bounds = array<i64: 1, 8, 32>}, {transform_indices = @transform_1, window_bounds = array<i64: 1, 32, 1024>}, {transform_indices = @transform_2, window_bounds = array<i64: 1, 8, 1024>}, {transform_indices = @transform_3, window_bounds = array<i64: 1, 8, 1024>}, {transform_indices = @transform_4, window_bounds = array<i64: 1, 8, 1024>}]} {
    %c0_i32 = arith.constant 0 : i32
    %0 = arith.cmpi eq, %arg1, %c0_i32 : i32
    %1 = arith.extui %0 : i1 to i32
    %c0_i32_0 = arith.constant 0 : i32
    %2 = arith.cmpi ne, %1, %c0_i32_0 : i32
    scf.if %2 {
      %cst_23 = arith.constant 0.000000e+00 : f32
      %33 = vector.broadcast %cst_23 : f32 to vector<8x1024xf32>
      %c0_24 = arith.constant 0 : index
      %c0_25 = arith.constant 0 : index
      %c0_26 = arith.constant 0 : index
      %34 = vector.load %arg5[%c0_24, %c0_25, %c0_26] : memref<1x8x1024xf32, #tpu.memory_space<vmem>>, vector<1x8x1024xf32>
      %35 = vector.shape_cast %34 : vector<1x8x1024xf32> to vector<8x1024xf32>
      %36 = vector.shape_cast %33 : vector<8x1024xf32> to vector<1x8x1024xf32>
      tpu.vector_store %arg5[%c0_24, %c0_25, %c0_26], %36 {strides = array<i32>} : memref<1x8x1024xf32, #tpu.memory_space<vmem>>, vector<1x8x1024xf32>,
      %cst_27 = arith.constant 0.000000e+00 : f32
      %37 = vector.broadcast %cst_27 : f32 to vector<8x1024xf32>
      %c0_28 = arith.constant 0 : index
      %c0_29 = arith.constant 0 : index
      %c0_30 = arith.constant 0 : index
      %38 = vector.load %arg6[%c0_28, %c0_29, %c0_30] : memref<1x8x1024xf32, #tpu.memory_space<vmem>>, vector<1x8x1024xf32>
      %39 = vector.shape_cast %38 : vector<1x8x1024xf32> to vector<8x1024xf32>
      %40 = vector.shape_cast %37 : vector<8x1024xf32> to vector<1x8x1024xf32>
      tpu.vector_store %arg6[%c0_28, %c0_29, %c0_30], %40 {strides = array<i32>} : memref<1x8x1024xf32, #tpu.memory_space<vmem>>, vector<1x8x1024xf32>,
    } else {
    }
    %c0 = arith.constant 0 : index
    %c0_1 = arith.constant 0 : index
    %c0_2 = arith.constant 0 : index
    %3 = vector.load %arg2[%c0, %c0_1, %c0_2] : memref<1x8x32xbf16, #tpu.memory_space<vmem>>, vector<1x8x32xbf16>
    %4 = vector.shape_cast %3 : vector<1x8x32xbf16> to vector<8x32xbf16>
    %c0_3 = arith.constant 0 : index
    %c0_4 = arith.constant 0 : index
    %c0_5 = arith.constant 0 : index
    %5 = vector.load %arg3[%c0_3, %c0_4, %c0_5] : memref<1x32x1024xbf16, #tpu.memory_space<vmem>>, vector<1x32x1024xbf16>
    %6 = vector.shape_cast %5 : vector<1x32x1024xbf16> to vector<32x1024xbf16>
    %cst = arith.constant dense<0.000000e+00> : vector<8x1024xf32>
    %7 = tpu.matmul %4, %6, %cst {dimension_numbers = #tpu.dot_dimension_numbers<[1], [0], [0], [1], [0, 0, 1, 1], [], []>} : vector<8x32xbf16>, vector<32x1024xbf16>, vector<8x1024xf32> -> vector<8x1024xf32>
    %8 = arith.truncf %7 : vector<8x1024xf32> to vector<8x1024xbf16>
    %c0_6 = arith.constant 0 : index
    %c0_7 = arith.constant 0 : index
    %c0_8 = arith.constant 0 : index
    %9 = vector.load %arg4[%c0_6, %c0_7, %c0_8] : memref<1x8x1024xbf16, #tpu.memory_space<vmem>>, vector<1x8x1024xbf16>
    %10 = vector.shape_cast %9 : vector<1x8x1024xbf16> to vector<8x1024xbf16>
    %11 = vector.shape_cast %8 : vector<8x1024xbf16> to vector<1x8x1024xbf16>
    tpu.vector_store %arg4[%c0_6, %c0_7, %c0_8], %11 {strides = array<i32>} : memref<1x8x1024xbf16, #tpu.memory_space<vmem>>, vector<1x8x1024xbf16>,
    %c0_9 = arith.constant 0 : index
    %c0_10 = arith.constant 0 : index
    %c0_11 = arith.constant 0 : index
    %12 = vector.load %arg5[%c0_9, %c0_10, %c0_11] : memref<1x8x1024xf32, #tpu.memory_space<vmem>>, vector<1x8x1024xf32>
    %13 = vector.shape_cast %12 : vector<1x8x1024xf32> to vector<8x1024xf32>
    %cst_12 = arith.constant dense<0.000000e+00> : vector<1024xf32>
    %14 = vector.multi_reduction <add>, %7, %cst_12 [0] : vector<8x1024xf32> to vector<1024xf32>
    %15 = vector.shape_cast %14 : vector<1024xf32> to vector<1x1024xf32>
    %16 = vector.shape_cast %15 : vector<1x1024xf32> to vector<1x1024xf32>
    %17 = vector.broadcast %16 : vector<1x1024xf32> to vector<8x1024xf32>
    %18 = arith.addf %13, %17 : vector<8x1024xf32>
    %c0_13 = arith.constant 0 : index
    %c0_14 = arith.constant 0 : index
    %c0_15 = arith.constant 0 : index
    %19 = vector.load %arg5[%c0_13, %c0_14, %c0_15] : memref<1x8x1024xf32, #tpu.memory_space<vmem>>, vector<1x8x1024xf32>
    %20 = vector.shape_cast %19 : vector<1x8x1024xf32> to vector<8x1024xf32>
    %21 = vector.shape_cast %18 : vector<8x1024xf32> to vector<1x8x1024xf32>
    tpu.vector_store %arg5[%c0_13, %c0_14, %c0_15], %21 {strides = array<i32>} : memref<1x8x1024xf32, #tpu.memory_space<vmem>>, vector<1x8x1024xf32>,
    %c0_16 = arith.constant 0 : index
    %c0_17 = arith.constant 0 : index
    %c0_18 = arith.constant 0 : index
    %22 = vector.load %arg6[%c0_16, %c0_17, %c0_18] : memref<1x8x1024xf32, #tpu.memory_space<vmem>>, vector<1x8x1024xf32>
    %23 = vector.shape_cast %22 : vector<1x8x1024xf32> to vector<8x1024xf32>
    %24 = arith.mulf %7, %7 : vector<8x1024xf32>
    %cst_19 = arith.constant dense<0.000000e+00> : vector<1024xf32>
    %25 = vector.multi_reduction <add>, %24, %cst_19 [0] : vector<8x1024xf32> to vector<1024xf32>
    %26 = vector.shape_cast %25 : vector<1024xf32> to vector<1x1024xf32>
    %27 = vector.shape_cast %26 : vector<1x1024xf32> to vector<1x1024xf32>
    %28 = vector.broadcast %27 : vector<1x1024xf32> to vector<8x1024xf32>
    %29 = arith.addf %23, %28 : vector<8x1024xf32>
    %c0_20 = arith.constant 0 : index
    %c0_21 = arith.constant 0 : index
    %c0_22 = arith.constant 0 : index
    %30 = vector.load %arg6[%c0_20, %c0_21, %c0_22] : memref<1x8x1024xf32, #tpu.memory_space<vmem>>, vector<1x8x1024xf32>
    %31 = vector.shape_cast %30 : vector<1x8x1024xf32> to vector<8x1024xf32>
    %32 = vector.shape_cast %29 : vector<8x1024xf32> to vector<1x8x1024xf32>
    tpu.vector_store %arg6[%c0_20, %c0_21, %c0_22], %32 {strides = array<i32>} : memref<1x8x1024xf32, #tpu.memory_space<vmem>>, vector<1x8x1024xf32>,
    return
  }
  func.func @transform_0(%arg0: i32, %arg1: i32) -> (i32, i32, i32) {
    %c0_i32 = arith.constant 0 : i32
    %c0_i32_0 = arith.constant 0 : i32
    return %arg0, %arg1, %c0_i32 : i32, i32, i32
  }
  func.func @transform_1(%arg0: i32, %arg1: i32) -> (i32, i32, i32) {
    %c0_i32 = arith.constant 0 : i32
    %c0_i32_0 = arith.constant 0 : i32
    %c0_i32_1 = arith.constant 0 : i32
    return %arg0, %c0_i32, %c0_i32_0 : i32, i32, i32
  }
  func.func @transform_2(%arg0: i32, %arg1: i32) -> (i32, i32, i32) {
    %c0_i32 = arith.constant 0 : i32
    %c0_i32_0 = arith.constant 0 : i32
    return %arg0, %arg1, %c0_i32 : i32, i32, i32
  }
  func.func @transform_3(%arg0: i32, %arg1: i32) -> (i32, i32, i32) {
    %c0_i32 = arith.constant 0 : i32
    %c0_i32_0 = arith.constant 0 : i32
    %c0_i32_1 = arith.constant 0 : i32
    return %arg0, %c0_i32, %c0_i32_0 : i32, i32, i32
  }
  func.func @transform_4(%arg0: i32, %arg1: i32) -> (i32, i32, i32) {
    %c0_i32 = arith.constant 0 : i32
    %c0_i32_0 = arith.constant 0 : i32
    %c0_i32_1 = arith.constant 0 : i32
    return %arg0, %c0_i32, %c0_i32_0 : i32, i32, i32
  }
}

module attributes {stable_mosaic.version = 11 : i64} {
  func.func @_bn_relu_kernel(%arg0: i32, %arg1: memref<8x1024xbf16, #tpu.memory_space<vmem>>, %arg2: memref<1x1024xf32, #tpu.memory_space<vmem>>, %arg3: memref<1x1024xf32, #tpu.memory_space<vmem>>, %arg4: memref<8x1024xbf16, #tpu.memory_space<vmem>>) attributes {dimension_semantics = [#tpu.dimension_semantics<parallel>], iteration_bounds = array<i64: 1>, scalar_prefetch = 0 : i64, scratch_operands = 0 : i64, tpu.core_type = #tpu.core_type<tc>, window_params = [{transform_indices = @transform_0, window_bounds = array<i64: 8, 1024>}, {pipeline_mode = #tpu.pipeline_mode<synchronous>, transform_indices = @transform_1, window_bounds = array<i64: 1, 1024>}, {pipeline_mode = #tpu.pipeline_mode<synchronous>, transform_indices = @transform_2, window_bounds = array<i64: 1, 1024>}, {transform_indices = @transform_3, window_bounds = array<i64: 8, 1024>}]} {
    %c0 = arith.constant 0 : index
    %c0_0 = arith.constant 0 : index
    %0 = vector.load %arg1[%c0, %c0_0] : memref<8x1024xbf16, #tpu.memory_space<vmem>>, vector<8x1024xbf16>
    %1 = arith.extf %0 : vector<8x1024xbf16> to vector<8x1024xf32>
    %c0_1 = arith.constant 0 : index
    %c0_2 = arith.constant 0 : index
    %2 = vector.load %arg2[%c0_1, %c0_2] : memref<1x1024xf32, #tpu.memory_space<vmem>>, vector<1x1024xf32>
    %3 = vector.broadcast %2 : vector<1x1024xf32> to vector<8x1024xf32>
    %4 = arith.mulf %1, %3 : vector<8x1024xf32>
    %c0_3 = arith.constant 0 : index
    %c0_4 = arith.constant 0 : index
    %5 = vector.load %arg3[%c0_3, %c0_4] : memref<1x1024xf32, #tpu.memory_space<vmem>>, vector<1x1024xf32>
    %6 = vector.broadcast %5 : vector<1x1024xf32> to vector<8x1024xf32>
    %7 = arith.addf %4, %6 : vector<8x1024xf32>
    %cst = arith.constant 0.000000e+00 : f32
    %8 = vector.broadcast %cst : f32 to vector<8x1024xf32>
    %9 = arith.maximumf %7, %8 : vector<8x1024xf32>
    %10 = arith.truncf %9 : vector<8x1024xf32> to vector<8x1024xbf16>
    %c0_5 = arith.constant 0 : index
    %c0_6 = arith.constant 0 : index
    %11 = vector.load %arg4[%c0_5, %c0_6] : memref<8x1024xbf16, #tpu.memory_space<vmem>>, vector<8x1024xbf16>
    tpu.vector_store %arg4[%c0_5, %c0_6], %10 {strides = array<i32>} : memref<8x1024xbf16, #tpu.memory_space<vmem>>, vector<8x1024xbf16>,
    return
  }
  func.func @transform_0(%arg0: i32) -> (i32, i32) {
    %c0_i32 = arith.constant 0 : i32
    %c0_i32_0 = arith.constant 0 : i32
    return %arg0, %c0_i32 : i32, i32
  }
  func.func @transform_1(%arg0: i32) -> (i32, i32) {
    %c0_i32 = arith.constant 0 : i32
    %c0_i32_0 = arith.constant 0 : i32
    %c0_i32_1 = arith.constant 0 : i32
    return %c0_i32, %c0_i32_0 : i32, i32
  }
  func.func @transform_2(%arg0: i32) -> (i32, i32) {
    %c0_i32 = arith.constant 0 : i32
    %c0_i32_0 = arith.constant 0 : i32
    %c0_i32_1 = arith.constant 0 : i32
    return %c0_i32, %c0_i32_0 : i32, i32
  }
  func.func @transform_3(%arg0: i32) -> (i32, i32) {
    %c0_i32 = arith.constant 0 : i32
    %c0_i32_0 = arith.constant 0 : i32
    return %arg0, %c0_i32 : i32, i32
  }
}

module attributes {stable_mosaic.version = 11 : i64} {
  func.func @_matmul_stats_kernel(%arg0: i32, %arg1: i32, %arg2: memref<1x32x256xbf16, #tpu.memory_space<vmem>>, %arg3: memref<1x256x128xbf16, #tpu.memory_space<vmem>>, %arg4: memref<1x32x128xbf16, #tpu.memory_space<vmem>>, %arg5: memref<1x8x128xf32, #tpu.memory_space<vmem>>, %arg6: memref<1x8x128xf32, #tpu.memory_space<vmem>>) attributes {dimension_semantics = [#tpu.dimension_semantics<parallel>, #tpu.dimension_semantics<arbitrary>], iteration_bounds = array<i64: 4, 1>, scalar_prefetch = 0 : i64, scratch_operands = 0 : i64, tpu.core_type = #tpu.core_type<tc>, window_params = [{transform_indices = @transform_0, window_bounds = array<i64: 1, 32, 256>}, {transform_indices = @transform_1, window_bounds = array<i64: 1, 256, 128>}, {transform_indices = @transform_2, window_bounds = array<i64: 1, 32, 128>}, {transform_indices = @transform_3, window_bounds = array<i64: 1, 8, 128>}, {transform_indices = @transform_4, window_bounds = array<i64: 1, 8, 128>}]} {
    %c0_i32 = arith.constant 0 : i32
    %0 = arith.cmpi eq, %arg1, %c0_i32 : i32
    %1 = arith.extui %0 : i1 to i32
    %c0_i32_0 = arith.constant 0 : i32
    %2 = arith.cmpi ne, %1, %c0_i32_0 : i32
    scf.if %2 {
      %cst_23 = arith.constant 0.000000e+00 : f32
      %33 = vector.broadcast %cst_23 : f32 to vector<8x128xf32>
      %c0_24 = arith.constant 0 : index
      %c0_25 = arith.constant 0 : index
      %c0_26 = arith.constant 0 : index
      %34 = vector.load %arg5[%c0_24, %c0_25, %c0_26] : memref<1x8x128xf32, #tpu.memory_space<vmem>>, vector<1x8x128xf32>
      %35 = vector.shape_cast %34 : vector<1x8x128xf32> to vector<8x128xf32>
      %36 = vector.shape_cast %33 : vector<8x128xf32> to vector<1x8x128xf32>
      tpu.vector_store %arg5[%c0_24, %c0_25, %c0_26], %36 {strides = array<i32>} : memref<1x8x128xf32, #tpu.memory_space<vmem>>, vector<1x8x128xf32>,
      %cst_27 = arith.constant 0.000000e+00 : f32
      %37 = vector.broadcast %cst_27 : f32 to vector<8x128xf32>
      %c0_28 = arith.constant 0 : index
      %c0_29 = arith.constant 0 : index
      %c0_30 = arith.constant 0 : index
      %38 = vector.load %arg6[%c0_28, %c0_29, %c0_30] : memref<1x8x128xf32, #tpu.memory_space<vmem>>, vector<1x8x128xf32>
      %39 = vector.shape_cast %38 : vector<1x8x128xf32> to vector<8x128xf32>
      %40 = vector.shape_cast %37 : vector<8x128xf32> to vector<1x8x128xf32>
      tpu.vector_store %arg6[%c0_28, %c0_29, %c0_30], %40 {strides = array<i32>} : memref<1x8x128xf32, #tpu.memory_space<vmem>>, vector<1x8x128xf32>,
    } else {
    }
    %c0 = arith.constant 0 : index
    %c0_1 = arith.constant 0 : index
    %c0_2 = arith.constant 0 : index
    %3 = vector.load %arg2[%c0, %c0_1, %c0_2] : memref<1x32x256xbf16, #tpu.memory_space<vmem>>, vector<1x32x256xbf16>
    %4 = vector.shape_cast %3 : vector<1x32x256xbf16> to vector<32x256xbf16>
    %c0_3 = arith.constant 0 : index
    %c0_4 = arith.constant 0 : index
    %c0_5 = arith.constant 0 : index
    %5 = vector.load %arg3[%c0_3, %c0_4, %c0_5] : memref<1x256x128xbf16, #tpu.memory_space<vmem>>, vector<1x256x128xbf16>
    %6 = vector.shape_cast %5 : vector<1x256x128xbf16> to vector<256x128xbf16>
    %cst = arith.constant dense<0.000000e+00> : vector<32x128xf32>
    %7 = tpu.matmul %4, %6, %cst {dimension_numbers = #tpu.dot_dimension_numbers<[1], [0], [0], [1], [0, 0, 1, 1], [], []>} : vector<32x256xbf16>, vector<256x128xbf16>, vector<32x128xf32> -> vector<32x128xf32>
    %8 = arith.truncf %7 : vector<32x128xf32> to vector<32x128xbf16>
    %c0_6 = arith.constant 0 : index
    %c0_7 = arith.constant 0 : index
    %c0_8 = arith.constant 0 : index
    %9 = vector.load %arg4[%c0_6, %c0_7, %c0_8] : memref<1x32x128xbf16, #tpu.memory_space<vmem>>, vector<1x32x128xbf16>
    %10 = vector.shape_cast %9 : vector<1x32x128xbf16> to vector<32x128xbf16>
    %11 = vector.shape_cast %8 : vector<32x128xbf16> to vector<1x32x128xbf16>
    tpu.vector_store %arg4[%c0_6, %c0_7, %c0_8], %11 {strides = array<i32>} : memref<1x32x128xbf16, #tpu.memory_space<vmem>>, vector<1x32x128xbf16>,
    %c0_9 = arith.constant 0 : index
    %c0_10 = arith.constant 0 : index
    %c0_11 = arith.constant 0 : index
    %12 = vector.load %arg5[%c0_9, %c0_10, %c0_11] : memref<1x8x128xf32, #tpu.memory_space<vmem>>, vector<1x8x128xf32>
    %13 = vector.shape_cast %12 : vector<1x8x128xf32> to vector<8x128xf32>
    %cst_12 = arith.constant dense<0.000000e+00> : vector<128xf32>
    %14 = vector.multi_reduction <add>, %7, %cst_12 [0] : vector<32x128xf32> to vector<128xf32>
    %15 = vector.shape_cast %14 : vector<128xf32> to vector<1x128xf32>
    %16 = vector.shape_cast %15 : vector<1x128xf32> to vector<1x128xf32>
    %17 = vector.broadcast %16 : vector<1x128xf32> to vector<8x128xf32>
    %18 = arith.addf %13, %17 : vector<8x128xf32>
    %c0_13 = arith.constant 0 : index
    %c0_14 = arith.constant 0 : index
    %c0_15 = arith.constant 0 : index
    %19 = vector.load %arg5[%c0_13, %c0_14, %c0_15] : memref<1x8x128xf32, #tpu.memory_space<vmem>>, vector<1x8x128xf32>
    %20 = vector.shape_cast %19 : vector<1x8x128xf32> to vector<8x128xf32>
    %21 = vector.shape_cast %18 : vector<8x128xf32> to vector<1x8x128xf32>
    tpu.vector_store %arg5[%c0_13, %c0_14, %c0_15], %21 {strides = array<i32>} : memref<1x8x128xf32, #tpu.memory_space<vmem>>, vector<1x8x128xf32>,
    %c0_16 = arith.constant 0 : index
    %c0_17 = arith.constant 0 : index
    %c0_18 = arith.constant 0 : index
    %22 = vector.load %arg6[%c0_16, %c0_17, %c0_18] : memref<1x8x128xf32, #tpu.memory_space<vmem>>, vector<1x8x128xf32>
    %23 = vector.shape_cast %22 : vector<1x8x128xf32> to vector<8x128xf32>
    %24 = arith.mulf %7, %7 : vector<32x128xf32>
    %cst_19 = arith.constant dense<0.000000e+00> : vector<128xf32>
    %25 = vector.multi_reduction <add>, %24, %cst_19 [0] : vector<32x128xf32> to vector<128xf32>
    %26 = vector.shape_cast %25 : vector<128xf32> to vector<1x128xf32>
    %27 = vector.shape_cast %26 : vector<1x128xf32> to vector<1x128xf32>
    %28 = vector.broadcast %27 : vector<1x128xf32> to vector<8x128xf32>
    %29 = arith.addf %23, %28 : vector<8x128xf32>
    %c0_20 = arith.constant 0 : index
    %c0_21 = arith.constant 0 : index
    %c0_22 = arith.constant 0 : index
    %30 = vector.load %arg6[%c0_20, %c0_21, %c0_22] : memref<1x8x128xf32, #tpu.memory_space<vmem>>, vector<1x8x128xf32>
    %31 = vector.shape_cast %30 : vector<1x8x128xf32> to vector<8x128xf32>
    %32 = vector.shape_cast %29 : vector<8x128xf32> to vector<1x8x128xf32>
    tpu.vector_store %arg6[%c0_20, %c0_21, %c0_22], %32 {strides = array<i32>} : memref<1x8x128xf32, #tpu.memory_space<vmem>>, vector<1x8x128xf32>,
    return
  }
  func.func @transform_0(%arg0: i32, %arg1: i32) -> (i32, i32, i32) {
    %c0_i32 = arith.constant 0 : i32
    %c0_i32_0 = arith.constant 0 : i32
    return %arg0, %arg1, %c0_i32 : i32, i32, i32
  }
  func.func @transform_1(%arg0: i32, %arg1: i32) -> (i32, i32, i32) {
    %c0_i32 = arith.constant 0 : i32
    %c0_i32_0 = arith.constant 0 : i32
    %c0_i32_1 = arith.constant 0 : i32
    return %arg0, %c0_i32, %c0_i32_0 : i32, i32, i32
  }
  func.func @transform_2(%arg0: i32, %arg1: i32) -> (i32, i32, i32) {
    %c0_i32 = arith.constant 0 : i32
    %c0_i32_0 = arith.constant 0 : i32
    return %arg0, %arg1, %c0_i32 : i32, i32, i32
  }
  func.func @transform_3(%arg0: i32, %arg1: i32) -> (i32, i32, i32) {
    %c0_i32 = arith.constant 0 : i32
    %c0_i32_0 = arith.constant 0 : i32
    %c0_i32_1 = arith.constant 0 : i32
    return %arg0, %c0_i32, %c0_i32_0 : i32, i32, i32
  }
  func.func @transform_4(%arg0: i32, %arg1: i32) -> (i32, i32, i32) {
    %c0_i32 = arith.constant 0 : i32
    %c0_i32_0 = arith.constant 0 : i32
    %c0_i32_1 = arith.constant 0 : i32
    return %arg0, %c0_i32, %c0_i32_0 : i32, i32, i32
  }
}

module attributes {stable_mosaic.version = 11 : i64} {
  func.func @_bn_relu_kernel(%arg0: i32, %arg1: memref<32x128xbf16, #tpu.memory_space<vmem>>, %arg2: memref<1x128xf32, #tpu.memory_space<vmem>>, %arg3: memref<1x128xf32, #tpu.memory_space<vmem>>, %arg4: memref<32x128xbf16, #tpu.memory_space<vmem>>) attributes {dimension_semantics = [#tpu.dimension_semantics<parallel>], iteration_bounds = array<i64: 4>, scalar_prefetch = 0 : i64, scratch_operands = 0 : i64, tpu.core_type = #tpu.core_type<tc>, window_params = [{transform_indices = @transform_0, window_bounds = array<i64: 32, 128>}, {pipeline_mode = #tpu.pipeline_mode<synchronous>, transform_indices = @transform_1, window_bounds = array<i64: 1, 128>}, {pipeline_mode = #tpu.pipeline_mode<synchronous>, transform_indices = @transform_2, window_bounds = array<i64: 1, 128>}, {transform_indices = @transform_3, window_bounds = array<i64: 32, 128>}]} {
    %c0 = arith.constant 0 : index
    %c0_0 = arith.constant 0 : index
    %0 = vector.load %arg1[%c0, %c0_0] : memref<32x128xbf16, #tpu.memory_space<vmem>>, vector<32x128xbf16>
    %1 = arith.extf %0 : vector<32x128xbf16> to vector<32x128xf32>
    %c0_1 = arith.constant 0 : index
    %c0_2 = arith.constant 0 : index
    %2 = vector.load %arg2[%c0_1, %c0_2] : memref<1x128xf32, #tpu.memory_space<vmem>>, vector<1x128xf32>
    %3 = vector.broadcast %2 : vector<1x128xf32> to vector<32x128xf32>
    %4 = arith.mulf %1, %3 : vector<32x128xf32>
    %c0_3 = arith.constant 0 : index
    %c0_4 = arith.constant 0 : index
    %5 = vector.load %arg3[%c0_3, %c0_4] : memref<1x128xf32, #tpu.memory_space<vmem>>, vector<1x128xf32>
    %6 = vector.broadcast %5 : vector<1x128xf32> to vector<32x128xf32>
    %7 = arith.addf %4, %6 : vector<32x128xf32>
    %cst = arith.constant 0.000000e+00 : f32
    %8 = vector.broadcast %cst : f32 to vector<32x128xf32>
    %9 = arith.maximumf %7, %8 : vector<32x128xf32>
    %10 = arith.truncf %9 : vector<32x128xf32> to vector<32x128xbf16>
    %c0_5 = arith.constant 0 : index
    %c0_6 = arith.constant 0 : index
    %11 = vector.load %arg4[%c0_5, %c0_6] : memref<32x128xbf16, #tpu.memory_space<vmem>>, vector<32x128xbf16>
    tpu.vector_store %arg4[%c0_5, %c0_6], %10 {strides = array<i32>} : memref<32x128xbf16, #tpu.memory_space<vmem>>, vector<32x128xbf16>,
    return
  }
  func.func @transform_0(%arg0: i32) -> (i32, i32) {
    %c0_i32 = arith.constant 0 : i32
    %c0_i32_0 = arith.constant 0 : i32
    return %arg0, %c0_i32 : i32, i32
  }
  func.func @transform_1(%arg0: i32) -> (i32, i32) {
    %c0_i32 = arith.constant 0 : i32
    %c0_i32_0 = arith.constant 0 : i32
    %c0_i32_1 = arith.constant 0 : i32
    return %c0_i32, %c0_i32_0 : i32, i32
  }
  func.func @transform_2(%arg0: i32) -> (i32, i32) {
    %c0_i32 = arith.constant 0 : i32
    %c0_i32_0 = arith.constant 0 : i32
    %c0_i32_1 = arith.constant 0 : i32
    return %c0_i32, %c0_i32_0 : i32, i32
  }
  func.func @transform_3(%arg0: i32) -> (i32, i32) {
    %c0_i32 = arith.constant 0 : i32
    %c0_i32_0 = arith.constant 0 : i32
    return %arg0, %c0_i32 : i32, i32
  }
}

module attributes {stable_mosaic.version = 11 : i64} {
  func.func @_matmul_stats_kernel(%arg0: i32, %arg1: i32, %arg2: memref<1x128x128xbf16, #tpu.memory_space<vmem>>, %arg3: memref<1x128x128xbf16, #tpu.memory_space<vmem>>, %arg4: memref<1x128x128xbf16, #tpu.memory_space<vmem>>, %arg5: memref<1x8x128xf32, #tpu.memory_space<vmem>>, %arg6: memref<1x8x128xf32, #tpu.memory_space<vmem>>) attributes {dimension_semantics = [#tpu.dimension_semantics<parallel>, #tpu.dimension_semantics<arbitrary>], iteration_bounds = array<i64: 4, 1>, scalar_prefetch = 0 : i64, scratch_operands = 0 : i64, tpu.core_type = #tpu.core_type<tc>, window_params = [{transform_indices = @transform_0, window_bounds = array<i64: 1, 128, 128>}, {transform_indices = @transform_1, window_bounds = array<i64: 1, 128, 128>}, {transform_indices = @transform_2, window_bounds = array<i64: 1, 128, 128>}, {transform_indices = @transform_3, window_bounds = array<i64: 1, 8, 128>}, {transform_indices = @transform_4, window_bounds = array<i64: 1, 8, 128>}]} {
    %c0_i32 = arith.constant 0 : i32
    %0 = arith.cmpi eq, %arg1, %c0_i32 : i32
    %1 = arith.extui %0 : i1 to i32
    %c0_i32_0 = arith.constant 0 : i32
    %2 = arith.cmpi ne, %1, %c0_i32_0 : i32
    scf.if %2 {
      %cst_23 = arith.constant 0.000000e+00 : f32
      %33 = vector.broadcast %cst_23 : f32 to vector<8x128xf32>
      %c0_24 = arith.constant 0 : index
      %c0_25 = arith.constant 0 : index
      %c0_26 = arith.constant 0 : index
      %34 = vector.load %arg5[%c0_24, %c0_25, %c0_26] : memref<1x8x128xf32, #tpu.memory_space<vmem>>, vector<1x8x128xf32>
      %35 = vector.shape_cast %34 : vector<1x8x128xf32> to vector<8x128xf32>
      %36 = vector.shape_cast %33 : vector<8x128xf32> to vector<1x8x128xf32>
      tpu.vector_store %arg5[%c0_24, %c0_25, %c0_26], %36 {strides = array<i32>} : memref<1x8x128xf32, #tpu.memory_space<vmem>>, vector<1x8x128xf32>,
      %cst_27 = arith.constant 0.000000e+00 : f32
      %37 = vector.broadcast %cst_27 : f32 to vector<8x128xf32>
      %c0_28 = arith.constant 0 : index
      %c0_29 = arith.constant 0 : index
      %c0_30 = arith.constant 0 : index
      %38 = vector.load %arg6[%c0_28, %c0_29, %c0_30] : memref<1x8x128xf32, #tpu.memory_space<vmem>>, vector<1x8x128xf32>
      %39 = vector.shape_cast %38 : vector<1x8x128xf32> to vector<8x128xf32>
      %40 = vector.shape_cast %37 : vector<8x128xf32> to vector<1x8x128xf32>
      tpu.vector_store %arg6[%c0_28, %c0_29, %c0_30], %40 {strides = array<i32>} : memref<1x8x128xf32, #tpu.memory_space<vmem>>, vector<1x8x128xf32>,
    } else {
    }
    %c0 = arith.constant 0 : index
    %c0_1 = arith.constant 0 : index
    %c0_2 = arith.constant 0 : index
    %3 = vector.load %arg2[%c0, %c0_1, %c0_2] : memref<1x128x128xbf16, #tpu.memory_space<vmem>>, vector<1x128x128xbf16>
    %4 = vector.shape_cast %3 : vector<1x128x128xbf16> to vector<128x128xbf16>
    %c0_3 = arith.constant 0 : index
    %c0_4 = arith.constant 0 : index
    %c0_5 = arith.constant 0 : index
    %5 = vector.load %arg3[%c0_3, %c0_4, %c0_5] : memref<1x128x128xbf16, #tpu.memory_space<vmem>>, vector<1x128x128xbf16>
    %6 = vector.shape_cast %5 : vector<1x128x128xbf16> to vector<128x128xbf16>
    %cst = arith.constant dense<0.000000e+00> : vector<128x128xf32>
    %7 = tpu.matmul %4, %6, %cst {dimension_numbers = #tpu.dot_dimension_numbers<[1], [0], [0], [1], [0, 0, 1, 1], [], []>} : vector<128x128xbf16>, vector<128x128xbf16>, vector<128x128xf32> -> vector<128x128xf32>
    %8 = arith.truncf %7 : vector<128x128xf32> to vector<128x128xbf16>
    %c0_6 = arith.constant 0 : index
    %c0_7 = arith.constant 0 : index
    %c0_8 = arith.constant 0 : index
    %9 = vector.load %arg4[%c0_6, %c0_7, %c0_8] : memref<1x128x128xbf16, #tpu.memory_space<vmem>>, vector<1x128x128xbf16>
    %10 = vector.shape_cast %9 : vector<1x128x128xbf16> to vector<128x128xbf16>
    %11 = vector.shape_cast %8 : vector<128x128xbf16> to vector<1x128x128xbf16>
    tpu.vector_store %arg4[%c0_6, %c0_7, %c0_8], %11 {strides = array<i32>} : memref<1x128x128xbf16, #tpu.memory_space<vmem>>, vector<1x128x128xbf16>,
    %c0_9 = arith.constant 0 : index
    %c0_10 = arith.constant 0 : index
    %c0_11 = arith.constant 0 : index
    %12 = vector.load %arg5[%c0_9, %c0_10, %c0_11] : memref<1x8x128xf32, #tpu.memory_space<vmem>>, vector<1x8x128xf32>
    %13 = vector.shape_cast %12 : vector<1x8x128xf32> to vector<8x128xf32>
    %cst_12 = arith.constant dense<0.000000e+00> : vector<128xf32>
    %14 = vector.multi_reduction <add>, %7, %cst_12 [0] : vector<128x128xf32> to vector<128xf32>
    %15 = vector.shape_cast %14 : vector<128xf32> to vector<1x128xf32>
    %16 = vector.shape_cast %15 : vector<1x128xf32> to vector<1x128xf32>
    %17 = vector.broadcast %16 : vector<1x128xf32> to vector<8x128xf32>
    %18 = arith.addf %13, %17 : vector<8x128xf32>
    %c0_13 = arith.constant 0 : index
    %c0_14 = arith.constant 0 : index
    %c0_15 = arith.constant 0 : index
    %19 = vector.load %arg5[%c0_13, %c0_14, %c0_15] : memref<1x8x128xf32, #tpu.memory_space<vmem>>, vector<1x8x128xf32>
    %20 = vector.shape_cast %19 : vector<1x8x128xf32> to vector<8x128xf32>
    %21 = vector.shape_cast %18 : vector<8x128xf32> to vector<1x8x128xf32>
    tpu.vector_store %arg5[%c0_13, %c0_14, %c0_15], %21 {strides = array<i32>} : memref<1x8x128xf32, #tpu.memory_space<vmem>>, vector<1x8x128xf32>,
    %c0_16 = arith.constant 0 : index
    %c0_17 = arith.constant 0 : index
    %c0_18 = arith.constant 0 : index
    %22 = vector.load %arg6[%c0_16, %c0_17, %c0_18] : memref<1x8x128xf32, #tpu.memory_space<vmem>>, vector<1x8x128xf32>
    %23 = vector.shape_cast %22 : vector<1x8x128xf32> to vector<8x128xf32>
    %24 = arith.mulf %7, %7 : vector<128x128xf32>
    %cst_19 = arith.constant dense<0.000000e+00> : vector<128xf32>
    %25 = vector.multi_reduction <add>, %24, %cst_19 [0] : vector<128x128xf32> to vector<128xf32>
    %26 = vector.shape_cast %25 : vector<128xf32> to vector<1x128xf32>
    %27 = vector.shape_cast %26 : vector<1x128xf32> to vector<1x128xf32>
    %28 = vector.broadcast %27 : vector<1x128xf32> to vector<8x128xf32>
    %29 = arith.addf %23, %28 : vector<8x128xf32>
    %c0_20 = arith.constant 0 : index
    %c0_21 = arith.constant 0 : index
    %c0_22 = arith.constant 0 : index
    %30 = vector.load %arg6[%c0_20, %c0_21, %c0_22] : memref<1x8x128xf32, #tpu.memory_space<vmem>>, vector<1x8x128xf32>
    %31 = vector.shape_cast %30 : vector<1x8x128xf32> to vector<8x128xf32>
    %32 = vector.shape_cast %29 : vector<8x128xf32> to vector<1x8x128xf32>
    tpu.vector_store %arg6[%c0_20, %c0_21, %c0_22], %32 {strides = array<i32>} : memref<1x8x128xf32, #tpu.memory_space<vmem>>, vector<1x8x128xf32>,
    return
  }
  func.func @transform_0(%arg0: i32, %arg1: i32) -> (i32, i32, i32) {
    %c0_i32 = arith.constant 0 : i32
    %c0_i32_0 = arith.constant 0 : i32
    return %arg0, %arg1, %c0_i32 : i32, i32, i32
  }
  func.func @transform_1(%arg0: i32, %arg1: i32) -> (i32, i32, i32) {
    %c0_i32 = arith.constant 0 : i32
    %c0_i32_0 = arith.constant 0 : i32
    %c0_i32_1 = arith.constant 0 : i32
    return %arg0, %c0_i32, %c0_i32_0 : i32, i32, i32
  }
  func.func @transform_2(%arg0: i32, %arg1: i32) -> (i32, i32, i32) {
    %c0_i32 = arith.constant 0 : i32
    %c0_i32_0 = arith.constant 0 : i32
    return %arg0, %arg1, %c0_i32 : i32, i32, i32
  }
  func.func @transform_3(%arg0: i32, %arg1: i32) -> (i32, i32, i32) {
    %c0_i32 = arith.constant 0 : i32
    %c0_i32_0 = arith.constant 0 : i32
    %c0_i32_1 = arith.constant 0 : i32
    return %arg0, %c0_i32, %c0_i32_0 : i32, i32, i32
  }
  func.func @transform_4(%arg0: i32, %arg1: i32) -> (i32, i32, i32) {
    %c0_i32 = arith.constant 0 : i32
    %c0_i32_0 = arith.constant 0 : i32
    %c0_i32_1 = arith.constant 0 : i32
    return %arg0, %c0_i32, %c0_i32_0 : i32, i32, i32
  }
}

module attributes {stable_mosaic.version = 11 : i64} {
  func.func @_bn_relu_kernel(%arg0: i32, %arg1: memref<128x128xbf16, #tpu.memory_space<vmem>>, %arg2: memref<1x128xf32, #tpu.memory_space<vmem>>, %arg3: memref<1x128xf32, #tpu.memory_space<vmem>>, %arg4: memref<128x128xbf16, #tpu.memory_space<vmem>>) attributes {dimension_semantics = [#tpu.dimension_semantics<parallel>], iteration_bounds = array<i64: 4>, scalar_prefetch = 0 : i64, scratch_operands = 0 : i64, tpu.core_type = #tpu.core_type<tc>, window_params = [{transform_indices = @transform_0, window_bounds = array<i64: 128, 128>}, {pipeline_mode = #tpu.pipeline_mode<synchronous>, transform_indices = @transform_1, window_bounds = array<i64: 1, 128>}, {pipeline_mode = #tpu.pipeline_mode<synchronous>, transform_indices = @transform_2, window_bounds = array<i64: 1, 128>}, {transform_indices = @transform_3, window_bounds = array<i64: 128, 128>}]} {
    %c0 = arith.constant 0 : index
    %c0_0 = arith.constant 0 : index
    %0 = vector.load %arg1[%c0, %c0_0] : memref<128x128xbf16, #tpu.memory_space<vmem>>, vector<128x128xbf16>
    %1 = arith.extf %0 : vector<128x128xbf16> to vector<128x128xf32>
    %c0_1 = arith.constant 0 : index
    %c0_2 = arith.constant 0 : index
    %2 = vector.load %arg2[%c0_1, %c0_2] : memref<1x128xf32, #tpu.memory_space<vmem>>, vector<1x128xf32>
    %3 = vector.broadcast %2 : vector<1x128xf32> to vector<128x128xf32>
    %4 = arith.mulf %1, %3 : vector<128x128xf32>
    %c0_3 = arith.constant 0 : index
    %c0_4 = arith.constant 0 : index
    %5 = vector.load %arg3[%c0_3, %c0_4] : memref<1x128xf32, #tpu.memory_space<vmem>>, vector<1x128xf32>
    %6 = vector.broadcast %5 : vector<1x128xf32> to vector<128x128xf32>
    %7 = arith.addf %4, %6 : vector<128x128xf32>
    %cst = arith.constant 0.000000e+00 : f32
    %8 = vector.broadcast %cst : f32 to vector<128x128xf32>
    %9 = arith.maximumf %7, %8 : vector<128x128xf32>
    %10 = arith.truncf %9 : vector<128x128xf32> to vector<128x128xbf16>
    %c0_5 = arith.constant 0 : index
    %c0_6 = arith.constant 0 : index
    %11 = vector.load %arg4[%c0_5, %c0_6] : memref<128x128xbf16, #tpu.memory_space<vmem>>, vector<128x128xbf16>
    tpu.vector_store %arg4[%c0_5, %c0_6], %10 {strides = array<i32>} : memref<128x128xbf16, #tpu.memory_space<vmem>>, vector<128x128xbf16>,
    return
  }
  func.func @transform_0(%arg0: i32) -> (i32, i32) {
    %c0_i32 = arith.constant 0 : i32
    %c0_i32_0 = arith.constant 0 : i32
    return %arg0, %c0_i32 : i32, i32
  }
  func.func @transform_1(%arg0: i32) -> (i32, i32) {
    %c0_i32 = arith.constant 0 : i32
    %c0_i32_0 = arith.constant 0 : i32
    %c0_i32_1 = arith.constant 0 : i32
    return %c0_i32, %c0_i32_0 : i32, i32
  }
  func.func @transform_2(%arg0: i32) -> (i32, i32) {
    %c0_i32 = arith.constant 0 : i32
    %c0_i32_0 = arith.constant 0 : i32
    %c0_i32_1 = arith.constant 0 : i32
    return %c0_i32, %c0_i32_0 : i32, i32
  }
  func.func @transform_3(%arg0: i32) -> (i32, i32) {
    %c0_i32 = arith.constant 0 : i32
    %c0_i32_0 = arith.constant 0 : i32
    return %arg0, %c0_i32 : i32, i32
  }
}

module attributes {stable_mosaic.version = 11 : i64} {
  func.func @_matmul_stats_kernel(%arg0: i32, %arg1: i32, %arg2: memref<1x512x64xbf16, #tpu.memory_space<vmem>>, %arg3: memref<1x64x128xbf16, #tpu.memory_space<vmem>>, %arg4: memref<1x512x128xbf16, #tpu.memory_space<vmem>>, %arg5: memref<1x8x128xf32, #tpu.memory_space<vmem>>, %arg6: memref<1x8x128xf32, #tpu.memory_space<vmem>>) attributes {dimension_semantics = [#tpu.dimension_semantics<parallel>, #tpu.dimension_semantics<arbitrary>], iteration_bounds = array<i64: 4, 1>, scalar_prefetch = 0 : i64, scratch_operands = 0 : i64, tpu.core_type = #tpu.core_type<tc>, window_params = [{transform_indices = @transform_0, window_bounds = array<i64: 1, 512, 64>}, {transform_indices = @transform_1, window_bounds = array<i64: 1, 64, 128>}, {transform_indices = @transform_2, window_bounds = array<i64: 1, 512, 128>}, {transform_indices = @transform_3, window_bounds = array<i64: 1, 8, 128>}, {transform_indices = @transform_4, window_bounds = array<i64: 1, 8, 128>}]} {
    %c0_i32 = arith.constant 0 : i32
    %0 = arith.cmpi eq, %arg1, %c0_i32 : i32
    %1 = arith.extui %0 : i1 to i32
    %c0_i32_0 = arith.constant 0 : i32
    %2 = arith.cmpi ne, %1, %c0_i32_0 : i32
    scf.if %2 {
      %cst_23 = arith.constant 0.000000e+00 : f32
      %33 = vector.broadcast %cst_23 : f32 to vector<8x128xf32>
      %c0_24 = arith.constant 0 : index
      %c0_25 = arith.constant 0 : index
      %c0_26 = arith.constant 0 : index
      %34 = vector.load %arg5[%c0_24, %c0_25, %c0_26] : memref<1x8x128xf32, #tpu.memory_space<vmem>>, vector<1x8x128xf32>
      %35 = vector.shape_cast %34 : vector<1x8x128xf32> to vector<8x128xf32>
      %36 = vector.shape_cast %33 : vector<8x128xf32> to vector<1x8x128xf32>
      tpu.vector_store %arg5[%c0_24, %c0_25, %c0_26], %36 {strides = array<i32>} : memref<1x8x128xf32, #tpu.memory_space<vmem>>, vector<1x8x128xf32>,
      %cst_27 = arith.constant 0.000000e+00 : f32
      %37 = vector.broadcast %cst_27 : f32 to vector<8x128xf32>
      %c0_28 = arith.constant 0 : index
      %c0_29 = arith.constant 0 : index
      %c0_30 = arith.constant 0 : index
      %38 = vector.load %arg6[%c0_28, %c0_29, %c0_30] : memref<1x8x128xf32, #tpu.memory_space<vmem>>, vector<1x8x128xf32>
      %39 = vector.shape_cast %38 : vector<1x8x128xf32> to vector<8x128xf32>
      %40 = vector.shape_cast %37 : vector<8x128xf32> to vector<1x8x128xf32>
      tpu.vector_store %arg6[%c0_28, %c0_29, %c0_30], %40 {strides = array<i32>} : memref<1x8x128xf32, #tpu.memory_space<vmem>>, vector<1x8x128xf32>,
    } else {
    }
    %c0 = arith.constant 0 : index
    %c0_1 = arith.constant 0 : index
    %c0_2 = arith.constant 0 : index
    %3 = vector.load %arg2[%c0, %c0_1, %c0_2] : memref<1x512x64xbf16, #tpu.memory_space<vmem>>, vector<1x512x64xbf16>
    %4 = vector.shape_cast %3 : vector<1x512x64xbf16> to vector<512x64xbf16>
    %c0_3 = arith.constant 0 : index
    %c0_4 = arith.constant 0 : index
    %c0_5 = arith.constant 0 : index
    %5 = vector.load %arg3[%c0_3, %c0_4, %c0_5] : memref<1x64x128xbf16, #tpu.memory_space<vmem>>, vector<1x64x128xbf16>
    %6 = vector.shape_cast %5 : vector<1x64x128xbf16> to vector<64x128xbf16>
    %cst = arith.constant dense<0.000000e+00> : vector<512x128xf32>
    %7 = tpu.matmul %4, %6, %cst {dimension_numbers = #tpu.dot_dimension_numbers<[1], [0], [0], [1], [0, 0, 1, 1], [], []>} : vector<512x64xbf16>, vector<64x128xbf16>, vector<512x128xf32> -> vector<512x128xf32>
    %8 = arith.truncf %7 : vector<512x128xf32> to vector<512x128xbf16>
    %c0_6 = arith.constant 0 : index
    %c0_7 = arith.constant 0 : index
    %c0_8 = arith.constant 0 : index
    %9 = vector.load %arg4[%c0_6, %c0_7, %c0_8] : memref<1x512x128xbf16, #tpu.memory_space<vmem>>, vector<1x512x128xbf16>
    %10 = vector.shape_cast %9 : vector<1x512x128xbf16> to vector<512x128xbf16>
    %11 = vector.shape_cast %8 : vector<512x128xbf16> to vector<1x512x128xbf16>
    tpu.vector_store %arg4[%c0_6, %c0_7, %c0_8], %11 {strides = array<i32>} : memref<1x512x128xbf16, #tpu.memory_space<vmem>>, vector<1x512x128xbf16>,
    %c0_9 = arith.constant 0 : index
    %c0_10 = arith.constant 0 : index
    %c0_11 = arith.constant 0 : index
    %12 = vector.load %arg5[%c0_9, %c0_10, %c0_11] : memref<1x8x128xf32, #tpu.memory_space<vmem>>, vector<1x8x128xf32>
    %13 = vector.shape_cast %12 : vector<1x8x128xf32> to vector<8x128xf32>
    %cst_12 = arith.constant dense<0.000000e+00> : vector<128xf32>
    %14 = vector.multi_reduction <add>, %7, %cst_12 [0] : vector<512x128xf32> to vector<128xf32>
    %15 = vector.shape_cast %14 : vector<128xf32> to vector<1x128xf32>
    %16 = vector.shape_cast %15 : vector<1x128xf32> to vector<1x128xf32>
    %17 = vector.broadcast %16 : vector<1x128xf32> to vector<8x128xf32>
    %18 = arith.addf %13, %17 : vector<8x128xf32>
    %c0_13 = arith.constant 0 : index
    %c0_14 = arith.constant 0 : index
    %c0_15 = arith.constant 0 : index
    %19 = vector.load %arg5[%c0_13, %c0_14, %c0_15] : memref<1x8x128xf32, #tpu.memory_space<vmem>>, vector<1x8x128xf32>
    %20 = vector.shape_cast %19 : vector<1x8x128xf32> to vector<8x128xf32>
    %21 = vector.shape_cast %18 : vector<8x128xf32> to vector<1x8x128xf32>
    tpu.vector_store %arg5[%c0_13, %c0_14, %c0_15], %21 {strides = array<i32>} : memref<1x8x128xf32, #tpu.memory_space<vmem>>, vector<1x8x128xf32>,
    %c0_16 = arith.constant 0 : index
    %c0_17 = arith.constant 0 : index
    %c0_18 = arith.constant 0 : index
    %22 = vector.load %arg6[%c0_16, %c0_17, %c0_18] : memref<1x8x128xf32, #tpu.memory_space<vmem>>, vector<1x8x128xf32>
    %23 = vector.shape_cast %22 : vector<1x8x128xf32> to vector<8x128xf32>
    %24 = arith.mulf %7, %7 : vector<512x128xf32>
    %cst_19 = arith.constant dense<0.000000e+00> : vector<128xf32>
    %25 = vector.multi_reduction <add>, %24, %cst_19 [0] : vector<512x128xf32> to vector<128xf32>
    %26 = vector.shape_cast %25 : vector<128xf32> to vector<1x128xf32>
    %27 = vector.shape_cast %26 : vector<1x128xf32> to vector<1x128xf32>
    %28 = vector.broadcast %27 : vector<1x128xf32> to vector<8x128xf32>
    %29 = arith.addf %23, %28 : vector<8x128xf32>
    %c0_20 = arith.constant 0 : index
    %c0_21 = arith.constant 0 : index
    %c0_22 = arith.constant 0 : index
    %30 = vector.load %arg6[%c0_20, %c0_21, %c0_22] : memref<1x8x128xf32, #tpu.memory_space<vmem>>, vector<1x8x128xf32>
    %31 = vector.shape_cast %30 : vector<1x8x128xf32> to vector<8x128xf32>
    %32 = vector.shape_cast %29 : vector<8x128xf32> to vector<1x8x128xf32>
    tpu.vector_store %arg6[%c0_20, %c0_21, %c0_22], %32 {strides = array<i32>} : memref<1x8x128xf32, #tpu.memory_space<vmem>>, vector<1x8x128xf32>,
    return
  }
  func.func @transform_0(%arg0: i32, %arg1: i32) -> (i32, i32, i32) {
    %c0_i32 = arith.constant 0 : i32
    %c0_i32_0 = arith.constant 0 : i32
    return %arg0, %arg1, %c0_i32 : i32, i32, i32
  }
  func.func @transform_1(%arg0: i32, %arg1: i32) -> (i32, i32, i32) {
    %c0_i32 = arith.constant 0 : i32
    %c0_i32_0 = arith.constant 0 : i32
    %c0_i32_1 = arith.constant 0 : i32
    return %arg0, %c0_i32, %c0_i32_0 : i32, i32, i32
  }
  func.func @transform_2(%arg0: i32, %arg1: i32) -> (i32, i32, i32) {
    %c0_i32 = arith.constant 0 : i32
    %c0_i32_0 = arith.constant 0 : i32
    return %arg0, %arg1, %c0_i32 : i32, i32, i32
  }
  func.func @transform_3(%arg0: i32, %arg1: i32) -> (i32, i32, i32) {
    %c0_i32 = arith.constant 0 : i32
    %c0_i32_0 = arith.constant 0 : i32
    %c0_i32_1 = arith.constant 0 : i32
    return %arg0, %c0_i32, %c0_i32_0 : i32, i32, i32
  }
  func.func @transform_4(%arg0: i32, %arg1: i32) -> (i32, i32, i32) {
    %c0_i32 = arith.constant 0 : i32
    %c0_i32_0 = arith.constant 0 : i32
    %c0_i32_1 = arith.constant 0 : i32
    return %arg0, %c0_i32, %c0_i32_0 : i32, i32, i32
  }
}

module attributes {stable_mosaic.version = 11 : i64} {
  func.func @_bn_relu_kernel(%arg0: i32, %arg1: memref<512x128xbf16, #tpu.memory_space<vmem>>, %arg2: memref<1x128xf32, #tpu.memory_space<vmem>>, %arg3: memref<1x128xf32, #tpu.memory_space<vmem>>, %arg4: memref<512x128xbf16, #tpu.memory_space<vmem>>) attributes {dimension_semantics = [#tpu.dimension_semantics<parallel>], iteration_bounds = array<i64: 4>, scalar_prefetch = 0 : i64, scratch_operands = 0 : i64, tpu.core_type = #tpu.core_type<tc>, window_params = [{transform_indices = @transform_0, window_bounds = array<i64: 512, 128>}, {pipeline_mode = #tpu.pipeline_mode<synchronous>, transform_indices = @transform_1, window_bounds = array<i64: 1, 128>}, {pipeline_mode = #tpu.pipeline_mode<synchronous>, transform_indices = @transform_2, window_bounds = array<i64: 1, 128>}, {transform_indices = @transform_3, window_bounds = array<i64: 512, 128>}]} {
    %c0 = arith.constant 0 : index
    %c0_0 = arith.constant 0 : index
    %0 = vector.load %arg1[%c0, %c0_0] : memref<512x128xbf16, #tpu.memory_space<vmem>>, vector<512x128xbf16>
    %1 = arith.extf %0 : vector<512x128xbf16> to vector<512x128xf32>
    %c0_1 = arith.constant 0 : index
    %c0_2 = arith.constant 0 : index
    %2 = vector.load %arg2[%c0_1, %c0_2] : memref<1x128xf32, #tpu.memory_space<vmem>>, vector<1x128xf32>
    %3 = vector.broadcast %2 : vector<1x128xf32> to vector<512x128xf32>
    %4 = arith.mulf %1, %3 : vector<512x128xf32>
    %c0_3 = arith.constant 0 : index
    %c0_4 = arith.constant 0 : index
    %5 = vector.load %arg3[%c0_3, %c0_4] : memref<1x128xf32, #tpu.memory_space<vmem>>, vector<1x128xf32>
    %6 = vector.broadcast %5 : vector<1x128xf32> to vector<512x128xf32>
    %7 = arith.addf %4, %6 : vector<512x128xf32>
    %cst = arith.constant 0.000000e+00 : f32
    %8 = vector.broadcast %cst : f32 to vector<512x128xf32>
    %9 = arith.maximumf %7, %8 : vector<512x128xf32>
    %10 = arith.truncf %9 : vector<512x128xf32> to vector<512x128xbf16>
    %c0_5 = arith.constant 0 : index
    %c0_6 = arith.constant 0 : index
    %11 = vector.load %arg4[%c0_5, %c0_6] : memref<512x128xbf16, #tpu.memory_space<vmem>>, vector<512x128xbf16>
    tpu.vector_store %arg4[%c0_5, %c0_6], %10 {strides = array<i32>} : memref<512x128xbf16, #tpu.memory_space<vmem>>, vector<512x128xbf16>,
    return
  }
  func.func @transform_0(%arg0: i32) -> (i32, i32) {
    %c0_i32 = arith.constant 0 : i32
    %c0_i32_0 = arith.constant 0 : i32
    return %arg0, %c0_i32 : i32, i32
  }
  func.func @transform_1(%arg0: i32) -> (i32, i32) {
    %c0_i32 = arith.constant 0 : i32
    %c0_i32_0 = arith.constant 0 : i32
    %c0_i32_1 = arith.constant 0 : i32
    return %c0_i32, %c0_i32_0 : i32, i32
  }
  func.func @transform_2(%arg0: i32) -> (i32, i32) {
    %c0_i32 = arith.constant 0 : i32
    %c0_i32_0 = arith.constant 0 : i32
    %c0_i32_1 = arith.constant 0 : i32
    return %c0_i32, %c0_i32_0 : i32, i32
  }
  func.func @transform_3(%arg0: i32) -> (i32, i32) {
    %c0_i32 = arith.constant 0 : i32
    %c0_i32_0 = arith.constant 0 : i32
    return %arg0, %c0_i32 : i32, i32
  }
}

module attributes {stable_mosaic.version = 11 : i64} {
  func.func @_matmul_kernel(%arg0: i32, %arg1: i32, %arg2: memref<1x1024x32xbf16, #tpu.memory_space<vmem>>, %arg3: memref<1x32x128xbf16, #tpu.memory_space<vmem>>, %arg4: memref<1x1024x128xbf16, #tpu.memory_space<vmem>>) attributes {dimension_semantics = [#tpu.dimension_semantics<parallel>, #tpu.dimension_semantics<parallel>], iteration_bounds = array<i64: 4, 2>, scalar_prefetch = 0 : i64, scratch_operands = 0 : i64, tpu.core_type = #tpu.core_type<tc>, window_params = [{transform_indices = @transform_0, window_bounds = array<i64: 1, 1024, 32>}, {transform_indices = @transform_1, window_bounds = array<i64: 1, 32, 128>}, {transform_indices = @transform_2, window_bounds = array<i64: 1, 1024, 128>}]} {
    %c0 = arith.constant 0 : index
    %c0_0 = arith.constant 0 : index
    %c0_1 = arith.constant 0 : index
    %0 = vector.load %arg2[%c0, %c0_0, %c0_1] : memref<1x1024x32xbf16, #tpu.memory_space<vmem>>, vector<1x1024x32xbf16>
    %1 = vector.shape_cast %0 : vector<1x1024x32xbf16> to vector<1024x32xbf16>
    %c0_2 = arith.constant 0 : index
    %c0_3 = arith.constant 0 : index
    %c0_4 = arith.constant 0 : index
    %2 = vector.load %arg3[%c0_2, %c0_3, %c0_4] : memref<1x32x128xbf16, #tpu.memory_space<vmem>>, vector<1x32x128xbf16>
    %3 = vector.shape_cast %2 : vector<1x32x128xbf16> to vector<32x128xbf16>
    %cst = arith.constant dense<0.000000e+00> : vector<1024x128xf32>
    %4 = tpu.matmul %1, %3, %cst {dimension_numbers = #tpu.dot_dimension_numbers<[1], [0], [0], [1], [0, 0, 1, 1], [], []>} : vector<1024x32xbf16>, vector<32x128xbf16>, vector<1024x128xf32> -> vector<1024x128xf32>
    %5 = arith.truncf %4 : vector<1024x128xf32> to vector<1024x128xbf16>
    %c0_5 = arith.constant 0 : index
    %c0_6 = arith.constant 0 : index
    %c0_7 = arith.constant 0 : index
    %6 = vector.load %arg4[%c0_5, %c0_6, %c0_7] : memref<1x1024x128xbf16, #tpu.memory_space<vmem>>, vector<1x1024x128xbf16>
    %7 = vector.shape_cast %6 : vector<1x1024x128xbf16> to vector<1024x128xbf16>
    %8 = vector.shape_cast %5 : vector<1024x128xbf16> to vector<1x1024x128xbf16>
    tpu.vector_store %arg4[%c0_5, %c0_6, %c0_7], %8 {strides = array<i32>} : memref<1x1024x128xbf16, #tpu.memory_space<vmem>>, vector<1x1024x128xbf16>,
    return
  }
  func.func @transform_0(%arg0: i32, %arg1: i32) -> (i32, i32, i32) {
    %c0_i32 = arith.constant 0 : i32
    %c0_i32_0 = arith.constant 0 : i32
    return %arg0, %arg1, %c0_i32 : i32, i32, i32
  }
  func.func @transform_1(%arg0: i32, %arg1: i32) -> (i32, i32, i32) {
    %c0_i32 = arith.constant 0 : i32
    %c0_i32_0 = arith.constant 0 : i32
    %c0_i32_1 = arith.constant 0 : i32
    return %arg0, %c0_i32, %c0_i32_0 : i32, i32, i32
  }
  func.func @transform_2(%arg0: i32, %arg1: i32) -> (i32, i32, i32) {
    %c0_i32 = arith.constant 0 : i32
    %c0_i32_0 = arith.constant 0 : i32
    return %arg0, %arg1, %c0_i32 : i32, i32, i32
  }
}

</mosaic_0001>

<llo_original>
// kernel: squeeze.9
$region0: #{squeeze.9}
  %s0 = inlined_call_operand.vmem [shape: f32[1024], index: 0, kind: input, shape index: {}]
  %s1 = inlined_call_operand.vmem [shape: f32[16,64], index: 1, kind: output, shape index: {}]
  %v2 = vld [vmem:[%s0] sm:$0xff]
  %vm3 = vcmask 523264
  %4 = vst.msk [vmem:[%s1] ss:$2 sm:$0xff] %vm3, %v2
  %v5 = vld [vmem:[%s0] sm:$0xff]
  %6 = vrot.lane.b32.xlu0 %v5, 64
  %v7 = vpop.permute.xlu0 %6
  %vm8 = vcmask 523264
  %s9 = scalar_lea.vmem %s1, 1
  %10 = vst.msk [vmem:[%s9] ss:$2 sm:$0xff] %vm8, %v7

// kernel: tile.18
$region0: #{tile.18}
  #allocation0 [shape = 's32[1]{0}', space=sflag, size = 0x4, scoped, tag = 'scoped memory for tile.18']
  %s0 = inlined_call_operand.vmem [shape: f32[64], index: 0, kind: input, shape index: {}]
  %s1 = inlined_call_operand.vmem [shape: f32[16,64], index: 1, kind: output, shape index: {}]
  // Predicated region
  $region2: #{tile.18} parent=0 // pred_check
    _
  $region3: #{tile.18} parent=0 // pred_check_branch
    %3 = sbr.rel (0) target = $region5
  $region4: #{tile.18} parent=0 // pred_region
    _
  $region5: #{tile.18} parent=0 // pred_fallthru
    _
  %v4 = vld [vmem:[%s0] ss:$0 sm:$0xff]
  %5 = vst [vmem:[%s1] sm:$0xff] %v4
  %s6 = scalar_lea.vmem %s1, 8
  %7 = vst [vmem:[%s6] sm:$0xff] %v4

// kernel: generator_forward.10
$region0: #{generator_forward.10}
  #allocation0 [shape = 'u32[]', space=smem, size = 0x4, offset = 0x4, fixed_abs, tag = 'smem constant byte address 0x4 - core index']
  #allocation1 [shape = 'u32[144,128]{1,0:T(1,128)}', space=vmem, size = 0x12000, scoped, tag = 'internal scratch']
  %s0 = inlined_call_operand.vmem [shape: bf16[8,1024], index: 0, kind: input, shape index: {}]
  %s1 = inlined_call_operand.vmem [shape: f32[1,1024], index: 1, kind: input, shape index: {}]
  %s2 = inlined_call_operand.vmem [shape: f32[1,1024], index: 2, kind: input, shape index: {}]
  %s3 = inlined_call_operand.vmem [shape: bf16[8,1024], index: 3, kind: output, shape index: {}]
  %s4 = sld [smem:[#allocation0]]
  $region22: #{generator_forward.10} parent=0
    _
  %s6 = ssub.s32 1, %s4
  %s7 = scalar_select 0, %s6, %s4
  // Predicated region
  $region2: #{generator_forward.10} parent=0 // pred_check
    _
  $region3: #{generator_forward.10} parent=0 // pred_check_branch
    %9 = sbr.rel (0) target = $region5
  $region4: #{generator_forward.10} parent=0 // pred_region
    _
  $region5: #{generator_forward.10} parent=0 // pred_fallthru
    _
  // Predicated region
  $region6: #{generator_forward.10} parent=0 // pred_check
    _
  $region7: #{generator_forward.10} parent=0 // pred_check_branch
    %11 = sbr.rel (0) target = $region9
  $region8: #{generator_forward.10} parent=0 // pred_region
    _
  $region9: #{generator_forward.10} parent=0 // pred_fallthru
    _
  // Predicated region
  $region10: #{generator_forward.10} parent=0 // pred_check
    _
  $region11: #{generator_forward.10} parent=0 // pred_check_branch
    %13 = sbr.rel (0) target = $region13
  $region12: #{generator_forward.10} parent=0 // pred_region
    _
  $region13: #{generator_forward.10} parent=0 // pred_fallthru
    _
  %v14 = vld [vmem:[%s0] sm:$0xff]
  %v15 = vld [vmem:[%s0 + $0x8] sm:$0xff]
  %v16 = vld [vmem:[%s0 + $0x10] sm:$0xff]
  %v17 = vld [vmem:[%s0 + $0x18] sm:$0xff]
  %v18 = vunpack.c.l.bf16 %v14
  %v19 = vunpack.c.h.bf16 %v14
  %v20 = vunpack.c.l.bf16 %v15
  %v21 = vunpack.c.h.bf16 %v15
  %v22 = vunpack.c.l.bf16 %v16
  %v23 = vunpack.c.h.bf16 %v16
  %v24 = vunpack.c.l.bf16 %v17
  %v25 = vunpack.c.h.bf16 %v17
  %v26 = vld [vmem:[%s1] sm:$0xff]
  %v28 = vlaneseq
  %v29 = vshrl.u32 %v28, 7
  %v30 = vsub.s32 0, %v29
  %v31 = vrot.slane %v26, %v30
  %v32 = vlaneseq
  %v33 = vshrl.u32 %v32, 7
  %v34 = vsub.s32 1, %v33
  %v35 = vrot.slane %v26, %v34
  %v36 = vlaneseq
  %v37 = vshrl.u32 %v36, 7
  %v38 = vsub.s32 2, %v37
  %v39 = vrot.slane %v26, %v38
  %v40 = vlaneseq
  %v41 = vshrl.u32 %v40, 7
  %v42 = vsub.s32 3, %v41
  %v43 = vrot.slane %v26, %v42
  %v44 = vlaneseq
  %v45 = vshrl.u32 %v44, 7
  %v46 = vsub.s32 4, %v45
  %v47 = vrot.slane %v26, %v46
  %v48 = vlaneseq
  %v49 = vshrl.u32 %v48, 7
  %v50 = vsub.s32 5, %v49
  %v51 = vrot.slane %v26, %v50
  %v52 = vlaneseq
  %v53 = vshrl.u32 %v52, 7
  %v54 = vsub.s32 6, %v53
  %v55 = vrot.slane %v26, %v54
  %v56 = vlaneseq
  %v57 = vshrl.u32 %v56, 7
  %v58 = vsub.s32 7, %v57
  %v59 = vrot.slane %v26, %v58
  %v68 = vmul.f32 %v18, %v31
  %v69 = vmul.f32 %v19, %v35
  %v70 = vmul.f32 %v20, %v39
  %v71 = vmul.f32 %v21, %v43
  %v72 = vmul.f32 %v22, %v47
  %v73 = vmul.f32 %v23, %v51
  %v74 = vmul.f32 %v24, %v55
  %v75 = vmul.f32 %v25, %v59
  %v76 = vld [vmem:[%s2] sm:$0xff]
  %v78 = vlaneseq
  %v79 = vshrl.u32 %v78, 7
  %v80 = vsub.s32 0, %v79
  %v81 = vrot.slane %v76, %v80
  %v82 = vlaneseq
  %v83 = vshrl.u32 %v82, 7
  %v84 = vsub.s32 1, %v83
  %v85 = vrot.slane %v76, %v84
  %v86 = vlaneseq
  %v87 = vshrl.u32 %v86, 7
  %v88 = vsub.s32 2, %v87
  %v89 = vrot.slane %v76, %v88
  %v90 = vlaneseq
  %v91 = vshrl.u32 %v90, 7
  %v92 = vsub.s32 3, %v91
  %v93 = vrot.slane %v76, %v92
  %v94 = vlaneseq
  %v95 = vshrl.u32 %v94, 7
  %v96 = vsub.s32 4, %v95
  %v97 = vrot.slane %v76, %v96
  %v98 = vlaneseq
  %v99 = vshrl.u32 %v98, 7
  %v100 = vsub.s32 5, %v99
  %v101 = vrot.slane %v76, %v100
  %v102 = vlaneseq
  %v103 = vshrl.u32 %v102, 7
  %v104 = vsub.s32 6, %v103
  %v105 = vrot.slane %v76, %v104
  %v106 = vlaneseq
  %v107 = vshrl.u32 %v106, 7
  %v108 = vsub.s32 7, %v107
  %v109 = vrot.slane %v76, %v108
  %v118 = vadd.f32 %v68, %v81
  %v119 = vadd.f32 %v69, %v85
  %v120 = vadd.f32 %v70, %v89
  %v121 = vadd.f32 %v71, %v93
  %v122 = vadd.f32 %v72, %v97
  %v123 = vadd.f32 %v73, %v101
  %v124 = vadd.f32 %v74, %v105
  %v125 = vadd.f32 %v75, %v109
  %v126 = vmax.f32 %v118, 0.0
  %v127 = vmax.f32 %v119, 0.0
  %v128 = vmax.f32 %v120, 0.0
  %v129 = vmax.f32 %v121, 0.0
  %v130 = vmax.f32 %v122, 0.0
  %v131 = vmax.f32 %v123, 0.0
  %v132 = vmax.f32 %v124, 0.0
  %v133 = vmax.f32 %v125, 0.0
  %v134 = vpack.c.bf16 %v126, %v126
  %v135 = vpack.c.bf16 %v127, %v127
  %v136 = vpack.c.bf16 %v128, %v128
  %v137 = vpack.c.bf16 %v129, %v129
  %v138 = vpack.c.bf16 %v130, %v130
  %v139 = vpack.c.bf16 %v131, %v131
  %v140 = vpack.c.bf16 %v132, %v132
  %v141 = vpack.c.bf16 %v133, %v133
  %v150 = vunpack.c.l.b16 %v134
  %v151 = vunpack.c.l.b16 %v135
  %v152 = vunpack.c.l.b16 %v136
  %v153 = vunpack.c.l.b16 %v137
  %v154 = vunpack.c.l.b16 %v138
  %v155 = vunpack.c.l.b16 %v139
  %v156 = vunpack.c.l.b16 %v140
  %v157 = vunpack.c.l.b16 %v141
  %v158 = vpack.c.b16 %v151, %v150
  %v159 = vpack.c.b16 %v153, %v152
  %v160 = vpack.c.b16 %v155, %v154
  %v161 = vpack.c.b16 %v157, %v156
  %166 = vst [vmem:[%s3] sm:$0xff] %v158
  %167 = vst [vmem:[%s3 + $0x8] sm:$0xff] %v159
  %168 = vst [vmem:[%s3 + $0x10] sm:$0xff] %v160
  %169 = vst [vmem:[%s3 + $0x18] sm:$0xff] %v161
  // Predicated region
  $region14: #{generator_forward.10} parent=0 // pred_check
    _
  $region15: #{generator_forward.10} parent=0 // pred_check_branch
    %171 = sbr.rel (0) target = $region17
  $region16: #{generator_forward.10} parent=0 // pred_region
    _
  $region17: #{generator_forward.10} parent=0 // pred_fallthru
    _
  // Predicated region
  $region18: #{generator_forward.10} parent=0 // pred_check
    _
  $region19: #{generator_forward.10} parent=0 // pred_check_branch
    %173 = sbr.rel (0) target = $region21
  $region20: #{generator_forward.10} parent=0 // pred_region
    _
  $region21: #{generator_forward.10} parent=0 // pred_fallthru
    _

// kernel: generator_forward.9
$region0: #{generator_forward.9}
  #allocation0 [shape = 'u32[]', space=smem, size = 0x4, offset = 0x4, fixed_abs, tag = 'smem constant byte address 0x4 - core index']
  #allocation1 [shape = 'u32[144,128]{1,0:T(1,128)}', space=vmem, size = 0x12000, scoped, tag = 'internal scratch']
  %s0 = inlined_call_operand.vmem [shape: bf16[1,8,32], index: 0, kind: input, shape index: {}]
  %s1 = inlined_call_operand.vmem [shape: bf16[1,32,1024], index: 1, kind: input, shape index: {}]
  %s2 = inlined_call_operand.vmem [shape: bf16[1,8,1024], index: 2, kind: output, shape index: {0}]
  %s3 = inlined_call_operand.vmem [shape: f32[1,8,1024], index: 3, kind: output, shape index: {1}]
  %s4 = inlined_call_operand.vmem [shape: f32[1,8,1024], index: 4, kind: output, shape index: {2}]
  %5 = xla_tuple %s2, %s3, %s4
  %s6 = sld [smem:[#allocation0]]
  $region38: #{generator_forward.9} parent=0
    _
  %s8 = ssub.s32 1, %s6
  %s9 = scalar_select 0, %s8, %s6
  // Predicated region
  $region2: #{generator_forward.9} parent=0 // pred_check
    _
  $region3: #{generator_forward.9} parent=0 // pred_check_branch
    %11 = sbr.rel (0) target = $region5
  $region4: #{generator_forward.9} parent=0 // pred_region
    _
  $region5: #{generator_forward.9} parent=0 // pred_fallthru
    _
  // Predicated region
  $region6: #{generator_forward.9} parent=0 // pred_check
    _
  $region7: #{generator_forward.9} parent=0 // pred_check_branch
    %13 = sbr.rel (0) target = $region9
  $region8: #{generator_forward.9} parent=0 // pred_region
    _
  $region9: #{generator_forward.9} parent=0 // pred_fallthru
    _
  %p15 = scmp.eq.s32.totalorder 0, 0
  // Predicated region
  $region10: #{generator_forward.9} parent=0 // pred_check
    %p16 = pneg %p15
  $region11: #{generator_forward.9} parent=0 // pred_check_branch
    %18 = sbr.rel (%p16) target = $region13
  $region12: #{generator_forward.9} parent=0 // pred_region
    %19 = vst [vmem:[%s3] sm:$0xff] 0.0
    %20 = vst [vmem:[%s3 + $0x8] sm:$0xff] 0.0
    %21 = vst [vmem:[%s3 + $0x10] sm:$0xff] 0.0
    %22 = vst [vmem:[%s3 + $0x18] sm:$0xff] 0.0
    %23 = vst [vmem:[%s3 + $0x20] sm:$0xff] 0.0
    %24 = vst [vmem:[%s3 + $0x28] sm:$0xff] 0.0
    %25 = vst [vmem:[%s3 + $0x30] sm:$0xff] 0.0
    %26 = vst [vmem:[%s3 + $0x38] sm:$0xff] 0.0
    %27 = vst [vmem:[%s4] sm:$0xff] 0.0
    %28 = vst [vmem:[%s4 + $0x8] sm:$0xff] 0.0
    %29 = vst [vmem:[%s4 + $0x10] sm:$0xff] 0.0
    %30 = vst [vmem:[%s4 + $0x18] sm:$0xff] 0.0
    %31 = vst [vmem:[%s4 + $0x20] sm:$0xff] 0.0
    %32 = vst [vmem:[%s4 + $0x28] sm:$0xff] 0.0
    %33 = vst [vmem:[%s4 + $0x30] sm:$0xff] 0.0
    %34 = vst [vmem:[%s4 + $0x38] sm:$0xff] 0.0
  $region13: #{generator_forward.9} parent=0 // pred_fallthru
    _
  %v35 = vld [vmem:[%s0] sm:$0xf]
  %v36 = vld [vmem:[%s1] sm:$0xff]
  %v37 = vld [vmem:[%s1 + $0x8] sm:$0xff]
  %v38 = vld [vmem:[%s1 + $0x10] sm:$0xff]
  %v39 = vld [vmem:[%s1 + $0x18] sm:$0xff]
  %v40 = vld [vmem:[%s1 + $0x20] sm:$0xff]
  %v41 = vld [vmem:[%s1 + $0x28] sm:$0xff]
  %v42 = vld [vmem:[%s1 + $0x30] sm:$0xff]
  %v43 = vld [vmem:[%s1 + $0x38] sm:$0xff]
  %v44 = vld [vmem:[%s1 + $0x40] sm:$0xff]
  %v45 = vld [vmem:[%s1 + $0x48] sm:$0xff]
  %v46 = vld [vmem:[%s1 + $0x50] sm:$0xff]
  %v47 = vld [vmem:[%s1 + $0x58] sm:$0xff]
  %v48 = vld [vmem:[%s1 + $0x60] sm:$0xff]
  %v49 = vld [vmem:[%s1 + $0x68] sm:$0xff]
  %v50 = vld [vmem:[%s1 + $0x70] sm:$0xff]
  %v51 = vld [vmem:[%s1 + $0x78] sm:$0xff]
  %v68 = vunpack.c.l.b16 %v36
  %v69 = vunpack.c.h.b16 %v36
  %v70 = vunpack.c.l.b16 %v37
  %v71 = vunpack.c.h.b16 %v37
  %v72 = vunpack.c.l.b16 %v38
  %v73 = vunpack.c.h.b16 %v38
  %v74 = vunpack.c.l.b16 %v39
  %v75 = vunpack.c.h.b16 %v39
  %v76 = vunpack.c.l.b16 %v40
  %v77 = vunpack.c.h.b16 %v40
  %v78 = vunpack.c.l.b16 %v41
  %v79 = vunpack.c.h.b16 %v41
  %v80 = vunpack.c.l.b16 %v42
  %v81 = vunpack.c.h.b16 %v42
  %v82 = vunpack.c.l.b16 %v43
  %v83 = vunpack.c.h.b16 %v43
  %v84 = vunpack.c.l.b16 %v44
  %v85 = vunpack.c.h.b16 %v44
  %v86 = vunpack.c.l.b16 %v45
  %v87 = vunpack.c.h.b16 %v45
  %v88 = vunpack.c.l.b16 %v46
  %v89 = vunpack.c.h.b16 %v46
  %v90 = vunpack.c.l.b16 %v47
  %v91 = vunpack.c.h.b16 %v47
  %v92 = vunpack.c.l.b16 %v48
  %v93 = vunpack.c.h.b16 %v48
  %v94 = vunpack.c.l.b16 %v49
  %v95 = vunpack.c.h.b16 %v49
  %v96 = vunpack.c.l.b16 %v50
  %v97 = vunpack.c.h.b16 %v50
  %v98 = vunpack.c.l.b16 %v51
  %v99 = vunpack.c.h.b16 %v51
  %v100 = vpack.c.b16 %v76, %v68
  %v101 = vpack.c.b16 %v77, %v69
  %v102 = vpack.c.b16 %v78, %v70
  %v103 = vpack.c.b16 %v79, %v71
  %v104 = vpack.c.b16 %v80, %v72
  %v105 = vpack.c.b16 %v81, %v73
  %v106 = vpack.c.b16 %v82, %v74
  %v107 = vpack.c.b16 %v83, %v75
  %v108 = vpack.c.b16 %v92, %v84
  %v109 = vpack.c.b16 %v93, %v85
  %v110 = vpack.c.b16 %v94, %v86
  %v111 = vpack.c.b16 %v95, %v87
  %v112 = vpack.c.b16 %v96, %v88
  %v113 = vpack.c.b16 %v97, %v89
  %v114 = vpack.c.b16 %v98, %v90
  %v115 = vpack.c.b16 %v99, %v91
  %vm132 = vcmask 261120
  %v134 = vsel %vm132, %v35, 0
  %136 = vmatprep.subr.bf16.mxu0 0
  %137 = vmatpush1.bf16.msra.mxu0 0
  %138 = vmatprep.subr.bf16.mxu0 0
  %139 = vmatpush1.bf16.msra.mxu0 0
  %140 = vmatprep.subr.bf16.mxu0 0
  %141 = vmatpush1.bf16.msra.mxu0 0
  %142 = vmatprep.subr.bf16.mxu0 0
  %143 = vmatpush1.bf16.msra.mxu0 0
  %144 = vmatprep.subr.bf16.mxu0 0
  %145 = vmatpush1.bf16.msra.mxu0 0
  %146 = vmatprep.subr.bf16.mxu0 0
  %147 = vmatpush1.bf16.msra.mxu0 0
  %148 = vmatprep.subr.bf16.mxu0 %v109
  %149 = vmatpush1.bf16.msra.mxu0 %v108
  %150 = vmatprep.subr.bf16.mxu0 %v101
  %151 = vmatpush1.bf16.msra.mxu0 %v100
  %152 = vmatprep.subr.bf16.mxu0 0
  %153 = vmatpush2.bf16.msra.mxu0 0
  %154 = vmatprep.subr.bf16.mxu0 0
  %155 = vmatpush2.bf16.msra.mxu0 0
  %156 = vmatprep.subr.bf16.mxu0 0
  %157 = vmatpush2.bf16.msra.mxu0 0
  %158 = vmatprep.subr.bf16.mxu0 0
  %159 = vmatpush2.bf16.msra.mxu0 0
  %160 = vmatprep.subr.bf16.mxu0 0
  %161 = vmatpush2.bf16.msra.mxu0 0
  %162 = vmatprep.subr.bf16.mxu0 0
  %163 = vmatpush2.bf16.msra.mxu0 0
  %164 = vmatprep.subr.bf16.mxu0 0
  %165 = vmatpush2.bf16.msra.mxu0 0
  %166 = vmatprep.subr.bf16.mxu0 0
  %167 = vmatpush2.bf16.msra.mxu0 0
  %168 = vmatprep.mubr.bf16.mxu0 0
  %169 = vmatmul.mubr.bf16.gmra.mxu0 %v134
  %v170 = vpop.f32.mrf.mxu0
  %v171 = vadd.f32 0.0, %v170
  %v172 = vpop.f32.mrf.mxu0
  %v173 = vadd.f32 0.0, %v172
  %v174 = vpop.f32.mrf.mxu0
  %v175 = vpop.f32.mrf.mxu0
  %176 = vdwg.mxu0
  %177 = vmatprep.subr.bf16.mxu0 0
  %178 = vmatpush1.bf16.msra.mxu0 0
  %179 = vmatprep.subr.bf16.mxu0 0
  %180 = vmatpush1.bf16.msra.mxu0 0
  %181 = vmatprep.subr.bf16.mxu0 0
  %182 = vmatpush1.bf16.msra.mxu0 0
  %183 = vmatprep.subr.bf16.mxu0 0
  %184 = vmatpush1.bf16.msra.mxu0 0
  %185 = vmatprep.subr.bf16.mxu0 0
  %186 = vmatpush1.bf16.msra.mxu0 0
  %187 = vmatprep.subr.bf16.mxu0 0
  %188 = vmatpush1.bf16.msra.mxu0 0
  %189 = vmatprep.subr.bf16.mxu0 %v111
  %190 = vmatpush1.bf16.msra.mxu0 %v110
  %191 = vmatprep.subr.bf16.mxu0 %v103
  %192 = vmatpush1.bf16.msra.mxu0 %v102
  %193 = vmatprep.subr.bf16.mxu0 0
  %194 = vmatpush2.bf16.msra.mxu0 0
  %195 = vmatprep.subr.bf16.mxu0 0
  %196 = vmatpush2.bf16.msra.mxu0 0
  %197 = vmatprep.subr.bf16.mxu0 0
  %198 = vmatpush2.bf16.msra.mxu0 0
  %199 = vmatprep.subr.bf16.mxu0 0
  %200 = vmatpush2.bf16.msra.mxu0 0
  %201 = vmatprep.subr.bf16.mxu0 0
  %202 = vmatpush2.bf16.msra.mxu0 0
  %203 = vmatprep.subr.bf16.mxu0 0
  %204 = vmatpush2.bf16.msra.mxu0 0
  %205 = vmatprep.subr.bf16.mxu0 0
  %206 = vmatpush2.bf16.msra.mxu0 0
  %207 = vmatprep.subr.bf16.mxu0 0
  %208 = vmatpush2.bf16.msra.mxu0 0
  %209 = vmatprep.mubr.bf16.mxu0 0
  %210 = vmatmul.mubr.bf16.gmra.mxu0 %v134
  %v211 = vpop.f32.mrf.mxu0
  %v212 = vadd.f32 0.0, %v211
  %v213 = vpop.f32.mrf.mxu0
  %v214 = vadd.f32 0.0, %v213
  %v215 = vpop.f32.mrf.mxu0
  %v216 = vpop.f32.mrf.mxu0
  %217 = vdwg.mxu0
  %218 = vmatprep.subr.bf16.mxu0 0
  %219 = vmatpush1.bf16.msra.mxu0 0
  %220 = vmatprep.subr.bf16.mxu0 0
  %221 = vmatpush1.bf16.msra.mxu0 0
  %222 = vmatprep.subr.bf16.mxu0 0
  %223 = vmatpush1.bf16.msra.mxu0 0
  %224 = vmatprep.subr.bf16.mxu0 0
  %225 = vmatpush1.bf16.msra.mxu0 0
  %226 = vmatprep.subr.bf16.mxu0 0
  %227 = vmatpush1.bf16.msra.mxu0 0
  %228 = vmatprep.subr.bf16.mxu0 0
  %229 = vmatpush1.bf16.msra.mxu0 0
  %230 = vmatprep.subr.bf16.mxu0 %v113
  %231 = vmatpush1.bf16.msra.mxu0 %v112
  %232 = vmatprep.subr.bf16.mxu0 %v105
  %233 = vmatpush1.bf16.msra.mxu0 %v104
  %234 = vmatprep.subr.bf16.mxu0 0
  %235 = vmatpush2.bf16.msra.mxu0 0
  %236 = vmatprep.subr.bf16.mxu0 0
  %237 = vmatpush2.bf16.msra.mxu0 0
  %238 = vmatprep.subr.bf16.mxu0 0
  %239 = vmatpush2.bf16.msra.mxu0 0
  %240 = vmatprep.subr.bf16.mxu0 0
  %241 = vmatpush2.bf16.msra.mxu0 0
  %242 = vmatprep.subr.bf16.mxu0 0
  %243 = vmatpush2.bf16.msra.mxu0 0
  %244 = vmatprep.subr.bf16.mxu0 0
  %245 = vmatpush2.bf16.msra.mxu0 0
  %246 = vmatprep.subr.bf16.mxu0 0
  %247 = vmatpush2.bf16.msra.mxu0 0
  %248 = vmatprep.subr.bf16.mxu0 0
  %249 = vmatpush2.bf16.msra.mxu0 0
  %250 = vmatprep.mubr.bf16.mxu0 0
  %251 = vmatmul.mubr.bf16.gmra.mxu0 %v134
  %v252 = vpop.f32.mrf.mxu0
  %v253 = vadd.f32 0.0, %v252
  %v254 = vpop.f32.mrf.mxu0
  %v255 = vadd.f32 0.0, %v254
  %v256 = vpop.f32.mrf.mxu0
  %v257 = vpop.f32.mrf.mxu0
  %258 = vdwg.mxu0
  %259 = vmatprep.subr.bf16.mxu0 0
  %260 = vmatpush1.bf16.msra.mxu0 0
  %261 = vmatprep.subr.bf16.mxu0 0
  %262 = vmatpush1.bf16.msra.mxu0 0
  %263 = vmatprep.subr.bf16.mxu0 0
  %264 = vmatpush1.bf16.msra.mxu0 0
  %265 = vmatprep.subr.bf16.mxu0 0
  %266 = vmatpush1.bf16.msra.mxu0 0
  %267 = vmatprep.subr.bf16.mxu0 0
  %268 = vmatpush1.bf16.msra.mxu0 0
  %269 = vmatprep.subr.bf16.mxu0 0
  %270 = vmatpush1.bf16.msra.mxu0 0
  %271 = vmatprep.subr.bf16.mxu0 %v115
  %272 = vmatpush1.bf16.msra.mxu0 %v114
  %273 = vmatprep.subr.bf16.mxu0 %v107
  %274 = vmatpush1.bf16.msra.mxu0 %v106
  %275 = vmatprep.subr.bf16.mxu0 0
  %276 = vmatpush2.bf16.msra.mxu0 0
  %277 = vmatprep.subr.bf16.mxu0 0
  %278 = vmatpush2.bf16.msra.mxu0 0
  %279 = vmatprep.subr.bf16.mxu0 0
  %280 = vmatpush2.bf16.msra.mxu0 0
  %281 = vmatprep.subr.bf16.mxu0 0
  %282 = vmatpush2.bf16.msra.mxu0 0
  %283 = vmatprep.subr.bf16.mxu0 0
  %284 = vmatpush2.bf16.msra.mxu0 0
  %285 = vmatprep.subr.bf16.mxu0 0
  %286 = vmatpush2.bf16.msra.mxu0 0
  %287 = vmatprep.subr.bf16.mxu0 0
  %288 = vmatpush2.bf16.msra.mxu0 0
  %289 = vmatprep.subr.bf16.mxu0 0
  %290 = vmatpush2.bf16.msra.mxu0 0
  %291 = vmatprep.mubr.bf16.mxu0 0
  %292 = vmatmul.mubr.bf16.gmra.mxu0 %v134
  %v293 = vpop.f32.mrf.mxu0
  %v294 = vadd.f32 0.0, %v293
  %v295 = vpop.f32.mrf.mxu0
  %v296 = vadd.f32 0.0, %v295
  %v297 = vpop.f32.mrf.mxu0
  %v298 = vpop.f32.mrf.mxu0
  %299 = vdwg.mxu0
  %v300 = vpack.c.bf16 %v171, %v171
  %v301 = vpack.c.bf16 %v173, %v173
  %v302 = vpack.c.bf16 %v212, %v212
  %v303 = vpack.c.bf16 %v214, %v214
  %v304 = vpack.c.bf16 %v253, %v253
  %v305 = vpack.c.bf16 %v255, %v255
  %v306 = vpack.c.bf16 %v294, %v294
  %v307 = vpack.c.bf16 %v296, %v296
  %v316 = vunpack.c.l.b16 %v300
  %v317 = vunpack.c.l.b16 %v301
  %v318 = vunpack.c.l.b16 %v302
  %v319 = vunpack.c.l.b16 %v303
  %v320 = vunpack.c.l.b16 %v304
  %v321 = vunpack.c.l.b16 %v305
  %v322 = vunpack.c.l.b16 %v306
  %v323 = vunpack.c.l.b16 %v307
  %v324 = vpack.c.b16 %v317, %v316
  %v325 = vpack.c.b16 %v319, %v318
  %v326 = vpack.c.b16 %v321, %v320
  %v327 = vpack.c.b16 %v323, %v322
  %332 = vst [vmem:[%s2] sm:$0xff] %v324
  %333 = vst [vmem:[%s2 + $0x8] sm:$0xff] %v325
  %334 = vst [vmem:[%s2 + $0x10] sm:$0xff] %v326
  %335 = vst [vmem:[%s2 + $0x18] sm:$0xff] %v327
  %v336 = vld [vmem:[%s3] sm:$0xff]
  %v337 = vld [vmem:[%s3 + $0x8] sm:$0xff]
  %v338 = vld [vmem:[%s3 + $0x10] sm:$0xff]
  %v339 = vld [vmem:[%s3 + $0x18] sm:$0xff]
  %v340 = vld [vmem:[%s3 + $0x20] sm:$0xff]
  %v341 = vld [vmem:[%s3 + $0x28] sm:$0xff]
  %v342 = vld [vmem:[%s3 + $0x30] sm:$0xff]
  %v343 = vld [vmem:[%s3 + $0x38] sm:$0xff]
  %v344 = vrot.slane %v171, 4
  %v345 = vadd.f32 %v171, %v344
  %v346 = vrot.slane %v345, 2
  %v347 = vadd.f32 %v345, %v346
  %v348 = vrot.slane %v347, 1
  %v349 = vadd.f32 %v347, %v348
  %v350 = vrot.slane %v173, 4
  %v351 = vadd.f32 %v173, %v350
  %v352 = vrot.slane %v351, 2
  %v353 = vadd.f32 %v351, %v352
  %v354 = vrot.slane %v353, 1
  %v355 = vadd.f32 %v353, %v354
  %v356 = vrot.slane %v212, 4
  %v357 = vadd.f32 %v212, %v356
  %v358 = vrot.slane %v357, 2
  %v359 = vadd.f32 %v357, %v358
  %v360 = vrot.slane %v359, 1
  %v361 = vadd.f32 %v359, %v360
  %v362 = vrot.slane %v214, 4
  %v363 = vadd.f32 %v214, %v362
  %v364 = vrot.slane %v363, 2
  %v365 = vadd.f32 %v363, %v364
  %v366 = vrot.slane %v365, 1
  %v367 = vadd.f32 %v365, %v366
  %v368 = vrot.slane %v253, 4
  %v369 = vadd.f32 %v253, %v368
  %v370 = vrot.slane %v369, 2
  %v371 = vadd.f32 %v369, %v370
  %v372 = vrot.slane %v371, 1
  %v373 = vadd.f32 %v371, %v372
  %v374 = vrot.slane %v255, 4
  %v375 = vadd.f32 %v255, %v374
  %v376 = vrot.slane %v375, 2
  %v377 = vadd.f32 %v375, %v376
  %v378 = vrot.slane %v377, 1
  %v379 = vadd.f32 %v377, %v378
  %v380 = vrot.slane %v294, 4
  %v381 = vadd.f32 %v294, %v380
  %v382 = vrot.slane %v381, 2
  %v383 = vadd.f32 %v381, %v382
  %v384 = vrot.slane %v383, 1
  %v385 = vadd.f32 %v383, %v384
  %v386 = vrot.slane %v296, 4
  %v387 = vadd.f32 %v296, %v386
  %v388 = vrot.slane %v387, 2
  %v389 = vadd.f32 %v387, %v388
  %v390 = vrot.slane %v389, 1
  %v391 = vadd.f32 %v389, %v390
  %v392 = vadd.f32 %v336, %v349
  %v393 = vadd.f32 %v337, %v355
  %v394 = vadd.f32 %v338, %v361
  %v395 = vadd.f32 %v339, %v367
  %v396 = vadd.f32 %v340, %v373
  %v397 = vadd.f32 %v341, %v379
  %v398 = vadd.f32 %v342, %v385
  %v399 = vadd.f32 %v343, %v391
  %400 = vst [vmem:[%s3] sm:$0xff] %v392
  %401 = vst [vmem:[%s3 + $0x8] sm:$0xff] %v393
  %402 = vst [vmem:[%s3 + $0x10] sm:$0xff] %v394
  %403 = vst [vmem:[%s3 + $0x18] sm:$0xff] %v395
  %404 = vst [vmem:[%s3 + $0x20] sm:$0xff] %v396
  %405 = vst [vmem:[%s3 + $0x28] sm:$0xff] %v397
  %406 = vst [vmem:[%s3 + $0x30] sm:$0xff] %v398
  %407 = vst [vmem:[%s3 + $0x38] sm:$0xff] %v399
  %v408 = vld [vmem:[%s4] sm:$0xff]
  %v409 = vld [vmem:[%s4 + $0x8] sm:$0xff]
  %v410 = vld [vmem:[%s4 + $0x10] sm:$0xff]
  %v411 = vld [vmem:[%s4 + $0x18] sm:$0xff]
  %v412 = vld [vmem:[%s4 + $0x20] sm:$0xff]
  %v413 = vld [vmem:[%s4 + $0x28] sm:$0xff]
  %v414 = vld [vmem:[%s4 + $0x30] sm:$0xff]
  %v415 = vld [vmem:[%s4 + $0x38] sm:$0xff]
  %v416 = vmul.f32 %v171, %v171
  %v417 = vmul.f32 %v173, %v173
  %v418 = vmul.f32 %v212, %v212
  %v419 = vmul.f32 %v214, %v214
  %v420 = vmul.f32 %v253, %v253
  %v421 = vmul.f32 %v255, %v255
  %v422 = vmul.f32 %v294, %v294
  %v423 = vmul.f32 %v296, %v296
  %v424 = vrot.slane %v416, 4
  %v425 = vadd.f32 %v416, %v424
  %v426 = vrot.slane %v425, 2
  %v427 = vadd.f32 %v425, %v426
  %v428 = vrot.slane %v427, 1
  %v429 = vadd.f32 %v427, %v428
  %v430 = vrot.slane %v417, 4
  %v431 = vadd.f32 %v417, %v430
  %v432 = vrot.slane %v431, 2
  %v433 = vadd.f32 %v431, %v432
  %v434 = vrot.slane %v433, 1
  %v435 = vadd.f32 %v433, %v434
  %v436 = vrot.slane %v418, 4
  %v437 = vadd.f32 %v418, %v436
  %v438 = vrot.slane %v437, 2
  %v439 = vadd.f32 %v437, %v438
  %v440 = vrot.slane %v439, 1
  %v441 = vadd.f32 %v439, %v440
  %v442 = vrot.slane %v419, 4
  %v443 = vadd.f32 %v419, %v442
  %v444 = vrot.slane %v443, 2
  %v445 = vadd.f32 %v443, %v444
  %v446 = vrot.slane %v445, 1
  %v447 = vadd.f32 %v445, %v446
  %v448 = vrot.slane %v420, 4
  %v449 = vadd.f32 %v420, %v448
  %v450 = vrot.slane %v449, 2
  %v451 = vadd.f32 %v449, %v450
  %v452 = vrot.slane %v451, 1
  %v453 = vadd.f32 %v451, %v452
  %v454 = vrot.slane %v421, 4
  %v455 = vadd.f32 %v421, %v454
  %v456 = vrot.slane %v455, 2
  %v457 = vadd.f32 %v455, %v456
  %v458 = vrot.slane %v457, 1
  %v459 = vadd.f32 %v457, %v458
  %v460 = vrot.slane %v422, 4
  %v461 = vadd.f32 %v422, %v460
  %v462 = vrot.slane %v461, 2
  %v463 = vadd.f32 %v461, %v462
  %v464 = vrot.slane %v463, 1
  %v465 = vadd.f32 %v463, %v464
  %v466 = vrot.slane %v423, 4
  %v467 = vadd.f32 %v423, %v466
  %v468 = vrot.slane %v467, 2
  %v469 = vadd.f32 %v467, %v468
  %v470 = vrot.slane %v469, 1
  %v471 = vadd.f32 %v469, %v470
  %v472 = vadd.f32 %v408, %v429
  %v473 = vadd.f32 %v409, %v435
  %v474 = vadd.f32 %v410, %v441
  %v475 = vadd.f32 %v411, %v447
  %v476 = vadd.f32 %v412, %v453
  %v477 = vadd.f32 %v413, %v459
  %v478 = vadd.f32 %v414, %v465
  %v479 = vadd.f32 %v415, %v471
  %480 = vst [vmem:[%s4] sm:$0xff] %v472
  %481 = vst [vmem:[%s4 + $0x8] sm:$0xff] %v473
  %482 = vst [vmem:[%s4 + $0x10] sm:$0xff] %v474
  %483 = vst [vmem:[%s4 + $0x18] sm:$0xff] %v475
  %484 = vst [vmem:[%s4 + $0x20] sm:$0xff] %v476
  %485 = vst [vmem:[%s4 + $0x28] sm:$0xff] %v477
  %486 = vst [vmem:[%s4 + $0x30] sm:$0xff] %v478
  %487 = vst [vmem:[%s4 + $0x38] sm:$0xff] %v479
  // Predicated region
  $region14: #{generator_forward.9} parent=0 // pred_check
    _
  $region15: #{generator_forward.9} parent=0 // pred_check_branch
    %489 = sbr.rel (0) target = $region17
  $region16: #{generator_forward.9} parent=0 // pred_region
    _
  $region17: #{generator_forward.9} parent=0 // pred_fallthru
    _
  // Predicated region
  $region18: #{generator_forward.9} parent=0 // pred_check
    _
  $region19: #{generator_forward.9} parent=0 // pred_check_branch
    %491 = sbr.rel (0) target = $region21
  $region20: #{generator_forward.9} parent=0 // pred_region
    _
  $region21: #{generator_forward.9} parent=0 // pred_fallthru
    _
  // Predicated region
  $region22: #{generator_forward.9} parent=0 // pred_check
    _
  $region23: #{generator_forward.9} parent=0 // pred_check_branch
    %493 = sbr.rel (0) target = $region25
  $region24: #{generator_forward.9} parent=0 // pred_region
    _
  $region25: #{generator_forward.9} parent=0 // pred_fallthru
    _
  // Predicated region
  $region26: #{generator_forward.9} parent=0 // pred_check
    _
  $region27: #{generator_forward.9} parent=0 // pred_check_branch
    %495 = sbr.rel (0) target = $region29
  $region28: #{generator_forward.9} parent=0 // pred_region
    _
  $region29: #{generator_forward.9} parent=0 // pred_fallthru
    _
  // Predicated region
  $region30: #{generator_forward.9} parent=0 // pred_check
    _
  $region31: #{generator_forward.9} parent=0 // pred_check_branch
    %497 = sbr.rel (0) target = $region33
  $region32: #{generator_forward.9} parent=0 // pred_region
    _
  $region33: #{generator_forward.9} parent=0 // pred_fallthru
    _
  // Predicated region
  $region34: #{generator_forward.9} parent=0 // pred_check
    _
  $region35: #{generator_forward.9} parent=0 // pred_check_branch
    %499 = sbr.rel (0) target = $region37
  $region36: #{generator_forward.9} parent=0 // pred_region
    _
  $region37: #{generator_forward.9} parent=0 // pred_fallthru
    _

// kernel: generator_forward.12
$region0: #{generator_forward.12}
  #allocation0 [shape = 'u32[]', space=smem, size = 0x4, offset = 0x4, fixed_abs, tag = 'smem constant byte address 0x4 - core index']
  #allocation1 [shape = 'u32[144,128]{1,0:T(1,128)}', space=vmem, size = 0x12000, scoped, tag = 'internal scratch']
  %s0 = inlined_call_operand.vmem [shape: bf16[128,128], index: 0, kind: input, shape index: {}]
  %s1 = inlined_call_operand.vmem [shape: f32[1,128], index: 1, kind: input, shape index: {}]
  %s2 = inlined_call_operand.vmem [shape: f32[1,128], index: 2, kind: input, shape index: {}]
  %s3 = inlined_call_operand.vmem [shape: bf16[128,128], index: 3, kind: output, shape index: {}]
  %s4 = sld [smem:[#allocation0]]
  $region45: #{generator_forward.12} parent=0
    _
  %s6 = ssub.s32 1, %s4
  %s7 = scalar_select 0, %s6, %s4
  loop: start=0, step=1, limit=6
  $region2: #{generator_forward.12} parent=0 // loop_pre_header
    _
  $region3: #{generator_forward.12} parent=0 // loop_header
    %s9 = sphi 0, %s13
    %p10 = scmp.ge.s32.totalorder %s9, 6
    %s19 = sphi 0, %s21
    %s22 = sphi 0, %s19
    %s23 = sphi 0, %s22
    %s39 = sphi 0, %s23
    %s43 = sphi 0, %s43
    %s45 = sphi 0, %s43
    %s46 = sphi 0, %s45
    %s60 = sphi 0, %s46
    %s64 = sphi 0, %s64
    %s66 = sphi 0, %s64
    %s67 = sphi 0, %s66
    %s81 = sphi 0, %s67
    %s87 = sphi 0, %s89
    %s90 = sphi 0, %s87
    %s91 = sphi 0, %s90
    %s107 = sphi 0, %s91
  $region4: #{generator_forward.12} parent=0 // loop_header_branch
    %12 = sbr.rel (%p10) target = $region8
  $region5: #{generator_forward.12} parent=0 // loop_body
    %s14 = ssub.s32 %s9, 1
    %s15 = ssub.s32 %s9, 2
    %s16 = sadd.s32 %s9, 1
    %s17 = ssub.s32 %s9, %s16
    %p18 = scmp.eq.s32.totalorder %s17, 0
    %s20 = sadd.s32 %s19, 1
    %s21 = scalar_select %p18, %s19, %s20
    %p24 = pneg %p18
    %p25 = scmp.eq.s32.totalorder %s9, 3
    %p26 = por %p24, %p25
    %p27 = scmp.ne.s32.totalorder %s19, %s22
    %p28 = scmp.eq.s32.totalorder %s9, 0
    %p29 = por %p27, %p28
    %p30 = scmp.ne.s32.totalorder %s19, %s22
    %p31 = scmp.eq.s32.totalorder %s14, 3
    %p32 = por %p30, %p31
    %p33 = scmp.ne.s32.totalorder %s22, %s23
    %p34 = scmp.eq.s32.totalorder %s14, 0
    %p35 = por %p33, %p34
    %p36 = scmp.ne.s32.totalorder %s22, %s23
    %p37 = scmp.eq.s32.totalorder %s15, 3
    %p38 = por %p36, %p37
    %p40 = scmp.ne.s32.totalorder %s23, %s39
    %p41 = scmp.eq.s32.totalorder %s15, 0
    %p42 = por %p40, %p41
    %s44 = sadd.s32 %s43, 1
    %p47 = scmp.eq.s32.totalorder %s9, 3
    %p48 = scmp.ne.s32.totalorder %s43, %s45
    %p49 = scmp.eq.s32.totalorder %s9, 0
    %p50 = por %p48, %p49
    %p51 = scmp.ne.s32.totalorder %s43, %s45
    %p52 = scmp.eq.s32.totalorder %s14, 3
    %p53 = por %p51, %p52
    %p54 = scmp.ne.s32.totalorder %s45, %s46
    %p55 = scmp.eq.s32.totalorder %s14, 0
    %p56 = por %p54, %p55
    %p57 = scmp.ne.s32.totalorder %s45, %s46
    %p58 = scmp.eq.s32.totalorder %s15, 3
    %p59 = por %p57, %p58
    %p61 = scmp.ne.s32.totalorder %s46, %s60
    %p62 = scmp.eq.s32.totalorder %s15, 0
    %p63 = por %p61, %p62
    %s65 = sadd.s32 %s64, 1
    %p68 = scmp.eq.s32.totalorder %s9, 3
    %p69 = scmp.ne.s32.totalorder %s64, %s66
    %p70 = scmp.eq.s32.totalorder %s9, 0
    %p71 = por %p69, %p70
    %p72 = scmp.ne.s32.totalorder %s64, %s66
    %p73 = scmp.eq.s32.totalorder %s14, 3
    %p74 = por %p72, %p73
    %p75 = scmp.ne.s32.totalorder %s66, %s67
    %p76 = scmp.eq.s32.totalorder %s14, 0
    %p77 = por %p75, %p76
    %p78 = scmp.ne.s32.totalorder %s66, %s67
    %p79 = scmp.eq.s32.totalorder %s15, 3
    %p80 = por %p78, %p79
    %p82 = scmp.ne.s32.totalorder %s67, %s81
    %p83 = scmp.eq.s32.totalorder %s15, 0
    %p84 = por %p82, %p83
    %s85 = ssub.s32 %s9, %s16
    %p86 = scmp.eq.s32.totalorder %s85, 0
    %s88 = sadd.s32 %s87, 1
    %s89 = scalar_select %p86, %s87, %s88
    %p92 = pneg %p86
    %p93 = scmp.eq.s32.totalorder %s9, 3
    %p94 = por %p92, %p93
    %p95 = scmp.ne.s32.totalorder %s87, %s90
    %p96 = scmp.eq.s32.totalorder %s9, 0
    %p97 = por %p95, %p96
    %p98 = scmp.ne.s32.totalorder %s87, %s90
    %p99 = scmp.eq.s32.totalorder %s14, 3
    %p100 = por %p98, %p99
    %p101 = scmp.ne.s32.totalorder %s90, %s91
    %p102 = scmp.eq.s32.totalorder %s14, 0
    %p103 = por %p101, %p102
    %p104 = scmp.ne.s32.totalorder %s90, %s91
    %p105 = scmp.eq.s32.totalorder %s15, 3
    %p106 = por %p104, %p105
    %p108 = scmp.ne.s32.totalorder %s91, %s107
    %p109 = scmp.eq.s32.totalorder %s15, 0
    %p110 = por %p108, %p109
    %p111 = scmp.le.s32.totalorder 1, %s9
    %p112 = scmp.lt.s32.totalorder %s9, 5
    %p113 = pnand %p111, %p112
    %p114 = pneg %p113
    // Predicated region
    $region9: #{generator_forward.12} parent=5 // pred_check
      _
    $region10: #{generator_forward.12} parent=5 // pred_check_branch
      %116 = sbr.rel (%p113) target = $region12
    $region11: #{generator_forward.12} parent=5 // pred_region
      %s117 = ssub.s32 %s9, 1
      // Predicated region
      $region13: #{generator_forward.12} parent=11 // pred_check
        %p118 = pneg %p56
      $region14: #{generator_forward.12} parent=11 // pred_check_branch
        %120 = sbr.rel (%p118) target = $region16
      $region15: #{generator_forward.12} parent=11 // pred_region
        _
      $region16: #{generator_forward.12} parent=11 // pred_fallthru
        _
      // Predicated region
      $region17: #{generator_forward.12} parent=11 // pred_check
        %p121 = pneg %p77
      $region18: #{generator_forward.12} parent=11 // pred_check_branch
        %123 = sbr.rel (%p121) target = $region20
      $region19: #{generator_forward.12} parent=11 // pred_region
        _
      $region20: #{generator_forward.12} parent=11 // pred_fallthru
        _
    $region12: #{generator_forward.12} parent=5 // pred_fallthru
      _
    %p124 = scmp.lt.s32.totalorder %s9, 4
    // Predicated region
    $region21: #{generator_forward.12} parent=5 // pred_check
      %p125 = pneg %p124
    $region22: #{generator_forward.12} parent=5 // pred_check_branch
      %127 = sbr.rel (%p125) target = $region24
    $region23: #{generator_forward.12} parent=5 // pred_region
      // Predicated region
      $region25: #{generator_forward.12} parent=23 // pred_check
        %p128 = pneg %p29
      $region26: #{generator_forward.12} parent=23 // pred_check_branch
        %130 = sbr.rel (%p128) target = $region28
      $region27: #{generator_forward.12} parent=23 // pred_region
        %s131 = smul.u32 4, %s9
        %p132 = scmp.lt.s32.totalorder %s131, 15
        %s133 = scalar_select %p132, %s131, 15
        %s134 = smul.addr %s133, 4
        %s135 = scalar_lea.vmem %s0, %s134
        %s136 = smul.u32 4, %s9
      $region28: #{generator_forward.12} parent=23 // pred_fallthru
        _
    $region24: #{generator_forward.12} parent=5 // pred_fallthru
      _
    %p137 = scmp.le.s32.totalorder 1, %s9
    %p138 = scmp.lt.s32.totalorder %s9, 5
    %p139 = pnand %p137, %p138
    %p140 = pneg %p139
    // Predicated region
    $region29: #{generator_forward.12} parent=5 // pred_check
      _
    $region30: #{generator_forward.12} parent=5 // pred_check_branch
      %142 = sbr.rel (%p139) target = $region32
    $region31: #{generator_forward.12} parent=5 // pred_region
      %s143 = ssub.s32 %s9, 1
      %s144 = smul.u32 4, %s14
      %p145 = scmp.lt.s32.totalorder %s144, 15
      %s146 = scalar_select %p145, %s144, 15
      %s147 = smul.addr %s146, 4
      %s148 = scalar_lea.vmem %s0, %s147
      %p149 = pneg %p35
      %p150 = pneg %p32
      %p151 = pneg %p56
      %p152 = pneg %p53
      %p153 = pneg %p77
      %p154 = pneg %p74
      %p155 = pneg %p103
      %p156 = pneg %p100
      %s157 = smul.u32 4, %s14
      %p158 = scmp.lt.s32.totalorder %s157, 15
      %s159 = scalar_select %p158, %s157, 15
      %s160 = smul.addr %s159, 4
      %s161 = scalar_lea.vmem %s3, %s160
      %s162 = smul.u32 4, %s14
      %p163 = scmp.lt.s32.totalorder %s162, 15
      %s164 = scalar_select %p163, %s162, 15
      %s165 = smul.addr %s164, 4
      %s166 = scalar_lea.vmem %s0, %s165
      %s167 = smul.u32 4, %s14
      %s168 = smul.u32 4, %s14
      %p169 = scmp.lt.s32.totalorder %s168, 15
      %s170 = scalar_select %p169, %s168, 15
      %s171 = smul.addr %s170, 4
      %s172 = scalar_lea.vmem %s3, %s171
      %s173 = smul.u32 4, %s14
      %v174 = vld [vmem:[%s166] sm:$0xf]
      %v175 = vld [vmem:[%s166 + $0x4] sm:$0xf]
      %v176 = vld [vmem:[%s166 + $0x8] sm:$0xf]
      %v177 = vld [vmem:[%s166 + $0xc] sm:$0xf]
      %v178 = vunpack.c.l.bf16 %v174
      %v179 = vunpack.c.l.bf16 %v175
      %v180 = vunpack.c.l.bf16 %v176
      %v181 = vunpack.c.l.bf16 %v177
      %v182 = vld [vmem:[%s1] sm:$0x1]
      %v184 = vlaneseq
      %v185 = vshrl.u32 %v184, 7
      %v186 = vsub.s32 0, %v185
      %v187 = vrot.slane %v182, %v186
      %v189 = vmul.f32 %v178, %v187
      %v190 = vmul.f32 %v179, %v187
      %v191 = vmul.f32 %v180, %v187
      %v192 = vmul.f32 %v181, %v187
      %v193 = vld [vmem:[%s2] sm:$0x1]
      %v195 = vlaneseq
      %v196 = vshrl.u32 %v195, 7
      %v197 = vsub.s32 0, %v196
      %v198 = vrot.slane %v193, %v197
      %v200 = vadd.f32 %v189, %v198
      %v201 = vadd.f32 %v190, %v198
      %v202 = vadd.f32 %v191, %v198
      %v203 = vadd.f32 %v192, %v198
      %v204 = vmax.f32 %v200, 0.0
      %v205 = vmax.f32 %v201, 0.0
      %v206 = vmax.f32 %v202, 0.0
      %v207 = vmax.f32 %v203, 0.0
      %v208 = vpack.c.bf16 %v205, %v204
      %v209 = vpack.c.bf16 %v207, %v206
      %v212 = vunpack.c.l.b16 %v208
      %v213 = vunpack.c.h.b16 %v208
      %v214 = vunpack.c.l.b16 %v209
      %v215 = vunpack.c.h.b16 %v209
      %v216 = vpack.c.b16 %v212, %v212
      %v217 = vpack.c.b16 %v213, %v213
      %v218 = vpack.c.b16 %v214, %v214
      %v219 = vpack.c.b16 %v215, %v215
      %224 = vst [vmem:[%s172] sm:$0xf] %v216
      %225 = vst [vmem:[%s172 + $0x4] sm:$0xf] %v217
      %226 = vst [vmem:[%s172 + $0x8] sm:$0xf] %v218
      %227 = vst [vmem:[%s172 + $0xc] sm:$0xf] %v219
      %s228 = smul.u32 4, %s14
      %p229 = scmp.lt.s32.totalorder %s228, 15
      %s230 = scalar_select %p229, %s228, 15
      %s231 = smul.addr %s230, 4
      %s232 = scalar_lea.vmem %s3, %s231
      // Predicated region
      $region33: #{generator_forward.12} parent=31 // pred_check
        %p233 = pneg %p100
      $region34: #{generator_forward.12} parent=31 // pred_check_branch
        %235 = sbr.rel (%p233) target = $region36
      $region35: #{generator_forward.12} parent=31 // pred_region
        %s236 = smul.u32 4, %s14
      $region36: #{generator_forward.12} parent=31 // pred_fallthru
        _
    $region32: #{generator_forward.12} parent=5 // pred_fallthru
      _
    %p237 = scmp.le.s32.totalorder 2, %s9
    // Predicated region
    $region37: #{generator_forward.12} parent=5 // pred_check
      %p238 = pneg %p237
    $region38: #{generator_forward.12} parent=5 // pred_check_branch
      %240 = sbr.rel (%p238) target = $region40
    $region39: #{generator_forward.12} parent=5 // pred_region
      %s241 = ssub.s32 %s9, 2
      // Predicated region
      $region41: #{generator_forward.12} parent=39 // pred_check
        %p242 = pneg %p106
      $region42: #{generator_forward.12} parent=39 // pred_check_branch
        %244 = sbr.rel (%p242) target = $region44
      $region43: #{generator_forward.12} parent=39 // pred_region
        %s245 = smul.u32 4, %s15
        %p246 = scmp.lt.s32.totalorder %s245, 15
        %s247 = scalar_select %p246, %s245, 15
        %s248 = smul.addr %s247, 4
        %s249 = scalar_lea.vmem %s3, %s248
      $region44: #{generator_forward.12} parent=39 // pred_fallthru
        _
    $region40: #{generator_forward.12} parent=5 // pred_fallthru
      _
  $region6: #{generator_forward.12} parent=0 // loop_footer
    %s13 = sadd.s32 1, %s9
  $region7: #{generator_forward.12} parent=0 // loop_footer_branch
    %8 = sbr.rel target = $region3
  $region8: #{generator_forward.12} parent=0 // loop_exit
    _

// kernel: generator_forward.11
$region0: #{generator_forward.11}
  #allocation0 [shape = 'u32[]', space=smem, size = 0x4, offset = 0x4, fixed_abs, tag = 'smem constant byte address 0x4 - core index']
  #allocation1 [shape = 'u32[144,128]{1,0:T(1,128)}', space=vmem, size = 0x12000, scoped, tag = 'internal scratch']
  %s0 = inlined_call_operand.vmem [shape: bf16[4,32,256], index: 0, kind: input, shape index: {}]
  %s1 = inlined_call_operand.vmem [shape: bf16[4,256,128], index: 1, kind: input, shape index: {}]
  %s2 = inlined_call_operand.vmem [shape: bf16[4,32,128], index: 2, kind: output, shape index: {0}]
  %s3 = inlined_call_operand.vmem [shape: f32[4,8,128], index: 3, kind: output, shape index: {1}]
  %s4 = inlined_call_operand.vmem [shape: f32[4,8,128], index: 4, kind: output, shape index: {2}]
  %5 = xla_tuple %s2, %s3, %s4
  %s6 = sld [smem:[#allocation0]]
  $region61: #{generator_forward.11} parent=0
    _
  %s8 = ssub.s32 1, %s6
  %s9 = scalar_select 0, %s8, %s6
  loop: start=0, step=1, limit=6
  $region2: #{generator_forward.11} parent=0 // loop_pre_header
    _
  $region3: #{generator_forward.11} parent=0 // loop_header
    %s11 = sphi 0, %s15
    %p12 = scmp.ge.s32.totalorder %s11, 6
    %s18 = sphi 0, %s30
    %s19 = sphi 0, %s26
    %s20 = sphi 0, %s18
    %s21 = sphi 0, %s19
    %s22 = sphi 0, %s20
    %s23 = sphi 0, %s21
    %s35 = sphi 0, %s37
    %s38 = sphi 0, %s35
    %s39 = sphi 0, %s38
    %s55 = sphi 0, %s39
    %s61 = sphi 0, %s63
    %s64 = sphi 0, %s61
    %s65 = sphi 0, %s64
    %s81 = sphi 0, %s65
    %s89 = sphi 0, %s91
    %s92 = sphi 0, %s89
    %s93 = sphi 0, %s92
    %s109 = sphi 0, %s93
    %s115 = sphi 0, %s117
    %s118 = sphi 0, %s115
    %s119 = sphi 0, %s118
    %s135 = sphi 0, %s119
    %s141 = sphi 0, %s143
    %s144 = sphi 0, %s141
    %s145 = sphi 0, %s144
    %s161 = sphi 0, %s145
  $region4: #{generator_forward.11} parent=0 // loop_header_branch
    %14 = sbr.rel (%p12) target = $region8
  $region5: #{generator_forward.11} parent=0 // loop_body
    %s16 = ssub.s32 %s11, 1
    %s17 = ssub.s32 %s11, 2
    %s24 = sadd.s32 1, %s19
    %p25 = scmp.ge.s32.totalorder %s24, 1
    %s26 = scalar_select %p25, 0, %s24
    %s27 = sadd.s32 1, %s18
    %s28 = scalar_select %p25, %s27, %s18
    %p29 = scmp.ge.s32.totalorder %s28, 4
    %s30 = scalar_select %p29, 0, %s28
    %s31 = ssub.s32 %s18, %s30
    %s32 = ssub.s32 %s19, %s26
    %s33 = sor.u32 %s31, %s32
    %p34 = scmp.eq.s32.totalorder %s33, 0
    %s36 = sadd.s32 %s35, 1
    %s37 = scalar_select %p34, %s35, %s36
    %p40 = pneg %p34
    %p41 = scmp.eq.s32.totalorder %s11, 3
    %p42 = por %p40, %p41
    %p43 = scmp.ne.s32.totalorder %s35, %s38
    %p44 = scmp.eq.s32.totalorder %s11, 0
    %p45 = por %p43, %p44
    %p46 = scmp.ne.s32.totalorder %s35, %s38
    %p47 = scmp.eq.s32.totalorder %s16, 3
    %p48 = por %p46, %p47
    %p49 = scmp.ne.s32.totalorder %s38, %s39
    %p50 = scmp.eq.s32.totalorder %s16, 0
    %p51 = por %p49, %p50
    %p52 = scmp.ne.s32.totalorder %s38, %s39
    %p53 = scmp.eq.s32.totalorder %s17, 3
    %p54 = por %p52, %p53
    %p56 = scmp.ne.s32.totalorder %s39, %s55
    %p57 = scmp.eq.s32.totalorder %s17, 0
    %p58 = por %p56, %p57
    %s59 = ssub.s32 %s18, %s30
    %p60 = scmp.eq.s32.totalorder %s59, 0
    %s62 = sadd.s32 %s61, 1
    %s63 = scalar_select %p60, %s61, %s62
    %p66 = pneg %p60
    %p67 = scmp.eq.s32.totalorder %s11, 3
    %p68 = por %p66, %p67
    %p69 = scmp.ne.s32.totalorder %s61, %s64
    %p70 = scmp.eq.s32.totalorder %s11, 0
    %p71 = por %p69, %p70
    %p72 = scmp.ne.s32.totalorder %s61, %s64
    %p73 = scmp.eq.s32.totalorder %s16, 3
    %p74 = por %p72, %p73
    %p75 = scmp.ne.s32.totalorder %s64, %s65
    %p76 = scmp.eq.s32.totalorder %s16, 0
    %p77 = por %p75, %p76
    %p78 = scmp.ne.s32.totalorder %s64, %s65
    %p79 = scmp.eq.s32.totalorder %s17, 3
    %p80 = por %p78, %p79
    %p82 = scmp.ne.s32.totalorder %s65, %s81
    %p83 = scmp.eq.s32.totalorder %s17, 0
    %p84 = por %p82, %p83
    %s85 = ssub.s32 %s18, %s30
    %s86 = ssub.s32 %s19, %s26
    %s87 = sor.u32 %s85, %s86
    %p88 = scmp.eq.s32.totalorder %s87, 0
    %s90 = sadd.s32 %s89, 1
    %s91 = scalar_select %p88, %s89, %s90
    %p94 = pneg %p88
    %p95 = scmp.eq.s32.totalorder %s11, 3
    %p96 = por %p94, %p95
    %p97 = scmp.ne.s32.totalorder %s89, %s92
    %p98 = scmp.eq.s32.totalorder %s11, 0
    %p99 = por %p97, %p98
    %p100 = scmp.ne.s32.totalorder %s89, %s92
    %p101 = scmp.eq.s32.totalorder %s16, 3
    %p102 = por %p100, %p101
    %p103 = scmp.ne.s32.totalorder %s92, %s93
    %p104 = scmp.eq.s32.totalorder %s16, 0
    %p105 = por %p103, %p104
    %p106 = scmp.ne.s32.totalorder %s92, %s93
    %p107 = scmp.eq.s32.totalorder %s17, 3
    %p108 = por %p106, %p107
    %p110 = scmp.ne.s32.totalorder %s93, %s109
    %p111 = scmp.eq.s32.totalorder %s17, 0
    %p112 = por %p110, %p111
    %s113 = ssub.s32 %s18, %s30
    %p114 = scmp.eq.s32.totalorder %s113, 0
    %s116 = sadd.s32 %s115, 1
    %s117 = scalar_select %p114, %s115, %s116
    %p120 = pneg %p114
    %p121 = scmp.eq.s32.totalorder %s11, 3
    %p122 = por %p120, %p121
    %p123 = scmp.ne.s32.totalorder %s115, %s118
    %p124 = scmp.eq.s32.totalorder %s11, 0
    %p125 = por %p123, %p124
    %p126 = scmp.ne.s32.totalorder %s115, %s118
    %p127 = scmp.eq.s32.totalorder %s16, 3
    %p128 = por %p126, %p127
    %p129 = scmp.ne.s32.totalorder %s118, %s119
    %p130 = scmp.eq.s32.totalorder %s16, 0
    %p131 = por %p129, %p130
    %p132 = scmp.ne.s32.totalorder %s118, %s119
    %p133 = scmp.eq.s32.totalorder %s17, 3
    %p134 = por %p132, %p133
    %p136 = scmp.ne.s32.totalorder %s119, %s135
    %p137 = scmp.eq.s32.totalorder %s17, 0
    %p138 = por %p136, %p137
    %s139 = ssub.s32 %s18, %s30
    %p140 = scmp.eq.s32.totalorder %s139, 0
    %s142 = sadd.s32 %s141, 1
    %s143 = scalar_select %p140, %s141, %s142
    %p146 = pneg %p140
    %p147 = scmp.eq.s32.totalorder %s11, 3
    %p148 = por %p146, %p147
    %p149 = scmp.ne.s32.totalorder %s141, %s144
    %p150 = scmp.eq.s32.totalorder %s11, 0
    %p151 = por %p149, %p150
    %p152 = scmp.ne.s32.totalorder %s141, %s144
    %p153 = scmp.eq.s32.totalorder %s16, 3
    %p154 = por %p152, %p153
    %p155 = scmp.ne.s32.totalorder %s144, %s145
    %p156 = scmp.eq.s32.totalorder %s16, 0
    %p157 = por %p155, %p156
    %p158 = scmp.ne.s32.totalorder %s144, %s145
    %p159 = scmp.eq.s32.totalorder %s17, 3
    %p160 = por %p158, %p159
    %p162 = scmp.ne.s32.totalorder %s145, %s161
    %p163 = scmp.eq.s32.totalorder %s17, 0
    %p164 = por %p162, %p163
    %p165 = scmp.le.s32.totalorder 1, %s11
    %p166 = scmp.lt.s32.totalorder %s11, 5
    %p167 = pnand %p165, %p166
    %p168 = pneg %p167
    // Predicated region
    $region9: #{generator_forward.11} parent=5 // pred_check
      _
    $region10: #{generator_forward.11} parent=5 // pred_check_branch
      %170 = sbr.rel (%p167) target = $region12
    $region11: #{generator_forward.11} parent=5 // pred_region
      %s171 = ssub.s32 %s11, 1
    $region12: #{generator_forward.11} parent=5 // pred_fallthru
      _
    %p172 = scmp.lt.s32.totalorder %s11, 4
    // Predicated region
    $region13: #{generator_forward.11} parent=5 // pred_check
      %p173 = pneg %p172
    $region14: #{generator_forward.11} parent=5 // pred_check_branch
      %175 = sbr.rel (%p173) target = $region16
    $region15: #{generator_forward.11} parent=5 // pred_region
      // Predicated region
      $region17: #{generator_forward.11} parent=15 // pred_check
        %p176 = pneg %p45
      $region18: #{generator_forward.11} parent=15 // pred_check_branch
        %178 = sbr.rel (%p176) target = $region20
      $region19: #{generator_forward.11} parent=15 // pred_region
        %s179 = smul.u32 4, %s19
        %p180 = scmp.lt.s32.totalorder %s18, 3
        %s181 = scalar_select %p180, %s18, 3
        %p182 = scmp.lt.s32.totalorder %s179, 3
        %s183 = scalar_select %p182, %s179, 3
        %s184 = smul.addr %s183, 2
        %s185 = smul.addr %s181, 8
        %s186 = sadd.s32 %s184, %s185
        %s187 = smul.addr %s186, 4
        %s188 = scalar_lea.vmem %s0, %s187
        %s189 = smul.u32 4, %s19
      $region20: #{generator_forward.11} parent=15 // pred_fallthru
        _
      // Predicated region
      $region21: #{generator_forward.11} parent=15 // pred_check
        %p190 = pneg %p71
      $region22: #{generator_forward.11} parent=15 // pred_check_branch
        %192 = sbr.rel (%p190) target = $region24
      $region23: #{generator_forward.11} parent=15 // pred_region
        %p193 = scmp.lt.s32.totalorder %s18, 3
        %s194 = scalar_select %p193, %s18, 3
        %s195 = smul.addr %s194, 32
        %s196 = smul.addr %s195, 4
        %s197 = scalar_lea.vmem %s1, %s196
      $region24: #{generator_forward.11} parent=15 // pred_fallthru
        _
    $region16: #{generator_forward.11} parent=5 // pred_fallthru
      _
    %p198 = scmp.le.s32.totalorder 1, %s11
    %p199 = scmp.lt.s32.totalorder %s11, 5
    %p200 = pnand %p198, %p199
    %p201 = pneg %p200
    // Predicated region
    $region25: #{generator_forward.11} parent=5 // pred_check
      _
    $region26: #{generator_forward.11} parent=5 // pred_check_branch
      %203 = sbr.rel (%p200) target = $region28
    $region27: #{generator_forward.11} parent=5 // pred_region
      %s204 = ssub.s32 %s11, 1
      %s205 = smul.u32 4, %s21
      %p206 = scmp.lt.s32.totalorder %s20, 3
      %s207 = scalar_select %p206, %s20, 3
      %p208 = scmp.lt.s32.totalorder %s205, 3
      %s209 = scalar_select %p208, %s205, 3
      %s210 = smul.addr %s209, 2
      %s211 = smul.addr %s207, 8
      %s212 = sadd.s32 %s210, %s211
      %s213 = smul.addr %s212, 4
      %s214 = scalar_lea.vmem %s0, %s213
      %p215 = pneg %p51
      %p216 = pneg %p48
      %p217 = scmp.lt.s32.totalorder %s20, 3
      %s218 = scalar_select %p217, %s20, 3
      %s219 = smul.addr %s218, 32
      %s220 = smul.addr %s219, 4
      %s221 = scalar_lea.vmem %s1, %s220
      %p222 = pneg %p77
      %p223 = pneg %p74
      %p224 = pneg %p105
      %p225 = pneg %p102
      %s226 = smul.u32 4, %s21
      %p227 = scmp.lt.s32.totalorder %s20, 3
      %s228 = scalar_select %p227, %s20, 3
      %p229 = scmp.lt.s32.totalorder %s226, 3
      %s230 = scalar_select %p229, %s226, 3
      %s231 = smul.addr %s228, 4
      %s232 = sadd.s32 %s230, %s231
      %s233 = smul.addr %s232, 4
      %s234 = scalar_lea.vmem %s2, %s233
      %p235 = pneg %p131
      %p236 = pneg %p128
      %p237 = scmp.lt.s32.totalorder %s20, 3
      %s238 = scalar_select %p237, %s20, 3
      %s239 = smul.addr %s238, 8
      %s240 = scalar_lea.vmem %s3, %s239
      %p241 = pneg %p157
      %p242 = pneg %p154
      %p243 = scmp.lt.s32.totalorder %s20, 3
      %s244 = scalar_select %p243, %s20, 3
      %s245 = smul.addr %s244, 8
      %s246 = scalar_lea.vmem %s4, %s245
      %s247 = smul.u32 4, %s21
      %p248 = scmp.lt.s32.totalorder %s20, 3
      %s249 = scalar_select %p248, %s20, 3
      %p250 = scmp.lt.s32.totalorder %s247, 3
      %s251 = scalar_select %p250, %s247, 3
      %s252 = smul.addr %s251, 2
      %s253 = smul.addr %s249, 8
      %s254 = sadd.s32 %s252, %s253
      %s255 = smul.addr %s254, 4
      %s256 = scalar_lea.vmem %s0, %s255
      %s257 = smul.u32 4, %s21
      %p258 = scmp.lt.s32.totalorder %s20, 3
      %s259 = scalar_select %p258, %s20, 3
      %s260 = smul.addr %s259, 32
      %s261 = smul.addr %s260, 4
      %s262 = scalar_lea.vmem %s1, %s261
      %s263 = smul.u32 4, %s21
      %p264 = scmp.lt.s32.totalorder %s20, 3
      %s265 = scalar_select %p264, %s20, 3
      %p266 = scmp.lt.s32.totalorder %s263, 3
      %s267 = scalar_select %p266, %s263, 3
      %s268 = smul.addr %s265, 4
      %s269 = sadd.s32 %s267, %s268
      %s270 = smul.addr %s269, 4
      %s271 = scalar_lea.vmem %s2, %s270
      %s272 = smul.u32 4, %s21
      %p273 = scmp.lt.s32.totalorder %s20, 3
      %s274 = scalar_select %p273, %s20, 3
      %s275 = smul.addr %s274, 8
      %s276 = scalar_lea.vmem %s3, %s275
      %p277 = scmp.lt.s32.totalorder %s20, 3
      %s278 = scalar_select %p277, %s20, 3
      %s279 = smul.addr %s278, 8
      %s280 = scalar_lea.vmem %s4, %s279
      %p282 = scmp.eq.s32.totalorder %s21, 0
      // Predicated region
      $region29: #{generator_forward.11} parent=27 // pred_check
        %p283 = pneg %p282
      $region30: #{generator_forward.11} parent=27 // pred_check_branch
        %285 = sbr.rel (%p283) target = $region32
      $region31: #{generator_forward.11} parent=27 // pred_region
        %286 = vst [vmem:[%s276] sm:$0xff] 0.0
        %287 = vst [vmem:[%s280] sm:$0xff] 0.0
      $region32: #{generator_forward.11} parent=27 // pred_fallthru
        _
      %v288 = vld [vmem:[%s256] sm:$0xff]
      %v289 = vld [vmem:[%s256 + $0x8] sm:$0xff]
      %v290 = vld [vmem:[%s256 + $0x10] sm:$0xff]
      %v291 = vld [vmem:[%s256 + $0x18] sm:$0xff]
      %v292 = vld [vmem:[%s262] sm:$0xf]
      %v293 = vld [vmem:[%s262 + $0x4] sm:$0xf]
      %v294 = vld [vmem:[%s262 + $0x8] sm:$0xf]
      %v295 = vld [vmem:[%s262 + $0xc] sm:$0xf]
      %v296 = vld [vmem:[%s262 + $0x10] sm:$0xf]
      %v297 = vld [vmem:[%s262 + $0x14] sm:$0xf]
      %v298 = vld [vmem:[%s262 + $0x18] sm:$0xf]
      %v299 = vld [vmem:[%s262 + $0x1c] sm:$0xf]
      %v300 = vld [vmem:[%s262 + $0x20] sm:$0xf]
      %v301 = vld [vmem:[%s262 + $0x24] sm:$0xf]
      %v302 = vld [vmem:[%s262 + $0x28] sm:$0xf]
      %v303 = vld [vmem:[%s262 + $0x2c] sm:$0xf]
      %v304 = vld [vmem:[%s262 + $0x30] sm:$0xf]
      %v305 = vld [vmem:[%s262 + $0x34] sm:$0xf]
      %v306 = vld [vmem:[%s262 + $0x38] sm:$0xf]
      %v307 = vld [vmem:[%s262 + $0x3c] sm:$0xf]
      %v308 = vld [vmem:[%s262 + $0x40] sm:$0xf]
      %v309 = vld [vmem:[%s262 + $0x44] sm:$0xf]
      %v310 = vld [vmem:[%s262 + $0x48] sm:$0xf]
      %v311 = vld [vmem:[%s262 + $0x4c] sm:$0xf]
      %v312 = vld [vmem:[%s262 + $0x50] sm:$0xf]
      %v313 = vld [vmem:[%s262 + $0x54] sm:$0xf]
      %v314 = vld [vmem:[%s262 + $0x58] sm:$0xf]
      %v315 = vld [vmem:[%s262 + $0x5c] sm:$0xf]
      %v316 = vld [vmem:[%s262 + $0x60] sm:$0xf]
      %v317 = vld [vmem:[%s262 + $0x64] sm:$0xf]
      %v318 = vld [vmem:[%s262 + $0x68] sm:$0xf]
      %v319 = vld [vmem:[%s262 + $0x6c] sm:$0xf]
      %v320 = vld [vmem:[%s262 + $0x70] sm:$0xf]
      %v321 = vld [vmem:[%s262 + $0x74] sm:$0xf]
      %v322 = vld [vmem:[%s262 + $0x78] sm:$0xf]
      %v323 = vld [vmem:[%s262 + $0x7c] sm:$0xf]
      %v328 = vunpack.c.l.b16 %v288
      %v329 = vunpack.c.h.b16 %v288
      %v330 = vunpack.c.l.b16 %v289
      %v331 = vunpack.c.h.b16 %v289
      %v332 = vunpack.c.l.b16 %v290
      %v333 = vunpack.c.h.b16 %v290
      %v334 = vunpack.c.l.b16 %v291
      %v335 = vunpack.c.h.b16 %v291
      %v336 = vpack.c.b16 %v330, %v328
      %v337 = vpack.c.b16 %v331, %v329
      %v338 = vpack.c.b16 %v334, %v332
      %v339 = vpack.c.b16 %v335, %v333
      %v376 = vunpack.c.l.b16 %v292
      %v377 = vunpack.c.l.b16 %v293
      %v378 = vunpack.c.l.b16 %v294
      %v379 = vunpack.c.l.b16 %v295
      %v380 = vunpack.c.l.b16 %v296
      %v381 = vunpack.c.l.b16 %v297
      %v382 = vunpack.c.l.b16 %v298
      %v383 = vunpack.c.l.b16 %v299
      %v384 = vunpack.c.l.b16 %v300
      %v385 = vunpack.c.l.b16 %v301
      %v386 = vunpack.c.l.b16 %v302
      %v387 = vunpack.c.l.b16 %v303
      %v388 = vunpack.c.l.b16 %v304
      %v389 = vunpack.c.l.b16 %v305
      %v390 = vunpack.c.l.b16 %v306
      %v391 = vunpack.c.l.b16 %v307
      %v392 = vunpack.c.l.b16 %v308
      %v393 = vunpack.c.l.b16 %v309
      %v394 = vunpack.c.l.b16 %v310
      %v395 = vunpack.c.l.b16 %v311
      %v396 = vunpack.c.l.b16 %v312
      %v397 = vunpack.c.l.b16 %v313
      %v398 = vunpack.c.l.b16 %v314
      %v399 = vunpack.c.l.b16 %v315
      %v400 = vunpack.c.l.b16 %v316
      %v401 = vunpack.c.l.b16 %v317
      %v402 = vunpack.c.l.b16 %v318
      %v403 = vunpack.c.l.b16 %v319
      %v404 = vunpack.c.l.b16 %v320
      %v405 = vunpack.c.l.b16 %v321
      %v406 = vunpack.c.l.b16 %v322
      %v407 = vunpack.c.l.b16 %v323
      %v408 = vpack.c.b16 %v377, %v376
      %v409 = vpack.c.b16 %v379, %v378
      %v410 = vpack.c.b16 %v381, %v380
      %v411 = vpack.c.b16 %v383, %v382
      %v412 = vpack.c.b16 %v385, %v384
      %v413 = vpack.c.b16 %v387, %v386
      %v414 = vpack.c.b16 %v389, %v388
      %v415 = vpack.c.b16 %v391, %v390
      %v416 = vpack.c.b16 %v393, %v392
      %v417 = vpack.c.b16 %v395, %v394
      %v418 = vpack.c.b16 %v397, %v396
      %v419 = vpack.c.b16 %v399, %v398
      %v420 = vpack.c.b16 %v401, %v400
      %v421 = vpack.c.b16 %v403, %v402
      %v422 = vpack.c.b16 %v405, %v404
      %v423 = vpack.c.b16 %v407, %v406
      %440 = vmatprep.subr.bf16.mxu0 0
      %441 = vmatpush1.bf16.msra.mxu0 %v415
      %442 = vmatprep.subr.bf16.mxu0 0
      %443 = vmatpush1.bf16.msra.mxu0 %v414
      %444 = vmatprep.subr.bf16.mxu0 0
      %445 = vmatpush1.bf16.msra.mxu0 %v413
      %446 = vmatprep.subr.bf16.mxu0 0
      %447 = vmatpush1.bf16.msra.mxu0 %v412
      %448 = vmatprep.subr.bf16.mxu0 0
      %449 = vmatpush1.bf16.msra.mxu0 %v411
      %450 = vmatprep.subr.bf16.mxu0 0
      %451 = vmatpush1.bf16.msra.mxu0 %v410
      %452 = vmatprep.subr.bf16.mxu0 0
      %453 = vmatpush1.bf16.msra.mxu0 %v409
      %454 = vmatprep.subr.bf16.mxu0 0
      %455 = vmatpush1.bf16.msra.mxu0 %v408
      %456 = vmatprep.subr.bf16.mxu0 0
      %457 = vmatpush2.bf16.msra.mxu0 %v423
      %458 = vmatprep.subr.bf16.mxu0 0
      %459 = vmatpush2.bf16.msra.mxu0 %v422
      %460 = vmatprep.subr.bf16.mxu0 0
      %461 = vmatpush2.bf16.msra.mxu0 %v421
      %462 = vmatprep.subr.bf16.mxu0 0
      %463 = vmatpush2.bf16.msra.mxu0 %v420
      %464 = vmatprep.subr.bf16.mxu0 0
      %465 = vmatpush2.bf16.msra.mxu0 %v419
      %466 = vmatprep.subr.bf16.mxu0 0
      %467 = vmatpush2.bf16.msra.mxu0 %v418
      %468 = vmatprep.subr.bf16.mxu0 0
      %469 = vmatpush2.bf16.msra.mxu0 %v417
      %470 = vmatprep.subr.bf16.mxu0 0
      %471 = vmatpush2.bf16.msra.mxu0 %v416
      %472 = vmatprep.mubr.bf16.mxu0 %v337
      %473 = vmatmul.mubr.bf16.gmra.mxu0 %v336
      %v474 = vpop.f32.mrf.mxu0
      %v475 = vadd.f32 0.0, %v474
      %v476 = vpop.f32.mrf.mxu0
      %v477 = vpop.f32.mrf.mxu0
      %v478 = vadd.f32 0.0, %v477
      %v479 = vpop.f32.mrf.mxu0
      %480 = vmatprep.mubr.bf16.mxu0 %v339
      %481 = vmatmul.mubr.bf16.gmra.mxu0 %v338
      %v482 = vpop.f32.mrf.mxu0
      %v483 = vadd.f32 0.0, %v482
      %v484 = vpop.f32.mrf.mxu0
      %v485 = vpop.f32.mrf.mxu0
      %v486 = vadd.f32 0.0, %v485
      %v487 = vpop.f32.mrf.mxu0
      %488 = vdwg.mxu0
      %v489 = vpack.c.bf16 %v478, %v475
      %v490 = vpack.c.bf16 %v486, %v483
      %v493 = vunpack.c.l.b16 %v489
      %v494 = vunpack.c.h.b16 %v489
      %v495 = vunpack.c.l.b16 %v490
      %v496 = vunpack.c.h.b16 %v490
      %v497 = vpack.c.b16 %v493, %v493
      %v498 = vpack.c.b16 %v494, %v494
      %v499 = vpack.c.b16 %v495, %v495
      %v500 = vpack.c.b16 %v496, %v496
      %505 = vst [vmem:[%s271] sm:$0xf] %v497
      %506 = vst [vmem:[%s271 + $0x4] sm:$0xf] %v498
      %507 = vst [vmem:[%s271 + $0x8] sm:$0xf] %v499
      %508 = vst [vmem:[%s271 + $0xc] sm:$0xf] %v500
      %v509 = vld [vmem:[%s276] sm:$0xff]
      %v510 = vadd.f32 %v475, %v478
      %v511 = vadd.f32 %v510, %v483
      %v512 = vadd.f32 %v511, %v486
      %v513 = vrot.slane %v512, 4
      %v514 = vadd.f32 %v512, %v513
      %v515 = vrot.slane %v514, 2
      %v516 = vadd.f32 %v514, %v515
      %v517 = vrot.slane %v516, 1
      %v518 = vadd.f32 %v516, %v517
      %v519 = vadd.f32 %v509, %v518
      %520 = vst [vmem:[%s276] sm:$0xff] %v519
      %v521 = vld [vmem:[%s280] sm:$0xff]
      %v522 = vmul.f32 %v475, %v475
      %v523 = vmul.f32 %v478, %v478
      %v524 = vmul.f32 %v483, %v483
      %v525 = vmul.f32 %v486, %v486
      %v526 = vadd.f32 %v522, %v523
      %v527 = vadd.f32 %v526, %v524
      %v528 = vadd.f32 %v527, %v525
      %v529 = vrot.slane %v528, 4
      %v530 = vadd.f32 %v528, %v529
      %v531 = vrot.slane %v530, 2
      %v532 = vadd.f32 %v530, %v531
      %v533 = vrot.slane %v532, 1
      %v534 = vadd.f32 %v532, %v533
      %v535 = vadd.f32 %v521, %v534
      %536 = vst [vmem:[%s280] sm:$0xff] %v535
      %s537 = smul.u32 4, %s21
      %p538 = scmp.lt.s32.totalorder %s20, 3
      %s539 = scalar_select %p538, %s20, 3
      %p540 = scmp.lt.s32.totalorder %s537, 3
      %s541 = scalar_select %p540, %s537, 3
      %s542 = smul.addr %s539, 4
      %s543 = sadd.s32 %s541, %s542
      %s544 = smul.addr %s543, 4
      %s545 = scalar_lea.vmem %s2, %s544
      %p546 = scmp.lt.s32.totalorder %s20, 3
      %s547 = scalar_select %p546, %s20, 3
      %s548 = smul.addr %s547, 8
      %s549 = scalar_lea.vmem %s3, %s548
      %p550 = scmp.lt.s32.totalorder %s20, 3
      %s551 = scalar_select %p550, %s20, 3
      %s552 = smul.addr %s551, 8
      %s553 = scalar_lea.vmem %s4, %s552
      // Predicated region
      $region33: #{generator_forward.11} parent=27 // pred_check
        %p554 = pneg %p102
      $region34: #{generator_forward.11} parent=27 // pred_check_branch
        %556 = sbr.rel (%p554) target = $region36
      $region35: #{generator_forward.11} parent=27 // pred_region
        %s557 = smul.u32 4, %s21
      $region36: #{generator_forward.11} parent=27 // pred_fallthru
        _
      // Predicated region
      $region37: #{generator_forward.11} parent=27 // pred_check
        %p558 = pneg %p128
      $region38: #{generator_forward.11} parent=27 // pred_check_branch
        %560 = sbr.rel (%p558) target = $region40
      $region39: #{generator_forward.11} parent=27 // pred_region
        _
      $region40: #{generator_forward.11} parent=27 // pred_fallthru
        _
      // Predicated region
      $region41: #{generator_forward.11} parent=27 // pred_check
        %p561 = pneg %p154
      $region42: #{generator_forward.11} parent=27 // pred_check_branch
        %563 = sbr.rel (%p561) target = $region44
      $region43: #{generator_forward.11} parent=27 // pred_region
        _
      $region44: #{generator_forward.11} parent=27 // pred_fallthru
        _
    $region28: #{generator_forward.11} parent=5 // pred_fallthru
      _
    %p564 = scmp.le.s32.totalorder 2, %s11
    // Predicated region
    $region45: #{generator_forward.11} parent=5 // pred_check
      %p565 = pneg %p564
    $region46: #{generator_forward.11} parent=5 // pred_check_branch
      %567 = sbr.rel (%p565) target = $region48
    $region47: #{generator_forward.11} parent=5 // pred_region
      %s568 = ssub.s32 %s11, 2
      // Predicated region
      $region49: #{generator_forward.11} parent=47 // pred_check
        %p569 = pneg %p108
      $region50: #{generator_forward.11} parent=47 // pred_check_branch
        %571 = sbr.rel (%p569) target = $region52
      $region51: #{generator_forward.11} parent=47 // pred_region
        %s572 = smul.u32 4, %s23
        %p573 = scmp.lt.s32.totalorder %s22, 3
        %s574 = scalar_select %p573, %s22, 3
        %p575 = scmp.lt.s32.totalorder %s572, 3
        %s576 = scalar_select %p575, %s572, 3
        %s577 = smul.addr %s574, 4
        %s578 = sadd.s32 %s576, %s577
        %s579 = smul.addr %s578, 4
        %s580 = scalar_lea.vmem %s2, %s579
      $region52: #{generator_forward.11} parent=47 // pred_fallthru
        _
      // Predicated region
      $region53: #{generator_forward.11} parent=47 // pred_check
        %p581 = pneg %p134
      $region54: #{generator_forward.11} parent=47 // pred_check_branch
        %583 = sbr.rel (%p581) target = $region56
      $region55: #{generator_forward.11} parent=47 // pred_region
        %p584 = scmp.lt.s32.totalorder %s22, 3
        %s585 = scalar_select %p584, %s22, 3
        %s586 = smul.addr %s585, 8
        %s587 = scalar_lea.vmem %s3, %s586
      $region56: #{generator_forward.11} parent=47 // pred_fallthru
        _
      // Predicated region
      $region57: #{generator_forward.11} parent=47 // pred_check
        %p588 = pneg %p160
      $region58: #{generator_forward.11} parent=47 // pred_check_branch
        %590 = sbr.rel (%p588) target = $region60
      $region59: #{generator_forward.11} parent=47 // pred_region
        %p591 = scmp.lt.s32.totalorder %s22, 3
        %s592 = scalar_select %p591, %s22, 3
        %s593 = smul.addr %s592, 8
        %s594 = scalar_lea.vmem %s4, %s593
      $region60: #{generator_forward.11} parent=47 // pred_fallthru
        _
    $region48: #{generator_forward.11} parent=5 // pred_fallthru
      _
  $region6: #{generator_forward.11} parent=0 // loop_footer
    %s15 = sadd.s32 1, %s11
  $region7: #{generator_forward.11} parent=0 // loop_footer_branch
    %10 = sbr.rel target = $region3
  $region8: #{generator_forward.11} parent=0 // loop_exit
    _

// kernel: generator_forward.13
$region0: #{generator_forward.13}
  #allocation0 [shape = 'u32[]', space=smem, size = 0x4, offset = 0x4, fixed_abs, tag = 'smem constant byte address 0x4 - core index']
  #allocation1 [shape = 'u32[144,128]{1,0:T(1,128)}', space=vmem, size = 0x12000, scoped, tag = 'internal scratch']
  %s0 = inlined_call_operand.vmem [shape: bf16[4,128,128], index: 0, kind: input, shape index: {}]
  %s1 = inlined_call_operand.vmem [shape: bf16[4,128,128], index: 1, kind: input, shape index: {}]
  %s2 = inlined_call_operand.vmem [shape: bf16[4,128,128], index: 2, kind: output, shape index: {0}]
  %s3 = inlined_call_operand.vmem [shape: f32[4,8,128], index: 3, kind: output, shape index: {1}]
  %s4 = inlined_call_operand.vmem [shape: f32[4,8,128], index: 4, kind: output, shape index: {2}]
  %5 = xla_tuple %s2, %s3, %s4
  %s6 = sld [smem:[#allocation0]]
  $region61: #{generator_forward.13} parent=0
    _
  %s8 = ssub.s32 1, %s6
  %s9 = scalar_select 0, %s8, %s6
  loop: start=0, step=1, limit=6
  $region2: #{generator_forward.13} parent=0 // loop_pre_header
    _
  $region3: #{generator_forward.13} parent=0 // loop_header
    %s11 = sphi 0, %s15
    %p12 = scmp.ge.s32.totalorder %s11, 6
    %s18 = sphi 0, %s30
    %s19 = sphi 0, %s26
    %s20 = sphi 0, %s18
    %s21 = sphi 0, %s19
    %s22 = sphi 0, %s20
    %s23 = sphi 0, %s21
    %s35 = sphi 0, %s37
    %s38 = sphi 0, %s35
    %s39 = sphi 0, %s38
    %s55 = sphi 0, %s39
    %s61 = sphi 0, %s63
    %s64 = sphi 0, %s61
    %s65 = sphi 0, %s64
    %s81 = sphi 0, %s65
    %s89 = sphi 0, %s91
    %s92 = sphi 0, %s89
    %s93 = sphi 0, %s92
    %s109 = sphi 0, %s93
    %s115 = sphi 0, %s117
    %s118 = sphi 0, %s115
    %s119 = sphi 0, %s118
    %s135 = sphi 0, %s119
    %s141 = sphi 0, %s143
    %s144 = sphi 0, %s141
    %s145 = sphi 0, %s144
    %s161 = sphi 0, %s145
  $region4: #{generator_forward.13} parent=0 // loop_header_branch
    %14 = sbr.rel (%p12) target = $region8
  $region5: #{generator_forward.13} parent=0 // loop_body
    %s16 = ssub.s32 %s11, 1
    %s17 = ssub.s32 %s11, 2
    %s24 = sadd.s32 1, %s19
    %p25 = scmp.ge.s32.totalorder %s24, 1
    %s26 = scalar_select %p25, 0, %s24
    %s27 = sadd.s32 1, %s18
    %s28 = scalar_select %p25, %s27, %s18
    %p29 = scmp.ge.s32.totalorder %s28, 4
    %s30 = scalar_select %p29, 0, %s28
    %s31 = ssub.s32 %s18, %s30
    %s32 = ssub.s32 %s19, %s26
    %s33 = sor.u32 %s31, %s32
    %p34 = scmp.eq.s32.totalorder %s33, 0
    %s36 = sadd.s32 %s35, 1
    %s37 = scalar_select %p34, %s35, %s36
    %p40 = pneg %p34
    %p41 = scmp.eq.s32.totalorder %s11, 3
    %p42 = por %p40, %p41
    %p43 = scmp.ne.s32.totalorder %s35, %s38
    %p44 = scmp.eq.s32.totalorder %s11, 0
    %p45 = por %p43, %p44
    %p46 = scmp.ne.s32.totalorder %s35, %s38
    %p47 = scmp.eq.s32.totalorder %s16, 3
    %p48 = por %p46, %p47
    %p49 = scmp.ne.s32.totalorder %s38, %s39
    %p50 = scmp.eq.s32.totalorder %s16, 0
    %p51 = por %p49, %p50
    %p52 = scmp.ne.s32.totalorder %s38, %s39
    %p53 = scmp.eq.s32.totalorder %s17, 3
    %p54 = por %p52, %p53
    %p56 = scmp.ne.s32.totalorder %s39, %s55
    %p57 = scmp.eq.s32.totalorder %s17, 0
    %p58 = por %p56, %p57
    %s59 = ssub.s32 %s18, %s30
    %p60 = scmp.eq.s32.totalorder %s59, 0
    %s62 = sadd.s32 %s61, 1
    %s63 = scalar_select %p60, %s61, %s62
    %p66 = pneg %p60
    %p67 = scmp.eq.s32.totalorder %s11, 3
    %p68 = por %p66, %p67
    %p69 = scmp.ne.s32.totalorder %s61, %s64
    %p70 = scmp.eq.s32.totalorder %s11, 0
    %p71 = por %p69, %p70
    %p72 = scmp.ne.s32.totalorder %s61, %s64
    %p73 = scmp.eq.s32.totalorder %s16, 3
    %p74 = por %p72, %p73
    %p75 = scmp.ne.s32.totalorder %s64, %s65
    %p76 = scmp.eq.s32.totalorder %s16, 0
    %p77 = por %p75, %p76
    %p78 = scmp.ne.s32.totalorder %s64, %s65
    %p79 = scmp.eq.s32.totalorder %s17, 3
    %p80 = por %p78, %p79
    %p82 = scmp.ne.s32.totalorder %s65, %s81
    %p83 = scmp.eq.s32.totalorder %s17, 0
    %p84 = por %p82, %p83
    %s85 = ssub.s32 %s18, %s30
    %s86 = ssub.s32 %s19, %s26
    %s87 = sor.u32 %s85, %s86
    %p88 = scmp.eq.s32.totalorder %s87, 0
    %s90 = sadd.s32 %s89, 1
    %s91 = scalar_select %p88, %s89, %s90
    %p94 = pneg %p88
    %p95 = scmp.eq.s32.totalorder %s11, 3
    %p96 = por %p94, %p95
    %p97 = scmp.ne.s32.totalorder %s89, %s92
    %p98 = scmp.eq.s32.totalorder %s11, 0
    %p99 = por %p97, %p98
    %p100 = scmp.ne.s32.totalorder %s89, %s92
    %p101 = scmp.eq.s32.totalorder %s16, 3
    %p102 = por %p100, %p101
    %p103 = scmp.ne.s32.totalorder %s92, %s93
    %p104 = scmp.eq.s32.totalorder %s16, 0
    %p105 = por %p103, %p104
    %p106 = scmp.ne.s32.totalorder %s92, %s93
    %p107 = scmp.eq.s32.totalorder %s17, 3
    %p108 = por %p106, %p107
    %p110 = scmp.ne.s32.totalorder %s93, %s109
    %p111 = scmp.eq.s32.totalorder %s17, 0
    %p112 = por %p110, %p111
    %s113 = ssub.s32 %s18, %s30
    %p114 = scmp.eq.s32.totalorder %s113, 0
    %s116 = sadd.s32 %s115, 1
    %s117 = scalar_select %p114, %s115, %s116
    %p120 = pneg %p114
    %p121 = scmp.eq.s32.totalorder %s11, 3
    %p122 = por %p120, %p121
    %p123 = scmp.ne.s32.totalorder %s115, %s118
    %p124 = scmp.eq.s32.totalorder %s11, 0
    %p125 = por %p123, %p124
    %p126 = scmp.ne.s32.totalorder %s115, %s118
    %p127 = scmp.eq.s32.totalorder %s16, 3
    %p128 = por %p126, %p127
    %p129 = scmp.ne.s32.totalorder %s118, %s119
    %p130 = scmp.eq.s32.totalorder %s16, 0
    %p131 = por %p129, %p130
    %p132 = scmp.ne.s32.totalorder %s118, %s119
    %p133 = scmp.eq.s32.totalorder %s17, 3
    %p134 = por %p132, %p133
    %p136 = scmp.ne.s32.totalorder %s119, %s135
    %p137 = scmp.eq.s32.totalorder %s17, 0
    %p138 = por %p136, %p137
    %s139 = ssub.s32 %s18, %s30
    %p140 = scmp.eq.s32.totalorder %s139, 0
    %s142 = sadd.s32 %s141, 1
    %s143 = scalar_select %p140, %s141, %s142
    %p146 = pneg %p140
    %p147 = scmp.eq.s32.totalorder %s11, 3
    %p148 = por %p146, %p147
    %p149 = scmp.ne.s32.totalorder %s141, %s144
    %p150 = scmp.eq.s32.totalorder %s11, 0
    %p151 = por %p149, %p150
    %p152 = scmp.ne.s32.totalorder %s141, %s144
    %p153 = scmp.eq.s32.totalorder %s16, 3
    %p154 = por %p152, %p153
    %p155 = scmp.ne.s32.totalorder %s144, %s145
    %p156 = scmp.eq.s32.totalorder %s16, 0
    %p157 = por %p155, %p156
    %p158 = scmp.ne.s32.totalorder %s144, %s145
    %p159 = scmp.eq.s32.totalorder %s17, 3
    %p160 = por %p158, %p159
    %p162 = scmp.ne.s32.totalorder %s145, %s161
    %p163 = scmp.eq.s32.totalorder %s17, 0
    %p164 = por %p162, %p163
    %p165 = scmp.le.s32.totalorder 1, %s11
    %p166 = scmp.lt.s32.totalorder %s11, 5
    %p167 = pnand %p165, %p166
    %p168 = pneg %p167
    // Predicated region
    $region9: #{generator_forward.13} parent=5 // pred_check
      _
    $region10: #{generator_forward.13} parent=5 // pred_check_branch
      %170 = sbr.rel (%p167) target = $region12
    $region11: #{generator_forward.13} parent=5 // pred_region
      %s171 = ssub.s32 %s11, 1
    $region12: #{generator_forward.13} parent=5 // pred_fallthru
      _
    %p172 = scmp.lt.s32.totalorder %s11, 4
    // Predicated region
    $region13: #{generator_forward.13} parent=5 // pred_check
      %p173 = pneg %p172
    $region14: #{generator_forward.13} parent=5 // pred_check_branch
      %175 = sbr.rel (%p173) target = $region16
    $region15: #{generator_forward.13} parent=5 // pred_region
      // Predicated region
      $region17: #{generator_forward.13} parent=15 // pred_check
        %p176 = pneg %p45
      $region18: #{generator_forward.13} parent=15 // pred_check_branch
        %178 = sbr.rel (%p176) target = $region20
      $region19: #{generator_forward.13} parent=15 // pred_region
        %s179 = smul.u32 16, %s19
        %p180 = scmp.lt.s32.totalorder %s18, 3
        %s181 = scalar_select %p180, %s18, 3
        %p182 = scmp.lt.s32.totalorder %s179, 15
        %s183 = scalar_select %p182, %s179, 15
        %s184 = smul.addr %s181, 16
        %s185 = sadd.s32 %s183, %s184
        %s186 = smul.addr %s185, 4
        %s187 = scalar_lea.vmem %s0, %s186
        %s188 = smul.u32 16, %s19
      $region20: #{generator_forward.13} parent=15 // pred_fallthru
        _
      // Predicated region
      $region21: #{generator_forward.13} parent=15 // pred_check
        %p189 = pneg %p71
      $region22: #{generator_forward.13} parent=15 // pred_check_branch
        %191 = sbr.rel (%p189) target = $region24
      $region23: #{generator_forward.13} parent=15 // pred_region
        %p192 = scmp.lt.s32.totalorder %s18, 3
        %s193 = scalar_select %p192, %s18, 3
        %s194 = smul.addr %s193, 16
        %s195 = smul.addr %s194, 4
        %s196 = scalar_lea.vmem %s1, %s195
      $region24: #{generator_forward.13} parent=15 // pred_fallthru
        _
    $region16: #{generator_forward.13} parent=5 // pred_fallthru
      _
    %p197 = scmp.le.s32.totalorder 1, %s11
    %p198 = scmp.lt.s32.totalorder %s11, 5
    %p199 = pnand %p197, %p198
    %p200 = pneg %p199
    // Predicated region
    $region25: #{generator_forward.13} parent=5 // pred_check
      _
    $region26: #{generator_forward.13} parent=5 // pred_check_branch
      %202 = sbr.rel (%p199) target = $region28
    $region27: #{generator_forward.13} parent=5 // pred_region
      %s203 = ssub.s32 %s11, 1
      %s204 = smul.u32 16, %s21
      %p205 = scmp.lt.s32.totalorder %s20, 3
      %s206 = scalar_select %p205, %s20, 3
      %p207 = scmp.lt.s32.totalorder %s204, 15
      %s208 = scalar_select %p207, %s204, 15
      %s209 = smul.addr %s206, 16
      %s210 = sadd.s32 %s208, %s209
      %s211 = smul.addr %s210, 4
      %s212 = scalar_lea.vmem %s0, %s211
      %p213 = pneg %p51
      %p214 = pneg %p48
      %p215 = scmp.lt.s32.totalorder %s20, 3
      %s216 = scalar_select %p215, %s20, 3
      %s217 = smul.addr %s216, 16
      %s218 = smul.addr %s217, 4
      %s219 = scalar_lea.vmem %s1, %s218
      %p220 = pneg %p77
      %p221 = pneg %p74
      %p222 = pneg %p105
      %p223 = pneg %p102
      %s224 = smul.u32 16, %s21
      %p225 = scmp.lt.s32.totalorder %s20, 3
      %s226 = scalar_select %p225, %s20, 3
      %p227 = scmp.lt.s32.totalorder %s224, 15
      %s228 = scalar_select %p227, %s224, 15
      %s229 = smul.addr %s226, 16
      %s230 = sadd.s32 %s228, %s229
      %s231 = smul.addr %s230, 4
      %s232 = scalar_lea.vmem %s2, %s231
      %p233 = pneg %p131
      %p234 = pneg %p128
      %p235 = scmp.lt.s32.totalorder %s20, 3
      %s236 = scalar_select %p235, %s20, 3
      %s237 = smul.addr %s236, 8
      %s238 = scalar_lea.vmem %s3, %s237
      %p239 = pneg %p157
      %p240 = pneg %p154
      %p241 = scmp.lt.s32.totalorder %s20, 3
      %s242 = scalar_select %p241, %s20, 3
      %s243 = smul.addr %s242, 8
      %s244 = scalar_lea.vmem %s4, %s243
      %s245 = smul.u32 16, %s21
      %p246 = scmp.lt.s32.totalorder %s20, 3
      %s247 = scalar_select %p246, %s20, 3
      %p248 = scmp.lt.s32.totalorder %s245, 15
      %s249 = scalar_select %p248, %s245, 15
      %s250 = smul.addr %s247, 16
      %s251 = sadd.s32 %s249, %s250
      %s252 = smul.addr %s251, 4
      %s253 = scalar_lea.vmem %s0, %s252
      %s254 = smul.u32 16, %s21
      %p255 = scmp.lt.s32.totalorder %s20, 3
      %s256 = scalar_select %p255, %s20, 3
      %s257 = smul.addr %s256, 16
      %s258 = smul.addr %s257, 4
      %s259 = scalar_lea.vmem %s1, %s258
      %s260 = smul.u32 16, %s21
      %p261 = scmp.lt.s32.totalorder %s20, 3
      %s262 = scalar_select %p261, %s20, 3
      %p263 = scmp.lt.s32.totalorder %s260, 15
      %s264 = scalar_select %p263, %s260, 15
      %s265 = smul.addr %s262, 16
      %s266 = sadd.s32 %s264, %s265
      %s267 = smul.addr %s266, 4
      %s268 = scalar_lea.vmem %s2, %s267
      %s269 = smul.u32 16, %s21
      %p270 = scmp.lt.s32.totalorder %s20, 3
      %s271 = scalar_select %p270, %s20, 3
      %s272 = smul.addr %s271, 8
      %s273 = scalar_lea.vmem %s3, %s272
      %p274 = scmp.lt.s32.totalorder %s20, 3
      %s275 = scalar_select %p274, %s20, 3
      %s276 = smul.addr %s275, 8
      %s277 = scalar_lea.vmem %s4, %s276
      %p279 = scmp.eq.s32.totalorder %s21, 0
      // Predicated region
      $region29: #{generator_forward.13} parent=27 // pred_check
        %p280 = pneg %p279
      $region30: #{generator_forward.13} parent=27 // pred_check_branch
        %282 = sbr.rel (%p280) target = $region32
      $region31: #{generator_forward.13} parent=27 // pred_region
        %283 = vst [vmem:[%s273] sm:$0xff] 0.0
        %284 = vst [vmem:[%s277] sm:$0xff] 0.0
      $region32: #{generator_forward.13} parent=27 // pred_fallthru
        _
      %v285 = vld [vmem:[%s253] sm:$0xf]
      %v286 = vld [vmem:[%s253 + $0x4] sm:$0xf]
      %v287 = vld [vmem:[%s253 + $0x8] sm:$0xf]
      %v288 = vld [vmem:[%s253 + $0xc] sm:$0xf]
      %v289 = vld [vmem:[%s253 + $0x10] sm:$0xf]
      %v290 = vld [vmem:[%s253 + $0x14] sm:$0xf]
      %v291 = vld [vmem:[%s253 + $0x18] sm:$0xf]
      %v292 = vld [vmem:[%s253 + $0x1c] sm:$0xf]
      %v293 = vld [vmem:[%s253 + $0x20] sm:$0xf]
      %v294 = vld [vmem:[%s253 + $0x24] sm:$0xf]
      %v295 = vld [vmem:[%s253 + $0x28] sm:$0xf]
      %v296 = vld [vmem:[%s253 + $0x2c] sm:$0xf]
      %v297 = vld [vmem:[%s253 + $0x30] sm:$0xf]
      %v298 = vld [vmem:[%s253 + $0x34] sm:$0xf]
      %v299 = vld [vmem:[%s253 + $0x38] sm:$0xf]
      %v300 = vld [vmem:[%s253 + $0x3c] sm:$0xf]
      %v301 = vld [vmem:[%s259] sm:$0xf]
      %v302 = vld [vmem:[%s259 + $0x4] sm:$0xf]
      %v303 = vld [vmem:[%s259 + $0x8] sm:$0xf]
      %v304 = vld [vmem:[%s259 + $0xc] sm:$0xf]
      %v305 = vld [vmem:[%s259 + $0x10] sm:$0xf]
      %v306 = vld [vmem:[%s259 + $0x14] sm:$0xf]
      %v307 = vld [vmem:[%s259 + $0x18] sm:$0xf]
      %v308 = vld [vmem:[%s259 + $0x1c] sm:$0xf]
      %v309 = vld [vmem:[%s259 + $0x20] sm:$0xf]
      %v310 = vld [vmem:[%s259 + $0x24] sm:$0xf]
      %v311 = vld [vmem:[%s259 + $0x28] sm:$0xf]
      %v312 = vld [vmem:[%s259 + $0x2c] sm:$0xf]
      %v313 = vld [vmem:[%s259 + $0x30] sm:$0xf]
      %v314 = vld [vmem:[%s259 + $0x34] sm:$0xf]
      %v315 = vld [vmem:[%s259 + $0x38] sm:$0xf]
      %v316 = vld [vmem:[%s259 + $0x3c] sm:$0xf]
      %v333 = vunpack.c.l.b16 %v285
      %v334 = vunpack.c.l.b16 %v286
      %v335 = vunpack.c.l.b16 %v287
      %v336 = vunpack.c.l.b16 %v288
      %v337 = vunpack.c.l.b16 %v289
      %v338 = vunpack.c.l.b16 %v290
      %v339 = vunpack.c.l.b16 %v291
      %v340 = vunpack.c.l.b16 %v292
      %v341 = vunpack.c.l.b16 %v293
      %v342 = vunpack.c.l.b16 %v294
      %v343 = vunpack.c.l.b16 %v295
      %v344 = vunpack.c.l.b16 %v296
      %v345 = vunpack.c.l.b16 %v297
      %v346 = vunpack.c.l.b16 %v298
      %v347 = vunpack.c.l.b16 %v299
      %v348 = vunpack.c.l.b16 %v300
      %v349 = vpack.c.b16 %v334, %v333
      %v350 = vpack.c.b16 %v336, %v335
      %v351 = vpack.c.b16 %v338, %v337
      %v352 = vpack.c.b16 %v340, %v339
      %v353 = vpack.c.b16 %v342, %v341
      %v354 = vpack.c.b16 %v344, %v343
      %v355 = vpack.c.b16 %v346, %v345
      %v356 = vpack.c.b16 %v348, %v347
      %v381 = vunpack.c.l.b16 %v301
      %v382 = vunpack.c.l.b16 %v302
      %v383 = vunpack.c.l.b16 %v303
      %v384 = vunpack.c.l.b16 %v304
      %v385 = vunpack.c.l.b16 %v305
      %v386 = vunpack.c.l.b16 %v306
      %v387 = vunpack.c.l.b16 %v307
      %v388 = vunpack.c.l.b16 %v308
      %v389 = vunpack.c.l.b16 %v309
      %v390 = vunpack.c.l.b16 %v310
      %v391 = vunpack.c.l.b16 %v311
      %v392 = vunpack.c.l.b16 %v312
      %v393 = vunpack.c.l.b16 %v313
      %v394 = vunpack.c.l.b16 %v314
      %v395 = vunpack.c.l.b16 %v315
      %v396 = vunpack.c.l.b16 %v316
      %v397 = vpack.c.b16 %v382, %v381
      %v398 = vpack.c.b16 %v384, %v383
      %v399 = vpack.c.b16 %v386, %v385
      %v400 = vpack.c.b16 %v388, %v387
      %v401 = vpack.c.b16 %v390, %v389
      %v402 = vpack.c.b16 %v392, %v391
      %v403 = vpack.c.b16 %v394, %v393
      %v404 = vpack.c.b16 %v396, %v395
      %413 = vmatprep.subr.bf16.mxu0 0
      %414 = vmatpush1.bf16.msra.mxu0 %v404
      %415 = vmatprep.subr.bf16.mxu0 0
      %416 = vmatpush1.bf16.msra.mxu0 %v403
      %417 = vmatprep.subr.bf16.mxu0 0
      %418 = vmatpush1.bf16.msra.mxu0 %v402
      %419 = vmatprep.subr.bf16.mxu0 0
      %420 = vmatpush1.bf16.msra.mxu0 %v401
      %421 = vmatprep.subr.bf16.mxu0 0
      %422 = vmatpush1.bf16.msra.mxu0 %v400
      %423 = vmatprep.subr.bf16.mxu0 0
      %424 = vmatpush1.bf16.msra.mxu0 %v399
      %425 = vmatprep.subr.bf16.mxu0 0
      %426 = vmatpush1.bf16.msra.mxu0 %v398
      %427 = vmatprep.subr.bf16.mxu0 0
      %428 = vmatpush1.bf16.msra.mxu0 %v397
      %429 = vmatprep.subr.bf16.mxu0 0
      %430 = vmatpush2.bf16.msra.mxu0 0
      %431 = vmatprep.subr.bf16.mxu0 0
      %432 = vmatpush2.bf16.msra.mxu0 0
      %433 = vmatprep.subr.bf16.mxu0 0
      %434 = vmatpush2.bf16.msra.mxu0 0
      %435 = vmatprep.subr.bf16.mxu0 0
      %436 = vmatpush2.bf16.msra.mxu0 0
      %437 = vmatprep.subr.bf16.mxu0 0
      %438 = vmatpush2.bf16.msra.mxu0 0
      %439 = vmatprep.subr.bf16.mxu0 0
      %440 = vmatpush2.bf16.msra.mxu0 0
      %441 = vmatprep.subr.bf16.mxu0 0
      %442 = vmatpush2.bf16.msra.mxu0 0
      %443 = vmatprep.subr.bf16.mxu0 0
      %444 = vmatpush2.bf16.msra.mxu0 0
      %445 = vmatprep.mubr.bf16.mxu0 0
      %446 = vmatmul.mubr.bf16.gmra.mxu0 %v349
      %v447 = vpop.f32.mrf.mxu0
      %v448 = vadd.f32 0.0, %v447
      %v449 = vpop.f32.mrf.mxu0
      %v450 = vpop.f32.mrf.mxu0
      %v451 = vadd.f32 0.0, %v450
      %v452 = vpop.f32.mrf.mxu0
      %453 = vmatprep.mubr.bf16.mxu0 0
      %454 = vmatmul.mubr.bf16.gmra.mxu0 %v350
      %v455 = vpop.f32.mrf.mxu0
      %v456 = vadd.f32 0.0, %v455
      %v457 = vpop.f32.mrf.mxu0
      %v458 = vpop.f32.mrf.mxu0
      %v459 = vadd.f32 0.0, %v458
      %v460 = vpop.f32.mrf.mxu0
      %461 = vmatprep.mubr.bf16.mxu0 0
      %462 = vmatmul.mubr.bf16.gmra.mxu0 %v351
      %v463 = vpop.f32.mrf.mxu0
      %v464 = vadd.f32 0.0, %v463
      %v465 = vpop.f32.mrf.mxu0
      %v466 = vpop.f32.mrf.mxu0
      %v467 = vadd.f32 0.0, %v466
      %v468 = vpop.f32.mrf.mxu0
      %469 = vmatprep.mubr.bf16.mxu0 0
      %470 = vmatmul.mubr.bf16.gmra.mxu0 %v352
      %v471 = vpop.f32.mrf.mxu0
      %v472 = vadd.f32 0.0, %v471
      %v473 = vpop.f32.mrf.mxu0
      %v474 = vpop.f32.mrf.mxu0
      %v475 = vadd.f32 0.0, %v474
      %v476 = vpop.f32.mrf.mxu0
      %477 = vmatprep.mubr.bf16.mxu0 0
      %478 = vmatmul.mubr.bf16.gmra.mxu0 %v353
      %v479 = vpop.f32.mrf.mxu0
      %v480 = vadd.f32 0.0, %v479
      %v481 = vpop.f32.mrf.mxu0
      %v482 = vpop.f32.mrf.mxu0
      %v483 = vadd.f32 0.0, %v482
      %v484 = vpop.f32.mrf.mxu0
      %485 = vmatprep.mubr.bf16.mxu0 0
      %486 = vmatmul.mubr.bf16.gmra.mxu0 %v354
      %v487 = vpop.f32.mrf.mxu0
      %v488 = vadd.f32 0.0, %v487
      %v489 = vpop.f32.mrf.mxu0
      %v490 = vpop.f32.mrf.mxu0
      %v491 = vadd.f32 0.0, %v490
      %v492 = vpop.f32.mrf.mxu0
      %493 = vmatprep.mubr.bf16.mxu0 0
      %494 = vmatmul.mubr.bf16.gmra.mxu0 %v355
      %v495 = vpop.f32.mrf.mxu0
      %v496 = vadd.f32 0.0, %v495
      %v497 = vpop.f32.mrf.mxu0
      %v498 = vpop.f32.mrf.mxu0
      %v499 = vadd.f32 0.0, %v498
      %v500 = vpop.f32.mrf.mxu0
      %501 = vmatprep.mubr.bf16.mxu0 0
      %502 = vmatmul.mubr.bf16.gmra.mxu0 %v356
      %v503 = vpop.f32.mrf.mxu0
      %v504 = vadd.f32 0.0, %v503
      %v505 = vpop.f32.mrf.mxu0
      %v506 = vpop.f32.mrf.mxu0
      %v507 = vadd.f32 0.0, %v506
      %v508 = vpop.f32.mrf.mxu0
      %509 = vdwg.mxu0
      %v510 = vpack.c.bf16 %v451, %v448
      %v511 = vpack.c.bf16 %v459, %v456
      %v512 = vpack.c.bf16 %v467, %v464
      %v513 = vpack.c.bf16 %v475, %v472
      %v514 = vpack.c.bf16 %v483, %v480
      %v515 = vpack.c.bf16 %v491, %v488
      %v516 = vpack.c.bf16 %v499, %v496
      %v517 = vpack.c.bf16 %v507, %v504
      %v526 = vunpack.c.l.b16 %v510
      %v527 = vunpack.c.h.b16 %v510
      %v528 = vunpack.c.l.b16 %v511
      %v529 = vunpack.c.h.b16 %v511
      %v530 = vunpack.c.l.b16 %v512
      %v531 = vunpack.c.h.b16 %v512
      %v532 = vunpack.c.l.b16 %v513
      %v533 = vunpack.c.h.b16 %v513
      %v534 = vunpack.c.l.b16 %v514
      %v535 = vunpack.c.h.b16 %v514
      %v536 = vunpack.c.l.b16 %v515
      %v537 = vunpack.c.h.b16 %v515
      %v538 = vunpack.c.l.b16 %v516
      %v539 = vunpack.c.h.b16 %v516
      %v540 = vunpack.c.l.b16 %v517
      %v541 = vunpack.c.h.b16 %v517
      %v542 = vpack.c.b16 %v526, %v526
      %v543 = vpack.c.b16 %v527, %v527
      %v544 = vpack.c.b16 %v528, %v528
      %v545 = vpack.c.b16 %v529, %v529
      %v546 = vpack.c.b16 %v530, %v530
      %v547 = vpack.c.b16 %v531, %v531
      %v548 = vpack.c.b16 %v532, %v532
      %v549 = vpack.c.b16 %v533, %v533
      %v550 = vpack.c.b16 %v534, %v534
      %v551 = vpack.c.b16 %v535, %v535
      %v552 = vpack.c.b16 %v536, %v536
      %v553 = vpack.c.b16 %v537, %v537
      %v554 = vpack.c.b16 %v538, %v538
      %v555 = vpack.c.b16 %v539, %v539
      %v556 = vpack.c.b16 %v540, %v540
      %v557 = vpack.c.b16 %v541, %v541
      %574 = vst [vmem:[%s268] sm:$0xf] %v542
      %575 = vst [vmem:[%s268 + $0x4] sm:$0xf] %v543
      %576 = vst [vmem:[%s268 + $0x8] sm:$0xf] %v544
      %577 = vst [vmem:[%s268 + $0xc] sm:$0xf] %v545
      %578 = vst [vmem:[%s268 + $0x10] sm:$0xf] %v546
      %579 = vst [vmem:[%s268 + $0x14] sm:$0xf] %v547
      %580 = vst [vmem:[%s268 + $0x18] sm:$0xf] %v548
      %581 = vst [vmem:[%s268 + $0x1c] sm:$0xf] %v549
      %582 = vst [vmem:[%s268 + $0x20] sm:$0xf] %v550
      %583 = vst [vmem:[%s268 + $0x24] sm:$0xf] %v551
      %584 = vst [vmem:[%s268 + $0x28] sm:$0xf] %v552
      %585 = vst [vmem:[%s268 + $0x2c] sm:$0xf] %v553
      %586 = vst [vmem:[%s268 + $0x30] sm:$0xf] %v554
      %587 = vst [vmem:[%s268 + $0x34] sm:$0xf] %v555
      %588 = vst [vmem:[%s268 + $0x38] sm:$0xf] %v556
      %589 = vst [vmem:[%s268 + $0x3c] sm:$0xf] %v557
      %v590 = vld [vmem:[%s273] sm:$0xff]
      %v591 = vadd.f32 %v448, %v451
      %v592 = vadd.f32 %v591, %v456
      %v593 = vadd.f32 %v592, %v459
      %v594 = vadd.f32 %v593, %v464
      %v595 = vadd.f32 %v594, %v467
      %v596 = vadd.f32 %v595, %v472
      %v597 = vadd.f32 %v596, %v475
      %v598 = vadd.f32 %v597, %v480
      %v599 = vadd.f32 %v598, %v483
      %v600 = vadd.f32 %v599, %v488
      %v601 = vadd.f32 %v600, %v491
      %v602 = vadd.f32 %v601, %v496
      %v603 = vadd.f32 %v602, %v499
      %v604 = vadd.f32 %v603, %v504
      %v605 = vadd.f32 %v604, %v507
      %v606 = vrot.slane %v605, 4
      %v607 = vadd.f32 %v605, %v606
      %v608 = vrot.slane %v607, 2
      %v609 = vadd.f32 %v607, %v608
      %v610 = vrot.slane %v609, 1
      %v611 = vadd.f32 %v609, %v610
      %v612 = vadd.f32 %v590, %v611
      %613 = vst [vmem:[%s273] sm:$0xff] %v612
      %v614 = vld [vmem:[%s277] sm:$0xff]
      %v615 = vmul.f32 %v448, %v448
      %v616 = vmul.f32 %v451, %v451
      %v617 = vmul.f32 %v456, %v456
      %v618 = vmul.f32 %v459, %v459
      %v619 = vmul.f32 %v464, %v464
      %v620 = vmul.f32 %v467, %v467
      %v621 = vmul.f32 %v472, %v472
      %v622 = vmul.f32 %v475, %v475
      %v623 = vmul.f32 %v480, %v480
      %v624 = vmul.f32 %v483, %v483
      %v625 = vmul.f32 %v488, %v488
      %v626 = vmul.f32 %v491, %v491
      %v627 = vmul.f32 %v496, %v496
      %v628 = vmul.f32 %v499, %v499
      %v629 = vmul.f32 %v504, %v504
      %v630 = vmul.f32 %v507, %v507
      %v631 = vadd.f32 %v615, %v616
      %v632 = vadd.f32 %v631, %v617
      %v633 = vadd.f32 %v632, %v618
      %v634 = vadd.f32 %v633, %v619
      %v635 = vadd.f32 %v634, %v620
      %v636 = vadd.f32 %v635, %v621
      %v637 = vadd.f32 %v636, %v622
      %v638 = vadd.f32 %v637, %v623
      %v639 = vadd.f32 %v638, %v624
      %v640 = vadd.f32 %v639, %v625
      %v641 = vadd.f32 %v640, %v626
      %v642 = vadd.f32 %v641, %v627
      %v643 = vadd.f32 %v642, %v628
      %v644 = vadd.f32 %v643, %v629
      %v645 = vadd.f32 %v644, %v630
      %v646 = vrot.slane %v645, 4
      %v647 = vadd.f32 %v645, %v646
      %v648 = vrot.slane %v647, 2
      %v649 = vadd.f32 %v647, %v648
      %v650 = vrot.slane %v649, 1
      %v651 = vadd.f32 %v649, %v650
      %v652 = vadd.f32 %v614, %v651
      %653 = vst [vmem:[%s277] sm:$0xff] %v652
      %s654 = smul.u32 16, %s21
      %p655 = scmp.lt.s32.totalorder %s20, 3
      %s656 = scalar_select %p655, %s20, 3
      %p657 = scmp.lt.s32.totalorder %s654, 15
      %s658 = scalar_select %p657, %s654, 15
      %s659 = smul.addr %s656, 16
      %s660 = sadd.s32 %s658, %s659
      %s661 = smul.addr %s660, 4
      %s662 = scalar_lea.vmem %s2, %s661
      %p663 = scmp.lt.s32.totalorder %s20, 3
      %s664 = scalar_select %p663, %s20, 3
      %s665 = smul.addr %s664, 8
      %s666 = scalar_lea.vmem %s3, %s665
      %p667 = scmp.lt.s32.totalorder %s20, 3
      %s668 = scalar_select %p667, %s20, 3
      %s669 = smul.addr %s668, 8
      %s670 = scalar_lea.vmem %s4, %s669
      // Predicated region
      $region33: #{generator_forward.13} parent=27 // pred_check
        %p671 = pneg %p102
      $region34: #{generator_forward.13} parent=27 // pred_check_branch
        %673 = sbr.rel (%p671) target = $region36
      $region35: #{generator_forward.13} parent=27 // pred_region
        %s674 = smul.u32 16, %s21
      $region36: #{generator_forward.13} parent=27 // pred_fallthru
        _
      // Predicated region
      $region37: #{generator_forward.13} parent=27 // pred_check
        %p675 = pneg %p128
      $region38: #{generator_forward.13} parent=27 // pred_check_branch
        %677 = sbr.rel (%p675) target = $region40
      $region39: #{generator_forward.13} parent=27 // pred_region
        _
      $region40: #{generator_forward.13} parent=27 // pred_fallthru
        _
      // Predicated region
      $region41: #{generator_forward.13} parent=27 // pred_check
        %p678 = pneg %p154
      $region42: #{generator_forward.13} parent=27 // pred_check_branch
        %680 = sbr.rel (%p678) target = $region44
      $region43: #{generator_forward.13} parent=27 // pred_region
        _
      $region44: #{generator_forward.13} parent=27 // pred_fallthru
        _
    $region28: #{generator_forward.13} parent=5 // pred_fallthru
      _
    %p681 = scmp.le.s32.totalorder 2, %s11
    // Predicated region
    $region45: #{generator_forward.13} parent=5 // pred_check
      %p682 = pneg %p681
    $region46: #{generator_forward.13} parent=5 // pred_check_branch
      %684 = sbr.rel (%p682) target = $region48
    $region47: #{generator_forward.13} parent=5 // pred_region
      %s685 = ssub.s32 %s11, 2
      // Predicated region
      $region49: #{generator_forward.13} parent=47 // pred_check
        %p686 = pneg %p108
      $region50: #{generator_forward.13} parent=47 // pred_check_branch
        %688 = sbr.rel (%p686) target = $region52
      $region51: #{generator_forward.13} parent=47 // pred_region
        %s689 = smul.u32 16, %s23
        %p690 = scmp.lt.s32.totalorder %s22, 3
        %s691 = scalar_select %p690, %s22, 3
        %p692 = scmp.lt.s32.totalorder %s689, 15
        %s693 = scalar_select %p692, %s689, 15
        %s694 = smul.addr %s691, 16
        %s695 = sadd.s32 %s693, %s694
        %s696 = smul.addr %s695, 4
        %s697 = scalar_lea.vmem %s2, %s696
      $region52: #{generator_forward.13} parent=47 // pred_fallthru
        _
      // Predicated region
      $region53: #{generator_forward.13} parent=47 // pred_check
        %p698 = pneg %p134
      $region54: #{generator_forward.13} parent=47 // pred_check_branch
        %700 = sbr.rel (%p698) target = $region56
      $region55: #{generator_forward.13} parent=47 // pred_region
        %p701 = scmp.lt.s32.totalorder %s22, 3
        %s702 = scalar_select %p701, %s22, 3
        %s703 = smul.addr %s702, 8
        %s704 = scalar_lea.vmem %s3, %s703
      $region56: #{generator_forward.13} parent=47 // pred_fallthru
        _
      // Predicated region
      $region57: #{generator_forward.13} parent=47 // pred_check
        %p705 = pneg %p160
      $region58: #{generator_forward.13} parent=47 // pred_check_branch
        %707 = sbr.rel (%p705) target = $region60
      $region59: #{generator_forward.13} parent=47 // pred_region
        %p708 = scmp.lt.s32.totalorder %s22, 3
        %s709 = scalar_select %p708, %s22, 3
        %s710 = smul.addr %s709, 8
        %s711 = scalar_lea.vmem %s4, %s710
      $region60: #{generator_forward.13} parent=47 // pred_fallthru
        _
    $region48: #{generator_forward.13} parent=5 // pred_fallthru
      _
  $region6: #{generator_forward.13} parent=0 // loop_footer
    %s15 = sadd.s32 1, %s11
  $region7: #{generator_forward.13} parent=0 // loop_footer_branch
    %10 = sbr.rel target = $region3
  $region8: #{generator_forward.13} parent=0 // loop_exit
    _

// kernel: generator_forward.14
$region0: #{generator_forward.14}
  #allocation0 [shape = 'u32[]', space=smem, size = 0x4, offset = 0x4, fixed_abs, tag = 'smem constant byte address 0x4 - core index']
  #allocation1 [shape = 'u32[144,128]{1,0:T(1,128)}', space=vmem, size = 0x12000, scoped, tag = 'internal scratch']
  %s0 = inlined_call_operand.vmem [shape: bf16[512,128], index: 0, kind: input, shape index: {}]
  %s1 = inlined_call_operand.vmem [shape: f32[1,128], index: 1, kind: input, shape index: {}]
  %s2 = inlined_call_operand.vmem [shape: f32[1,128], index: 2, kind: input, shape index: {}]
  %s3 = inlined_call_operand.vmem [shape: bf16[512,128], index: 3, kind: output, shape index: {}]
  %s4 = sld [smem:[#allocation0]]
  $region45: #{generator_forward.14} parent=0
    _
  %s6 = ssub.s32 1, %s4
  %s7 = scalar_select 0, %s6, %s4
  loop: start=0, step=1, limit=6
  $region2: #{generator_forward.14} parent=0 // loop_pre_header
    _
  $region3: #{generator_forward.14} parent=0 // loop_header
    %s9 = sphi 0, %s13
    %p10 = scmp.ge.s32.totalorder %s9, 6
    %s19 = sphi 0, %s21
    %s22 = sphi 0, %s19
    %s23 = sphi 0, %s22
    %s39 = sphi 0, %s23
    %s43 = sphi 0, %s43
    %s45 = sphi 0, %s43
    %s46 = sphi 0, %s45
    %s60 = sphi 0, %s46
    %s64 = sphi 0, %s64
    %s66 = sphi 0, %s64
    %s67 = sphi 0, %s66
    %s81 = sphi 0, %s67
    %s87 = sphi 0, %s89
    %s90 = sphi 0, %s87
    %s91 = sphi 0, %s90
    %s107 = sphi 0, %s91
  $region4: #{generator_forward.14} parent=0 // loop_header_branch
    %12 = sbr.rel (%p10) target = $region8
  $region5: #{generator_forward.14} parent=0 // loop_body
    %s14 = ssub.s32 %s9, 1
    %s15 = ssub.s32 %s9, 2
    %s16 = sadd.s32 %s9, 1
    %s17 = ssub.s32 %s9, %s16
    %p18 = scmp.eq.s32.totalorder %s17, 0
    %s20 = sadd.s32 %s19, 1
    %s21 = scalar_select %p18, %s19, %s20
    %p24 = pneg %p18
    %p25 = scmp.eq.s32.totalorder %s9, 3
    %p26 = por %p24, %p25
    %p27 = scmp.ne.s32.totalorder %s19, %s22
    %p28 = scmp.eq.s32.totalorder %s9, 0
    %p29 = por %p27, %p28
    %p30 = scmp.ne.s32.totalorder %s19, %s22
    %p31 = scmp.eq.s32.totalorder %s14, 3
    %p32 = por %p30, %p31
    %p33 = scmp.ne.s32.totalorder %s22, %s23
    %p34 = scmp.eq.s32.totalorder %s14, 0
    %p35 = por %p33, %p34
    %p36 = scmp.ne.s32.totalorder %s22, %s23
    %p37 = scmp.eq.s32.totalorder %s15, 3
    %p38 = por %p36, %p37
    %p40 = scmp.ne.s32.totalorder %s23, %s39
    %p41 = scmp.eq.s32.totalorder %s15, 0
    %p42 = por %p40, %p41
    %s44 = sadd.s32 %s43, 1
    %p47 = scmp.eq.s32.totalorder %s9, 3
    %p48 = scmp.ne.s32.totalorder %s43, %s45
    %p49 = scmp.eq.s32.totalorder %s9, 0
    %p50 = por %p48, %p49
    %p51 = scmp.ne.s32.totalorder %s43, %s45
    %p52 = scmp.eq.s32.totalorder %s14, 3
    %p53 = por %p51, %p52
    %p54 = scmp.ne.s32.totalorder %s45, %s46
    %p55 = scmp.eq.s32.totalorder %s14, 0
    %p56 = por %p54, %p55
    %p57 = scmp.ne.s32.totalorder %s45, %s46
    %p58 = scmp.eq.s32.totalorder %s15, 3
    %p59 = por %p57, %p58
    %p61 = scmp.ne.s32.totalorder %s46, %s60
    %p62 = scmp.eq.s32.totalorder %s15, 0
    %p63 = por %p61, %p62
    %s65 = sadd.s32 %s64, 1
    %p68 = scmp.eq.s32.totalorder %s9, 3
    %p69 = scmp.ne.s32.totalorder %s64, %s66
    %p70 = scmp.eq.s32.totalorder %s9, 0
    %p71 = por %p69, %p70
    %p72 = scmp.ne.s32.totalorder %s64, %s66
    %p73 = scmp.eq.s32.totalorder %s14, 3
    %p74 = por %p72, %p73
    %p75 = scmp.ne.s32.totalorder %s66, %s67
    %p76 = scmp.eq.s32.totalorder %s14, 0
    %p77 = por %p75, %p76
    %p78 = scmp.ne.s32.totalorder %s66, %s67
    %p79 = scmp.eq.s32.totalorder %s15, 3
    %p80 = por %p78, %p79
    %p82 = scmp.ne.s32.totalorder %s67, %s81
    %p83 = scmp.eq.s32.totalorder %s15, 0
    %p84 = por %p82, %p83
    %s85 = ssub.s32 %s9, %s16
    %p86 = scmp.eq.s32.totalorder %s85, 0
    %s88 = sadd.s32 %s87, 1
    %s89 = scalar_select %p86, %s87, %s88
    %p92 = pneg %p86
    %p93 = scmp.eq.s32.totalorder %s9, 3
    %p94 = por %p92, %p93
    %p95 = scmp.ne.s32.totalorder %s87, %s90
    %p96 = scmp.eq.s32.totalorder %s9, 0
    %p97 = por %p95, %p96
    %p98 = scmp.ne.s32.totalorder %s87, %s90
    %p99 = scmp.eq.s32.totalorder %s14, 3
    %p100 = por %p98, %p99
    %p101 = scmp.ne.s32.totalorder %s90, %s91
    %p102 = scmp.eq.s32.totalorder %s14, 0
    %p103 = por %p101, %p102
    %p104 = scmp.ne.s32.totalorder %s90, %s91
    %p105 = scmp.eq.s32.totalorder %s15, 3
    %p106 = por %p104, %p105
    %p108 = scmp.ne.s32.totalorder %s91, %s107
    %p109 = scmp.eq.s32.totalorder %s15, 0
    %p110 = por %p108, %p109
    %p111 = scmp.le.s32.totalorder 1, %s9
    %p112 = scmp.lt.s32.totalorder %s9, 5
    %p113 = pnand %p111, %p112
    %p114 = pneg %p113
    // Predicated region
    $region9: #{generator_forward.14} parent=5 // pred_check
      _
    $region10: #{generator_forward.14} parent=5 // pred_check_branch
      %116 = sbr.rel (%p113) target = $region12
    $region11: #{generator_forward.14} parent=5 // pred_region
      %s117 = ssub.s32 %s9, 1
      // Predicated region
      $region13: #{generator_forward.14} parent=11 // pred_check
        %p118 = pneg %p56
      $region14: #{generator_forward.14} parent=11 // pred_check_branch
        %120 = sbr.rel (%p118) target = $region16
      $region15: #{generator_forward.14} parent=11 // pred_region
        _
      $region16: #{generator_forward.14} parent=11 // pred_fallthru
        _
      // Predicated region
      $region17: #{generator_forward.14} parent=11 // pred_check
        %p121 = pneg %p77
      $region18: #{generator_forward.14} parent=11 // pred_check_branch
        %123 = sbr.rel (%p121) target = $region20
      $region19: #{generator_forward.14} parent=11 // pred_region
        _
      $region20: #{generator_forward.14} parent=11 // pred_fallthru
        _
    $region12: #{generator_forward.14} parent=5 // pred_fallthru
      _
    %p124 = scmp.lt.s32.totalorder %s9, 4
    // Predicated region
    $region21: #{generator_forward.14} parent=5 // pred_check
      %p125 = pneg %p124
    $region22: #{generator_forward.14} parent=5 // pred_check_branch
      %127 = sbr.rel (%p125) target = $region24
    $region23: #{generator_forward.14} parent=5 // pred_region
      // Predicated region
      $region25: #{generator_forward.14} parent=23 // pred_check
        %p128 = pneg %p29
      $region26: #{generator_forward.14} parent=23 // pred_check_branch
        %130 = sbr.rel (%p128) target = $region28
      $region27: #{generator_forward.14} parent=23 // pred_region
        %s131 = smul.u32 16, %s9
        %p132 = scmp.lt.s32.totalorder %s131, 63
        %s133 = scalar_select %p132, %s131, 63
        %s134 = smul.addr %s133, 4
        %s135 = scalar_lea.vmem %s0, %s134
        %s136 = smul.u32 16, %s9
      $region28: #{generator_forward.14} parent=23 // pred_fallthru
        _
    $region24: #{generator_forward.14} parent=5 // pred_fallthru
      _
    %p137 = scmp.le.s32.totalorder 1, %s9
    %p138 = scmp.lt.s32.totalorder %s9, 5
    %p139 = pnand %p137, %p138
    %p140 = pneg %p139
    // Predicated region
    $region29: #{generator_forward.14} parent=5 // pred_check
      _
    $region30: #{generator_forward.14} parent=5 // pred_check_branch
      %142 = sbr.rel (%p139) target = $region32
    $region31: #{generator_forward.14} parent=5 // pred_region
      %s143 = ssub.s32 %s9, 1
      %s144 = smul.u32 16, %s14
      %p145 = scmp.lt.s32.totalorder %s144, 63
      %s146 = scalar_select %p145, %s144, 63
      %s147 = smul.addr %s146, 4
      %s148 = scalar_lea.vmem %s0, %s147
      %p149 = pneg %p35
      %p150 = pneg %p32
      %p151 = pneg %p56
      %p152 = pneg %p53
      %p153 = pneg %p77
      %p154 = pneg %p74
      %p155 = pneg %p103
      %p156 = pneg %p100
      %s157 = smul.u32 16, %s14
      %p158 = scmp.lt.s32.totalorder %s157, 63
      %s159 = scalar_select %p158, %s157, 63
      %s160 = smul.addr %s159, 4
      %s161 = scalar_lea.vmem %s3, %s160
      %s162 = smul.u32 16, %s14
      %p163 = scmp.lt.s32.totalorder %s162, 63
      %s164 = scalar_select %p163, %s162, 63
      %s165 = smul.addr %s164, 4
      %s166 = scalar_lea.vmem %s0, %s165
      %s167 = smul.u32 16, %s14
      %s168 = smul.u32 16, %s14
      %p169 = scmp.lt.s32.totalorder %s168, 63
      %s170 = scalar_select %p169, %s168, 63
      %s171 = smul.addr %s170, 4
      %s172 = scalar_lea.vmem %s3, %s171
      %s173 = smul.u32 16, %s14
      %v174 = vld [vmem:[%s166] sm:$0xf]
      %v175 = vld [vmem:[%s166 + $0x4] sm:$0xf]
      %v176 = vld [vmem:[%s166 + $0x8] sm:$0xf]
      %v177 = vld [vmem:[%s166 + $0xc] sm:$0xf]
      %v178 = vld [vmem:[%s166 + $0x10] sm:$0xf]
      %v179 = vld [vmem:[%s166 + $0x14] sm:$0xf]
      %v180 = vld [vmem:[%s166 + $0x18] sm:$0xf]
      %v181 = vld [vmem:[%s166 + $0x1c] sm:$0xf]
      %v182 = vld [vmem:[%s166 + $0x20] sm:$0xf]
      %v183 = vld [vmem:[%s166 + $0x24] sm:$0xf]
      %v184 = vld [vmem:[%s166 + $0x28] sm:$0xf]
      %v185 = vld [vmem:[%s166 + $0x2c] sm:$0xf]
      %v186 = vld [vmem:[%s166 + $0x30] sm:$0xf]
      %v187 = vld [vmem:[%s166 + $0x34] sm:$0xf]
      %v188 = vld [vmem:[%s166 + $0x38] sm:$0xf]
      %v189 = vld [vmem:[%s166 + $0x3c] sm:$0xf]
      %v190 = vunpack.c.l.bf16 %v174
      %v191 = vunpack.c.l.bf16 %v175
      %v192 = vunpack.c.l.bf16 %v176
      %v193 = vunpack.c.l.bf16 %v177
      %v194 = vunpack.c.l.bf16 %v178
      %v195 = vunpack.c.l.bf16 %v179
      %v196 = vunpack.c.l.bf16 %v180
      %v197 = vunpack.c.l.bf16 %v181
      %v198 = vunpack.c.l.bf16 %v182
      %v199 = vunpack.c.l.bf16 %v183
      %v200 = vunpack.c.l.bf16 %v184
      %v201 = vunpack.c.l.bf16 %v185
      %v202 = vunpack.c.l.bf16 %v186
      %v203 = vunpack.c.l.bf16 %v187
      %v204 = vunpack.c.l.bf16 %v188
      %v205 = vunpack.c.l.bf16 %v189
      %v206 = vld [vmem:[%s1] sm:$0x1]
      %v208 = vlaneseq
      %v209 = vshrl.u32 %v208, 7
      %v210 = vsub.s32 0, %v209
      %v211 = vrot.slane %v206, %v210
      %v213 = vmul.f32 %v190, %v211
      %v214 = vmul.f32 %v191, %v211
      %v215 = vmul.f32 %v192, %v211
      %v216 = vmul.f32 %v193, %v211
      %v217 = vmul.f32 %v194, %v211
      %v218 = vmul.f32 %v195, %v211
      %v219 = vmul.f32 %v196, %v211
      %v220 = vmul.f32 %v197, %v211
      %v221 = vmul.f32 %v198, %v211
      %v222 = vmul.f32 %v199, %v211
      %v223 = vmul.f32 %v200, %v211
      %v224 = vmul.f32 %v201, %v211
      %v225 = vmul.f32 %v202, %v211
      %v226 = vmul.f32 %v203, %v211
      %v227 = vmul.f32 %v204, %v211
      %v228 = vmul.f32 %v205, %v211
      %v229 = vld [vmem:[%s2] sm:$0x1]
      %v231 = vlaneseq
      %v232 = vshrl.u32 %v231, 7
      %v233 = vsub.s32 0, %v232
      %v234 = vrot.slane %v229, %v233
      %v236 = vadd.f32 %v213, %v234
      %v237 = vadd.f32 %v214, %v234
      %v238 = vadd.f32 %v215, %v234
      %v239 = vadd.f32 %v216, %v234
      %v240 = vadd.f32 %v217, %v234
      %v241 = vadd.f32 %v218, %v234
      %v242 = vadd.f32 %v219, %v234
      %v243 = vadd.f32 %v220, %v234
      %v244 = vadd.f32 %v221, %v234
      %v245 = vadd.f32 %v222, %v234
      %v246 = vadd.f32 %v223, %v234
      %v247 = vadd.f32 %v224, %v234
      %v248 = vadd.f32 %v225, %v234
      %v249 = vadd.f32 %v226, %v234
      %v250 = vadd.f32 %v227, %v234
      %v251 = vadd.f32 %v228, %v234
      %v252 = vmax.f32 %v236, 0.0
      %v253 = vmax.f32 %v237, 0.0
      %v254 = vmax.f32 %v238, 0.0
      %v255 = vmax.f32 %v239, 0.0
      %v256 = vmax.f32 %v240, 0.0
      %v257 = vmax.f32 %v241, 0.0
      %v258 = vmax.f32 %v242, 0.0
      %v259 = vmax.f32 %v243, 0.0
      %v260 = vmax.f32 %v244, 0.0
      %v261 = vmax.f32 %v245, 0.0
      %v262 = vmax.f32 %v246, 0.0
      %v263 = vmax.f32 %v247, 0.0
      %v264 = vmax.f32 %v248, 0.0
      %v265 = vmax.f32 %v249, 0.0
      %v266 = vmax.f32 %v250, 0.0
      %v267 = vmax.f32 %v251, 0.0
      %v268 = vpack.c.bf16 %v253, %v252
      %v269 = vpack.c.bf16 %v255, %v254
      %v270 = vpack.c.bf16 %v257, %v256
      %v271 = vpack.c.bf16 %v259, %v258
      %v272 = vpack.c.bf16 %v261, %v260
      %v273 = vpack.c.bf16 %v263, %v262
      %v274 = vpack.c.bf16 %v265, %v264
      %v275 = vpack.c.bf16 %v267, %v266
      %v284 = vunpack.c.l.b16 %v268
      %v285 = vunpack.c.h.b16 %v268
      %v286 = vunpack.c.l.b16 %v269
      %v287 = vunpack.c.h.b16 %v269
      %v288 = vunpack.c.l.b16 %v270
      %v289 = vunpack.c.h.b16 %v270
      %v290 = vunpack.c.l.b16 %v271
      %v291 = vunpack.c.h.b16 %v271
      %v292 = vunpack.c.l.b16 %v272
      %v293 = vunpack.c.h.b16 %v272
      %v294 = vunpack.c.l.b16 %v273
      %v295 = vunpack.c.h.b16 %v273
      %v296 = vunpack.c.l.b16 %v274
      %v297 = vunpack.c.h.b16 %v274
      %v298 = vunpack.c.l.b16 %v275
      %v299 = vunpack.c.h.b16 %v275
      %v300 = vpack.c.b16 %v284, %v284
      %v301 = vpack.c.b16 %v285, %v285
      %v302 = vpack.c.b16 %v286, %v286
      %v303 = vpack.c.b16 %v287, %v287
      %v304 = vpack.c.b16 %v288, %v288
      %v305 = vpack.c.b16 %v289, %v289
      %v306 = vpack.c.b16 %v290, %v290
      %v307 = vpack.c.b16 %v291, %v291
      %v308 = vpack.c.b16 %v292, %v292
      %v309 = vpack.c.b16 %v293, %v293
      %v310 = vpack.c.b16 %v294, %v294
      %v311 = vpack.c.b16 %v295, %v295
      %v312 = vpack.c.b16 %v296, %v296
      %v313 = vpack.c.b16 %v297, %v297
      %v314 = vpack.c.b16 %v298, %v298
      %v315 = vpack.c.b16 %v299, %v299
      %332 = vst [vmem:[%s172] sm:$0xf] %v300
      %333 = vst [vmem:[%s172 + $0x4] sm:$0xf] %v301
      %334 = vst [vmem:[%s172 + $0x8] sm:$0xf] %v302
      %335 = vst [vmem:[%s172 + $0xc] sm:$0xf] %v303
      %336 = vst [vmem:[%s172 + $0x10] sm:$0xf] %v304
      %337 = vst [vmem:[%s172 + $0x14] sm:$0xf] %v305
      %338 = vst [vmem:[%s172 + $0x18] sm:$0xf] %v306
      %339 = vst [vmem:[%s172 + $0x1c] sm:$0xf] %v307
      %340 = vst [vmem:[%s172 + $0x20] sm:$0xf] %v308
      %341 = vst [vmem:[%s172 + $0x24] sm:$0xf] %v309
      %342 = vst [vmem:[%s172 + $0x28] sm:$0xf] %v310
      %343 = vst [vmem:[%s172 + $0x2c] sm:$0xf] %v311
      %344 = vst [vmem:[%s172 + $0x30] sm:$0xf] %v312
      %345 = vst [vmem:[%s172 + $0x34] sm:$0xf] %v313
      %346 = vst [vmem:[%s172 + $0x38] sm:$0xf] %v314
      %347 = vst [vmem:[%s172 + $0x3c] sm:$0xf] %v315
      %s348 = smul.u32 16, %s14
      %p349 = scmp.lt.s32.totalorder %s348, 63
      %s350 = scalar_select %p349, %s348, 63
      %s351 = smul.addr %s350, 4
      %s352 = scalar_lea.vmem %s3, %s351
      // Predicated region
      $region33: #{generator_forward.14} parent=31 // pred_check
        %p353 = pneg %p100
      $region34: #{generator_forward.14} parent=31 // pred_check_branch
        %355 = sbr.rel (%p353) target = $region36
      $region35: #{generator_forward.14} parent=31 // pred_region
        %s356 = smul.u32 16, %s14
      $region36: #{generator_forward.14} parent=31 // pred_fallthru
        _
    $region32: #{generator_forward.14} parent=5 // pred_fallthru
      _
    %p357 = scmp.le.s32.totalorder 2, %s9
    // Predicated region
    $region37: #{generator_forward.14} parent=5 // pred_check
      %p358 = pneg %p357
    $region38: #{generator_forward.14} parent=5 // pred_check_branch
      %360 = sbr.rel (%p358) target = $region40
    $region39: #{generator_forward.14} parent=5 // pred_region
      %s361 = ssub.s32 %s9, 2
      // Predicated region
      $region41: #{generator_forward.14} parent=39 // pred_check
        %p362 = pneg %p106
      $region42: #{generator_forward.14} parent=39 // pred_check_branch
        %364 = sbr.rel (%p362) target = $region44
      $region43: #{generator_forward.14} parent=39 // pred_region
        %s365 = smul.u32 16, %s15
        %p366 = scmp.lt.s32.totalorder %s365, 63
        %s367 = scalar_select %p366, %s365, 63
        %s368 = smul.addr %s367, 4
        %s369 = scalar_lea.vmem %s3, %s368
      $region44: #{generator_forward.14} parent=39 // pred_fallthru
        _
    $region40: #{generator_forward.14} parent=5 // pred_fallthru
      _
  $region6: #{generator_forward.14} parent=0 // loop_footer
    %s13 = sadd.s32 1, %s9
  $region7: #{generator_forward.14} parent=0 // loop_footer_branch
    %8 = sbr.rel target = $region3
  $region8: #{generator_forward.14} parent=0 // loop_exit
    _

// kernel: generator_forward.15
$region0: #{generator_forward.15}
  #allocation0 [shape = 'u32[]', space=smem, size = 0x4, offset = 0x4, fixed_abs, tag = 'smem constant byte address 0x4 - core index']
  #allocation1 [shape = 'u32[144,128]{1,0:T(1,128)}', space=vmem, size = 0x12000, scoped, tag = 'internal scratch']
  %s0 = inlined_call_operand.vmem [shape: bf16[4,512,64], index: 0, kind: input, shape index: {}]
  %s1 = inlined_call_operand.vmem [shape: bf16[4,64,128], index: 1, kind: input, shape index: {}]
  %s2 = inlined_call_operand.vmem [shape: bf16[4,512,128], index: 2, kind: output, shape index: {0}]
  %s3 = inlined_call_operand.vmem [shape: f32[4,8,128], index: 3, kind: output, shape index: {1}]
  %s4 = inlined_call_operand.vmem [shape: f32[4,8,128], index: 4, kind: output, shape index: {2}]
  %5 = xla_tuple %s2, %s3, %s4
  %s6 = sld [smem:[#allocation0]]
  $region61: #{generator_forward.15} parent=0
    _
  %s8 = ssub.s32 1, %s6
  %s9 = scalar_select 0, %s8, %s6
  loop: start=0, step=1, limit=6
  $region2: #{generator_forward.15} parent=0 // loop_pre_header
    _
  $region3: #{generator_forward.15} parent=0 // loop_header
    %s11 = sphi 0, %s15
    %p12 = scmp.ge.s32.totalorder %s11, 6
    %s18 = sphi 0, %s30
    %s19 = sphi 0, %s26
    %s20 = sphi 0, %s18
    %s21 = sphi 0, %s19
    %s22 = sphi 0, %s20
    %s23 = sphi 0, %s21
    %s35 = sphi 0, %s37
    %s38 = sphi 0, %s35
    %s39 = sphi 0, %s38
    %s55 = sphi 0, %s39
    %s61 = sphi 0, %s63
    %s64 = sphi 0, %s61
    %s65 = sphi 0, %s64
    %s81 = sphi 0, %s65
    %s89 = sphi 0, %s91
    %s92 = sphi 0, %s89
    %s93 = sphi 0, %s92
    %s109 = sphi 0, %s93
    %s115 = sphi 0, %s117
    %s118 = sphi 0, %s115
    %s119 = sphi 0, %s118
    %s135 = sphi 0, %s119
    %s141 = sphi 0, %s143
    %s144 = sphi 0, %s141
    %s145 = sphi 0, %s144
    %s161 = sphi 0, %s145
  $region4: #{generator_forward.15} parent=0 // loop_header_branch
    %14 = sbr.rel (%p12) target = $region8
  $region5: #{generator_forward.15} parent=0 // loop_body
    %s16 = ssub.s32 %s11, 1
    %s17 = ssub.s32 %s11, 2
    %s24 = sadd.s32 1, %s19
    %p25 = scmp.ge.s32.totalorder %s24, 1
    %s26 = scalar_select %p25, 0, %s24
    %s27 = sadd.s32 1, %s18
    %s28 = scalar_select %p25, %s27, %s18
    %p29 = scmp.ge.s32.totalorder %s28, 4
    %s30 = scalar_select %p29, 0, %s28
    %s31 = ssub.s32 %s18, %s30
    %s32 = ssub.s32 %s19, %s26
    %s33 = sor.u32 %s31, %s32
    %p34 = scmp.eq.s32.totalorder %s33, 0
    %s36 = sadd.s32 %s35, 1
    %s37 = scalar_select %p34, %s35, %s36
    %p40 = pneg %p34
    %p41 = scmp.eq.s32.totalorder %s11, 3
    %p42 = por %p40, %p41
    %p43 = scmp.ne.s32.totalorder %s35, %s38
    %p44 = scmp.eq.s32.totalorder %s11, 0
    %p45 = por %p43, %p44
    %p46 = scmp.ne.s32.totalorder %s35, %s38
    %p47 = scmp.eq.s32.totalorder %s16, 3
    %p48 = por %p46, %p47
    %p49 = scmp.ne.s32.totalorder %s38, %s39
    %p50 = scmp.eq.s32.totalorder %s16, 0
    %p51 = por %p49, %p50
    %p52 = scmp.ne.s32.totalorder %s38, %s39
    %p53 = scmp.eq.s32.totalorder %s17, 3
    %p54 = por %p52, %p53
    %p56 = scmp.ne.s32.totalorder %s39, %s55
    %p57 = scmp.eq.s32.totalorder %s17, 0
    %p58 = por %p56, %p57
    %s59 = ssub.s32 %s18, %s30
    %p60 = scmp.eq.s32.totalorder %s59, 0
    %s62 = sadd.s32 %s61, 1
    %s63 = scalar_select %p60, %s61, %s62
    %p66 = pneg %p60
    %p67 = scmp.eq.s32.totalorder %s11, 3
    %p68 = por %p66, %p67
    %p69 = scmp.ne.s32.totalorder %s61, %s64
    %p70 = scmp.eq.s32.totalorder %s11, 0
    %p71 = por %p69, %p70
    %p72 = scmp.ne.s32.totalorder %s61, %s64
    %p73 = scmp.eq.s32.totalorder %s16, 3
    %p74 = por %p72, %p73
    %p75 = scmp.ne.s32.totalorder %s64, %s65
    %p76 = scmp.eq.s32.totalorder %s16, 0
    %p77 = por %p75, %p76
    %p78 = scmp.ne.s32.totalorder %s64, %s65
    %p79 = scmp.eq.s32.totalorder %s17, 3
    %p80 = por %p78, %p79
    %p82 = scmp.ne.s32.totalorder %s65, %s81
    %p83 = scmp.eq.s32.totalorder %s17, 0
    %p84 = por %p82, %p83
    %s85 = ssub.s32 %s18, %s30
    %s86 = ssub.s32 %s19, %s26
    %s87 = sor.u32 %s85, %s86
    %p88 = scmp.eq.s32.totalorder %s87, 0
    %s90 = sadd.s32 %s89, 1
    %s91 = scalar_select %p88, %s89, %s90
    %p94 = pneg %p88
    %p95 = scmp.eq.s32.totalorder %s11, 3
    %p96 = por %p94, %p95
    %p97 = scmp.ne.s32.totalorder %s89, %s92
    %p98 = scmp.eq.s32.totalorder %s11, 0
    %p99 = por %p97, %p98
    %p100 = scmp.ne.s32.totalorder %s89, %s92
    %p101 = scmp.eq.s32.totalorder %s16, 3
    %p102 = por %p100, %p101
    %p103 = scmp.ne.s32.totalorder %s92, %s93
    %p104 = scmp.eq.s32.totalorder %s16, 0
    %p105 = por %p103, %p104
    %p106 = scmp.ne.s32.totalorder %s92, %s93
    %p107 = scmp.eq.s32.totalorder %s17, 3
    %p108 = por %p106, %p107
    %p110 = scmp.ne.s32.totalorder %s93, %s109
    %p111 = scmp.eq.s32.totalorder %s17, 0
    %p112 = por %p110, %p111
    %s113 = ssub.s32 %s18, %s30
    %p114 = scmp.eq.s32.totalorder %s113, 0
    %s116 = sadd.s32 %s115, 1
    %s117 = scalar_select %p114, %s115, %s116
    %p120 = pneg %p114
    %p121 = scmp.eq.s32.totalorder %s11, 3
    %p122 = por %p120, %p121
    %p123 = scmp.ne.s32.totalorder %s115, %s118
    %p124 = scmp.eq.s32.totalorder %s11, 0
    %p125 = por %p123, %p124
    %p126 = scmp.ne.s32.totalorder %s115, %s118
    %p127 = scmp.eq.s32.totalorder %s16, 3
    %p128 = por %p126, %p127
    %p129 = scmp.ne.s32.totalorder %s118, %s119
    %p130 = scmp.eq.s32.totalorder %s16, 0
    %p131 = por %p129, %p130
    %p132 = scmp.ne.s32.totalorder %s118, %s119
    %p133 = scmp.eq.s32.totalorder %s17, 3
    %p134 = por %p132, %p133
    %p136 = scmp.ne.s32.totalorder %s119, %s135
    %p137 = scmp.eq.s32.totalorder %s17, 0
    %p138 = por %p136, %p137
    %s139 = ssub.s32 %s18, %s30
    %p140 = scmp.eq.s32.totalorder %s139, 0
    %s142 = sadd.s32 %s141, 1
    %s143 = scalar_select %p140, %s141, %s142
    %p146 = pneg %p140
    %p147 = scmp.eq.s32.totalorder %s11, 3
    %p148 = por %p146, %p147
    %p149 = scmp.ne.s32.totalorder %s141, %s144
    %p150 = scmp.eq.s32.totalorder %s11, 0
    %p151 = por %p149, %p150
    %p152 = scmp.ne.s32.totalorder %s141, %s144
    %p153 = scmp.eq.s32.totalorder %s16, 3
    %p154 = por %p152, %p153
    %p155 = scmp.ne.s32.totalorder %s144, %s145
    %p156 = scmp.eq.s32.totalorder %s16, 0
    %p157 = por %p155, %p156
    %p158 = scmp.ne.s32.totalorder %s144, %s145
    %p159 = scmp.eq.s32.totalorder %s17, 3
    %p160 = por %p158, %p159
    %p162 = scmp.ne.s32.totalorder %s145, %s161
    %p163 = scmp.eq.s32.totalorder %s17, 0
    %p164 = por %p162, %p163
    %p165 = scmp.le.s32.totalorder 1, %s11
    %p166 = scmp.lt.s32.totalorder %s11, 5
    %p167 = pnand %p165, %p166
    %p168 = pneg %p167
    // Predicated region
    $region9: #{generator_forward.15} parent=5 // pred_check
      _
    $region10: #{generator_forward.15} parent=5 // pred_check_branch
      %170 = sbr.rel (%p167) target = $region12
    $region11: #{generator_forward.15} parent=5 // pred_region
      %s171 = ssub.s32 %s11, 1
    $region12: #{generator_forward.15} parent=5 // pred_fallthru
      _
    %p172 = scmp.lt.s32.totalorder %s11, 4
    // Predicated region
    $region13: #{generator_forward.15} parent=5 // pred_check
      %p173 = pneg %p172
    $region14: #{generator_forward.15} parent=5 // pred_check_branch
      %175 = sbr.rel (%p173) target = $region16
    $region15: #{generator_forward.15} parent=5 // pred_region
      // Predicated region
      $region17: #{generator_forward.15} parent=15 // pred_check
        %p176 = pneg %p45
      $region18: #{generator_forward.15} parent=15 // pred_check_branch
        %178 = sbr.rel (%p176) target = $region20
      $region19: #{generator_forward.15} parent=15 // pred_region
        %s179 = smul.u32 64, %s19
        %p180 = scmp.lt.s32.totalorder %s18, 3
        %s181 = scalar_select %p180, %s18, 3
        %p182 = scmp.lt.s32.totalorder %s179, 63
        %s183 = scalar_select %p182, %s179, 63
        %s184 = smul.addr %s181, 64
        %s185 = sadd.s32 %s183, %s184
        %s186 = smul.addr %s185, 4
        %s187 = scalar_lea.vmem %s0, %s186
        %s188 = smul.u32 64, %s19
      $region20: #{generator_forward.15} parent=15 // pred_fallthru
        _
      // Predicated region
      $region21: #{generator_forward.15} parent=15 // pred_check
        %p189 = pneg %p71
      $region22: #{generator_forward.15} parent=15 // pred_check_branch
        %191 = sbr.rel (%p189) target = $region24
      $region23: #{generator_forward.15} parent=15 // pred_region
        %p192 = scmp.lt.s32.totalorder %s18, 3
        %s193 = scalar_select %p192, %s18, 3
        %s194 = smul.addr %s193, 8
        %s195 = smul.addr %s194, 4
        %s196 = scalar_lea.vmem %s1, %s195
      $region24: #{generator_forward.15} parent=15 // pred_fallthru
        _
    $region16: #{generator_forward.15} parent=5 // pred_fallthru
      _
    %p197 = scmp.le.s32.totalorder 1, %s11
    %p198 = scmp.lt.s32.totalorder %s11, 5
    %p199 = pnand %p197, %p198
    %p200 = pneg %p199
    // Predicated region
    $region25: #{generator_forward.15} parent=5 // pred_check
      _
    $region26: #{generator_forward.15} parent=5 // pred_check_branch
      %202 = sbr.rel (%p199) target = $region28
    $region27: #{generator_forward.15} parent=5 // pred_region
      %s203 = ssub.s32 %s11, 1
      %s204 = smul.u32 64, %s21
      %p205 = scmp.lt.s32.totalorder %s20, 3
      %s206 = scalar_select %p205, %s20, 3
      %p207 = scmp.lt.s32.totalorder %s204, 63
      %s208 = scalar_select %p207, %s204, 63
      %s209 = smul.addr %s206, 64
      %s210 = sadd.s32 %s208, %s209
      %s211 = smul.addr %s210, 4
      %s212 = scalar_lea.vmem %s0, %s211
      %p213 = pneg %p51
      %p214 = pneg %p48
      %p215 = scmp.lt.s32.totalorder %s20, 3
      %s216 = scalar_select %p215, %s20, 3
      %s217 = smul.addr %s216, 8
      %s218 = smul.addr %s217, 4
      %s219 = scalar_lea.vmem %s1, %s218
      %p220 = pneg %p77
      %p221 = pneg %p74
      %p222 = pneg %p105
      %p223 = pneg %p102
      %s224 = smul.u32 64, %s21
      %p225 = scmp.lt.s32.totalorder %s20, 3
      %s226 = scalar_select %p225, %s20, 3
      %p227 = scmp.lt.s32.totalorder %s224, 63
      %s228 = scalar_select %p227, %s224, 63
      %s229 = smul.addr %s226, 64
      %s230 = sadd.s32 %s228, %s229
      %s231 = smul.addr %s230, 4
      %s232 = scalar_lea.vmem %s2, %s231
      %p233 = pneg %p131
      %p234 = pneg %p128
      %p235 = scmp.lt.s32.totalorder %s20, 3
      %s236 = scalar_select %p235, %s20, 3
      %s237 = smul.addr %s236, 8
      %s238 = scalar_lea.vmem %s3, %s237
      %p239 = pneg %p157
      %p240 = pneg %p154
      %p241 = scmp.lt.s32.totalorder %s20, 3
      %s242 = scalar_select %p241, %s20, 3
      %s243 = smul.addr %s242, 8
      %s244 = scalar_lea.vmem %s4, %s243
      %s245 = smul.u32 64, %s21
      %p246 = scmp.lt.s32.totalorder %s20, 3
      %s247 = scalar_select %p246, %s20, 3
      %p248 = scmp.lt.s32.totalorder %s245, 63
      %s249 = scalar_select %p248, %s245, 63
      %s250 = smul.addr %s247, 64
      %s251 = sadd.s32 %s249, %s250
      %s252 = smul.addr %s251, 4
      %s253 = scalar_lea.vmem %s0, %s252
      %s254 = smul.u32 64, %s21
      %p255 = scmp.lt.s32.totalorder %s20, 3
      %s256 = scalar_select %p255, %s20, 3
      %s257 = smul.addr %s256, 8
      %s258 = smul.addr %s257, 4
      %s259 = scalar_lea.vmem %s1, %s258
      %s260 = smul.u32 64, %s21
      %p261 = scmp.lt.s32.totalorder %s20, 3
      %s262 = scalar_select %p261, %s20, 3
      %p263 = scmp.lt.s32.totalorder %s260, 63
      %s264 = scalar_select %p263, %s260, 63
      %s265 = smul.addr %s262, 64
      %s266 = sadd.s32 %s264, %s265
      %s267 = smul.addr %s266, 4
      %s268 = scalar_lea.vmem %s2, %s267
      %s269 = smul.u32 64, %s21
      %p270 = scmp.lt.s32.totalorder %s20, 3
      %s271 = scalar_select %p270, %s20, 3
      %s272 = smul.addr %s271, 8
      %s273 = scalar_lea.vmem %s3, %s272
      %p274 = scmp.lt.s32.totalorder %s20, 3
      %s275 = scalar_select %p274, %s20, 3
      %s276 = smul.addr %s275, 8
      %s277 = scalar_lea.vmem %s4, %s276
      %p279 = scmp.eq.s32.totalorder %s21, 0
      // Predicated region
      $region29: #{generator_forward.15} parent=27 // pred_check
        %p280 = pneg %p279
      $region30: #{generator_forward.15} parent=27 // pred_check_branch
        %282 = sbr.rel (%p280) target = $region32
      $region31: #{generator_forward.15} parent=27 // pred_region
        %283 = vst [vmem:[%s273] sm:$0xff] 0.0
        %284 = vst [vmem:[%s277] sm:$0xff] 0.0
      $region32: #{generator_forward.15} parent=27 // pred_fallthru
        _
      %v285 = vld [vmem:[%s253] sm:$0xf]
      %v286 = vld [vmem:[%s253 + $0x4] sm:$0xf]
      %v287 = vld [vmem:[%s253 + $0x8] sm:$0xf]
      %v288 = vld [vmem:[%s253 + $0xc] sm:$0xf]
      %v289 = vld [vmem:[%s253 + $0x10] sm:$0xf]
      %v290 = vld [vmem:[%s253 + $0x14] sm:$0xf]
      %v291 = vld [vmem:[%s253 + $0x18] sm:$0xf]
      %v292 = vld [vmem:[%s253 + $0x1c] sm:$0xf]
      %v293 = vld [vmem:[%s253 + $0x20] sm:$0xf]
      %v294 = vld [vmem:[%s253 + $0x24] sm:$0xf]
      %v295 = vld [vmem:[%s253 + $0x28] sm:$0xf]
      %v296 = vld [vmem:[%s253 + $0x2c] sm:$0xf]
      %v297 = vld [vmem:[%s253 + $0x30] sm:$0xf]
      %v298 = vld [vmem:[%s253 + $0x34] sm:$0xf]
      %v299 = vld [vmem:[%s253 + $0x38] sm:$0xf]
      %v300 = vld [vmem:[%s253 + $0x3c] sm:$0xf]
      %v301 = vld [vmem:[%s253 + $0x40] sm:$0xf]
      %v302 = vld [vmem:[%s253 + $0x44] sm:$0xf]
      %v303 = vld [vmem:[%s253 + $0x48] sm:$0xf]
      %v304 = vld [vmem:[%s253 + $0x4c] sm:$0xf]
      %v305 = vld [vmem:[%s253 + $0x50] sm:$0xf]
      %v306 = vld [vmem:[%s253 + $0x54] sm:$0xf]
      %v307 = vld [vmem:[%s253 + $0x58] sm:$0xf]
      %v308 = vld [vmem:[%s253 + $0x5c] sm:$0xf]
      %v309 = vld [vmem:[%s253 + $0x60] sm:$0xf]
      %v310 = vld [vmem:[%s253 + $0x64] sm:$0xf]
      %v311 = vld [vmem:[%s253 + $0x68] sm:$0xf]
      %v312 = vld [vmem:[%s253 + $0x6c] sm:$0xf]
      %v313 = vld [vmem:[%s253 + $0x70] sm:$0xf]
      %v314 = vld [vmem:[%s253 + $0x74] sm:$0xf]
      %v315 = vld [vmem:[%s253 + $0x78] sm:$0xf]
      %v316 = vld [vmem:[%s253 + $0x7c] sm:$0xf]
      %v317 = vld [vmem:[%s253 + $0x80] sm:$0xf]
      %v318 = vld [vmem:[%s253 + $0x84] sm:$0xf]
      %v319 = vld [vmem:[%s253 + $0x88] sm:$0xf]
      %v320 = vld [vmem:[%s253 + $0x8c] sm:$0xf]
      %v321 = vld [vmem:[%s253 + $0x90] sm:$0xf]
      %v322 = vld [vmem:[%s253 + $0x94] sm:$0xf]
      %v323 = vld [vmem:[%s253 + $0x98] sm:$0xf]
      %v324 = vld [vmem:[%s253 + $0x9c] sm:$0xf]
      %v325 = vld [vmem:[%s253 + $0xa0] sm:$0xf]
      %v326 = vld [vmem:[%s253 + $0xa4] sm:$0xf]
      %v327 = vld [vmem:[%s253 + $0xa8] sm:$0xf]
      %v328 = vld [vmem:[%s253 + $0xac] sm:$0xf]
      %v329 = vld [vmem:[%s253 + $0xb0] sm:$0xf]
      %v330 = vld [vmem:[%s253 + $0xb4] sm:$0xf]
      %v331 = vld [vmem:[%s253 + $0xb8] sm:$0xf]
      %v332 = vld [vmem:[%s253 + $0xbc] sm:$0xf]
      %v333 = vld [vmem:[%s253 + $0xc0] sm:$0xf]
      %v334 = vld [vmem:[%s253 + $0xc4] sm:$0xf]
      %v335 = vld [vmem:[%s253 + $0xc8] sm:$0xf]
      %v336 = vld [vmem:[%s253 + $0xcc] sm:$0xf]
      %v337 = vld [vmem:[%s253 + $0xd0] sm:$0xf]
      %v338 = vld [vmem:[%s253 + $0xd4] sm:$0xf]
      %v339 = vld [vmem:[%s253 + $0xd8] sm:$0xf]
      %v340 = vld [vmem:[%s253 + $0xdc] sm:$0xf]
      %v341 = vld [vmem:[%s253 + $0xe0] sm:$0xf]
      %v342 = vld [vmem:[%s253 + $0xe4] sm:$0xf]
      %v343 = vld [vmem:[%s253 + $0xe8] sm:$0xf]
      %v344 = vld [vmem:[%s253 + $0xec] sm:$0xf]
      %v345 = vld [vmem:[%s253 + $0xf0] sm:$0xf]
      %v346 = vld [vmem:[%s253 + $0xf4] sm:$0xf]
      %v347 = vld [vmem:[%s253 + $0xf8] sm:$0xf]
      %v348 = vld [vmem:[%s253 + $0xfc] sm:$0xf]
      %v349 = vld [vmem:[%s259] sm:$0xf]
      %v350 = vld [vmem:[%s259 + $0x4] sm:$0xf]
      %v351 = vld [vmem:[%s259 + $0x8] sm:$0xf]
      %v352 = vld [vmem:[%s259 + $0xc] sm:$0xf]
      %v353 = vld [vmem:[%s259 + $0x10] sm:$0xf]
      %v354 = vld [vmem:[%s259 + $0x14] sm:$0xf]
      %v355 = vld [vmem:[%s259 + $0x18] sm:$0xf]
      %v356 = vld [vmem:[%s259 + $0x1c] sm:$0xf]
      %v421 = vunpack.c.l.b16 %v285
      %v422 = vunpack.c.l.b16 %v286
      %v423 = vunpack.c.l.b16 %v287
      %v424 = vunpack.c.l.b16 %v288
      %v425 = vunpack.c.l.b16 %v289
      %v426 = vunpack.c.l.b16 %v290
      %v427 = vunpack.c.l.b16 %v291
      %v428 = vunpack.c.l.b16 %v292
      %v429 = vunpack.c.l.b16 %v293
      %v430 = vunpack.c.l.b16 %v294
      %v431 = vunpack.c.l.b16 %v295
      %v432 = vunpack.c.l.b16 %v296
      %v433 = vunpack.c.l.b16 %v297
      %v434 = vunpack.c.l.b16 %v298
      %v435 = vunpack.c.l.b16 %v299
      %v436 = vunpack.c.l.b16 %v300
      %v437 = vunpack.c.l.b16 %v301
      %v438 = vunpack.c.l.b16 %v302
      %v439 = vunpack.c.l.b16 %v303
      %v440 = vunpack.c.l.b16 %v304
      %v441 = vunpack.c.l.b16 %v305
      %v442 = vunpack.c.l.b16 %v306
      %v443 = vunpack.c.l.b16 %v307
      %v444 = vunpack.c.l.b16 %v308
      %v445 = vunpack.c.l.b16 %v309
      %v446 = vunpack.c.l.b16 %v310
      %v447 = vunpack.c.l.b16 %v311
      %v448 = vunpack.c.l.b16 %v312
      %v449 = vunpack.c.l.b16 %v313
      %v450 = vunpack.c.l.b16 %v314
      %v451 = vunpack.c.l.b16 %v315
      %v452 = vunpack.c.l.b16 %v316
      %v453 = vunpack.c.l.b16 %v317
      %v454 = vunpack.c.l.b16 %v318
      %v455 = vunpack.c.l.b16 %v319
      %v456 = vunpack.c.l.b16 %v320
      %v457 = vunpack.c.l.b16 %v321
      %v458 = vunpack.c.l.b16 %v322
      %v459 = vunpack.c.l.b16 %v323
      %v460 = vunpack.c.l.b16 %v324
      %v461 = vunpack.c.l.b16 %v325
      %v462 = vunpack.c.l.b16 %v326
      %v463 = vunpack.c.l.b16 %v327
      %v464 = vunpack.c.l.b16 %v328
      %v465 = vunpack.c.l.b16 %v329
      %v466 = vunpack.c.l.b16 %v330
      %v467 = vunpack.c.l.b16 %v331
      %v468 = vunpack.c.l.b16 %v332
      %v469 = vunpack.c.l.b16 %v333
      %v470 = vunpack.c.l.b16 %v334
      %v471 = vunpack.c.l.b16 %v335
      %v472 = vunpack.c.l.b16 %v336
      %v473 = vunpack.c.l.b16 %v337
      %v474 = vunpack.c.l.b16 %v338
      %v475 = vunpack.c.l.b16 %v339
      %v476 = vunpack.c.l.b16 %v340
      %v477 = vunpack.c.l.b16 %v341
      %v478 = vunpack.c.l.b16 %v342
      %v479 = vunpack.c.l.b16 %v343
      %v480 = vunpack.c.l.b16 %v344
      %v481 = vunpack.c.l.b16 %v345
      %v482 = vunpack.c.l.b16 %v346
      %v483 = vunpack.c.l.b16 %v347
      %v484 = vunpack.c.l.b16 %v348
      %v485 = vpack.c.b16 %v422, %v421
      %v486 = vpack.c.b16 %v424, %v423
      %v487 = vpack.c.b16 %v426, %v425
      %v488 = vpack.c.b16 %v428, %v427
      %v489 = vpack.c.b16 %v430, %v429
      %v490 = vpack.c.b16 %v432, %v431
      %v491 = vpack.c.b16 %v434, %v433
      %v492 = vpack.c.b16 %v436, %v435
      %v493 = vpack.c.b16 %v438, %v437
      %v494 = vpack.c.b16 %v440, %v439
      %v495 = vpack.c.b16 %v442, %v441
      %v496 = vpack.c.b16 %v444, %v443
      %v497 = vpack.c.b16 %v446, %v445
      %v498 = vpack.c.b16 %v448, %v447
      %v499 = vpack.c.b16 %v450, %v449
      %v500 = vpack.c.b16 %v452, %v451
      %v501 = vpack.c.b16 %v454, %v453
      %v502 = vpack.c.b16 %v456, %v455
      %v503 = vpack.c.b16 %v458, %v457
      %v504 = vpack.c.b16 %v460, %v459
      %v505 = vpack.c.b16 %v462, %v461
      %v506 = vpack.c.b16 %v464, %v463
      %v507 = vpack.c.b16 %v466, %v465
      %v508 = vpack.c.b16 %v468, %v467
      %v509 = vpack.c.b16 %v470, %v469
      %v510 = vpack.c.b16 %v472, %v471
      %v511 = vpack.c.b16 %v474, %v473
      %v512 = vpack.c.b16 %v476, %v475
      %v513 = vpack.c.b16 %v478, %v477
      %v514 = vpack.c.b16 %v480, %v479
      %v515 = vpack.c.b16 %v482, %v481
      %v516 = vpack.c.b16 %v484, %v483
      %v525 = vunpack.c.l.b16 %v349
      %v526 = vunpack.c.l.b16 %v350
      %v527 = vunpack.c.l.b16 %v351
      %v528 = vunpack.c.l.b16 %v352
      %v529 = vunpack.c.l.b16 %v353
      %v530 = vunpack.c.l.b16 %v354
      %v531 = vunpack.c.l.b16 %v355
      %v532 = vunpack.c.l.b16 %v356
      %v533 = vpack.c.b16 %v526, %v525
      %v534 = vpack.c.b16 %v528, %v527
      %v535 = vpack.c.b16 %v530, %v529
      %v536 = vpack.c.b16 %v532, %v531
      %vm541 = vcmask 523264
      %v543 = vsel %vm541, %v485, 0
      %v546 = vsel %vm541, %v486, 0
      %v549 = vsel %vm541, %v487, 0
      %v552 = vsel %vm541, %v488, 0
      %v555 = vsel %vm541, %v489, 0
      %v558 = vsel %vm541, %v490, 0
      %v561 = vsel %vm541, %v491, 0
      %v564 = vsel %vm541, %v492, 0
      %v567 = vsel %vm541, %v493, 0
      %v570 = vsel %vm541, %v494, 0
      %v573 = vsel %vm541, %v495, 0
      %v576 = vsel %vm541, %v496, 0
      %v579 = vsel %vm541, %v497, 0
      %v582 = vsel %vm541, %v498, 0
      %v585 = vsel %vm541, %v499, 0
      %v588 = vsel %vm541, %v500, 0
      %v591 = vsel %vm541, %v501, 0
      %v594 = vsel %vm541, %v502, 0
      %v597 = vsel %vm541, %v503, 0
      %v600 = vsel %vm541, %v504, 0
      %v603 = vsel %vm541, %v505, 0
      %v606 = vsel %vm541, %v506, 0
      %v609 = vsel %vm541, %v507, 0
      %v612 = vsel %vm541, %v508, 0
      %v615 = vsel %vm541, %v509, 0
      %v618 = vsel %vm541, %v510, 0
      %v621 = vsel %vm541, %v511, 0
      %v624 = vsel %vm541, %v512, 0
      %v627 = vsel %vm541, %v513, 0
      %v630 = vsel %vm541, %v514, 0
      %v633 = vsel %vm541, %v515, 0
      %v636 = vsel %vm541, %v516, 0
      %638 = vmatprep.subr.bf16.mxu0 0
      %639 = vmatpush1.bf16.msra.mxu0 0
      %640 = vmatprep.subr.bf16.mxu0 0
      %641 = vmatpush1.bf16.msra.mxu0 0
      %642 = vmatprep.subr.bf16.mxu0 0
      %643 = vmatpush1.bf16.msra.mxu0 0
      %644 = vmatprep.subr.bf16.mxu0 0
      %645 = vmatpush1.bf16.msra.mxu0 0
      %646 = vmatprep.subr.bf16.mxu0 0
      %647 = vmatpush1.bf16.msra.mxu0 %v536
      %648 = vmatprep.subr.bf16.mxu0 0
      %649 = vmatpush1.bf16.msra.mxu0 %v535
      %650 = vmatprep.subr.bf16.mxu0 0
      %651 = vmatpush1.bf16.msra.mxu0 %v534
      %652 = vmatprep.subr.bf16.mxu0 0
      %653 = vmatpush1.bf16.msra.mxu0 %v533
      %654 = vmatprep.subr.bf16.mxu0 0
      %655 = vmatpush2.bf16.msra.mxu0 0
      %656 = vmatprep.subr.bf16.mxu0 0
      %657 = vmatpush2.bf16.msra.mxu0 0
      %658 = vmatprep.subr.bf16.mxu0 0
      %659 = vmatpush2.bf16.msra.mxu0 0
      %660 = vmatprep.subr.bf16.mxu0 0
      %661 = vmatpush2.bf16.msra.mxu0 0
      %662 = vmatprep.subr.bf16.mxu0 0
      %663 = vmatpush2.bf16.msra.mxu0 0
      %664 = vmatprep.subr.bf16.mxu0 0
      %665 = vmatpush2.bf16.msra.mxu0 0
      %666 = vmatprep.subr.bf16.mxu0 0
      %667 = vmatpush2.bf16.msra.mxu0 0
      %668 = vmatprep.subr.bf16.mxu0 0
      %669 = vmatpush2.bf16.msra.mxu0 0
      %670 = vmatprep.mubr.bf16.mxu0 0
      %671 = vmatmul.mubr.bf16.gmra.mxu0 %v543
      %v672 = vpop.f32.mrf.mxu0
      %v673 = vadd.f32 0.0, %v672
      %v674 = vpop.f32.mrf.mxu0
      %v675 = vpop.f32.mrf.mxu0
      %v676 = vadd.f32 0.0, %v675
      %v677 = vpop.f32.mrf.mxu0
      %678 = vmatprep.mubr.bf16.mxu0 0
      %679 = vmatmul.mubr.bf16.gmra.mxu0 %v546
      %v680 = vpop.f32.mrf.mxu0
      %v681 = vadd.f32 0.0, %v680
      %v682 = vpop.f32.mrf.mxu0
      %v683 = vpop.f32.mrf.mxu0
      %v684 = vadd.f32 0.0, %v683
      %v685 = vpop.f32.mrf.mxu0
      %686 = vmatprep.mubr.bf16.mxu0 0
      %687 = vmatmul.mubr.bf16.gmra.mxu0 %v549
      %v688 = vpop.f32.mrf.mxu0
      %v689 = vadd.f32 0.0, %v688
      %v690 = vpop.f32.mrf.mxu0
      %v691 = vpop.f32.mrf.mxu0
      %v692 = vadd.f32 0.0, %v691
      %v693 = vpop.f32.mrf.mxu0
      %694 = vmatprep.mubr.bf16.mxu0 0
      %695 = vmatmul.mubr.bf16.gmra.mxu0 %v552
      %v696 = vpop.f32.mrf.mxu0
      %v697 = vadd.f32 0.0, %v696
      %v698 = vpop.f32.mrf.mxu0
      %v699 = vpop.f32.mrf.mxu0
      %v700 = vadd.f32 0.0, %v699
      %v701 = vpop.f32.mrf.mxu0
      %702 = vmatprep.mubr.bf16.mxu0 0
      %703 = vmatmul.mubr.bf16.gmra.mxu0 %v555
      %v704 = vpop.f32.mrf.mxu0
      %v705 = vadd.f32 0.0, %v704
      %v706 = vpop.f32.mrf.mxu0
      %v707 = vpop.f32.mrf.mxu0
      %v708 = vadd.f32 0.0, %v707
      %v709 = vpop.f32.mrf.mxu0
      %710 = vmatprep.mubr.bf16.mxu0 0
      %711 = vmatmul.mubr.bf16.gmra.mxu0 %v558
      %v712 = vpop.f32.mrf.mxu0
      %v713 = vadd.f32 0.0, %v712
      %v714 = vpop.f32.mrf.mxu0
      %v715 = vpop.f32.mrf.mxu0
      %v716 = vadd.f32 0.0, %v715
      %v717 = vpop.f32.mrf.mxu0
      %718 = vmatprep.mubr.bf16.mxu0 0
      %719 = vmatmul.mubr.bf16.gmra.mxu0 %v561
      %v720 = vpop.f32.mrf.mxu0
      %v721 = vadd.f32 0.0, %v720
      %v722 = vpop.f32.mrf.mxu0
      %v723 = vpop.f32.mrf.mxu0
      %v724 = vadd.f32 0.0, %v723
      %v725 = vpop.f32.mrf.mxu0
      %726 = vmatprep.mubr.bf16.mxu0 0
      %727 = vmatmul.mubr.bf16.gmra.mxu0 %v564
      %v728 = vpop.f32.mrf.mxu0
      %v729 = vadd.f32 0.0, %v728
      %v730 = vpop.f32.mrf.mxu0
      %v731 = vpop.f32.mrf.mxu0
      %v732 = vadd.f32 0.0, %v731
      %v733 = vpop.f32.mrf.mxu0
      %734 = vmatprep.mubr.bf16.mxu0 0
      %735 = vmatmul.mubr.bf16.gmra.mxu0 %v567
      %v736 = vpop.f32.mrf.mxu0
      %v737 = vadd.f32 0.0, %v736
      %v738 = vpop.f32.mrf.mxu0
      %v739 = vpop.f32.mrf.mxu0
      %v740 = vadd.f32 0.0, %v739
      %v741 = vpop.f32.mrf.mxu0
      %742 = vmatprep.mubr.bf16.mxu0 0
      %743 = vmatmul.mubr.bf16.gmra.mxu0 %v570
      %v744 = vpop.f32.mrf.mxu0
      %v745 = vadd.f32 0.0, %v744
      %v746 = vpop.f32.mrf.mxu0
      %v747 = vpop.f32.mrf.mxu0
      %v748 = vadd.f32 0.0, %v747
      %v749 = vpop.f32.mrf.mxu0
      %750 = vmatprep.mubr.bf16.mxu0 0
      %751 = vmatmul.mubr.bf16.gmra.mxu0 %v573
      %v752 = vpop.f32.mrf.mxu0
      %v753 = vadd.f32 0.0, %v752
      %v754 = vpop.f32.mrf.mxu0
      %v755 = vpop.f32.mrf.mxu0
      %v756 = vadd.f32 0.0, %v755
      %v757 = vpop.f32.mrf.mxu0
      %758 = vmatprep.mubr.bf16.mxu0 0
      %759 = vmatmul.mubr.bf16.gmra.mxu0 %v576
      %v760 = vpop.f32.mrf.mxu0
      %v761 = vadd.f32 0.0, %v760
      %v762 = vpop.f32.mrf.mxu0
      %v763 = vpop.f32.mrf.mxu0
      %v764 = vadd.f32 0.0, %v763
      %v765 = vpop.f32.mrf.mxu0
      %766 = vmatprep.mubr.bf16.mxu0 0
      %767 = vmatmul.mubr.bf16.gmra.mxu0 %v579
      %v768 = vpop.f32.mrf.mxu0
      %v769 = vadd.f32 0.0, %v768
      %v770 = vpop.f32.mrf.mxu0
      %v771 = vpop.f32.mrf.mxu0
      %v772 = vadd.f32 0.0, %v771
      %v773 = vpop.f32.mrf.mxu0
      %774 = vmatprep.mubr.bf16.mxu0 0
      %775 = vmatmul.mubr.bf16.gmra.mxu0 %v582
      %v776 = vpop.f32.mrf.mxu0
      %v777 = vadd.f32 0.0, %v776
      %v778 = vpop.f32.mrf.mxu0
      %v779 = vpop.f32.mrf.mxu0
      %v780 = vadd.f32 0.0, %v779
      %v781 = vpop.f32.mrf.mxu0
      %782 = vmatprep.mubr.bf16.mxu0 0
      %783 = vmatmul.mubr.bf16.gmra.mxu0 %v585
      %v784 = vpop.f32.mrf.mxu0
      %v785 = vadd.f32 0.0, %v784
      %v786 = vpop.f32.mrf.mxu0
      %v787 = vpop.f32.mrf.mxu0
      %v788 = vadd.f32 0.0, %v787
      %v789 = vpop.f32.mrf.mxu0
      %790 = vmatprep.mubr.bf16.mxu0 0
      %791 = vmatmul.mubr.bf16.gmra.mxu0 %v588
      %v792 = vpop.f32.mrf.mxu0
      %v793 = vadd.f32 0.0, %v792
      %v794 = vpop.f32.mrf.mxu0
      %v795 = vpop.f32.mrf.mxu0
      %v796 = vadd.f32 0.0, %v795
      %v797 = vpop.f32.mrf.mxu0
      %798 = vmatprep.mubr.bf16.mxu0 0
      %799 = vmatmul.mubr.bf16.gmra.mxu0 %v591
      %v800 = vpop.f32.mrf.mxu0
      %v801 = vadd.f32 0.0, %v800
      %v802 = vpop.f32.mrf.mxu0
      %v803 = vpop.f32.mrf.mxu0
      %v804 = vadd.f32 0.0, %v803
      %v805 = vpop.f32.mrf.mxu0
      %806 = vmatprep.mubr.bf16.mxu0 0
      %807 = vmatmul.mubr.bf16.gmra.mxu0 %v594
      %v808 = vpop.f32.mrf.mxu0
      %v809 = vadd.f32 0.0, %v808
      %v810 = vpop.f32.mrf.mxu0
      %v811 = vpop.f32.mrf.mxu0
      %v812 = vadd.f32 0.0, %v811
      %v813 = vpop.f32.mrf.mxu0
      %814 = vmatprep.mubr.bf16.mxu0 0
      %815 = vmatmul.mubr.bf16.gmra.mxu0 %v597
      %v816 = vpop.f32.mrf.mxu0
      %v817 = vadd.f32 0.0, %v816
      %v818 = vpop.f32.mrf.mxu0
      %v819 = vpop.f32.mrf.mxu0
      %v820 = vadd.f32 0.0, %v819
      %v821 = vpop.f32.mrf.mxu0
      %822 = vmatprep.mubr.bf16.mxu0 0
      %823 = vmatmul.mubr.bf16.gmra.mxu0 %v600
      %v824 = vpop.f32.mrf.mxu0
      %v825 = vadd.f32 0.0, %v824
      %v826 = vpop.f32.mrf.mxu0
      %v827 = vpop.f32.mrf.mxu0
      %v828 = vadd.f32 0.0, %v827
      %v829 = vpop.f32.mrf.mxu0
      %830 = vmatprep.mubr.bf16.mxu0 0
      %831 = vmatmul.mubr.bf16.gmra.mxu0 %v603
      %v832 = vpop.f32.mrf.mxu0
      %v833 = vadd.f32 0.0, %v832
      %v834 = vpop.f32.mrf.mxu0
      %v835 = vpop.f32.mrf.mxu0
      %v836 = vadd.f32 0.0, %v835
      %v837 = vpop.f32.mrf.mxu0
      %838 = vmatprep.mubr.bf16.mxu0 0
      %839 = vmatmul.mubr.bf16.gmra.mxu0 %v606
      %v840 = vpop.f32.mrf.mxu0
      %v841 = vadd.f32 0.0, %v840
      %v842 = vpop.f32.mrf.mxu0
      %v843 = vpop.f32.mrf.mxu0
      %v844 = vadd.f32 0.0, %v843
      %v845 = vpop.f32.mrf.mxu0
      %846 = vmatprep.mubr.bf16.mxu0 0
      %847 = vmatmul.mubr.bf16.gmra.mxu0 %v609
      %v848 = vpop.f32.mrf.mxu0
      %v849 = vadd.f32 0.0, %v848
      %v850 = vpop.f32.mrf.mxu0
      %v851 = vpop.f32.mrf.mxu0
      %v852 = vadd.f32 0.0, %v851
      %v853 = vpop.f32.mrf.mxu0
      %854 = vmatprep.mubr.bf16.mxu0 0
      %855 = vmatmul.mubr.bf16.gmra.mxu0 %v612
      %v856 = vpop.f32.mrf.mxu0
      %v857 = vadd.f32 0.0, %v856
      %v858 = vpop.f32.mrf.mxu0
      %v859 = vpop.f32.mrf.mxu0
      %v860 = vadd.f32 0.0, %v859
      %v861 = vpop.f32.mrf.mxu0
      %862 = vmatprep.mubr.bf16.mxu0 0
      %863 = vmatmul.mubr.bf16.gmra.mxu0 %v615
      %v864 = vpop.f32.mrf.mxu0
      %v865 = vadd.f32 0.0, %v864
      %v866 = vpop.f32.mrf.mxu0
      %v867 = vpop.f32.mrf.mxu0
      %v868 = vadd.f32 0.0, %v867
      %v869 = vpop.f32.mrf.mxu0
      %870 = vmatprep.mubr.bf16.mxu0 0
      %871 = vmatmul.mubr.bf16.gmra.mxu0 %v618
      %v872 = vpop.f32.mrf.mxu0
      %v873 = vadd.f32 0.0, %v872
      %v874 = vpop.f32.mrf.mxu0
      %v875 = vpop.f32.mrf.mxu0
      %v876 = vadd.f32 0.0, %v875
      %v877 = vpop.f32.mrf.mxu0
      %878 = vmatprep.mubr.bf16.mxu0 0
      %879 = vmatmul.mubr.bf16.gmra.mxu0 %v621
      %v880 = vpop.f32.mrf.mxu0
      %v881 = vadd.f32 0.0, %v880
      %v882 = vpop.f32.mrf.mxu0
      %v883 = vpop.f32.mrf.mxu0
      %v884 = vadd.f32 0.0, %v883
      %v885 = vpop.f32.mrf.mxu0
      %886 = vmatprep.mubr.bf16.mxu0 0
      %887 = vmatmul.mubr.bf16.gmra.mxu0 %v624
      %v888 = vpop.f32.mrf.mxu0
      %v889 = vadd.f32 0.0, %v888
      %v890 = vpop.f32.mrf.mxu0
      %v891 = vpop.f32.mrf.mxu0
      %v892 = vadd.f32 0.0, %v891
      %v893 = vpop.f32.mrf.mxu0
      %894 = vmatprep.mubr.bf16.mxu0 0
      %895 = vmatmul.mubr.bf16.gmra.mxu0 %v627
      %v896 = vpop.f32.mrf.mxu0
      %v897 = vadd.f32 0.0, %v896
      %v898 = vpop.f32.mrf.mxu0
      %v899 = vpop.f32.mrf.mxu0
      %v900 = vadd.f32 0.0, %v899
      %v901 = vpop.f32.mrf.mxu0
      %902 = vmatprep.mubr.bf16.mxu0 0
      %903 = vmatmul.mubr.bf16.gmra.mxu0 %v630
      %v904 = vpop.f32.mrf.mxu0
      %v905 = vadd.f32 0.0, %v904
      %v906 = vpop.f32.mrf.mxu0
      %v907 = vpop.f32.mrf.mxu0
      %v908 = vadd.f32 0.0, %v907
      %v909 = vpop.f32.mrf.mxu0
      %910 = vmatprep.mubr.bf16.mxu0 0
      %911 = vmatmul.mubr.bf16.gmra.mxu0 %v633
      %v912 = vpop.f32.mrf.mxu0
      %v913 = vadd.f32 0.0, %v912
      %v914 = vpop.f32.mrf.mxu0
      %v915 = vpop.f32.mrf.mxu0
      %v916 = vadd.f32 0.0, %v915
      %v917 = vpop.f32.mrf.mxu0
      %918 = vmatprep.mubr.bf16.mxu0 0
      %919 = vmatmul.mubr.bf16.gmra.mxu0 %v636
      %v920 = vpop.f32.mrf.mxu0
      %v921 = vadd.f32 0.0, %v920
      %v922 = vpop.f32.mrf.mxu0
      %v923 = vpop.f32.mrf.mxu0
      %v924 = vadd.f32 0.0, %v923
      %v925 = vpop.f32.mrf.mxu0
      %926 = vdwg.mxu0
      %v927 = vpack.c.bf16 %v676, %v673
      %v928 = vpack.c.bf16 %v684, %v681
      %v929 = vpack.c.bf16 %v692, %v689
      %v930 = vpack.c.bf16 %v700, %v697
      %v931 = vpack.c.bf16 %v708, %v705
      %v932 = vpack.c.bf16 %v716, %v713
      %v933 = vpack.c.bf16 %v724, %v721
      %v934 = vpack.c.bf16 %v732, %v729
      %v935 = vpack.c.bf16 %v740, %v737
      %v936 = vpack.c.bf16 %v748, %v745
      %v937 = vpack.c.bf16 %v756, %v753
      %v938 = vpack.c.bf16 %v764, %v761
      %v939 = vpack.c.bf16 %v772, %v769
      %v940 = vpack.c.bf16 %v780, %v777
      %v941 = vpack.c.bf16 %v788, %v785
      %v942 = vpack.c.bf16 %v796, %v793
      %v943 = vpack.c.bf16 %v804, %v801
      %v944 = vpack.c.bf16 %v812, %v809
      %v945 = vpack.c.bf16 %v820, %v817
      %v946 = vpack.c.bf16 %v828, %v825
      %v947 = vpack.c.bf16 %v836, %v833
      %v948 = vpack.c.bf16 %v844, %v841
      %v949 = vpack.c.bf16 %v852, %v849
      %v950 = vpack.c.bf16 %v860, %v857
      %v951 = vpack.c.bf16 %v868, %v865
      %v952 = vpack.c.bf16 %v876, %v873
      %v953 = vpack.c.bf16 %v884, %v881
      %v954 = vpack.c.bf16 %v892, %v889
      %v955 = vpack.c.bf16 %v900, %v897
      %v956 = vpack.c.bf16 %v908, %v905
      %v957 = vpack.c.bf16 %v916, %v913
      %v958 = vpack.c.bf16 %v924, %v921
      %v991 = vunpack.c.l.b16 %v927
      %v992 = vunpack.c.h.b16 %v927
      %v993 = vunpack.c.l.b16 %v928
      %v994 = vunpack.c.h.b16 %v928
      %v995 = vunpack.c.l.b16 %v929
      %v996 = vunpack.c.h.b16 %v929
      %v997 = vunpack.c.l.b16 %v930
      %v998 = vunpack.c.h.b16 %v930
      %v999 = vunpack.c.l.b16 %v931
      %v1000 = vunpack.c.h.b16 %v931
      %v1001 = vunpack.c.l.b16 %v932
      %v1002 = vunpack.c.h.b16 %v932
      %v1003 = vunpack.c.l.b16 %v933
      %v1004 = vunpack.c.h.b16 %v933
      %v1005 = vunpack.c.l.b16 %v934
      %v1006 = vunpack.c.h.b16 %v934
      %v1007 = vunpack.c.l.b16 %v935
      %v1008 = vunpack.c.h.b16 %v935
      %v1009 = vunpack.c.l.b16 %v936
      %v1010 = vunpack.c.h.b16 %v936
      %v1011 = vunpack.c.l.b16 %v937
      %v1012 = vunpack.c.h.b16 %v937
      %v1013 = vunpack.c.l.b16 %v938
      %v1014 = vunpack.c.h.b16 %v938
      %v1015 = vunpack.c.l.b16 %v939
      %v1016 = vunpack.c.h.b16 %v939
      %v1017 = vunpack.c.l.b16 %v940
      %v1018 = vunpack.c.h.b16 %v940
      %v1019 = vunpack.c.l.b16 %v941
      %v1020 = vunpack.c.h.b16 %v941
      %v1021 = vunpack.c.l.b16 %v942
      %v1022 = vunpack.c.h.b16 %v942
      %v1023 = vunpack.c.l.b16 %v943
      %v1024 = vunpack.c.h.b16 %v943
      %v1025 = vunpack.c.l.b16 %v944
      %v1026 = vunpack.c.h.b16 %v944
      %v1027 = vunpack.c.l.b16 %v945
      %v1028 = vunpack.c.h.b16 %v945
      %v1029 = vunpack.c.l.b16 %v946
      %v1030 = vunpack.c.h.b16 %v946
      %v1031 = vunpack.c.l.b16 %v947
      %v1032 = vunpack.c.h.b16 %v947
      %v1033 = vunpack.c.l.b16 %v948
      %v1034 = vunpack.c.h.b16 %v948
      %v1035 = vunpack.c.l.b16 %v949
      %v1036 = vunpack.c.h.b16 %v949
      %v1037 = vunpack.c.l.b16 %v950
      %v1038 = vunpack.c.h.b16 %v950
      %v1039 = vunpack.c.l.b16 %v951
      %v1040 = vunpack.c.h.b16 %v951
      %v1041 = vunpack.c.l.b16 %v952
      %v1042 = vunpack.c.h.b16 %v952
      %v1043 = vunpack.c.l.b16 %v953
      %v1044 = vunpack.c.h.b16 %v953
      %v1045 = vunpack.c.l.b16 %v954
      %v1046 = vunpack.c.h.b16 %v954
      %v1047 = vunpack.c.l.b16 %v955
      %v1048 = vunpack.c.h.b16 %v955
      %v1049 = vunpack.c.l.b16 %v956
      %v1050 = vunpack.c.h.b16 %v956
      %v1051 = vunpack.c.l.b16 %v957
      %v1052 = vunpack.c.h.b16 %v957
      %v1053 = vunpack.c.l.b16 %v958
      %v1054 = vunpack.c.h.b16 %v958
      %v1055 = vpack.c.b16 %v991, %v991
      %v1056 = vpack.c.b16 %v992, %v992
      %v1057 = vpack.c.b16 %v993, %v993
      %v1058 = vpack.c.b16 %v994, %v994
      %v1059 = vpack.c.b16 %v995, %v995
      %v1060 = vpack.c.b16 %v996, %v996
      %v1061 = vpack.c.b16 %v997, %v997
      %v1062 = vpack.c.b16 %v998, %v998
      %v1063 = vpack.c.b16 %v999, %v999
      %v1064 = vpack.c.b16 %v1000, %v1000
      %v1065 = vpack.c.b16 %v1001, %v1001
      %v1066 = vpack.c.b16 %v1002, %v1002
      %v1067 = vpack.c.b16 %v1003, %v1003
      %v1068 = vpack.c.b16 %v1004, %v1004
      %v1069 = vpack.c.b16 %v1005, %v1005
      %v1070 = vpack.c.b16 %v1006, %v1006
      %v1071 = vpack.c.b16 %v1007, %v1007
      %v1072 = vpack.c.b16 %v1008, %v1008
      %v1073 = vpack.c.b16 %v1009, %v1009
      %v1074 = vpack.c.b16 %v1010, %v1010
      %v1075 = vpack.c.b16 %v1011, %v1011
      %v1076 = vpack.c.b16 %v1012, %v1012
      %v1077 = vpack.c.b16 %v1013, %v1013
      %v1078 = vpack.c.b16 %v1014, %v1014
      %v1079 = vpack.c.b16 %v1015, %v1015
      %v1080 = vpack.c.b16 %v1016, %v1016
      %v1081 = vpack.c.b16 %v1017, %v1017
      %v1082 = vpack.c.b16 %v1018, %v1018
      %v1083 = vpack.c.b16 %v1019, %v1019
      %v1084 = vpack.c.b16 %v1020, %v1020
      %v1085 = vpack.c.b16 %v1021, %v1021
      %v1086 = vpack.c.b16 %v1022, %v1022
      %v1087 = vpack.c.b16 %v1023, %v1023
      %v1088 = vpack.c.b16 %v1024, %v1024
      %v1089 = vpack.c.b16 %v1025, %v1025
      %v1090 = vpack.c.b16 %v1026, %v1026
      %v1091 = vpack.c.b16 %v1027, %v1027
      %v1092 = vpack.c.b16 %v1028, %v1028
      %v1093 = vpack.c.b16 %v1029, %v1029
      %v1094 = vpack.c.b16 %v1030, %v1030
      %v1095 = vpack.c.b16 %v1031, %v1031
      %v1096 = vpack.c.b16 %v1032, %v1032
      %v1097 = vpack.c.b16 %v1033, %v1033
      %v1098 = vpack.c.b16 %v1034, %v1034
      %v1099 = vpack.c.b16 %v1035, %v1035
      %v1100 = vpack.c.b16 %v1036, %v1036
      %v1101 = vpack.c.b16 %v1037, %v1037
      %v1102 = vpack.c.b16 %v1038, %v1038
      %v1103 = vpack.c.b16 %v1039, %v1039
      %v1104 = vpack.c.b16 %v1040, %v1040
      %v1105 = vpack.c.b16 %v1041, %v1041
      %v1106 = vpack.c.b16 %v1042, %v1042
      %v1107 = vpack.c.b16 %v1043, %v1043
      %v1108 = vpack.c.b16 %v1044, %v1044
      %v1109 = vpack.c.b16 %v1045, %v1045
      %v1110 = vpack.c.b16 %v1046, %v1046
      %v1111 = vpack.c.b16 %v1047, %v1047
      %v1112 = vpack.c.b16 %v1048, %v1048
      %v1113 = vpack.c.b16 %v1049, %v1049
      %v1114 = vpack.c.b16 %v1050, %v1050
      %v1115 = vpack.c.b16 %v1051, %v1051
      %v1116 = vpack.c.b16 %v1052, %v1052
      %v1117 = vpack.c.b16 %v1053, %v1053
      %v1118 = vpack.c.b16 %v1054, %v1054
      %1183 = vst [vmem:[%s268] sm:$0xf] %v1055
      %1184 = vst [vmem:[%s268 + $0x4] sm:$0xf] %v1056
      %1185 = vst [vmem:[%s268 + $0x8] sm:$0xf] %v1057
      %1186 = vst [vmem:[%s268 + $0xc] sm:$0xf] %v1058
      %1187 = vst [vmem:[%s268 + $0x10] sm:$0xf] %v1059
      %1188 = vst [vmem:[%s268 + $0x14] sm:$0xf] %v1060
      %1189 = vst [vmem:[%s268 + $0x18] sm:$0xf] %v1061
      %1190 = vst [vmem:[%s268 + $0x1c] sm:$0xf] %v1062
      %1191 = vst [vmem:[%s268 + $0x20] sm:$0xf] %v1063
      %1192 = vst [vmem:[%s268 + $0x24] sm:$0xf] %v1064
      %1193 = vst [vmem:[%s268 + $0x28] sm:$0xf] %v1065
      %1194 = vst [vmem:[%s268 + $0x2c] sm:$0xf] %v1066
      %1195 = vst [vmem:[%s268 + $0x30] sm:$0xf] %v1067
      %1196 = vst [vmem:[%s268 + $0x34] sm:$0xf] %v1068
      %1197 = vst [vmem:[%s268 + $0x38] sm:$0xf] %v1069
      %1198 = vst [vmem:[%s268 + $0x3c] sm:$0xf] %v1070
      %1199 = vst [vmem:[%s268 + $0x40] sm:$0xf] %v1071
      %1200 = vst [vmem:[%s268 + $0x44] sm:$0xf] %v1072
      %1201 = vst [vmem:[%s268 + $0x48] sm:$0xf] %v1073
      %1202 = vst [vmem:[%s268 + $0x4c] sm:$0xf] %v1074
      %1203 = vst [vmem:[%s268 + $0x50] sm:$0xf] %v1075
      %1204 = vst [vmem:[%s268 + $0x54] sm:$0xf] %v1076
      %1205 = vst [vmem:[%s268 + $0x58] sm:$0xf] %v1077
      %1206 = vst [vmem:[%s268 + $0x5c] sm:$0xf] %v1078
      %1207 = vst [vmem:[%s268 + $0x60] sm:$0xf] %v1079
      %1208 = vst [vmem:[%s268 + $0x64] sm:$0xf] %v1080
      %1209 = vst [vmem:[%s268 + $0x68] sm:$0xf] %v1081
      %1210 = vst [vmem:[%s268 + $0x6c] sm:$0xf] %v1082
      %1211 = vst [vmem:[%s268 + $0x70] sm:$0xf] %v1083
      %1212 = vst [vmem:[%s268 + $0x74] sm:$0xf] %v1084
      %1213 = vst [vmem:[%s268 + $0x78] sm:$0xf] %v1085
      %1214 = vst [vmem:[%s268 + $0x7c] sm:$0xf] %v1086
      %1215 = vst [vmem:[%s268 + $0x80] sm:$0xf] %v1087
      %1216 = vst [vmem:[%s268 + $0x84] sm:$0xf] %v1088
      %1217 = vst [vmem:[%s268 + $0x88] sm:$0xf] %v1089
      %1218 = vst [vmem:[%s268 + $0x8c] sm:$0xf] %v1090
      %1219 = vst [vmem:[%s268 + $0x90] sm:$0xf] %v1091
      %1220 = vst [vmem:[%s268 + $0x94] sm:$0xf] %v1092
      %1221 = vst [vmem:[%s268 + $0x98] sm:$0xf] %v1093
      %1222 = vst [vmem:[%s268 + $0x9c] sm:$0xf] %v1094
      %1223 = vst [vmem:[%s268 + $0xa0] sm:$0xf] %v1095
      %1224 = vst [vmem:[%s268 + $0xa4] sm:$0xf] %v1096
      %1225 = vst [vmem:[%s268 + $0xa8] sm:$0xf] %v1097
      %1226 = vst [vmem:[%s268 + $0xac] sm:$0xf] %v1098
      %1227 = vst [vmem:[%s268 + $0xb0] sm:$0xf] %v1099
      %1228 = vst [vmem:[%s268 + $0xb4] sm:$0xf] %v1100
      %1229 = vst [vmem:[%s268 + $0xb8] sm:$0xf] %v1101
      %1230 = vst [vmem:[%s268 + $0xbc] sm:$0xf] %v1102
      %1231 = vst [vmem:[%s268 + $0xc0] sm:$0xf] %v1103
      %1232 = vst [vmem:[%s268 + $0xc4] sm:$0xf] %v1104
      %1233 = vst [vmem:[%s268 + $0xc8] sm:$0xf] %v1105
      %1234 = vst [vmem:[%s268 + $0xcc] sm:$0xf] %v1106
      %1235 = vst [vmem:[%s268 + $0xd0] sm:$0xf] %v1107
      %1236 = vst [vmem:[%s268 + $0xd4] sm:$0xf] %v1108
      %1237 = vst [vmem:[%s268 + $0xd8] sm:$0xf] %v1109
      %1238 = vst [vmem:[%s268 + $0xdc] sm:$0xf] %v1110
      %1239 = vst [vmem:[%s268 + $0xe0] sm:$0xf] %v1111
      %1240 = vst [vmem:[%s268 + $0xe4] sm:$0xf] %v1112
      %1241 = vst [vmem:[%s268 + $0xe8] sm:$0xf] %v1113
      %1242 = vst [vmem:[%s268 + $0xec] sm:$0xf] %v1114
      %1243 = vst [vmem:[%s268 + $0xf0] sm:$0xf] %v1115
      %1244 = vst [vmem:[%s268 + $0xf4] sm:$0xf] %v1116
      %1245 = vst [vmem:[%s268 + $0xf8] sm:$0xf] %v1117
      %1246 = vst [vmem:[%s268 + $0xfc] sm:$0xf] %v1118
      %v1247 = vld [vmem:[%s273] sm:$0xff]
      %v1248 = vadd.f32 %v673, %v676
      %v1249 = vadd.f32 %v1248, %v681
      %v1250 = vadd.f32 %v1249, %v684
      %v1251 = vadd.f32 %v1250, %v689
      %v1252 = vadd.f32 %v1251, %v692
      %v1253 = vadd.f32 %v1252, %v697
      %v1254 = vadd.f32 %v1253, %v700
      %v1255 = vadd.f32 %v1254, %v705
      %v1256 = vadd.f32 %v1255, %v708
      %v1257 = vadd.f32 %v1256, %v713
      %v1258 = vadd.f32 %v1257, %v716
      %v1259 = vadd.f32 %v1258, %v721
      %v1260 = vadd.f32 %v1259, %v724
      %v1261 = vadd.f32 %v1260, %v729
      %v1262 = vadd.f32 %v1261, %v732
      %v1263 = vadd.f32 %v1262, %v737
      %v1264 = vadd.f32 %v1263, %v740
      %v1265 = vadd.f32 %v1264, %v745
      %v1266 = vadd.f32 %v1265, %v748
      %v1267 = vadd.f32 %v1266, %v753
      %v1268 = vadd.f32 %v1267, %v756
      %v1269 = vadd.f32 %v1268, %v761
      %v1270 = vadd.f32 %v1269, %v764
      %v1271 = vadd.f32 %v1270, %v769
      %v1272 = vadd.f32 %v1271, %v772
      %v1273 = vadd.f32 %v1272, %v777
      %v1274 = vadd.f32 %v1273, %v780
      %v1275 = vadd.f32 %v1274, %v785
      %v1276 = vadd.f32 %v1275, %v788
      %v1277 = vadd.f32 %v1276, %v793
      %v1278 = vadd.f32 %v1277, %v796
      %v1279 = vadd.f32 %v1278, %v801
      %v1280 = vadd.f32 %v1279, %v804
      %v1281 = vadd.f32 %v1280, %v809
      %v1282 = vadd.f32 %v1281, %v812
      %v1283 = vadd.f32 %v1282, %v817
      %v1284 = vadd.f32 %v1283, %v820
      %v1285 = vadd.f32 %v1284, %v825
      %v1286 = vadd.f32 %v1285, %v828
      %v1287 = vadd.f32 %v1286, %v833
      %v1288 = vadd.f32 %v1287, %v836
      %v1289 = vadd.f32 %v1288, %v841
      %v1290 = vadd.f32 %v1289, %v844
      %v1291 = vadd.f32 %v1290, %v849
      %v1292 = vadd.f32 %v1291, %v852
      %v1293 = vadd.f32 %v1292, %v857
      %v1294 = vadd.f32 %v1293, %v860
      %v1295 = vadd.f32 %v1294, %v865
      %v1296 = vadd.f32 %v1295, %v868
      %v1297 = vadd.f32 %v1296, %v873
      %v1298 = vadd.f32 %v1297, %v876
      %v1299 = vadd.f32 %v1298, %v881
      %v1300 = vadd.f32 %v1299, %v884
      %v1301 = vadd.f32 %v1300, %v889
      %v1302 = vadd.f32 %v1301, %v892
      %v1303 = vadd.f32 %v1302, %v897
      %v1304 = vadd.f32 %v1303, %v900
      %v1305 = vadd.f32 %v1304, %v905
      %v1306 = vadd.f32 %v1305, %v908
      %v1307 = vadd.f32 %v1306, %v913
      %v1308 = vadd.f32 %v1307, %v916
      %v1309 = vadd.f32 %v1308, %v921
      %v1310 = vadd.f32 %v1309, %v924
      %v1311 = vrot.slane %v1310, 4
      %v1312 = vadd.f32 %v1310, %v1311
      %v1313 = vrot.slane %v1312, 2
      %v1314 = vadd.f32 %v1312, %v1313
      %v1315 = vrot.slane %v1314, 1
      %v1316 = vadd.f32 %v1314, %v1315
      %v1317 = vadd.f32 %v1247, %v1316
      %1318 = vst [vmem:[%s273] sm:$0xff] %v1317
      %v1319 = vld [vmem:[%s277] sm:$0xff]
      %v1320 = vmul.f32 %v673, %v673
      %v1321 = vmul.f32 %v676, %v676
      %v1322 = vmul.f32 %v681, %v681
      %v1323 = vmul.f32 %v684, %v684
      %v1324 = vmul.f32 %v689, %v689
      %v1325 = vmul.f32 %v692, %v692
      %v1326 = vmul.f32 %v697, %v697
      %v1327 = vmul.f32 %v700, %v700
      %v1328 = vmul.f32 %v705, %v705
      %v1329 = vmul.f32 %v708, %v708
      %v1330 = vmul.f32 %v713, %v713
      %v1331 = vmul.f32 %v716, %v716
      %v1332 = vmul.f32 %v721, %v721
      %v1333 = vmul.f32 %v724, %v724
      %v1334 = vmul.f32 %v729, %v729
      %v1335 = vmul.f32 %v732, %v732
      %v1336 = vmul.f32 %v737, %v737
      %v1337 = vmul.f32 %v740, %v740
      %v1338 = vmul.f32 %v745, %v745
      %v1339 = vmul.f32 %v748, %v748
      %v1340 = vmul.f32 %v753, %v753
      %v1341 = vmul.f32 %v756, %v756
      %v1342 = vmul.f32 %v761, %v761
      %v1343 = vmul.f32 %v764, %v764
      %v1344 = vmul.f32 %v769, %v769
      %v1345 = vmul.f32 %v772, %v772
      %v1346 = vmul.f32 %v777, %v777
      %v1347 = vmul.f32 %v780, %v780
      %v1348 = vmul.f32 %v785, %v785
      %v1349 = vmul.f32 %v788, %v788
      %v1350 = vmul.f32 %v793, %v793
      %v1351 = vmul.f32 %v796, %v796
      %v1352 = vmul.f32 %v801, %v801
      %v1353 = vmul.f32 %v804, %v804
      %v1354 = vmul.f32 %v809, %v809
      %v1355 = vmul.f32 %v812, %v812
      %v1356 = vmul.f32 %v817, %v817
      %v1357 = vmul.f32 %v820, %v820
      %v1358 = vmul.f32 %v825, %v825
      %v1359 = vmul.f32 %v828, %v828
      %v1360 = vmul.f32 %v833, %v833
      %v1361 = vmul.f32 %v836, %v836
      %v1362 = vmul.f32 %v841, %v841
      %v1363 = vmul.f32 %v844, %v844
      %v1364 = vmul.f32 %v849, %v849
      %v1365 = vmul.f32 %v852, %v852
      %v1366 = vmul.f32 %v857, %v857
      %v1367 = vmul.f32 %v860, %v860
      %v1368 = vmul.f32 %v865, %v865
      %v1369 = vmul.f32 %v868, %v868
      %v1370 = vmul.f32 %v873, %v873
      %v1371 = vmul.f32 %v876, %v876
      %v1372 = vmul.f32 %v881, %v881
      %v1373 = vmul.f32 %v884, %v884
      %v1374 = vmul.f32 %v889, %v889
      %v1375 = vmul.f32 %v892, %v892
      %v1376 = vmul.f32 %v897, %v897
      %v1377 = vmul.f32 %v900, %v900
      %v1378 = vmul.f32 %v905, %v905
      %v1379 = vmul.f32 %v908, %v908
      %v1380 = vmul.f32 %v913, %v913
      %v1381 = vmul.f32 %v916, %v916
      %v1382 = vmul.f32 %v921, %v921
      %v1383 = vmul.f32 %v924, %v924
      %v1384 = vadd.f32 %v1320, %v1321
      %v1385 = vadd.f32 %v1384, %v1322
      %v1386 = vadd.f32 %v1385, %v1323
      %v1387 = vadd.f32 %v1386, %v1324
      %v1388 = vadd.f32 %v1387, %v1325
      %v1389 = vadd.f32 %v1388, %v1326
      %v1390 = vadd.f32 %v1389, %v1327
      %v1391 = vadd.f32 %v1390, %v1328
      %v1392 = vadd.f32 %v1391, %v1329
      %v1393 = vadd.f32 %v1392, %v1330
      %v1394 = vadd.f32 %v1393, %v1331
      %v1395 = vadd.f32 %v1394, %v1332
      %v1396 = vadd.f32 %v1395, %v1333
      %v1397 = vadd.f32 %v1396, %v1334
      %v1398 = vadd.f32 %v1397, %v1335
      %v1399 = vadd.f32 %v1398, %v1336
      %v1400 = vadd.f32 %v1399, %v1337
      %v1401 = vadd.f32 %v1400, %v1338
      %v1402 = vadd.f32 %v1401, %v1339
      %v1403 = vadd.f32 %v1402, %v1340
      %v1404 = vadd.f32 %v1403, %v1341
      %v1405 = vadd.f32 %v1404, %v1342
      %v1406 = vadd.f32 %v1405, %v1343
      %v1407 = vadd.f32 %v1406, %v1344
      %v1408 = vadd.f32 %v1407, %v1345
      %v1409 = vadd.f32 %v1408, %v1346
      %v1410 = vadd.f32 %v1409, %v1347
      %v1411 = vadd.f32 %v1410, %v1348
      %v1412 = vadd.f32 %v1411, %v1349
      %v1413 = vadd.f32 %v1412, %v1350
      %v1414 = vadd.f32 %v1413, %v1351
      %v1415 = vadd.f32 %v1414, %v1352
      %v1416 = vadd.f32 %v1415, %v1353
      %v1417 = vadd.f32 %v1416, %v1354
      %v1418 = vadd.f32 %v1417, %v1355
      %v1419 = vadd.f32 %v1418, %v1356
      %v1420 = vadd.f32 %v1419, %v1357
      %v1421 = vadd.f32 %v1420, %v1358
      %v1422 = vadd.f32 %v1421, %v1359
      %v1423 = vadd.f32 %v1422, %v1360
      %v1424 = vadd.f32 %v1423, %v1361
      %v1425 = vadd.f32 %v1424, %v1362
      %v1426 = vadd.f32 %v1425, %v1363
      %v1427 = vadd.f32 %v1426, %v1364
      %v1428 = vadd.f32 %v1427, %v1365
      %v1429 = vadd.f32 %v1428, %v1366
      %v1430 = vadd.f32 %v1429, %v1367
      %v1431 = vadd.f32 %v1430, %v1368
      %v1432 = vadd.f32 %v1431, %v1369
      %v1433 = vadd.f32 %v1432, %v1370
      %v1434 = vadd.f32 %v1433, %v1371
      %v1435 = vadd.f32 %v1434, %v1372
      %v1436 = vadd.f32 %v1435, %v1373
      %v1437 = vadd.f32 %v1436, %v1374
      %v1438 = vadd.f32 %v1437, %v1375
      %v1439 = vadd.f32 %v1438, %v1376
      %v1440 = vadd.f32 %v1439, %v1377
      %v1441 = vadd.f32 %v1440, %v1378
      %v1442 = vadd.f32 %v1441, %v1379
      %v1443 = vadd.f32 %v1442, %v1380
      %v1444 = vadd.f32 %v1443, %v1381
      %v1445 = vadd.f32 %v1444, %v1382
      %v1446 = vadd.f32 %v1445, %v1383
      %v1447 = vrot.slane %v1446, 4
      %v1448 = vadd.f32 %v1446, %v1447
      %v1449 = vrot.slane %v1448, 2
      %v1450 = vadd.f32 %v1448, %v1449
      %v1451 = vrot.slane %v1450, 1
      %v1452 = vadd.f32 %v1450, %v1451
      %v1453 = vadd.f32 %v1319, %v1452
      %1454 = vst [vmem:[%s277] sm:$0xff] %v1453
      %s1455 = smul.u32 64, %s21
      %p1456 = scmp.lt.s32.totalorder %s20, 3
      %s1457 = scalar_select %p1456, %s20, 3
      %p1458 = scmp.lt.s32.totalorder %s1455, 63
      %s1459 = scalar_select %p1458, %s1455, 63
      %s1460 = smul.addr %s1457, 64
      %s1461 = sadd.s32 %s1459, %s1460
      %s1462 = smul.addr %s1461, 4
      %s1463 = scalar_lea.vmem %s2, %s1462
      %p1464 = scmp.lt.s32.totalorder %s20, 3
      %s1465 = scalar_select %p1464, %s20, 3
      %s1466 = smul.addr %s1465, 8
      %s1467 = scalar_lea.vmem %s3, %s1466
      %p1468 = scmp.lt.s32.totalorder %s20, 3
      %s1469 = scalar_select %p1468, %s20, 3
      %s1470 = smul.addr %s1469, 8
      %s1471 = scalar_lea.vmem %s4, %s1470
      // Predicated region
      $region33: #{generator_forward.15} parent=27 // pred_check
        %p1472 = pneg %p102
      $region34: #{generator_forward.15} parent=27 // pred_check_branch
        %1474 = sbr.rel (%p1472) target = $region36
      $region35: #{generator_forward.15} parent=27 // pred_region
        %s1475 = smul.u32 64, %s21
      $region36: #{generator_forward.15} parent=27 // pred_fallthru
        _
      // Predicated region
      $region37: #{generator_forward.15} parent=27 // pred_check
        %p1476 = pneg %p128
      $region38: #{generator_forward.15} parent=27 // pred_check_branch
        %1478 = sbr.rel (%p1476) target = $region40
      $region39: #{generator_forward.15} parent=27 // pred_region
        _
      $region40: #{generator_forward.15} parent=27 // pred_fallthru
        _
      // Predicated region
      $region41: #{generator_forward.15} parent=27 // pred_check
        %p1479 = pneg %p154
      $region42: #{generator_forward.15} parent=27 // pred_check_branch
        %1481 = sbr.rel (%p1479) target = $region44
      $region43: #{generator_forward.15} parent=27 // pred_region
        _
      $region44: #{generator_forward.15} parent=27 // pred_fallthru
        _
    $region28: #{generator_forward.15} parent=5 // pred_fallthru
      _
    %p1482 = scmp.le.s32.totalorder 2, %s11
    // Predicated region
    $region45: #{generator_forward.15} parent=5 // pred_check
      %p1483 = pneg %p1482
    $region46: #{generator_forward.15} parent=5 // pred_check_branch
      %1485 = sbr.rel (%p1483) target = $region48
    $region47: #{generator_forward.15} parent=5 // pred_region
      %s1486 = ssub.s32 %s11, 2
      // Predicated region
      $region49: #{generator_forward.15} parent=47 // pred_check
        %p1487 = pneg %p108
      $region50: #{generator_forward.15} parent=47 // pred_check_branch
        %1489 = sbr.rel (%p1487) target = $region52
      $region51: #{generator_forward.15} parent=47 // pred_region
        %s1490 = smul.u32 64, %s23
        %p1491 = scmp.lt.s32.totalorder %s22, 3
        %s1492 = scalar_select %p1491, %s22, 3
        %p1493 = scmp.lt.s32.totalorder %s1490, 63
        %s1494 = scalar_select %p1493, %s1490, 63
        %s1495 = smul.addr %s1492, 64
        %s1496 = sadd.s32 %s1494, %s1495
        %s1497 = smul.addr %s1496, 4
        %s1498 = scalar_lea.vmem %s2, %s1497
      $region52: #{generator_forward.15} parent=47 // pred_fallthru
        _
      // Predicated region
      $region53: #{generator_forward.15} parent=47 // pred_check
        %p1499 = pneg %p134
      $region54: #{generator_forward.15} parent=47 // pred_check_branch
        %1501 = sbr.rel (%p1499) target = $region56
      $region55: #{generator_forward.15} parent=47 // pred_region
        %p1502 = scmp.lt.s32.totalorder %s22, 3
        %s1503 = scalar_select %p1502, %s22, 3
        %s1504 = smul.addr %s1503, 8
        %s1505 = scalar_lea.vmem %s3, %s1504
      $region56: #{generator_forward.15} parent=47 // pred_fallthru
        _
      // Predicated region
      $region57: #{generator_forward.15} parent=47 // pred_check
        %p1506 = pneg %p160
      $region58: #{generator_forward.15} parent=47 // pred_check_branch
        %1508 = sbr.rel (%p1506) target = $region60
      $region59: #{generator_forward.15} parent=47 // pred_region
        %p1509 = scmp.lt.s32.totalorder %s22, 3
        %s1510 = scalar_select %p1509, %s22, 3
        %s1511 = smul.addr %s1510, 8
        %s1512 = scalar_lea.vmem %s4, %s1511
      $region60: #{generator_forward.15} parent=47 // pred_fallthru
        _
    $region48: #{generator_forward.15} parent=5 // pred_fallthru
      _
  $region6: #{generator_forward.15} parent=0 // loop_footer
    %s15 = sadd.s32 1, %s11
  $region7: #{generator_forward.15} parent=0 // loop_footer_branch
    %10 = sbr.rel target = $region3
  $region8: #{generator_forward.15} parent=0 // loop_exit
    _

// kernel: generator_forward.16
$region0: #{generator_forward.16}
  #allocation0 [shape = 'u32[]', space=smem, size = 0x4, offset = 0x4, fixed_abs, tag = 'smem constant byte address 0x4 - core index']
  #allocation1 [shape = 'u32[144,128]{1,0:T(1,128)}', space=vmem, size = 0x12000, scoped, tag = 'internal scratch']
  %s0 = inlined_call_operand.vmem [shape: bf16[2048,128], index: 0, kind: input, shape index: {}]
  %s1 = inlined_call_operand.vmem [shape: f32[1,128], index: 1, kind: input, shape index: {}]
  %s2 = inlined_call_operand.vmem [shape: f32[1,128], index: 2, kind: input, shape index: {}]
  %s3 = inlined_call_operand.vmem [shape: bf16[2048,128], index: 3, kind: output, shape index: {}]
  %s4 = sld [smem:[#allocation0]]
  $region45: #{generator_forward.16} parent=0
    _
  %s6 = ssub.s32 1, %s4
  %s7 = scalar_select 0, %s6, %s4
  loop: start=0, step=1, limit=6
  $region2: #{generator_forward.16} parent=0 // loop_pre_header
    _
  $region3: #{generator_forward.16} parent=0 // loop_header
    %s9 = sphi 0, %s13
    %p10 = scmp.ge.s32.totalorder %s9, 6
    %s19 = sphi 0, %s21
    %s22 = sphi 0, %s19
    %s23 = sphi 0, %s22
    %s39 = sphi 0, %s23
    %s43 = sphi 0, %s43
    %s45 = sphi 0, %s43
    %s46 = sphi 0, %s45
    %s60 = sphi 0, %s46
    %s64 = sphi 0, %s64
    %s66 = sphi 0, %s64
    %s67 = sphi 0, %s66
    %s81 = sphi 0, %s67
    %s87 = sphi 0, %s89
    %s90 = sphi 0, %s87
    %s91 = sphi 0, %s90
    %s107 = sphi 0, %s91
  $region4: #{generator_forward.16} parent=0 // loop_header_branch
    %12 = sbr.rel (%p10) target = $region8
  $region5: #{generator_forward.16} parent=0 // loop_body
    %s14 = ssub.s32 %s9, 1
    %s15 = ssub.s32 %s9, 2
    %s16 = sadd.s32 %s9, 1
    %s17 = ssub.s32 %s9, %s16
    %p18 = scmp.eq.s32.totalorder %s17, 0
    %s20 = sadd.s32 %s19, 1
    %s21 = scalar_select %p18, %s19, %s20
    %p24 = pneg %p18
    %p25 = scmp.eq.s32.totalorder %s9, 3
    %p26 = por %p24, %p25
    %p27 = scmp.ne.s32.totalorder %s19, %s22
    %p28 = scmp.eq.s32.totalorder %s9, 0
    %p29 = por %p27, %p28
    %p30 = scmp.ne.s32.totalorder %s19, %s22
    %p31 = scmp.eq.s32.totalorder %s14, 3
    %p32 = por %p30, %p31
    %p33 = scmp.ne.s32.totalorder %s22, %s23
    %p34 = scmp.eq.s32.totalorder %s14, 0
    %p35 = por %p33, %p34
    %p36 = scmp.ne.s32.totalorder %s22, %s23
    %p37 = scmp.eq.s32.totalorder %s15, 3
    %p38 = por %p36, %p37
    %p40 = scmp.ne.s32.totalorder %s23, %s39
    %p41 = scmp.eq.s32.totalorder %s15, 0
    %p42 = por %p40, %p41
    %s44 = sadd.s32 %s43, 1
    %p47 = scmp.eq.s32.totalorder %s9, 3
    %p48 = scmp.ne.s32.totalorder %s43, %s45
    %p49 = scmp.eq.s32.totalorder %s9, 0
    %p50 = por %p48, %p49
    %p51 = scmp.ne.s32.totalorder %s43, %s45
    %p52 = scmp.eq.s32.totalorder %s14, 3
    %p53 = por %p51, %p52
    %p54 = scmp.ne.s32.totalorder %s45, %s46
    %p55 = scmp.eq.s32.totalorder %s14, 0
    %p56 = por %p54, %p55
    %p57 = scmp.ne.s32.totalorder %s45, %s46
    %p58 = scmp.eq.s32.totalorder %s15, 3
    %p59 = por %p57, %p58
    %p61 = scmp.ne.s32.totalorder %s46, %s60
    %p62 = scmp.eq.s32.totalorder %s15, 0
    %p63 = por %p61, %p62
    %s65 = sadd.s32 %s64, 1
    %p68 = scmp.eq.s32.totalorder %s9, 3
    %p69 = scmp.ne.s32.totalorder %s64, %s66
    %p70 = scmp.eq.s32.totalorder %s9, 0
    %p71 = por %p69, %p70
    %p72 = scmp.ne.s32.totalorder %s64, %s66
    %p73 = scmp.eq.s32.totalorder %s14, 3
    %p74 = por %p72, %p73
    %p75 = scmp.ne.s32.totalorder %s66, %s67
    %p76 = scmp.eq.s32.totalorder %s14, 0
    %p77 = por %p75, %p76
    %p78 = scmp.ne.s32.totalorder %s66, %s67
    %p79 = scmp.eq.s32.totalorder %s15, 3
    %p80 = por %p78, %p79
    %p82 = scmp.ne.s32.totalorder %s67, %s81
    %p83 = scmp.eq.s32.totalorder %s15, 0
    %p84 = por %p82, %p83
    %s85 = ssub.s32 %s9, %s16
    %p86 = scmp.eq.s32.totalorder %s85, 0
    %s88 = sadd.s32 %s87, 1
    %s89 = scalar_select %p86, %s87, %s88
    %p92 = pneg %p86
    %p93 = scmp.eq.s32.totalorder %s9, 3
    %p94 = por %p92, %p93
    %p95 = scmp.ne.s32.totalorder %s87, %s90
    %p96 = scmp.eq.s32.totalorder %s9, 0
    %p97 = por %p95, %p96
    %p98 = scmp.ne.s32.totalorder %s87, %s90
    %p99 = scmp.eq.s32.totalorder %s14, 3
    %p100 = por %p98, %p99
    %p101 = scmp.ne.s32.totalorder %s90, %s91
    %p102 = scmp.eq.s32.totalorder %s14, 0
    %p103 = por %p101, %p102
    %p104 = scmp.ne.s32.totalorder %s90, %s91
    %p105 = scmp.eq.s32.totalorder %s15, 3
    %p106 = por %p104, %p105
    %p108 = scmp.ne.s32.totalorder %s91, %s107
    %p109 = scmp.eq.s32.totalorder %s15, 0
    %p110 = por %p108, %p109
    %p111 = scmp.le.s32.totalorder 1, %s9
    %p112 = scmp.lt.s32.totalorder %s9, 5
    %p113 = pnand %p111, %p112
    %p114 = pneg %p113
    // Predicated region
    $region9: #{generator_forward.16} parent=5 // pred_check
      _
    $region10: #{generator_forward.16} parent=5 // pred_check_branch
      %116 = sbr.rel (%p113) target = $region12
    $region11: #{generator_forward.16} parent=5 // pred_region
      %s117 = ssub.s32 %s9, 1
      // Predicated region
      $region13: #{generator_forward.16} parent=11 // pred_check
        %p118 = pneg %p56
      $region14: #{generator_forward.16} parent=11 // pred_check_branch
        %120 = sbr.rel (%p118) target = $region16
      $region15: #{generator_forward.16} parent=11 // pred_region
        _
      $region16: #{generator_forward.16} parent=11 // pred_fallthru
        _
      // Predicated region
      $region17: #{generator_forward.16} parent=11 // pred_check
        %p121 = pneg %p77
      $region18: #{generator_forward.16} parent=11 // pred_check_branch
        %123 = sbr.rel (%p121) target = $region20
      $region19: #{generator_forward.16} parent=11 // pred_region
        _
      $region20: #{generator_forward.16} parent=11 // pred_fallthru
        _
    $region12: #{generator_forward.16} parent=5 // pred_fallthru
      _
    %p124 = scmp.lt.s32.totalorder %s9, 4
    // Predicated region
    $region21: #{generator_forward.16} parent=5 // pred_check
      %p125 = pneg %p124
    $region22: #{generator_forward.16} parent=5 // pred_check_branch
      %127 = sbr.rel (%p125) target = $region24
    $region23: #{generator_forward.16} parent=5 // pred_region
      // Predicated region
      $region25: #{generator_forward.16} parent=23 // pred_check
        %p128 = pneg %p29
      $region26: #{generator_forward.16} parent=23 // pred_check_branch
        %130 = sbr.rel (%p128) target = $region28
      $region27: #{generator_forward.16} parent=23 // pred_region
        %s131 = smul.u32 64, %s9
        %p132 = scmp.lt.s32.totalorder %s131, 255
        %s133 = scalar_select %p132, %s131, 255
        %s134 = smul.addr %s133, 4
        %s135 = scalar_lea.vmem %s0, %s134
        %s136 = smul.u32 64, %s9
      $region28: #{generator_forward.16} parent=23 // pred_fallthru
        _
    $region24: #{generator_forward.16} parent=5 // pred_fallthru
      _
    %p137 = scmp.le.s32.totalorder 1, %s9
    %p138 = scmp.lt.s32.totalorder %s9, 5
    %p139 = pnand %p137, %p138
    %p140 = pneg %p139
    // Predicated region
    $region29: #{generator_forward.16} parent=5 // pred_check
      _
    $region30: #{generator_forward.16} parent=5 // pred_check_branch
      %142 = sbr.rel (%p139) target = $region32
    $region31: #{generator_forward.16} parent=5 // pred_region
      %s143 = ssub.s32 %s9, 1
      %s144 = smul.u32 64, %s14
      %p145 = scmp.lt.s32.totalorder %s144, 255
      %s146 = scalar_select %p145, %s144, 255
      %s147 = smul.addr %s146, 4
      %s148 = scalar_lea.vmem %s0, %s147
      %p149 = pneg %p35
      %p150 = pneg %p32
      %p151 = pneg %p56
      %p152 = pneg %p53
      %p153 = pneg %p77
      %p154 = pneg %p74
      %p155 = pneg %p103
      %p156 = pneg %p100
      %s157 = smul.u32 64, %s14
      %p158 = scmp.lt.s32.totalorder %s157, 255
      %s159 = scalar_select %p158, %s157, 255
      %s160 = smul.addr %s159, 4
      %s161 = scalar_lea.vmem %s3, %s160
      %s162 = smul.u32 64, %s14
      %p163 = scmp.lt.s32.totalorder %s162, 255
      %s164 = scalar_select %p163, %s162, 255
      %s165 = smul.addr %s164, 4
      %s166 = scalar_lea.vmem %s0, %s165
      %s167 = smul.u32 64, %s14
      %s168 = smul.u32 64, %s14
      %p169 = scmp.lt.s32.totalorder %s168, 255
      %s170 = scalar_select %p169, %s168, 255
      %s171 = smul.addr %s170, 4
      %s172 = scalar_lea.vmem %s3, %s171
      %s173 = smul.u32 64, %s14
      %v174 = vld [vmem:[%s166] sm:$0xf]
      %v175 = vld [vmem:[%s166 + $0x4] sm:$0xf]
      %v176 = vld [vmem:[%s166 + $0x8] sm:$0xf]
      %v177 = vld [vmem:[%s166 + $0xc] sm:$0xf]
      %v178 = vld [vmem:[%s166 + $0x10] sm:$0xf]
      %v179 = vld [vmem:[%s166 + $0x14] sm:$0xf]
      %v180 = vld [vmem:[%s166 + $0x18] sm:$0xf]
      %v181 = vld [vmem:[%s166 + $0x1c] sm:$0xf]
      %v182 = vld [vmem:[%s166 + $0x20] sm:$0xf]
      %v183 = vld [vmem:[%s166 + $0x24] sm:$0xf]
      %v184 = vld [vmem:[%s166 + $0x28] sm:$0xf]
      %v185 = vld [vmem:[%s166 + $0x2c] sm:$0xf]
      %v186 = vld [vmem:[%s166 + $0x30] sm:$0xf]
      %v187 = vld [vmem:[%s166 + $0x34] sm:$0xf]
      %v188 = vld [vmem:[%s166 + $0x38] sm:$0xf]
      %v189 = vld [vmem:[%s166 + $0x3c] sm:$0xf]
      %v190 = vld [vmem:[%s166 + $0x40] sm:$0xf]
      %v191 = vld [vmem:[%s166 + $0x44] sm:$0xf]
      %v192 = vld [vmem:[%s166 + $0x48] sm:$0xf]
      %v193 = vld [vmem:[%s166 + $0x4c] sm:$0xf]
      %v194 = vld [vmem:[%s166 + $0x50] sm:$0xf]
      %v195 = vld [vmem:[%s166 + $0x54] sm:$0xf]
      %v196 = vld [vmem:[%s166 + $0x58] sm:$0xf]
      %v197 = vld [vmem:[%s166 + $0x5c] sm:$0xf]
      %v198 = vld [vmem:[%s166 + $0x60] sm:$0xf]
      %v199 = vld [vmem:[%s166 + $0x64] sm:$0xf]
      %v200 = vld [vmem:[%s166 + $0x68] sm:$0xf]
      %v201 = vld [vmem:[%s166 + $0x6c] sm:$0xf]
      %v202 = vld [vmem:[%s166 + $0x70] sm:$0xf]
      %v203 = vld [vmem:[%s166 + $0x74] sm:$0xf]
      %v204 = vld [vmem:[%s166 + $0x78] sm:$0xf]
      %v205 = vld [vmem:[%s166 + $0x7c] sm:$0xf]
      %v206 = vld [vmem:[%s166 + $0x80] sm:$0xf]
      %v207 = vld [vmem:[%s166 + $0x84] sm:$0xf]
      %v208 = vld [vmem:[%s166 + $0x88] sm:$0xf]
      %v209 = vld [vmem:[%s166 + $0x8c] sm:$0xf]
      %v210 = vld [vmem:[%s166 + $0x90] sm:$0xf]
      %v211 = vld [vmem:[%s166 + $0x94] sm:$0xf]
      %v212 = vld [vmem:[%s166 + $0x98] sm:$0xf]
      %v213 = vld [vmem:[%s166 + $0x9c] sm:$0xf]
      %v214 = vld [vmem:[%s166 + $0xa0] sm:$0xf]
      %v215 = vld [vmem:[%s166 + $0xa4] sm:$0xf]
      %v216 = vld [vmem:[%s166 + $0xa8] sm:$0xf]
      %v217 = vld [vmem:[%s166 + $0xac] sm:$0xf]
      %v218 = vld [vmem:[%s166 + $0xb0] sm:$0xf]
      %v219 = vld [vmem:[%s166 + $0xb4] sm:$0xf]
      %v220 = vld [vmem:[%s166 + $0xb8] sm:$0xf]
      %v221 = vld [vmem:[%s166 + $0xbc] sm:$0xf]
      %v222 = vld [vmem:[%s166 + $0xc0] sm:$0xf]
      %v223 = vld [vmem:[%s166 + $0xc4] sm:$0xf]
      %v224 = vld [vmem:[%s166 + $0xc8] sm:$0xf]
      %v225 = vld [vmem:[%s166 + $0xcc] sm:$0xf]
      %v226 = vld [vmem:[%s166 + $0xd0] sm:$0xf]
      %v227 = vld [vmem:[%s166 + $0xd4] sm:$0xf]
      %v228 = vld [vmem:[%s166 + $0xd8] sm:$0xf]
      %v229 = vld [vmem:[%s166 + $0xdc] sm:$0xf]
      %v230 = vld [vmem:[%s166 + $0xe0] sm:$0xf]
      %v231 = vld [vmem:[%s166 + $0xe4] sm:$0xf]
      %v232 = vld [vmem:[%s166 + $0xe8] sm:$0xf]
      %v233 = vld [vmem:[%s166 + $0xec] sm:$0xf]
      %v234 = vld [vmem:[%s166 + $0xf0] sm:$0xf]
      %v235 = vld [vmem:[%s166 + $0xf4] sm:$0xf]
      %v236 = vld [vmem:[%s166 + $0xf8] sm:$0xf]
      %v237 = vld [vmem:[%s166 + $0xfc] sm:$0xf]
      %v238 = vunpack.c.l.bf16 %v174
      %v239 = vunpack.c.l.bf16 %v175
      %v240 = vunpack.c.l.bf16 %v176
      %v241 = vunpack.c.l.bf16 %v177
      %v242 = vunpack.c.l.bf16 %v178
      %v243 = vunpack.c.l.bf16 %v179
      %v244 = vunpack.c.l.bf16 %v180
      %v245 = vunpack.c.l.bf16 %v181
      %v246 = vunpack.c.l.bf16 %v182
      %v247 = vunpack.c.l.bf16 %v183
      %v248 = vunpack.c.l.bf16 %v184
      %v249 = vunpack.c.l.bf16 %v185
      %v250 = vunpack.c.l.bf16 %v186
      %v251 = vunpack.c.l.bf16 %v187
      %v252 = vunpack.c.l.bf16 %v188
      %v253 = vunpack.c.l.bf16 %v189
      %v254 = vunpack.c.l.bf16 %v190
      %v255 = vunpack.c.l.bf16 %v191
      %v256 = vunpack.c.l.bf16 %v192
      %v257 = vunpack.c.l.bf16 %v193
      %v258 = vunpack.c.l.bf16 %v194
      %v259 = vunpack.c.l.bf16 %v195
      %v260 = vunpack.c.l.bf16 %v196
      %v261 = vunpack.c.l.bf16 %v197
      %v262 = vunpack.c.l.bf16 %v198
      %v263 = vunpack.c.l.bf16 %v199
      %v264 = vunpack.c.l.bf16 %v200
      %v265 = vunpack.c.l.bf16 %v201
      %v266 = vunpack.c.l.bf16 %v202
      %v267 = vunpack.c.l.bf16 %v203
      %v268 = vunpack.c.l.bf16 %v204
      %v269 = vunpack.c.l.bf16 %v205
      %v270 = vunpack.c.l.bf16 %v206
      %v271 = vunpack.c.l.bf16 %v207
      %v272 = vunpack.c.l.bf16 %v208
      %v273 = vunpack.c.l.bf16 %v209
      %v274 = vunpack.c.l.bf16 %v210
      %v275 = vunpack.c.l.bf16 %v211
      %v276 = vunpack.c.l.bf16 %v212
      %v277 = vunpack.c.l.bf16 %v213
      %v278 = vunpack.c.l.bf16 %v214
      %v279 = vunpack.c.l.bf16 %v215
      %v280 = vunpack.c.l.bf16 %v216
      %v281 = vunpack.c.l.bf16 %v217
      %v282 = vunpack.c.l.bf16 %v218
      %v283 = vunpack.c.l.bf16 %v219
      %v284 = vunpack.c.l.bf16 %v220
      %v285 = vunpack.c.l.bf16 %v221
      %v286 = vunpack.c.l.bf16 %v222
      %v287 = vunpack.c.l.bf16 %v223
      %v288 = vunpack.c.l.bf16 %v224
      %v289 = vunpack.c.l.bf16 %v225
      %v290 = vunpack.c.l.bf16 %v226
      %v291 = vunpack.c.l.bf16 %v227
      %v292 = vunpack.c.l.bf16 %v228
      %v293 = vunpack.c.l.bf16 %v229
      %v294 = vunpack.c.l.bf16 %v230
      %v295 = vunpack.c.l.bf16 %v231
      %v296 = vunpack.c.l.bf16 %v232
      %v297 = vunpack.c.l.bf16 %v233
      %v298 = vunpack.c.l.bf16 %v234
      %v299 = vunpack.c.l.bf16 %v235
      %v300 = vunpack.c.l.bf16 %v236
      %v301 = vunpack.c.l.bf16 %v237
      %v302 = vld [vmem:[%s1] sm:$0x1]
      %v304 = vlaneseq
      %v305 = vshrl.u32 %v304, 7
      %v306 = vsub.s32 0, %v305
      %v307 = vrot.slane %v302, %v306
      %v309 = vmul.f32 %v238, %v307
      %v310 = vmul.f32 %v239, %v307
      %v311 = vmul.f32 %v240, %v307
      %v312 = vmul.f32 %v241, %v307
      %v313 = vmul.f32 %v242, %v307
      %v314 = vmul.f32 %v243, %v307
      %v315 = vmul.f32 %v244, %v307
      %v316 = vmul.f32 %v245, %v307
      %v317 = vmul.f32 %v246, %v307
      %v318 = vmul.f32 %v247, %v307
      %v319 = vmul.f32 %v248, %v307
      %v320 = vmul.f32 %v249, %v307
      %v321 = vmul.f32 %v250, %v307
      %v322 = vmul.f32 %v251, %v307
      %v323 = vmul.f32 %v252, %v307
      %v324 = vmul.f32 %v253, %v307
      %v325 = vmul.f32 %v254, %v307
      %v326 = vmul.f32 %v255, %v307
      %v327 = vmul.f32 %v256, %v307
      %v328 = vmul.f32 %v257, %v307
      %v329 = vmul.f32 %v258, %v307
      %v330 = vmul.f32 %v259, %v307
      %v331 = vmul.f32 %v260, %v307
      %v332 = vmul.f32 %v261, %v307
      %v333 = vmul.f32 %v262, %v307
      %v334 = vmul.f32 %v263, %v307
      %v335 = vmul.f32 %v264, %v307
      %v336 = vmul.f32 %v265, %v307
      %v337 = vmul.f32 %v266, %v307
      %v338 = vmul.f32 %v267, %v307
      %v339 = vmul.f32 %v268, %v307
      %v340 = vmul.f32 %v269, %v307
      %v341 = vmul.f32 %v270, %v307
      %v342 = vmul.f32 %v271, %v307
      %v343 = vmul.f32 %v272, %v307
      %v344 = vmul.f32 %v273, %v307
      %v345 = vmul.f32 %v274, %v307
      %v346 = vmul.f32 %v275, %v307
      %v347 = vmul.f32 %v276, %v307
      %v348 = vmul.f32 %v277, %v307
      %v349 = vmul.f32 %v278, %v307
      %v350 = vmul.f32 %v279, %v307
      %v351 = vmul.f32 %v280, %v307
      %v352 = vmul.f32 %v281, %v307
      %v353 = vmul.f32 %v282, %v307
      %v354 = vmul.f32 %v283, %v307
      %v355 = vmul.f32 %v284, %v307
      %v356 = vmul.f32 %v285, %v307
      %v357 = vmul.f32 %v286, %v307
      %v358 = vmul.f32 %v287, %v307
      %v359 = vmul.f32 %v288, %v307
      %v360 = vmul.f32 %v289, %v307
      %v361 = vmul.f32 %v290, %v307
      %v362 = vmul.f32 %v291, %v307
      %v363 = vmul.f32 %v292, %v307
      %v364 = vmul.f32 %v293, %v307
      %v365 = vmul.f32 %v294, %v307
      %v366 = vmul.f32 %v295, %v307
      %v367 = vmul.f32 %v296, %v307
      %v368 = vmul.f32 %v297, %v307
      %v369 = vmul.f32 %v298, %v307
      %v370 = vmul.f32 %v299, %v307
      %v371 = vmul.f32 %v300, %v307
      %v372 = vmul.f32 %v301, %v307
      %v373 = vld [vmem:[%s2] sm:$0x1]
      %v375 = vlaneseq
      %v376 = vshrl.u32 %v375, 7
      %v377 = vsub.s32 0, %v376
      %v378 = vrot.slane %v373, %v377
      %v380 = vadd.f32 %v309, %v378
      %v381 = vadd.f32 %v310, %v378
      %v382 = vadd.f32 %v311, %v378
      %v383 = vadd.f32 %v312, %v378
      %v384 = vadd.f32 %v313, %v378
      %v385 = vadd.f32 %v314, %v378
      %v386 = vadd.f32 %v315, %v378
      %v387 = vadd.f32 %v316, %v378
      %v388 = vadd.f32 %v317, %v378
      %v389 = vadd.f32 %v318, %v378
      %v390 = vadd.f32 %v319, %v378
      %v391 = vadd.f32 %v320, %v378
      %v392 = vadd.f32 %v321, %v378
      %v393 = vadd.f32 %v322, %v378
      %v394 = vadd.f32 %v323, %v378
      %v395 = vadd.f32 %v324, %v378
      %v396 = vadd.f32 %v325, %v378
      %v397 = vadd.f32 %v326, %v378
      %v398 = vadd.f32 %v327, %v378
      %v399 = vadd.f32 %v328, %v378
      %v400 = vadd.f32 %v329, %v378
      %v401 = vadd.f32 %v330, %v378
      %v402 = vadd.f32 %v331, %v378
      %v403 = vadd.f32 %v332, %v378
      %v404 = vadd.f32 %v333, %v378
      %v405 = vadd.f32 %v334, %v378
      %v406 = vadd.f32 %v335, %v378
      %v407 = vadd.f32 %v336, %v378
      %v408 = vadd.f32 %v337, %v378
      %v409 = vadd.f32 %v338, %v378
      %v410 = vadd.f32 %v339, %v378
      %v411 = vadd.f32 %v340, %v378
      %v412 = vadd.f32 %v341, %v378
      %v413 = vadd.f32 %v342, %v378
      %v414 = vadd.f32 %v343, %v378
      %v415 = vadd.f32 %v344, %v378
      %v416 = vadd.f32 %v345, %v378
      %v417 = vadd.f32 %v346, %v378
      %v418 = vadd.f32 %v347, %v378
      %v419 = vadd.f32 %v348, %v378
      %v420 = vadd.f32 %v349, %v378
      %v421 = vadd.f32 %v350, %v378
      %v422 = vadd.f32 %v351, %v378
      %v423 = vadd.f32 %v352, %v378
      %v424 = vadd.f32 %v353, %v378
      %v425 = vadd.f32 %v354, %v378
      %v426 = vadd.f32 %v355, %v378
      %v427 = vadd.f32 %v356, %v378
      %v428 = vadd.f32 %v357, %v378
      %v429 = vadd.f32 %v358, %v378
      %v430 = vadd.f32 %v359, %v378
      %v431 = vadd.f32 %v360, %v378
      %v432 = vadd.f32 %v361, %v378
      %v433 = vadd.f32 %v362, %v378
      %v434 = vadd.f32 %v363, %v378
      %v435 = vadd.f32 %v364, %v378
      %v436 = vadd.f32 %v365, %v378
      %v437 = vadd.f32 %v366, %v378
      %v438 = vadd.f32 %v367, %v378
      %v439 = vadd.f32 %v368, %v378
      %v440 = vadd.f32 %v369, %v378
      %v441 = vadd.f32 %v370, %v378
      %v442 = vadd.f32 %v371, %v378
      %v443 = vadd.f32 %v372, %v378
      %v444 = vmax.f32 %v380, 0.0
      %v445 = vmax.f32 %v381, 0.0
      %v446 = vmax.f32 %v382, 0.0
      %v447 = vmax.f32 %v383, 0.0
      %v448 = vmax.f32 %v384, 0.0
      %v449 = vmax.f32 %v385, 0.0
      %v450 = vmax.f32 %v386, 0.0
      %v451 = vmax.f32 %v387, 0.0
      %v452 = vmax.f32 %v388, 0.0
      %v453 = vmax.f32 %v389, 0.0
      %v454 = vmax.f32 %v390, 0.0
      %v455 = vmax.f32 %v391, 0.0
      %v456 = vmax.f32 %v392, 0.0
      %v457 = vmax.f32 %v393, 0.0
      %v458 = vmax.f32 %v394, 0.0
      %v459 = vmax.f32 %v395, 0.0
      %v460 = vmax.f32 %v396, 0.0
      %v461 = vmax.f32 %v397, 0.0
      %v462 = vmax.f32 %v398, 0.0
      %v463 = vmax.f32 %v399, 0.0
      %v464 = vmax.f32 %v400, 0.0
      %v465 = vmax.f32 %v401, 0.0
      %v466 = vmax.f32 %v402, 0.0
      %v467 = vmax.f32 %v403, 0.0
      %v468 = vmax.f32 %v404, 0.0
      %v469 = vmax.f32 %v405, 0.0
      %v470 = vmax.f32 %v406, 0.0
      %v471 = vmax.f32 %v407, 0.0
      %v472 = vmax.f32 %v408, 0.0
      %v473 = vmax.f32 %v409, 0.0
      %v474 = vmax.f32 %v410, 0.0
      %v475 = vmax.f32 %v411, 0.0
      %v476 = vmax.f32 %v412, 0.0
      %v477 = vmax.f32 %v413, 0.0
      %v478 = vmax.f32 %v414, 0.0
      %v479 = vmax.f32 %v415, 0.0
      %v480 = vmax.f32 %v416, 0.0
      %v481 = vmax.f32 %v417, 0.0
      %v482 = vmax.f32 %v418, 0.0
      %v483 = vmax.f32 %v419, 0.0
      %v484 = vmax.f32 %v420, 0.0
      %v485 = vmax.f32 %v421, 0.0
      %v486 = vmax.f32 %v422, 0.0
      %v487 = vmax.f32 %v423, 0.0
      %v488 = vmax.f32 %v424, 0.0
      %v489 = vmax.f32 %v425, 0.0
      %v490 = vmax.f32 %v426, 0.0
      %v491 = vmax.f32 %v427, 0.0
      %v492 = vmax.f32 %v428, 0.0
      %v493 = vmax.f32 %v429, 0.0
      %v494 = vmax.f32 %v430, 0.0
      %v495 = vmax.f32 %v431, 0.0
      %v496 = vmax.f32 %v432, 0.0
      %v497 = vmax.f32 %v433, 0.0
      %v498 = vmax.f32 %v434, 0.0
      %v499 = vmax.f32 %v435, 0.0
      %v500 = vmax.f32 %v436, 0.0
      %v501 = vmax.f32 %v437, 0.0
      %v502 = vmax.f32 %v438, 0.0
      %v503 = vmax.f32 %v439, 0.0
      %v504 = vmax.f32 %v440, 0.0
      %v505 = vmax.f32 %v441, 0.0
      %v506 = vmax.f32 %v442, 0.0
      %v507 = vmax.f32 %v443, 0.0
      %v508 = vpack.c.bf16 %v445, %v444
      %v509 = vpack.c.bf16 %v447, %v446
      %v510 = vpack.c.bf16 %v449, %v448
      %v511 = vpack.c.bf16 %v451, %v450
      %v512 = vpack.c.bf16 %v453, %v452
      %v513 = vpack.c.bf16 %v455, %v454
      %v514 = vpack.c.bf16 %v457, %v456
      %v515 = vpack.c.bf16 %v459, %v458
      %v516 = vpack.c.bf16 %v461, %v460
      %v517 = vpack.c.bf16 %v463, %v462
      %v518 = vpack.c.bf16 %v465, %v464
      %v519 = vpack.c.bf16 %v467, %v466
      %v520 = vpack.c.bf16 %v469, %v468
      %v521 = vpack.c.bf16 %v471, %v470
      %v522 = vpack.c.bf16 %v473, %v472
      %v523 = vpack.c.bf16 %v475, %v474
      %v524 = vpack.c.bf16 %v477, %v476
      %v525 = vpack.c.bf16 %v479, %v478
      %v526 = vpack.c.bf16 %v481, %v480
      %v527 = vpack.c.bf16 %v483, %v482
      %v528 = vpack.c.bf16 %v485, %v484
      %v529 = vpack.c.bf16 %v487, %v486
      %v530 = vpack.c.bf16 %v489, %v488
      %v531 = vpack.c.bf16 %v491, %v490
      %v532 = vpack.c.bf16 %v493, %v492
      %v533 = vpack.c.bf16 %v495, %v494
      %v534 = vpack.c.bf16 %v497, %v496
      %v535 = vpack.c.bf16 %v499, %v498
      %v536 = vpack.c.bf16 %v501, %v500
      %v537 = vpack.c.bf16 %v503, %v502
      %v538 = vpack.c.bf16 %v505, %v504
      %v539 = vpack.c.bf16 %v507, %v506
      %v572 = vunpack.c.l.b16 %v508
      %v573 = vunpack.c.h.b16 %v508
      %v574 = vunpack.c.l.b16 %v509
      %v575 = vunpack.c.h.b16 %v509
      %v576 = vunpack.c.l.b16 %v510
      %v577 = vunpack.c.h.b16 %v510
      %v578 = vunpack.c.l.b16 %v511
      %v579 = vunpack.c.h.b16 %v511
      %v580 = vunpack.c.l.b16 %v512
      %v581 = vunpack.c.h.b16 %v512
      %v582 = vunpack.c.l.b16 %v513
      %v583 = vunpack.c.h.b16 %v513
      %v584 = vunpack.c.l.b16 %v514
      %v585 = vunpack.c.h.b16 %v514
      %v586 = vunpack.c.l.b16 %v515
      %v587 = vunpack.c.h.b16 %v515
      %v588 = vunpack.c.l.b16 %v516
      %v589 = vunpack.c.h.b16 %v516
      %v590 = vunpack.c.l.b16 %v517
      %v591 = vunpack.c.h.b16 %v517
      %v592 = vunpack.c.l.b16 %v518
      %v593 = vunpack.c.h.b16 %v518
      %v594 = vunpack.c.l.b16 %v519
      %v595 = vunpack.c.h.b16 %v519
      %v596 = vunpack.c.l.b16 %v520
      %v597 = vunpack.c.h.b16 %v520
      %v598 = vunpack.c.l.b16 %v521
      %v599 = vunpack.c.h.b16 %v521
      %v600 = vunpack.c.l.b16 %v522
      %v601 = vunpack.c.h.b16 %v522
      %v602 = vunpack.c.l.b16 %v523
      %v603 = vunpack.c.h.b16 %v523
      %v604 = vunpack.c.l.b16 %v524
      %v605 = vunpack.c.h.b16 %v524
      %v606 = vunpack.c.l.b16 %v525
      %v607 = vunpack.c.h.b16 %v525
      %v608 = vunpack.c.l.b16 %v526
      %v609 = vunpack.c.h.b16 %v526
      %v610 = vunpack.c.l.b16 %v527
      %v611 = vunpack.c.h.b16 %v527
      %v612 = vunpack.c.l.b16 %v528
      %v613 = vunpack.c.h.b16 %v528
      %v614 = vunpack.c.l.b16 %v529
      %v615 = vunpack.c.h.b16 %v529
      %v616 = vunpack.c.l.b16 %v530
      %v617 = vunpack.c.h.b16 %v530
      %v618 = vunpack.c.l.b16 %v531
      %v619 = vunpack.c.h.b16 %v531
      %v620 = vunpack.c.l.b16 %v532
      %v621 = vunpack.c.h.b16 %v532
      %v622 = vunpack.c.l.b16 %v533
      %v623 = vunpack.c.h.b16 %v533
      %v624 = vunpack.c.l.b16 %v534
      %v625 = vunpack.c.h.b16 %v534
      %v626 = vunpack.c.l.b16 %v535
      %v627 = vunpack.c.h.b16 %v535
      %v628 = vunpack.c.l.b16 %v536
      %v629 = vunpack.c.h.b16 %v536
      %v630 = vunpack.c.l.b16 %v537
      %v631 = vunpack.c.h.b16 %v537
      %v632 = vunpack.c.l.b16 %v538
      %v633 = vunpack.c.h.b16 %v538
      %v634 = vunpack.c.l.b16 %v539
      %v635 = vunpack.c.h.b16 %v539
      %v636 = vpack.c.b16 %v572, %v572
      %v637 = vpack.c.b16 %v573, %v573
      %v638 = vpack.c.b16 %v574, %v574
      %v639 = vpack.c.b16 %v575, %v575
      %v640 = vpack.c.b16 %v576, %v576
      %v641 = vpack.c.b16 %v577, %v577
      %v642 = vpack.c.b16 %v578, %v578
      %v643 = vpack.c.b16 %v579, %v579
      %v644 = vpack.c.b16 %v580, %v580
      %v645 = vpack.c.b16 %v581, %v581
      %v646 = vpack.c.b16 %v582, %v582
      %v647 = vpack.c.b16 %v583, %v583
      %v648 = vpack.c.b16 %v584, %v584
      %v649 = vpack.c.b16 %v585, %v585
      %v650 = vpack.c.b16 %v586, %v586
      %v651 = vpack.c.b16 %v587, %v587
      %v652 = vpack.c.b16 %v588, %v588
      %v653 = vpack.c.b16 %v589, %v589
      %v654 = vpack.c.b16 %v590, %v590
      %v655 = vpack.c.b16 %v591, %v591
      %v656 = vpack.c.b16 %v592, %v592
      %v657 = vpack.c.b16 %v593, %v593
      %v658 = vpack.c.b16 %v594, %v594
      %v659 = vpack.c.b16 %v595, %v595
      %v660 = vpack.c.b16 %v596, %v596
      %v661 = vpack.c.b16 %v597, %v597
      %v662 = vpack.c.b16 %v598, %v598
      %v663 = vpack.c.b16 %v599, %v599
      %v664 = vpack.c.b16 %v600, %v600
      %v665 = vpack.c.b16 %v601, %v601
      %v666 = vpack.c.b16 %v602, %v602
      %v667 = vpack.c.b16 %v603, %v603
      %v668 = vpack.c.b16 %v604, %v604
      %v669 = vpack.c.b16 %v605, %v605
      %v670 = vpack.c.b16 %v606, %v606
      %v671 = vpack.c.b16 %v607, %v607
      %v672 = vpack.c.b16 %v608, %v608
      %v673 = vpack.c.b16 %v609, %v609
      %v674 = vpack.c.b16 %v610, %v610
      %v675 = vpack.c.b16 %v611, %v611
      %v676 = vpack.c.b16 %v612, %v612
      %v677 = vpack.c.b16 %v613, %v613
      %v678 = vpack.c.b16 %v614, %v614
      %v679 = vpack.c.b16 %v615, %v615
      %v680 = vpack.c.b16 %v616, %v616
      %v681 = vpack.c.b16 %v617, %v617
      %v682 = vpack.c.b16 %v618, %v618
      %v683 = vpack.c.b16 %v619, %v619
      %v684 = vpack.c.b16 %v620, %v620
      %v685 = vpack.c.b16 %v621, %v621
      %v686 = vpack.c.b16 %v622, %v622
      %v687 = vpack.c.b16 %v623, %v623
      %v688 = vpack.c.b16 %v624, %v624
      %v689 = vpack.c.b16 %v625, %v625
      %v690 = vpack.c.b16 %v626, %v626
      %v691 = vpack.c.b16 %v627, %v627
      %v692 = vpack.c.b16 %v628, %v628
      %v693 = vpack.c.b16 %v629, %v629
      %v694 = vpack.c.b16 %v630, %v630
      %v695 = vpack.c.b16 %v631, %v631
      %v696 = vpack.c.b16 %v632, %v632
      %v697 = vpack.c.b16 %v633, %v633
      %v698 = vpack.c.b16 %v634, %v634
      %v699 = vpack.c.b16 %v635, %v635
      %764 = vst [vmem:[%s172] sm:$0xf] %v636
      %765 = vst [vmem:[%s172 + $0x4] sm:$0xf] %v637
      %766 = vst [vmem:[%s172 + $0x8] sm:$0xf] %v638
      %767 = vst [vmem:[%s172 + $0xc] sm:$0xf] %v639
      %768 = vst [vmem:[%s172 + $0x10] sm:$0xf] %v640
      %769 = vst [vmem:[%s172 + $0x14] sm:$0xf] %v641
      %770 = vst [vmem:[%s172 + $0x18] sm:$0xf] %v642
      %771 = vst [vmem:[%s172 + $0x1c] sm:$0xf] %v643
      %772 = vst [vmem:[%s172 + $0x20] sm:$0xf] %v644
      %773 = vst [vmem:[%s172 + $0x24] sm:$0xf] %v645
      %774 = vst [vmem:[%s172 + $0x28] sm:$0xf] %v646
      %775 = vst [vmem:[%s172 + $0x2c] sm:$0xf] %v647
      %776 = vst [vmem:[%s172 + $0x30] sm:$0xf] %v648
      %777 = vst [vmem:[%s172 + $0x34] sm:$0xf] %v649
      %778 = vst [vmem:[%s172 + $0x38] sm:$0xf] %v650
      %779 = vst [vmem:[%s172 + $0x3c] sm:$0xf] %v651
      %780 = vst [vmem:[%s172 + $0x40] sm:$0xf] %v652
      %781 = vst [vmem:[%s172 + $0x44] sm:$0xf] %v653
      %782 = vst [vmem:[%s172 + $0x48] sm:$0xf] %v654
      %783 = vst [vmem:[%s172 + $0x4c] sm:$0xf] %v655
      %784 = vst [vmem:[%s172 + $0x50] sm:$0xf] %v656
      %785 = vst [vmem:[%s172 + $0x54] sm:$0xf] %v657
      %786 = vst [vmem:[%s172 + $0x58] sm:$0xf] %v658
      %787 = vst [vmem:[%s172 + $0x5c] sm:$0xf] %v659
      %788 = vst [vmem:[%s172 + $0x60] sm:$0xf] %v660
      %789 = vst [vmem:[%s172 + $0x64] sm:$0xf] %v661
      %790 = vst [vmem:[%s172 + $0x68] sm:$0xf] %v662
      %791 = vst [vmem:[%s172 + $0x6c] sm:$0xf] %v663
      %792 = vst [vmem:[%s172 + $0x70] sm:$0xf] %v664
      %793 = vst [vmem:[%s172 + $0x74] sm:$0xf] %v665
      %794 = vst [vmem:[%s172 + $0x78] sm:$0xf] %v666
      %795 = vst [vmem:[%s172 + $0x7c] sm:$0xf] %v667
      %796 = vst [vmem:[%s172 + $0x80] sm:$0xf] %v668
      %797 = vst [vmem:[%s172 + $0x84] sm:$0xf] %v669
      %798 = vst [vmem:[%s172 + $0x88] sm:$0xf] %v670
      %799 = vst [vmem:[%s172 + $0x8c] sm:$0xf] %v671
      %800 = vst [vmem:[%s172 + $0x90] sm:$0xf] %v672
      %801 = vst [vmem:[%s172 + $0x94] sm:$0xf] %v673
      %802 = vst [vmem:[%s172 + $0x98] sm:$0xf] %v674
      %803 = vst [vmem:[%s172 + $0x9c] sm:$0xf] %v675
      %804 = vst [vmem:[%s172 + $0xa0] sm:$0xf] %v676
      %805 = vst [vmem:[%s172 + $0xa4] sm:$0xf] %v677
      %806 = vst [vmem:[%s172 + $0xa8] sm:$0xf] %v678
      %807 = vst [vmem:[%s172 + $0xac] sm:$0xf] %v679
      %808 = vst [vmem:[%s172 + $0xb0] sm:$0xf] %v680
      %809 = vst [vmem:[%s172 + $0xb4] sm:$0xf] %v681
      %810 = vst [vmem:[%s172 + $0xb8] sm:$0xf] %v682
      %811 = vst [vmem:[%s172 + $0xbc] sm:$0xf] %v683
      %812 = vst [vmem:[%s172 + $0xc0] sm:$0xf] %v684
      %813 = vst [vmem:[%s172 + $0xc4] sm:$0xf] %v685
      %814 = vst [vmem:[%s172 + $0xc8] sm:$0xf] %v686
      %815 = vst [vmem:[%s172 + $0xcc] sm:$0xf] %v687
      %816 = vst [vmem:[%s172 + $0xd0] sm:$0xf] %v688
      %817 = vst [vmem:[%s172 + $0xd4] sm:$0xf] %v689
      %818 = vst [vmem:[%s172 + $0xd8] sm:$0xf] %v690
      %819 = vst [vmem:[%s172 + $0xdc] sm:$0xf] %v691
      %820 = vst [vmem:[%s172 + $0xe0] sm:$0xf] %v692
      %821 = vst [vmem:[%s172 + $0xe4] sm:$0xf] %v693
      %822 = vst [vmem:[%s172 + $0xe8] sm:$0xf] %v694
      %823 = vst [vmem:[%s172 + $0xec] sm:$0xf] %v695
      %824 = vst [vmem:[%s172 + $0xf0] sm:$0xf] %v696
      %825 = vst [vmem:[%s172 + $0xf4] sm:$0xf] %v697
      %826 = vst [vmem:[%s172 + $0xf8] sm:$0xf] %v698
      %827 = vst [vmem:[%s172 + $0xfc] sm:$0xf] %v699
      %s828 = smul.u32 64, %s14
      %p829 = scmp.lt.s32.totalorder %s828, 255
      %s830 = scalar_select %p829, %s828, 255
      %s831 = smul.addr %s830, 4
      %s832 = scalar_lea.vmem %s3, %s831
      // Predicated region
      $region33: #{generator_forward.16} parent=31 // pred_check
        %p833 = pneg %p100
      $region34: #{generator_forward.16} parent=31 // pred_check_branch
        %835 = sbr.rel (%p833) target = $region36
      $region35: #{generator_forward.16} parent=31 // pred_region
        %s836 = smul.u32 64, %s14
      $region36: #{generator_forward.16} parent=31 // pred_fallthru
        _
    $region32: #{generator_forward.16} parent=5 // pred_fallthru
      _
    %p837 = scmp.le.s32.totalorder 2, %s9
    // Predicated region
    $region37: #{generator_forward.16} parent=5 // pred_check
      %p838 = pneg %p837
    $region38: #{generator_forward.16} parent=5 // pred_check_branch
      %840 = sbr.rel (%p838) target = $region40
    $region39: #{generator_forward.16} parent=5 // pred_region
      %s841 = ssub.s32 %s9, 2
      // Predicated region
      $region41: #{generator_forward.16} parent=39 // pred_check
        %p842 = pneg %p106
      $region42: #{generator_forward.16} parent=39 // pred_check_branch
        %844 = sbr.rel (%p842) target = $region44
      $region43: #{generator_forward.16} parent=39 // pred_region
        %s845 = smul.u32 64, %s15
        %p846 = scmp.lt.s32.totalorder %s845, 255
        %s847 = scalar_select %p846, %s845, 255
        %s848 = smul.addr %s847, 4
        %s849 = scalar_lea.vmem %s3, %s848
      $region44: #{generator_forward.16} parent=39 // pred_fallthru
        _
    $region40: #{generator_forward.16} parent=5 // pred_fallthru
      _
  $region6: #{generator_forward.16} parent=0 // loop_footer
    %s13 = sadd.s32 1, %s9
  $region7: #{generator_forward.16} parent=0 // loop_footer_branch
    %8 = sbr.rel target = $region3
  $region8: #{generator_forward.16} parent=0 // loop_exit
    _

// kernel: generator_forward.17
$region0: #{generator_forward.17}
  #allocation0 [shape = 'u32[]', space=smem, size = 0x4, offset = 0x4, fixed_abs, tag = 'smem constant byte address 0x4 - core index']
  #allocation1 [shape = 'u32[144,128]{1,0:T(1,128)}', space=vmem, size = 0x12000, scoped, tag = 'internal scratch']
  %s0 = inlined_call_operand.vmem [shape: bf16[4,2048,32], index: 0, kind: input, shape index: {}]
  %s1 = inlined_call_operand.vmem [shape: bf16[4,32,128], index: 1, kind: input, shape index: {}]
  %s2 = inlined_call_operand.vmem [shape: bf16[4,2048,128], index: 2, kind: output, shape index: {}]
  %s3 = sld [smem:[#allocation0]]
  $region41: #{generator_forward.17} parent=0
    _
  %s5 = ssub.s32 1, %s3
  %s6 = scalar_select 0, %s5, %s3
  loop: start=0, step=1, limit=10
  $region2: #{generator_forward.17} parent=0 // loop_pre_header
    _
  $region3: #{generator_forward.17} parent=0 // loop_header
    %s8 = sphi 0, %s12
    %p9 = scmp.ge.s32.totalorder %s8, 10
    %s15 = sphi 0, %s27
    %s16 = sphi 0, %s23
    %s17 = sphi 0, %s15
    %s18 = sphi 0, %s16
    %s19 = sphi 0, %s17
    %s20 = sphi 0, %s18
    %s32 = sphi 0, %s34
    %s35 = sphi 0, %s32
    %s36 = sphi 0, %s35
    %s52 = sphi 0, %s36
    %s58 = sphi 0, %s60
    %s61 = sphi 0, %s58
    %s62 = sphi 0, %s61
    %s78 = sphi 0, %s62
    %s86 = sphi 0, %s88
    %s89 = sphi 0, %s86
    %s90 = sphi 0, %s89
    %s106 = sphi 0, %s90
  $region4: #{generator_forward.17} parent=0 // loop_header_branch
    %11 = sbr.rel (%p9) target = $region8
  $region5: #{generator_forward.17} parent=0 // loop_body
    %s13 = ssub.s32 %s8, 1
    %s14 = ssub.s32 %s8, 2
    %s21 = sadd.s32 1, %s16
    %p22 = scmp.ge.s32.totalorder %s21, 2
    %s23 = scalar_select %p22, 0, %s21
    %s24 = sadd.s32 1, %s15
    %s25 = scalar_select %p22, %s24, %s15
    %p26 = scmp.ge.s32.totalorder %s25, 4
    %s27 = scalar_select %p26, 0, %s25
    %s28 = ssub.s32 %s15, %s27
    %s29 = ssub.s32 %s16, %s23
    %s30 = sor.u32 %s28, %s29
    %p31 = scmp.eq.s32.totalorder %s30, 0
    %s33 = sadd.s32 %s32, 1
    %s34 = scalar_select %p31, %s32, %s33
    %p37 = pneg %p31
    %p38 = scmp.eq.s32.totalorder %s8, 7
    %p39 = por %p37, %p38
    %p40 = scmp.ne.s32.totalorder %s32, %s35
    %p41 = scmp.eq.s32.totalorder %s8, 0
    %p42 = por %p40, %p41
    %p43 = scmp.ne.s32.totalorder %s32, %s35
    %p44 = scmp.eq.s32.totalorder %s13, 7
    %p45 = por %p43, %p44
    %p46 = scmp.ne.s32.totalorder %s35, %s36
    %p47 = scmp.eq.s32.totalorder %s13, 0
    %p48 = por %p46, %p47
    %p49 = scmp.ne.s32.totalorder %s35, %s36
    %p50 = scmp.eq.s32.totalorder %s14, 7
    %p51 = por %p49, %p50
    %p53 = scmp.ne.s32.totalorder %s36, %s52
    %p54 = scmp.eq.s32.totalorder %s14, 0
    %p55 = por %p53, %p54
    %s56 = ssub.s32 %s15, %s27
    %p57 = scmp.eq.s32.totalorder %s56, 0
    %s59 = sadd.s32 %s58, 1
    %s60 = scalar_select %p57, %s58, %s59
    %p63 = pneg %p57
    %p64 = scmp.eq.s32.totalorder %s8, 7
    %p65 = por %p63, %p64
    %p66 = scmp.ne.s32.totalorder %s58, %s61
    %p67 = scmp.eq.s32.totalorder %s8, 0
    %p68 = por %p66, %p67
    %p69 = scmp.ne.s32.totalorder %s58, %s61
    %p70 = scmp.eq.s32.totalorder %s13, 7
    %p71 = por %p69, %p70
    %p72 = scmp.ne.s32.totalorder %s61, %s62
    %p73 = scmp.eq.s32.totalorder %s13, 0
    %p74 = por %p72, %p73
    %p75 = scmp.ne.s32.totalorder %s61, %s62
    %p76 = scmp.eq.s32.totalorder %s14, 7
    %p77 = por %p75, %p76
    %p79 = scmp.ne.s32.totalorder %s62, %s78
    %p80 = scmp.eq.s32.totalorder %s14, 0
    %p81 = por %p79, %p80
    %s82 = ssub.s32 %s15, %s27
    %s83 = ssub.s32 %s16, %s23
    %s84 = sor.u32 %s82, %s83
    %p85 = scmp.eq.s32.totalorder %s84, 0
    %s87 = sadd.s32 %s86, 1
    %s88 = scalar_select %p85, %s86, %s87
    %p91 = pneg %p85
    %p92 = scmp.eq.s32.totalorder %s8, 7
    %p93 = por %p91, %p92
    %p94 = scmp.ne.s32.totalorder %s86, %s89
    %p95 = scmp.eq.s32.totalorder %s8, 0
    %p96 = por %p94, %p95
    %p97 = scmp.ne.s32.totalorder %s86, %s89
    %p98 = scmp.eq.s32.totalorder %s13, 7
    %p99 = por %p97, %p98
    %p100 = scmp.ne.s32.totalorder %s89, %s90
    %p101 = scmp.eq.s32.totalorder %s13, 0
    %p102 = por %p100, %p101
    %p103 = scmp.ne.s32.totalorder %s89, %s90
    %p104 = scmp.eq.s32.totalorder %s14, 7
    %p105 = por %p103, %p104
    %p107 = scmp.ne.s32.totalorder %s90, %s106
    %p108 = scmp.eq.s32.totalorder %s14, 0
    %p109 = por %p107, %p108
    %p110 = scmp.le.s32.totalorder 1, %s8
    %p111 = scmp.lt.s32.totalorder %s8, 9
    %p112 = pnand %p110, %p111
    %p113 = pneg %p112
    // Predicated region
    $region9: #{generator_forward.17} parent=5 // pred_check
      _
    $region10: #{generator_forward.17} parent=5 // pred_check_branch
      %115 = sbr.rel (%p112) target = $region12
    $region11: #{generator_forward.17} parent=5 // pred_region
      %s116 = ssub.s32 %s8, 1
    $region12: #{generator_forward.17} parent=5 // pred_fallthru
      _
    %p117 = scmp.lt.s32.totalorder %s8, 8
    // Predicated region
    $region13: #{generator_forward.17} parent=5 // pred_check
      %p118 = pneg %p117
    $region14: #{generator_forward.17} parent=5 // pred_check_branch
      %120 = sbr.rel (%p118) target = $region16
    $region15: #{generator_forward.17} parent=5 // pred_region
      // Predicated region
      $region17: #{generator_forward.17} parent=15 // pred_check
        %p121 = pneg %p42
      $region18: #{generator_forward.17} parent=15 // pred_check_branch
        %123 = sbr.rel (%p121) target = $region20
      $region19: #{generator_forward.17} parent=15 // pred_region
        %s124 = smul.u32 128, %s16
        %p125 = scmp.lt.s32.totalorder %s15, 3
        %s126 = scalar_select %p125, %s15, 3
        %p127 = scmp.lt.s32.totalorder %s124, 255
        %s128 = scalar_select %p127, %s124, 255
        %s129 = smul.addr %s126, 256
        %s130 = sadd.s32 %s128, %s129
        %s131 = smul.addr %s130, 4
        %s132 = scalar_lea.vmem %s0, %s131
        %s133 = smul.u32 128, %s16
      $region20: #{generator_forward.17} parent=15 // pred_fallthru
        _
      // Predicated region
      $region21: #{generator_forward.17} parent=15 // pred_check
        %p134 = pneg %p68
      $region22: #{generator_forward.17} parent=15 // pred_check_branch
        %136 = sbr.rel (%p134) target = $region24
      $region23: #{generator_forward.17} parent=15 // pred_region
        %p137 = scmp.lt.s32.totalorder %s15, 3
        %s138 = scalar_select %p137, %s15, 3
        %s139 = smul.addr %s138, 4
        %s140 = smul.addr %s139, 4
        %s141 = scalar_lea.vmem %s1, %s140
      $region24: #{generator_forward.17} parent=15 // pred_fallthru
        _
    $region16: #{generator_forward.17} parent=5 // pred_fallthru
      _
    %p142 = scmp.le.s32.totalorder 1, %s8
    %p143 = scmp.lt.s32.totalorder %s8, 9
    %p144 = pnand %p142, %p143
    %p145 = pneg %p144
    // Predicated region
    $region25: #{generator_forward.17} parent=5 // pred_check
      _
    $region26: #{generator_forward.17} parent=5 // pred_check_branch
      %147 = sbr.rel (%p144) target = $region28
    $region27: #{generator_forward.17} parent=5 // pred_region
      %s148 = ssub.s32 %s8, 1
      %s149 = smul.u32 128, %s18
      %p150 = scmp.lt.s32.totalorder %s17, 3
      %s151 = scalar_select %p150, %s17, 3
      %p152 = scmp.lt.s32.totalorder %s149, 255
      %s153 = scalar_select %p152, %s149, 255
      %s154 = smul.addr %s151, 256
      %s155 = sadd.s32 %s153, %s154
      %s156 = smul.addr %s155, 4
      %s157 = scalar_lea.vmem %s0, %s156
      %p158 = pneg %p48
      %p159 = pneg %p45
      %p160 = scmp.lt.s32.totalorder %s17, 3
      %s161 = scalar_select %p160, %s17, 3
      %s162 = smul.addr %s161, 4
      %s163 = smul.addr %s162, 4
      %s164 = scalar_lea.vmem %s1, %s163
      %p165 = pneg %p74
      %p166 = pneg %p71
      %p167 = pneg %p102
      %p168 = pneg %p99
      %s169 = smul.u32 128, %s18
      %p170 = scmp.lt.s32.totalorder %s17, 3
      %s171 = scalar_select %p170, %s17, 3
      %p172 = scmp.lt.s32.totalorder %s169, 255
      %s173 = scalar_select %p172, %s169, 255
      %s174 = smul.addr %s171, 256
      %s175 = sadd.s32 %s173, %s174
      %s176 = smul.addr %s175, 4
      %s177 = scalar_lea.vmem %s2, %s176
      %s178 = smul.u32 128, %s18
      %p179 = scmp.lt.s32.totalorder %s17, 3
      %s180 = scalar_select %p179, %s17, 3
      %p181 = scmp.lt.s32.totalorder %s178, 255
      %s182 = scalar_select %p181, %s178, 255
      %s183 = smul.addr %s180, 256
      %s184 = sadd.s32 %s182, %s183
      %s185 = smul.addr %s184, 4
      %s186 = scalar_lea.vmem %s0, %s185
      %s187 = smul.u32 128, %s18
      %p188 = scmp.lt.s32.totalorder %s17, 3
      %s189 = scalar_select %p188, %s17, 3
      %s190 = smul.addr %s189, 4
      %s191 = smul.addr %s190, 4
      %s192 = scalar_lea.vmem %s1, %s191
      %s193 = smul.u32 128, %s18
      %p194 = scmp.lt.s32.totalorder %s17, 3
      %s195 = scalar_select %p194, %s17, 3
      %p196 = scmp.lt.s32.totalorder %s193, 255
      %s197 = scalar_select %p196, %s193, 255
      %s198 = smul.addr %s195, 256
      %s199 = sadd.s32 %s197, %s198
      %s200 = smul.addr %s199, 4
      %s201 = scalar_lea.vmem %s2, %s200
      %s202 = smul.u32 128, %s18
      %v204 = vld [vmem:[%s186] sm:$0xf]
      %v205 = vld [vmem:[%s186 + $0x4] sm:$0xf]
      %v206 = vld [vmem:[%s186 + $0x8] sm:$0xf]
      %v207 = vld [vmem:[%s186 + $0xc] sm:$0xf]
      %v208 = vld [vmem:[%s186 + $0x10] sm:$0xf]
      %v209 = vld [vmem:[%s186 + $0x14] sm:$0xf]
      %v210 = vld [vmem:[%s186 + $0x18] sm:$0xf]
      %v211 = vld [vmem:[%s186 + $0x1c] sm:$0xf]
      %v212 = vld [vmem:[%s186 + $0x20] sm:$0xf]
      %v213 = vld [vmem:[%s186 + $0x24] sm:$0xf]
      %v214 = vld [vmem:[%s186 + $0x28] sm:$0xf]
      %v215 = vld [vmem:[%s186 + $0x2c] sm:$0xf]
      %v216 = vld [vmem:[%s186 + $0x30] sm:$0xf]
      %v217 = vld [vmem:[%s186 + $0x34] sm:$0xf]
      %v218 = vld [vmem:[%s186 + $0x38] sm:$0xf]
      %v219 = vld [vmem:[%s186 + $0x3c] sm:$0xf]
      %v220 = vld [vmem:[%s186 + $0x40] sm:$0xf]
      %v221 = vld [vmem:[%s186 + $0x44] sm:$0xf]
      %v222 = vld [vmem:[%s186 + $0x48] sm:$0xf]
      %v223 = vld [vmem:[%s186 + $0x4c] sm:$0xf]
      %v224 = vld [vmem:[%s186 + $0x50] sm:$0xf]
      %v225 = vld [vmem:[%s186 + $0x54] sm:$0xf]
      %v226 = vld [vmem:[%s186 + $0x58] sm:$0xf]
      %v227 = vld [vmem:[%s186 + $0x5c] sm:$0xf]
      %v228 = vld [vmem:[%s186 + $0x60] sm:$0xf]
      %v229 = vld [vmem:[%s186 + $0x64] sm:$0xf]
      %v230 = vld [vmem:[%s186 + $0x68] sm:$0xf]
      %v231 = vld [vmem:[%s186 + $0x6c] sm:$0xf]
      %v232 = vld [vmem:[%s186 + $0x70] sm:$0xf]
      %v233 = vld [vmem:[%s186 + $0x74] sm:$0xf]
      %v234 = vld [vmem:[%s186 + $0x78] sm:$0xf]
      %v235 = vld [vmem:[%s186 + $0x7c] sm:$0xf]
      %v236 = vld [vmem:[%s186 + $0x80] sm:$0xf]
      %v237 = vld [vmem:[%s186 + $0x84] sm:$0xf]
      %v238 = vld [vmem:[%s186 + $0x88] sm:$0xf]
      %v239 = vld [vmem:[%s186 + $0x8c] sm:$0xf]
      %v240 = vld [vmem:[%s186 + $0x90] sm:$0xf]
      %v241 = vld [vmem:[%s186 + $0x94] sm:$0xf]
      %v242 = vld [vmem:[%s186 + $0x98] sm:$0xf]
      %v243 = vld [vmem:[%s186 + $0x9c] sm:$0xf]
      %v244 = vld [vmem:[%s186 + $0xa0] sm:$0xf]
      %v245 = vld [vmem:[%s186 + $0xa4] sm:$0xf]
      %v246 = vld [vmem:[%s186 + $0xa8] sm:$0xf]
      %v247 = vld [vmem:[%s186 + $0xac] sm:$0xf]
      %v248 = vld [vmem:[%s186 + $0xb0] sm:$0xf]
      %v249 = vld [vmem:[%s186 + $0xb4] sm:$0xf]
      %v250 = vld [vmem:[%s186 + $0xb8] sm:$0xf]
      %v251 = vld [vmem:[%s186 + $0xbc] sm:$0xf]
      %v252 = vld [vmem:[%s186 + $0xc0] sm:$0xf]
      %v253 = vld [vmem:[%s186 + $0xc4] sm:$0xf]
      %v254 = vld [vmem:[%s186 + $0xc8] sm:$0xf]
      %v255 = vld [vmem:[%s186 + $0xcc] sm:$0xf]
      %v256 = vld [vmem:[%s186 + $0xd0] sm:$0xf]
      %v257 = vld [vmem:[%s186 + $0xd4] sm:$0xf]
      %v258 = vld [vmem:[%s186 + $0xd8] sm:$0xf]
      %v259 = vld [vmem:[%s186 + $0xdc] sm:$0xf]
      %v260 = vld [vmem:[%s186 + $0xe0] sm:$0xf]
      %v261 = vld [vmem:[%s186 + $0xe4] sm:$0xf]
      %v262 = vld [vmem:[%s186 + $0xe8] sm:$0xf]
      %v263 = vld [vmem:[%s186 + $0xec] sm:$0xf]
      %v264 = vld [vmem:[%s186 + $0xf0] sm:$0xf]
      %v265 = vld [vmem:[%s186 + $0xf4] sm:$0xf]
      %v266 = vld [vmem:[%s186 + $0xf8] sm:$0xf]
      %v267 = vld [vmem:[%s186 + $0xfc] sm:$0xf]
      %v268 = vld [vmem:[%s186 + $0x100] sm:$0xf]
      %v269 = vld [vmem:[%s186 + $0x104] sm:$0xf]
      %v270 = vld [vmem:[%s186 + $0x108] sm:$0xf]
      %v271 = vld [vmem:[%s186 + $0x10c] sm:$0xf]
      %v272 = vld [vmem:[%s186 + $0x110] sm:$0xf]
      %v273 = vld [vmem:[%s186 + $0x114] sm:$0xf]
      %v274 = vld [vmem:[%s186 + $0x118] sm:$0xf]
      %v275 = vld [vmem:[%s186 + $0x11c] sm:$0xf]
      %v276 = vld [vmem:[%s186 + $0x120] sm:$0xf]
      %v277 = vld [vmem:[%s186 + $0x124] sm:$0xf]
      %v278 = vld [vmem:[%s186 + $0x128] sm:$0xf]
      %v279 = vld [vmem:[%s186 + $0x12c] sm:$0xf]
      %v280 = vld [vmem:[%s186 + $0x130] sm:$0xf]
      %v281 = vld [vmem:[%s186 + $0x134] sm:$0xf]
      %v282 = vld [vmem:[%s186 + $0x138] sm:$0xf]
      %v283 = vld [vmem:[%s186 + $0x13c] sm:$0xf]
      %v284 = vld [vmem:[%s186 + $0x140] sm:$0xf]
      %v285 = vld [vmem:[%s186 + $0x144] sm:$0xf]
      %v286 = vld [vmem:[%s186 + $0x148] sm:$0xf]
      %v287 = vld [vmem:[%s186 + $0x14c] sm:$0xf]
      %v288 = vld [vmem:[%s186 + $0x150] sm:$0xf]
      %v289 = vld [vmem:[%s186 + $0x154] sm:$0xf]
      %v290 = vld [vmem:[%s186 + $0x158] sm:$0xf]
      %v291 = vld [vmem:[%s186 + $0x15c] sm:$0xf]
      %v292 = vld [vmem:[%s186 + $0x160] sm:$0xf]
      %v293 = vld [vmem:[%s186 + $0x164] sm:$0xf]
      %v294 = vld [vmem:[%s186 + $0x168] sm:$0xf]
      %v295 = vld [vmem:[%s186 + $0x16c] sm:$0xf]
      %v296 = vld [vmem:[%s186 + $0x170] sm:$0xf]
      %v297 = vld [vmem:[%s186 + $0x174] sm:$0xf]
      %v298 = vld [vmem:[%s186 + $0x178] sm:$0xf]
      %v299 = vld [vmem:[%s186 + $0x17c] sm:$0xf]
      %v300 = vld [vmem:[%s186 + $0x180] sm:$0xf]
      %v301 = vld [vmem:[%s186 + $0x184] sm:$0xf]
      %v302 = vld [vmem:[%s186 + $0x188] sm:$0xf]
      %v303 = vld [vmem:[%s186 + $0x18c] sm:$0xf]
      %v304 = vld [vmem:[%s186 + $0x190] sm:$0xf]
      %v305 = vld [vmem:[%s186 + $0x194] sm:$0xf]
      %v306 = vld [vmem:[%s186 + $0x198] sm:$0xf]
      %v307 = vld [vmem:[%s186 + $0x19c] sm:$0xf]
      %v308 = vld [vmem:[%s186 + $0x1a0] sm:$0xf]
      %v309 = vld [vmem:[%s186 + $0x1a4] sm:$0xf]
      %v310 = vld [vmem:[%s186 + $0x1a8] sm:$0xf]
      %v311 = vld [vmem:[%s186 + $0x1ac] sm:$0xf]
      %v312 = vld [vmem:[%s186 + $0x1b0] sm:$0xf]
      %v313 = vld [vmem:[%s186 + $0x1b4] sm:$0xf]
      %v314 = vld [vmem:[%s186 + $0x1b8] sm:$0xf]
      %v315 = vld [vmem:[%s186 + $0x1bc] sm:$0xf]
      %v316 = vld [vmem:[%s186 + $0x1c0] sm:$0xf]
      %v317 = vld [vmem:[%s186 + $0x1c4] sm:$0xf]
      %v318 = vld [vmem:[%s186 + $0x1c8] sm:$0xf]
      %v319 = vld [vmem:[%s186 + $0x1cc] sm:$0xf]
      %v320 = vld [vmem:[%s186 + $0x1d0] sm:$0xf]
      %v321 = vld [vmem:[%s186 + $0x1d4] sm:$0xf]
      %v322 = vld [vmem:[%s186 + $0x1d8] sm:$0xf]
      %v323 = vld [vmem:[%s186 + $0x1dc] sm:$0xf]
      %v324 = vld [vmem:[%s186 + $0x1e0] sm:$0xf]
      %v325 = vld [vmem:[%s186 + $0x1e4] sm:$0xf]
      %v326 = vld [vmem:[%s186 + $0x1e8] sm:$0xf]
      %v327 = vld [vmem:[%s186 + $0x1ec] sm:$0xf]
      %v328 = vld [vmem:[%s186 + $0x1f0] sm:$0xf]
      %v329 = vld [vmem:[%s186 + $0x1f4] sm:$0xf]
      %v330 = vld [vmem:[%s186 + $0x1f8] sm:$0xf]
      %v331 = vld [vmem:[%s186 + $0x1fc] sm:$0xf]
      %v332 = vld [vmem:[%s192] sm:$0xf]
      %v333 = vld [vmem:[%s192 + $0x4] sm:$0xf]
      %v334 = vld [vmem:[%s192 + $0x8] sm:$0xf]
      %v335 = vld [vmem:[%s192 + $0xc] sm:$0xf]
      %v464 = vunpack.c.l.b16 %v204
      %v465 = vunpack.c.l.b16 %v205
      %v466 = vunpack.c.l.b16 %v206
      %v467 = vunpack.c.l.b16 %v207
      %v468 = vunpack.c.l.b16 %v208
      %v469 = vunpack.c.l.b16 %v209
      %v470 = vunpack.c.l.b16 %v210
      %v471 = vunpack.c.l.b16 %v211
      %v472 = vunpack.c.l.b16 %v212
      %v473 = vunpack.c.l.b16 %v213
      %v474 = vunpack.c.l.b16 %v214
      %v475 = vunpack.c.l.b16 %v215
      %v476 = vunpack.c.l.b16 %v216
      %v477 = vunpack.c.l.b16 %v217
      %v478 = vunpack.c.l.b16 %v218
      %v479 = vunpack.c.l.b16 %v219
      %v480 = vunpack.c.l.b16 %v220
      %v481 = vunpack.c.l.b16 %v221
      %v482 = vunpack.c.l.b16 %v222
      %v483 = vunpack.c.l.b16 %v223
      %v484 = vunpack.c.l.b16 %v224
      %v485 = vunpack.c.l.b16 %v225
      %v486 = vunpack.c.l.b16 %v226
      %v487 = vunpack.c.l.b16 %v227
      %v488 = vunpack.c.l.b16 %v228
      %v489 = vunpack.c.l.b16 %v229
      %v490 = vunpack.c.l.b16 %v230
      %v491 = vunpack.c.l.b16 %v231
      %v492 = vunpack.c.l.b16 %v232
      %v493 = vunpack.c.l.b16 %v233
      %v494 = vunpack.c.l.b16 %v234
      %v495 = vunpack.c.l.b16 %v235
      %v496 = vunpack.c.l.b16 %v236
      %v497 = vunpack.c.l.b16 %v237
      %v498 = vunpack.c.l.b16 %v238
      %v499 = vunpack.c.l.b16 %v239
      %v500 = vunpack.c.l.b16 %v240
      %v501 = vunpack.c.l.b16 %v241
      %v502 = vunpack.c.l.b16 %v242
      %v503 = vunpack.c.l.b16 %v243
      %v504 = vunpack.c.l.b16 %v244
      %v505 = vunpack.c.l.b16 %v245
      %v506 = vunpack.c.l.b16 %v246
      %v507 = vunpack.c.l.b16 %v247
      %v508 = vunpack.c.l.b16 %v248
      %v509 = vunpack.c.l.b16 %v249
      %v510 = vunpack.c.l.b16 %v250
      %v511 = vunpack.c.l.b16 %v251
      %v512 = vunpack.c.l.b16 %v252
      %v513 = vunpack.c.l.b16 %v253
      %v514 = vunpack.c.l.b16 %v254
      %v515 = vunpack.c.l.b16 %v255
      %v516 = vunpack.c.l.b16 %v256
      %v517 = vunpack.c.l.b16 %v257
      %v518 = vunpack.c.l.b16 %v258
      %v519 = vunpack.c.l.b16 %v259
      %v520 = vunpack.c.l.b16 %v260
      %v521 = vunpack.c.l.b16 %v261
      %v522 = vunpack.c.l.b16 %v262
      %v523 = vunpack.c.l.b16 %v263
      %v524 = vunpack.c.l.b16 %v264
      %v525 = vunpack.c.l.b16 %v265
      %v526 = vunpack.c.l.b16 %v266
      %v527 = vunpack.c.l.b16 %v267
      %v528 = vunpack.c.l.b16 %v268
      %v529 = vunpack.c.l.b16 %v269
      %v530 = vunpack.c.l.b16 %v270
      %v531 = vunpack.c.l.b16 %v271
      %v532 = vunpack.c.l.b16 %v272
      %v533 = vunpack.c.l.b16 %v273
      %v534 = vunpack.c.l.b16 %v274
      %v535 = vunpack.c.l.b16 %v275
      %v536 = vunpack.c.l.b16 %v276
      %v537 = vunpack.c.l.b16 %v277
      %v538 = vunpack.c.l.b16 %v278
      %v539 = vunpack.c.l.b16 %v279
      %v540 = vunpack.c.l.b16 %v280
      %v541 = vunpack.c.l.b16 %v281
      %v542 = vunpack.c.l.b16 %v282
      %v543 = vunpack.c.l.b16 %v283
      %v544 = vunpack.c.l.b16 %v284
      %v545 = vunpack.c.l.b16 %v285
      %v546 = vunpack.c.l.b16 %v286
      %v547 = vunpack.c.l.b16 %v287
      %v548 = vunpack.c.l.b16 %v288
      %v549 = vunpack.c.l.b16 %v289
      %v550 = vunpack.c.l.b16 %v290
      %v551 = vunpack.c.l.b16 %v291
      %v552 = vunpack.c.l.b16 %v292
      %v553 = vunpack.c.l.b16 %v293
      %v554 = vunpack.c.l.b16 %v294
      %v555 = vunpack.c.l.b16 %v295
      %v556 = vunpack.c.l.b16 %v296
      %v557 = vunpack.c.l.b16 %v297
      %v558 = vunpack.c.l.b16 %v298
      %v559 = vunpack.c.l.b16 %v299
      %v560 = vunpack.c.l.b16 %v300
      %v561 = vunpack.c.l.b16 %v301
      %v562 = vunpack.c.l.b16 %v302
      %v563 = vunpack.c.l.b16 %v303
      %v564 = vunpack.c.l.b16 %v304
      %v565 = vunpack.c.l.b16 %v305
      %v566 = vunpack.c.l.b16 %v306
      %v567 = vunpack.c.l.b16 %v307
      %v568 = vunpack.c.l.b16 %v308
      %v569 = vunpack.c.l.b16 %v309
      %v570 = vunpack.c.l.b16 %v310
      %v571 = vunpack.c.l.b16 %v311
      %v572 = vunpack.c.l.b16 %v312
      %v573 = vunpack.c.l.b16 %v313
      %v574 = vunpack.c.l.b16 %v314
      %v575 = vunpack.c.l.b16 %v315
      %v576 = vunpack.c.l.b16 %v316
      %v577 = vunpack.c.l.b16 %v317
      %v578 = vunpack.c.l.b16 %v318
      %v579 = vunpack.c.l.b16 %v319
      %v580 = vunpack.c.l.b16 %v320
      %v581 = vunpack.c.l.b16 %v321
      %v582 = vunpack.c.l.b16 %v322
      %v583 = vunpack.c.l.b16 %v323
      %v584 = vunpack.c.l.b16 %v324
      %v585 = vunpack.c.l.b16 %v325
      %v586 = vunpack.c.l.b16 %v326
      %v587 = vunpack.c.l.b16 %v327
      %v588 = vunpack.c.l.b16 %v328
      %v589 = vunpack.c.l.b16 %v329
      %v590 = vunpack.c.l.b16 %v330
      %v591 = vunpack.c.l.b16 %v331
      %v592 = vpack.c.b16 %v465, %v464
      %v593 = vpack.c.b16 %v467, %v466
      %v594 = vpack.c.b16 %v469, %v468
      %v595 = vpack.c.b16 %v471, %v470
      %v596 = vpack.c.b16 %v473, %v472
      %v597 = vpack.c.b16 %v475, %v474
      %v598 = vpack.c.b16 %v477, %v476
      %v599 = vpack.c.b16 %v479, %v478
      %v600 = vpack.c.b16 %v481, %v480
      %v601 = vpack.c.b16 %v483, %v482
      %v602 = vpack.c.b16 %v485, %v484
      %v603 = vpack.c.b16 %v487, %v486
      %v604 = vpack.c.b16 %v489, %v488
      %v605 = vpack.c.b16 %v491, %v490
      %v606 = vpack.c.b16 %v493, %v492
      %v607 = vpack.c.b16 %v495, %v494
      %v608 = vpack.c.b16 %v497, %v496
      %v609 = vpack.c.b16 %v499, %v498
      %v610 = vpack.c.b16 %v501, %v500
      %v611 = vpack.c.b16 %v503, %v502
      %v612 = vpack.c.b16 %v505, %v504
      %v613 = vpack.c.b16 %v507, %v506
      %v614 = vpack.c.b16 %v509, %v508
      %v615 = vpack.c.b16 %v511, %v510
      %v616 = vpack.c.b16 %v513, %v512
      %v617 = vpack.c.b16 %v515, %v514
      %v618 = vpack.c.b16 %v517, %v516
      %v619 = vpack.c.b16 %v519, %v518
      %v620 = vpack.c.b16 %v521, %v520
      %v621 = vpack.c.b16 %v523, %v522
      %v622 = vpack.c.b16 %v525, %v524
      %v623 = vpack.c.b16 %v527, %v526
      %v624 = vpack.c.b16 %v529, %v528
      %v625 = vpack.c.b16 %v531, %v530
      %v626 = vpack.c.b16 %v533, %v532
      %v627 = vpack.c.b16 %v535, %v534
      %v628 = vpack.c.b16 %v537, %v536
      %v629 = vpack.c.b16 %v539, %v538
      %v630 = vpack.c.b16 %v541, %v540
      %v631 = vpack.c.b16 %v543, %v542
      %v632 = vpack.c.b16 %v545, %v544
      %v633 = vpack.c.b16 %v547, %v546
      %v634 = vpack.c.b16 %v549, %v548
      %v635 = vpack.c.b16 %v551, %v550
      %v636 = vpack.c.b16 %v553, %v552
      %v637 = vpack.c.b16 %v555, %v554
      %v638 = vpack.c.b16 %v557, %v556
      %v639 = vpack.c.b16 %v559, %v558
      %v640 = vpack.c.b16 %v561, %v560
      %v641 = vpack.c.b16 %v563, %v562
      %v642 = vpack.c.b16 %v565, %v564
      %v643 = vpack.c.b16 %v567, %v566
      %v644 = vpack.c.b16 %v569, %v568
      %v645 = vpack.c.b16 %v571, %v570
      %v646 = vpack.c.b16 %v573, %v572
      %v647 = vpack.c.b16 %v575, %v574
      %v648 = vpack.c.b16 %v577, %v576
      %v649 = vpack.c.b16 %v579, %v578
      %v650 = vpack.c.b16 %v581, %v580
      %v651 = vpack.c.b16 %v583, %v582
      %v652 = vpack.c.b16 %v585, %v584
      %v653 = vpack.c.b16 %v587, %v586
      %v654 = vpack.c.b16 %v589, %v588
      %v655 = vpack.c.b16 %v591, %v590
      %v660 = vunpack.c.l.b16 %v332
      %v661 = vunpack.c.l.b16 %v333
      %v662 = vunpack.c.l.b16 %v334
      %v663 = vunpack.c.l.b16 %v335
      %v664 = vpack.c.b16 %v661, %v660
      %v665 = vpack.c.b16 %v663, %v662
      %vm668 = vcmask 261120
      %v670 = vsel %vm668, %v592, 0
      %v673 = vsel %vm668, %v593, 0
      %v676 = vsel %vm668, %v594, 0
      %v679 = vsel %vm668, %v595, 0
      %v682 = vsel %vm668, %v596, 0
      %v685 = vsel %vm668, %v597, 0
      %v688 = vsel %vm668, %v598, 0
      %v691 = vsel %vm668, %v599, 0
      %v694 = vsel %vm668, %v600, 0
      %v697 = vsel %vm668, %v601, 0
      %v700 = vsel %vm668, %v602, 0
      %v703 = vsel %vm668, %v603, 0
      %v706 = vsel %vm668, %v604, 0
      %v709 = vsel %vm668, %v605, 0
      %v712 = vsel %vm668, %v606, 0
      %v715 = vsel %vm668, %v607, 0
      %v718 = vsel %vm668, %v608, 0
      %v721 = vsel %vm668, %v609, 0
      %v724 = vsel %vm668, %v610, 0
      %v727 = vsel %vm668, %v611, 0
      %v730 = vsel %vm668, %v612, 0
      %v733 = vsel %vm668, %v613, 0
      %v736 = vsel %vm668, %v614, 0
      %v739 = vsel %vm668, %v615, 0
      %v742 = vsel %vm668, %v616, 0
      %v745 = vsel %vm668, %v617, 0
      %v748 = vsel %vm668, %v618, 0
      %v751 = vsel %vm668, %v619, 0
      %v754 = vsel %vm668, %v620, 0
      %v757 = vsel %vm668, %v621, 0
      %v760 = vsel %vm668, %v622, 0
      %v763 = vsel %vm668, %v623, 0
      %v766 = vsel %vm668, %v624, 0
      %v769 = vsel %vm668, %v625, 0
      %v772 = vsel %vm668, %v626, 0
      %v775 = vsel %vm668, %v627, 0
      %v778 = vsel %vm668, %v628, 0
      %v781 = vsel %vm668, %v629, 0
      %v784 = vsel %vm668, %v630, 0
      %v787 = vsel %vm668, %v631, 0
      %v790 = vsel %vm668, %v632, 0
      %v793 = vsel %vm668, %v633, 0
      %v796 = vsel %vm668, %v634, 0
      %v799 = vsel %vm668, %v635, 0
      %v802 = vsel %vm668, %v636, 0
      %v805 = vsel %vm668, %v637, 0
      %v808 = vsel %vm668, %v638, 0
      %v811 = vsel %vm668, %v639, 0
      %v814 = vsel %vm668, %v640, 0
      %v817 = vsel %vm668, %v641, 0
      %v820 = vsel %vm668, %v642, 0
      %v823 = vsel %vm668, %v643, 0
      %v826 = vsel %vm668, %v644, 0
      %v829 = vsel %vm668, %v645, 0
      %v832 = vsel %vm668, %v646, 0
      %v835 = vsel %vm668, %v647, 0
      %v838 = vsel %vm668, %v648, 0
      %v841 = vsel %vm668, %v649, 0
      %v844 = vsel %vm668, %v650, 0
      %v847 = vsel %vm668, %v651, 0
      %v850 = vsel %vm668, %v652, 0
      %v853 = vsel %vm668, %v653, 0
      %v856 = vsel %vm668, %v654, 0
      %v859 = vsel %vm668, %v655, 0
      %861 = vmatprep.subr.bf16.mxu0 0
      %862 = vmatpush1.bf16.msra.mxu0 0
      %863 = vmatprep.subr.bf16.mxu0 0
      %864 = vmatpush1.bf16.msra.mxu0 0
      %865 = vmatprep.subr.bf16.mxu0 0
      %866 = vmatpush1.bf16.msra.mxu0 0
      %867 = vmatprep.subr.bf16.mxu0 0
      %868 = vmatpush1.bf16.msra.mxu0 0
      %869 = vmatprep.subr.bf16.mxu0 0
      %870 = vmatpush1.bf16.msra.mxu0 0
      %871 = vmatprep.subr.bf16.mxu0 0
      %872 = vmatpush1.bf16.msra.mxu0 0
      %873 = vmatprep.subr.bf16.mxu0 0
      %874 = vmatpush1.bf16.msra.mxu0 %v665
      %875 = vmatprep.subr.bf16.mxu0 0
      %876 = vmatpush1.bf16.msra.mxu0 %v664
      %877 = vmatprep.subr.bf16.mxu0 0
      %878 = vmatpush2.bf16.msra.mxu0 0
      %879 = vmatprep.subr.bf16.mxu0 0
      %880 = vmatpush2.bf16.msra.mxu0 0
      %881 = vmatprep.subr.bf16.mxu0 0
      %882 = vmatpush2.bf16.msra.mxu0 0
      %883 = vmatprep.subr.bf16.mxu0 0
      %884 = vmatpush2.bf16.msra.mxu0 0
      %885 = vmatprep.subr.bf16.mxu0 0
      %886 = vmatpush2.bf16.msra.mxu0 0
      %887 = vmatprep.subr.bf16.mxu0 0
      %888 = vmatpush2.bf16.msra.mxu0 0
      %889 = vmatprep.subr.bf16.mxu0 0
      %890 = vmatpush2.bf16.msra.mxu0 0
      %891 = vmatprep.subr.bf16.mxu0 0
      %892 = vmatpush2.bf16.msra.mxu0 0
      %893 = vmatprep.mubr.bf16.mxu0 0
      %894 = vmatmul.mubr.bf16.gmra.mxu0 %v670
      %v895 = vpop.f32.mrf.mxu0
      %v896 = vadd.f32 0.0, %v895
      %v897 = vpop.f32.mrf.mxu0
      %v898 = vpop.f32.mrf.mxu0
      %v899 = vadd.f32 0.0, %v898
      %v900 = vpop.f32.mrf.mxu0
      %901 = vmatprep.mubr.bf16.mxu0 0
      %902 = vmatmul.mubr.bf16.gmra.mxu0 %v673
      %v903 = vpop.f32.mrf.mxu0
      %v904 = vadd.f32 0.0, %v903
      %v905 = vpop.f32.mrf.mxu0
      %v906 = vpop.f32.mrf.mxu0
      %v907 = vadd.f32 0.0, %v906
      %v908 = vpop.f32.mrf.mxu0
      %909 = vmatprep.mubr.bf16.mxu0 0
      %910 = vmatmul.mubr.bf16.gmra.mxu0 %v676
      %v911 = vpop.f32.mrf.mxu0
      %v912 = vadd.f32 0.0, %v911
      %v913 = vpop.f32.mrf.mxu0
      %v914 = vpop.f32.mrf.mxu0
      %v915 = vadd.f32 0.0, %v914
      %v916 = vpop.f32.mrf.mxu0
      %917 = vmatprep.mubr.bf16.mxu0 0
      %918 = vmatmul.mubr.bf16.gmra.mxu0 %v679
      %v919 = vpop.f32.mrf.mxu0
      %v920 = vadd.f32 0.0, %v919
      %v921 = vpop.f32.mrf.mxu0
      %v922 = vpop.f32.mrf.mxu0
      %v923 = vadd.f32 0.0, %v922
      %v924 = vpop.f32.mrf.mxu0
      %925 = vmatprep.mubr.bf16.mxu0 0
      %926 = vmatmul.mubr.bf16.gmra.mxu0 %v682
      %v927 = vpop.f32.mrf.mxu0
      %v928 = vadd.f32 0.0, %v927
      %v929 = vpop.f32.mrf.mxu0
      %v930 = vpop.f32.mrf.mxu0
      %v931 = vadd.f32 0.0, %v930
      %v932 = vpop.f32.mrf.mxu0
      %933 = vmatprep.mubr.bf16.mxu0 0
      %934 = vmatmul.mubr.bf16.gmra.mxu0 %v685
      %v935 = vpop.f32.mrf.mxu0
      %v936 = vadd.f32 0.0, %v935
      %v937 = vpop.f32.mrf.mxu0
      %v938 = vpop.f32.mrf.mxu0
      %v939 = vadd.f32 0.0, %v938
      %v940 = vpop.f32.mrf.mxu0
      %941 = vmatprep.mubr.bf16.mxu0 0
      %942 = vmatmul.mubr.bf16.gmra.mxu0 %v688
      %v943 = vpop.f32.mrf.mxu0
      %v944 = vadd.f32 0.0, %v943
      %v945 = vpop.f32.mrf.mxu0
      %v946 = vpop.f32.mrf.mxu0
      %v947 = vadd.f32 0.0, %v946
      %v948 = vpop.f32.mrf.mxu0
      %949 = vmatprep.mubr.bf16.mxu0 0
      %950 = vmatmul.mubr.bf16.gmra.mxu0 %v691
      %v951 = vpop.f32.mrf.mxu0
      %v952 = vadd.f32 0.0, %v951
      %v953 = vpop.f32.mrf.mxu0
      %v954 = vpop.f32.mrf.mxu0
      %v955 = vadd.f32 0.0, %v954
      %v956 = vpop.f32.mrf.mxu0
      %957 = vmatprep.mubr.bf16.mxu0 0
      %958 = vmatmul.mubr.bf16.gmra.mxu0 %v694
      %v959 = vpop.f32.mrf.mxu0
      %v960 = vadd.f32 0.0, %v959
      %v961 = vpop.f32.mrf.mxu0
      %v962 = vpop.f32.mrf.mxu0
      %v963 = vadd.f32 0.0, %v962
      %v964 = vpop.f32.mrf.mxu0
      %965 = vmatprep.mubr.bf16.mxu0 0
      %966 = vmatmul.mubr.bf16.gmra.mxu0 %v697
      %v967 = vpop.f32.mrf.mxu0
      %v968 = vadd.f32 0.0, %v967
      %v969 = vpop.f32.mrf.mxu0
      %v970 = vpop.f32.mrf.mxu0
      %v971 = vadd.f32 0.0, %v970
      %v972 = vpop.f32.mrf.mxu0
      %973 = vmatprep.mubr.bf16.mxu0 0
      %974 = vmatmul.mubr.bf16.gmra.mxu0 %v700
      %v975 = vpop.f32.mrf.mxu0
      %v976 = vadd.f32 0.0, %v975
      %v977 = vpop.f32.mrf.mxu0
      %v978 = vpop.f32.mrf.mxu0
      %v979 = vadd.f32 0.0, %v978
      %v980 = vpop.f32.mrf.mxu0
      %981 = vmatprep.mubr.bf16.mxu0 0
      %982 = vmatmul.mubr.bf16.gmra.mxu0 %v703
      %v983 = vpop.f32.mrf.mxu0
      %v984 = vadd.f32 0.0, %v983
      %v985 = vpop.f32.mrf.mxu0
      %v986 = vpop.f32.mrf.mxu0
      %v987 = vadd.f32 0.0, %v986
      %v988 = vpop.f32.mrf.mxu0
      %989 = vmatprep.mubr.bf16.mxu0 0
      %990 = vmatmul.mubr.bf16.gmra.mxu0 %v706
      %v991 = vpop.f32.mrf.mxu0
      %v992 = vadd.f32 0.0, %v991
      %v993 = vpop.f32.mrf.mxu0
      %v994 = vpop.f32.mrf.mxu0
      %v995 = vadd.f32 0.0, %v994
      %v996 = vpop.f32.mrf.mxu0
      %997 = vmatprep.mubr.bf16.mxu0 0
      %998 = vmatmul.mubr.bf16.gmra.mxu0 %v709
      %v999 = vpop.f32.mrf.mxu0
      %v1000 = vadd.f32 0.0, %v999
      %v1001 = vpop.f32.mrf.mxu0
      %v1002 = vpop.f32.mrf.mxu0
      %v1003 = vadd.f32 0.0, %v1002
      %v1004 = vpop.f32.mrf.mxu0
      %1005 = vmatprep.mubr.bf16.mxu0 0
      %1006 = vmatmul.mubr.bf16.gmra.mxu0 %v712
      %v1007 = vpop.f32.mrf.mxu0
      %v1008 = vadd.f32 0.0, %v1007
      %v1009 = vpop.f32.mrf.mxu0
      %v1010 = vpop.f32.mrf.mxu0
      %v1011 = vadd.f32 0.0, %v1010
      %v1012 = vpop.f32.mrf.mxu0
      %1013 = vmatprep.mubr.bf16.mxu0 0
      %1014 = vmatmul.mubr.bf16.gmra.mxu0 %v715
      %v1015 = vpop.f32.mrf.mxu0
      %v1016 = vadd.f32 0.0, %v1015
      %v1017 = vpop.f32.mrf.mxu0
      %v1018 = vpop.f32.mrf.mxu0
      %v1019 = vadd.f32 0.0, %v1018
      %v1020 = vpop.f32.mrf.mxu0
      %1021 = vmatprep.mubr.bf16.mxu0 0
      %1022 = vmatmul.mubr.bf16.gmra.mxu0 %v718
      %v1023 = vpop.f32.mrf.mxu0
      %v1024 = vadd.f32 0.0, %v1023
      %v1025 = vpop.f32.mrf.mxu0
      %v1026 = vpop.f32.mrf.mxu0
      %v1027 = vadd.f32 0.0, %v1026
      %v1028 = vpop.f32.mrf.mxu0
      %1029 = vmatprep.mubr.bf16.mxu0 0
      %1030 = vmatmul.mubr.bf16.gmra.mxu0 %v721
      %v1031 = vpop.f32.mrf.mxu0
      %v1032 = vadd.f32 0.0, %v1031
      %v1033 = vpop.f32.mrf.mxu0
      %v1034 = vpop.f32.mrf.mxu0
      %v1035 = vadd.f32 0.0, %v1034
      %v1036 = vpop.f32.mrf.mxu0
      %1037 = vmatprep.mubr.bf16.mxu0 0
      %1038 = vmatmul.mubr.bf16.gmra.mxu0 %v724
      %v1039 = vpop.f32.mrf.mxu0
      %v1040 = vadd.f32 0.0, %v1039
      %v1041 = vpop.f32.mrf.mxu0
      %v1042 = vpop.f32.mrf.mxu0
      %v1043 = vadd.f32 0.0, %v1042
      %v1044 = vpop.f32.mrf.mxu0
      %1045 = vmatprep.mubr.bf16.mxu0 0
      %1046 = vmatmul.mubr.bf16.gmra.mxu0 %v727
      %v1047 = vpop.f32.mrf.mxu0
      %v1048 = vadd.f32 0.0, %v1047
      %v1049 = vpop.f32.mrf.mxu0
      %v1050 = vpop.f32.mrf.mxu0
      %v1051 = vadd.f32 0.0, %v1050
      %v1052 = vpop.f32.mrf.mxu0
      %1053 = vmatprep.mubr.bf16.mxu0 0
      %1054 = vmatmul.mubr.bf16.gmra.mxu0 %v730
      %v1055 = vpop.f32.mrf.mxu0
      %v1056 = vadd.f32 0.0, %v1055
      %v1057 = vpop.f32.mrf.mxu0
      %v1058 = vpop.f32.mrf.mxu0
      %v1059 = vadd.f32 0.0, %v1058
      %v1060 = vpop.f32.mrf.mxu0
      %1061 = vmatprep.mubr.bf16.mxu0 0
      %1062 = vmatmul.mubr.bf16.gmra.mxu0 %v733
      %v1063 = vpop.f32.mrf.mxu0
      %v1064 = vadd.f32 0.0, %v1063
      %v1065 = vpop.f32.mrf.mxu0
      %v1066 = vpop.f32.mrf.mxu0
      %v1067 = vadd.f32 0.0, %v1066
      %v1068 = vpop.f32.mrf.mxu0
      %1069 = vmatprep.mubr.bf16.mxu0 0
      %1070 = vmatmul.mubr.bf16.gmra.mxu0 %v736
      %v1071 = vpop.f32.mrf.mxu0
      %v1072 = vadd.f32 0.0, %v1071
      %v1073 = vpop.f32.mrf.mxu0
      %v1074 = vpop.f32.mrf.mxu0
      %v1075 = vadd.f32 0.0, %v1074
      %v1076 = vpop.f32.mrf.mxu0
      %1077 = vmatprep.mubr.bf16.mxu0 0
      %1078 = vmatmul.mubr.bf16.gmra.mxu0 %v739
      %v1079 = vpop.f32.mrf.mxu0
      %v1080 = vadd.f32 0.0, %v1079
      %v1081 = vpop.f32.mrf.mxu0
      %v1082 = vpop.f32.mrf.mxu0
      %v1083 = vadd.f32 0.0, %v1082
      %v1084 = vpop.f32.mrf.mxu0
      %1085 = vmatprep.mubr.bf16.mxu0 0
      %1086 = vmatmul.mubr.bf16.gmra.mxu0 %v742
      %v1087 = vpop.f32.mrf.mxu0
      %v1088 = vadd.f32 0.0, %v1087
      %v1089 = vpop.f32.mrf.mxu0
      %v1090 = vpop.f32.mrf.mxu0
      %v1091 = vadd.f32 0.0, %v1090
      %v1092 = vpop.f32.mrf.mxu0
      %1093 = vmatprep.mubr.bf16.mxu0 0
      %1094 = vmatmul.mubr.bf16.gmra.mxu0 %v745
      %v1095 = vpop.f32.mrf.mxu0
      %v1096 = vadd.f32 0.0, %v1095
      %v1097 = vpop.f32.mrf.mxu0
      %v1098 = vpop.f32.mrf.mxu0
      %v1099 = vadd.f32 0.0, %v1098
      %v1100 = vpop.f32.mrf.mxu0
      %1101 = vmatprep.mubr.bf16.mxu0 0
      %1102 = vmatmul.mubr.bf16.gmra.mxu0 %v748
      %v1103 = vpop.f32.mrf.mxu0
      %v1104 = vadd.f32 0.0, %v1103
      %v1105 = vpop.f32.mrf.mxu0
      %v1106 = vpop.f32.mrf.mxu0
      %v1107 = vadd.f32 0.0, %v1106
      %v1108 = vpop.f32.mrf.mxu0
      %1109 = vmatprep.mubr.bf16.mxu0 0
      %1110 = vmatmul.mubr.bf16.gmra.mxu0 %v751
      %v1111 = vpop.f32.mrf.mxu0
      %v1112 = vadd.f32 0.0, %v1111
      %v1113 = vpop.f32.mrf.mxu0
      %v1114 = vpop.f32.mrf.mxu0
      %v1115 = vadd.f32 0.0, %v1114
      %v1116 = vpop.f32.mrf.mxu0
      %1117 = vmatprep.mubr.bf16.mxu0 0
      %1118 = vmatmul.mubr.bf16.gmra.mxu0 %v754
      %v1119 = vpop.f32.mrf.mxu0
      %v1120 = vadd.f32 0.0, %v1119
      %v1121 = vpop.f32.mrf.mxu0
      %v1122 = vpop.f32.mrf.mxu0
      %v1123 = vadd.f32 0.0, %v1122
      %v1124 = vpop.f32.mrf.mxu0
      %1125 = vmatprep.mubr.bf16.mxu0 0
      %1126 = vmatmul.mubr.bf16.gmra.mxu0 %v757
      %v1127 = vpop.f32.mrf.mxu0
      %v1128 = vadd.f32 0.0, %v1127
      %v1129 = vpop.f32.mrf.mxu0
      %v1130 = vpop.f32.mrf.mxu0
      %v1131 = vadd.f32 0.0, %v1130
      %v1132 = vpop.f32.mrf.mxu0
      %1133 = vmatprep.mubr.bf16.mxu0 0
      %1134 = vmatmul.mubr.bf16.gmra.mxu0 %v760
      %v1135 = vpop.f32.mrf.mxu0
      %v1136 = vadd.f32 0.0, %v1135
      %v1137 = vpop.f32.mrf.mxu0
      %v1138 = vpop.f32.mrf.mxu0
      %v1139 = vadd.f32 0.0, %v1138
      %v1140 = vpop.f32.mrf.mxu0
      %1141 = vmatprep.mubr.bf16.mxu0 0
      %1142 = vmatmul.mubr.bf16.gmra.mxu0 %v763
      %v1143 = vpop.f32.mrf.mxu0
      %v1144 = vadd.f32 0.0, %v1143
      %v1145 = vpop.f32.mrf.mxu0
      %v1146 = vpop.f32.mrf.mxu0
      %v1147 = vadd.f32 0.0, %v1146
      %v1148 = vpop.f32.mrf.mxu0
      %1149 = vmatprep.mubr.bf16.mxu0 0
      %1150 = vmatmul.mubr.bf16.gmra.mxu0 %v766
      %v1151 = vpop.f32.mrf.mxu0
      %v1152 = vadd.f32 0.0, %v1151
      %v1153 = vpop.f32.mrf.mxu0
      %v1154 = vpop.f32.mrf.mxu0
      %v1155 = vadd.f32 0.0, %v1154
      %v1156 = vpop.f32.mrf.mxu0
      %1157 = vmatprep.mubr.bf16.mxu0 0
      %1158 = vmatmul.mubr.bf16.gmra.mxu0 %v769
      %v1159 = vpop.f32.mrf.mxu0
      %v1160 = vadd.f32 0.0, %v1159
      %v1161 = vpop.f32.mrf.mxu0
      %v1162 = vpop.f32.mrf.mxu0
      %v1163 = vadd.f32 0.0, %v1162
      %v1164 = vpop.f32.mrf.mxu0
      %1165 = vmatprep.mubr.bf16.mxu0 0
      %1166 = vmatmul.mubr.bf16.gmra.mxu0 %v772
      %v1167 = vpop.f32.mrf.mxu0
      %v1168 = vadd.f32 0.0, %v1167
      %v1169 = vpop.f32.mrf.mxu0
      %v1170 = vpop.f32.mrf.mxu0
      %v1171 = vadd.f32 0.0, %v1170
      %v1172 = vpop.f32.mrf.mxu0
      %1173 = vmatprep.mubr.bf16.mxu0 0
      %1174 = vmatmul.mubr.bf16.gmra.mxu0 %v775
      %v1175 = vpop.f32.mrf.mxu0
      %v1176 = vadd.f32 0.0, %v1175
      %v1177 = vpop.f32.mrf.mxu0
      %v1178 = vpop.f32.mrf.mxu0
      %v1179 = vadd.f32 0.0, %v1178
      %v1180 = vpop.f32.mrf.mxu0
      %1181 = vmatprep.mubr.bf16.mxu0 0
      %1182 = vmatmul.mubr.bf16.gmra.mxu0 %v778
      %v1183 = vpop.f32.mrf.mxu0
      %v1184 = vadd.f32 0.0, %v1183
      %v1185 = vpop.f32.mrf.mxu0
      %v1186 = vpop.f32.mrf.mxu0
      %v1187 = vadd.f32 0.0, %v1186
      %v1188 = vpop.f32.mrf.mxu0
      %1189 = vmatprep.mubr.bf16.mxu0 0
      %1190 = vmatmul.mubr.bf16.gmra.mxu0 %v781
      %v1191 = vpop.f32.mrf.mxu0
      %v1192 = vadd.f32 0.0, %v1191
      %v1193 = vpop.f32.mrf.mxu0
      %v1194 = vpop.f32.mrf.mxu0
      %v1195 = vadd.f32 0.0, %v1194
      %v1196 = vpop.f32.mrf.mxu0
      %1197 = vmatprep.mubr.bf16.mxu0 0
      %1198 = vmatmul.mubr.bf16.gmra.mxu0 %v784
      %v1199 = vpop.f32.mrf.mxu0
      %v1200 = vadd.f32 0.0, %v1199
      %v1201 = vpop.f32.mrf.mxu0
      %v1202 = vpop.f32.mrf.mxu0
      %v1203 = vadd.f32 0.0, %v1202
      %v1204 = vpop.f32.mrf.mxu0
      %1205 = vmatprep.mubr.bf16.mxu0 0
      %1206 = vmatmul.mubr.bf16.gmra.mxu0 %v787
      %v1207 = vpop.f32.mrf.mxu0
      %v1208 = vadd.f32 0.0, %v1207
      %v1209 = vpop.f32.mrf.mxu0
      %v1210 = vpop.f32.mrf.mxu0
      %v1211 = vadd.f32 0.0, %v1210
      %v1212 = vpop.f32.mrf.mxu0
      %1213 = vmatprep.mubr.bf16.mxu0 0
      %1214 = vmatmul.mubr.bf16.gmra.mxu0 %v790
      %v1215 = vpop.f32.mrf.mxu0
      %v1216 = vadd.f32 0.0, %v1215
      %v1217 = vpop.f32.mrf.mxu0
      %v1218 = vpop.f32.mrf.mxu0
      %v1219 = vadd.f32 0.0, %v1218
      %v1220 = vpop.f32.mrf.mxu0
      %1221 = vmatprep.mubr.bf16.mxu0 0
      %1222 = vmatmul.mubr.bf16.gmra.mxu0 %v793
      %v1223 = vpop.f32.mrf.mxu0
      %v1224 = vadd.f32 0.0, %v1223
      %v1225 = vpop.f32.mrf.mxu0
      %v1226 = vpop.f32.mrf.mxu0
      %v1227 = vadd.f32 0.0, %v1226
      %v1228 = vpop.f32.mrf.mxu0
      %1229 = vmatprep.mubr.bf16.mxu0 0
      %1230 = vmatmul.mubr.bf16.gmra.mxu0 %v796
      %v1231 = vpop.f32.mrf.mxu0
      %v1232 = vadd.f32 0.0, %v1231
      %v1233 = vpop.f32.mrf.mxu0
      %v1234 = vpop.f32.mrf.mxu0
      %v1235 = vadd.f32 0.0, %v1234
      %v1236 = vpop.f32.mrf.mxu0
      %1237 = vmatprep.mubr.bf16.mxu0 0
      %1238 = vmatmul.mubr.bf16.gmra.mxu0 %v799
      %v1239 = vpop.f32.mrf.mxu0
      %v1240 = vadd.f32 0.0, %v1239
      %v1241 = vpop.f32.mrf.mxu0
      %v1242 = vpop.f32.mrf.mxu0
      %v1243 = vadd.f32 0.0, %v1242
      %v1244 = vpop.f32.mrf.mxu0
      %1245 = vmatprep.mubr.bf16.mxu0 0
      %1246 = vmatmul.mubr.bf16.gmra.mxu0 %v802
      %v1247 = vpop.f32.mrf.mxu0
      %v1248 = vadd.f32 0.0, %v1247
      %v1249 = vpop.f32.mrf.mxu0
      %v1250 = vpop.f32.mrf.mxu0
      %v1251 = vadd.f32 0.0, %v1250
      %v1252 = vpop.f32.mrf.mxu0
      %1253 = vmatprep.mubr.bf16.mxu0 0
      %1254 = vmatmul.mubr.bf16.gmra.mxu0 %v805
      %v1255 = vpop.f32.mrf.mxu0
      %v1256 = vadd.f32 0.0, %v1255
      %v1257 = vpop.f32.mrf.mxu0
      %v1258 = vpop.f32.mrf.mxu0
      %v1259 = vadd.f32 0.0, %v1258
      %v1260 = vpop.f32.mrf.mxu0
      %1261 = vmatprep.mubr.bf16.mxu0 0
      %1262 = vmatmul.mubr.bf16.gmra.mxu0 %v808
      %v1263 = vpop.f32.mrf.mxu0
      %v1264 = vadd.f32 0.0, %v1263
      %v1265 = vpop.f32.mrf.mxu0
      %v1266 = vpop.f32.mrf.mxu0
      %v1267 = vadd.f32 0.0, %v1266
      %v1268 = vpop.f32.mrf.mxu0
      %1269 = vmatprep.mubr.bf16.mxu0 0
      %1270 = vmatmul.mubr.bf16.gmra.mxu0 %v811
      %v1271 = vpop.f32.mrf.mxu0
      %v1272 = vadd.f32 0.0, %v1271
      %v1273 = vpop.f32.mrf.mxu0
      %v1274 = vpop.f32.mrf.mxu0
      %v1275 = vadd.f32 0.0, %v1274
      %v1276 = vpop.f32.mrf.mxu0
      %1277 = vmatprep.mubr.bf16.mxu0 0
      %1278 = vmatmul.mubr.bf16.gmra.mxu0 %v814
      %v1279 = vpop.f32.mrf.mxu0
      %v1280 = vadd.f32 0.0, %v1279
      %v1281 = vpop.f32.mrf.mxu0
      %v1282 = vpop.f32.mrf.mxu0
      %v1283 = vadd.f32 0.0, %v1282
      %v1284 = vpop.f32.mrf.mxu0
      %1285 = vmatprep.mubr.bf16.mxu0 0
      %1286 = vmatmul.mubr.bf16.gmra.mxu0 %v817
      %v1287 = vpop.f32.mrf.mxu0
      %v1288 = vadd.f32 0.0, %v1287
      %v1289 = vpop.f32.mrf.mxu0
      %v1290 = vpop.f32.mrf.mxu0
      %v1291 = vadd.f32 0.0, %v1290
      %v1292 = vpop.f32.mrf.mxu0
      %1293 = vmatprep.mubr.bf16.mxu0 0
      %1294 = vmatmul.mubr.bf16.gmra.mxu0 %v820
      %v1295 = vpop.f32.mrf.mxu0
      %v1296 = vadd.f32 0.0, %v1295
      %v1297 = vpop.f32.mrf.mxu0
      %v1298 = vpop.f32.mrf.mxu0
      %v1299 = vadd.f32 0.0, %v1298
      %v1300 = vpop.f32.mrf.mxu0
      %1301 = vmatprep.mubr.bf16.mxu0 0
      %1302 = vmatmul.mubr.bf16.gmra.mxu0 %v823
      %v1303 = vpop.f32.mrf.mxu0
      %v1304 = vadd.f32 0.0, %v1303
      %v1305 = vpop.f32.mrf.mxu0
      %v1306 = vpop.f32.mrf.mxu0
      %v1307 = vadd.f32 0.0, %v1306
      %v1308 = vpop.f32.mrf.mxu0
      %1309 = vmatprep.mubr.bf16.mxu0 0
      %1310 = vmatmul.mubr.bf16.gmra.mxu0 %v826
      %v1311 = vpop.f32.mrf.mxu0
      %v1312 = vadd.f32 0.0, %v1311
      %v1313 = vpop.f32.mrf.mxu0
      %v1314 = vpop.f32.mrf.mxu0
      %v1315 = vadd.f32 0.0, %v1314
      %v1316 = vpop.f32.mrf.mxu0
      %1317 = vmatprep.mubr.bf16.mxu0 0
      %1318 = vmatmul.mubr.bf16.gmra.mxu0 %v829
      %v1319 = vpop.f32.mrf.mxu0
      %v1320 = vadd.f32 0.0, %v1319
      %v1321 = vpop.f32.mrf.mxu0
      %v1322 = vpop.f32.mrf.mxu0
      %v1323 = vadd.f32 0.0, %v1322
      %v1324 = vpop.f32.mrf.mxu0
      %1325 = vmatprep.mubr.bf16.mxu0 0
      %1326 = vmatmul.mubr.bf16.gmra.mxu0 %v832
      %v1327 = vpop.f32.mrf.mxu0
      %v1328 = vadd.f32 0.0, %v1327
      %v1329 = vpop.f32.mrf.mxu0
      %v1330 = vpop.f32.mrf.mxu0
      %v1331 = vadd.f32 0.0, %v1330
      %v1332 = vpop.f32.mrf.mxu0
      %1333 = vmatprep.mubr.bf16.mxu0 0
      %1334 = vmatmul.mubr.bf16.gmra.mxu0 %v835
      %v1335 = vpop.f32.mrf.mxu0
      %v1336 = vadd.f32 0.0, %v1335
      %v1337 = vpop.f32.mrf.mxu0
      %v1338 = vpop.f32.mrf.mxu0
      %v1339 = vadd.f32 0.0, %v1338
      %v1340 = vpop.f32.mrf.mxu0
      %1341 = vmatprep.mubr.bf16.mxu0 0
      %1342 = vmatmul.mubr.bf16.gmra.mxu0 %v838
      %v1343 = vpop.f32.mrf.mxu0
      %v1344 = vadd.f32 0.0, %v1343
      %v1345 = vpop.f32.mrf.mxu0
      %v1346 = vpop.f32.mrf.mxu0
      %v1347 = vadd.f32 0.0, %v1346
      %v1348 = vpop.f32.mrf.mxu0
      %1349 = vmatprep.mubr.bf16.mxu0 0
      %1350 = vmatmul.mubr.bf16.gmra.mxu0 %v841
      %v1351 = vpop.f32.mrf.mxu0
      %v1352 = vadd.f32 0.0, %v1351
      %v1353 = vpop.f32.mrf.mxu0
      %v1354 = vpop.f32.mrf.mxu0
      %v1355 = vadd.f32 0.0, %v1354
      %v1356 = vpop.f32.mrf.mxu0
      %1357 = vmatprep.mubr.bf16.mxu0 0
      %1358 = vmatmul.mubr.bf16.gmra.mxu0 %v844
      %v1359 = vpop.f32.mrf.mxu0
      %v1360 = vadd.f32 0.0, %v1359
      %v1361 = vpop.f32.mrf.mxu0
      %v1362 = vpop.f32.mrf.mxu0
      %v1363 = vadd.f32 0.0, %v1362
      %v1364 = vpop.f32.mrf.mxu0
      %1365 = vmatprep.mubr.bf16.mxu0 0
      %1366 = vmatmul.mubr.bf16.gmra.mxu0 %v847
      %v1367 = vpop.f32.mrf.mxu0
      %v1368 = vadd.f32 0.0, %v1367
      %v1369 = vpop.f32.mrf.mxu0
      %v1370 = vpop.f32.mrf.mxu0
      %v1371 = vadd.f32 0.0, %v1370
      %v1372 = vpop.f32.mrf.mxu0
      %1373 = vmatprep.mubr.bf16.mxu0 0
      %1374 = vmatmul.mubr.bf16.gmra.mxu0 %v850
      %v1375 = vpop.f32.mrf.mxu0
      %v1376 = vadd.f32 0.0, %v1375
      %v1377 = vpop.f32.mrf.mxu0
      %v1378 = vpop.f32.mrf.mxu0
      %v1379 = vadd.f32 0.0, %v1378
      %v1380 = vpop.f32.mrf.mxu0
      %1381 = vmatprep.mubr.bf16.mxu0 0
      %1382 = vmatmul.mubr.bf16.gmra.mxu0 %v853
      %v1383 = vpop.f32.mrf.mxu0
      %v1384 = vadd.f32 0.0, %v1383
      %v1385 = vpop.f32.mrf.mxu0
      %v1386 = vpop.f32.mrf.mxu0
      %v1387 = vadd.f32 0.0, %v1386
      %v1388 = vpop.f32.mrf.mxu0
      %1389 = vmatprep.mubr.bf16.mxu0 0
      %1390 = vmatmul.mubr.bf16.gmra.mxu0 %v856
      %v1391 = vpop.f32.mrf.mxu0
      %v1392 = vadd.f32 0.0, %v1391
      %v1393 = vpop.f32.mrf.mxu0
      %v1394 = vpop.f32.mrf.mxu0
      %v1395 = vadd.f32 0.0, %v1394
      %v1396 = vpop.f32.mrf.mxu0
      %1397 = vmatprep.mubr.bf16.mxu0 0
      %1398 = vmatmul.mubr.bf16.gmra.mxu0 %v859
      %v1399 = vpop.f32.mrf.mxu0
      %v1400 = vadd.f32 0.0, %v1399
      %v1401 = vpop.f32.mrf.mxu0
      %v1402 = vpop.f32.mrf.mxu0
      %v1403 = vadd.f32 0.0, %v1402
      %v1404 = vpop.f32.mrf.mxu0
      %1405 = vdwg.mxu0
      %v1406 = vpack.c.bf16 %v899, %v896
      %v1407 = vpack.c.bf16 %v907, %v904
      %v1408 = vpack.c.bf16 %v915, %v912
      %v1409 = vpack.c.bf16 %v923, %v920
      %v1410 = vpack.c.bf16 %v931, %v928
      %v1411 = vpack.c.bf16 %v939, %v936
      %v1412 = vpack.c.bf16 %v947, %v944
      %v1413 = vpack.c.bf16 %v955, %v952
      %v1414 = vpack.c.bf16 %v963, %v960
      %v1415 = vpack.c.bf16 %v971, %v968
      %v1416 = vpack.c.bf16 %v979, %v976
      %v1417 = vpack.c.bf16 %v987, %v984
      %v1418 = vpack.c.bf16 %v995, %v992
      %v1419 = vpack.c.bf16 %v1003, %v1000
      %v1420 = vpack.c.bf16 %v1011, %v1008
      %v1421 = vpack.c.bf16 %v1019, %v1016
      %v1422 = vpack.c.bf16 %v1027, %v1024
      %v1423 = vpack.c.bf16 %v1035, %v1032
      %v1424 = vpack.c.bf16 %v1043, %v1040
      %v1425 = vpack.c.bf16 %v1051, %v1048
      %v1426 = vpack.c.bf16 %v1059, %v1056
      %v1427 = vpack.c.bf16 %v1067, %v1064
      %v1428 = vpack.c.bf16 %v1075, %v1072
      %v1429 = vpack.c.bf16 %v1083, %v1080
      %v1430 = vpack.c.bf16 %v1091, %v1088
      %v1431 = vpack.c.bf16 %v1099, %v1096
      %v1432 = vpack.c.bf16 %v1107, %v1104
      %v1433 = vpack.c.bf16 %v1115, %v1112
      %v1434 = vpack.c.bf16 %v1123, %v1120
      %v1435 = vpack.c.bf16 %v1131, %v1128
      %v1436 = vpack.c.bf16 %v1139, %v1136
      %v1437 = vpack.c.bf16 %v1147, %v1144
      %v1438 = vpack.c.bf16 %v1155, %v1152
      %v1439 = vpack.c.bf16 %v1163, %v1160
      %v1440 = vpack.c.bf16 %v1171, %v1168
      %v1441 = vpack.c.bf16 %v1179, %v1176
      %v1442 = vpack.c.bf16 %v1187, %v1184
      %v1443 = vpack.c.bf16 %v1195, %v1192
      %v1444 = vpack.c.bf16 %v1203, %v1200
      %v1445 = vpack.c.bf16 %v1211, %v1208
      %v1446 = vpack.c.bf16 %v1219, %v1216
      %v1447 = vpack.c.bf16 %v1227, %v1224
      %v1448 = vpack.c.bf16 %v1235, %v1232
      %v1449 = vpack.c.bf16 %v1243, %v1240
      %v1450 = vpack.c.bf16 %v1251, %v1248
      %v1451 = vpack.c.bf16 %v1259, %v1256
      %v1452 = vpack.c.bf16 %v1267, %v1264
      %v1453 = vpack.c.bf16 %v1275, %v1272
      %v1454 = vpack.c.bf16 %v1283, %v1280
      %v1455 = vpack.c.bf16 %v1291, %v1288
      %v1456 = vpack.c.bf16 %v1299, %v1296
      %v1457 = vpack.c.bf16 %v1307, %v1304
      %v1458 = vpack.c.bf16 %v1315, %v1312
      %v1459 = vpack.c.bf16 %v1323, %v1320
      %v1460 = vpack.c.bf16 %v1331, %v1328
      %v1461 = vpack.c.bf16 %v1339, %v1336
      %v1462 = vpack.c.bf16 %v1347, %v1344
      %v1463 = vpack.c.bf16 %v1355, %v1352
      %v1464 = vpack.c.bf16 %v1363, %v1360
      %v1465 = vpack.c.bf16 %v1371, %v1368
      %v1466 = vpack.c.bf16 %v1379, %v1376
      %v1467 = vpack.c.bf16 %v1387, %v1384
      %v1468 = vpack.c.bf16 %v1395, %v1392
      %v1469 = vpack.c.bf16 %v1403, %v1400
      %v1534 = vunpack.c.l.b16 %v1406
      %v1535 = vunpack.c.h.b16 %v1406
      %v1536 = vunpack.c.l.b16 %v1407
      %v1537 = vunpack.c.h.b16 %v1407
      %v1538 = vunpack.c.l.b16 %v1408
      %v1539 = vunpack.c.h.b16 %v1408
      %v1540 = vunpack.c.l.b16 %v1409
      %v1541 = vunpack.c.h.b16 %v1409
      %v1542 = vunpack.c.l.b16 %v1410
      %v1543 = vunpack.c.h.b16 %v1410
      %v1544 = vunpack.c.l.b16 %v1411
      %v1545 = vunpack.c.h.b16 %v1411
      %v1546 = vunpack.c.l.b16 %v1412
      %v1547 = vunpack.c.h.b16 %v1412
      %v1548 = vunpack.c.l.b16 %v1413
      %v1549 = vunpack.c.h.b16 %v1413
      %v1550 = vunpack.c.l.b16 %v1414
      %v1551 = vunpack.c.h.b16 %v1414
      %v1552 = vunpack.c.l.b16 %v1415
      %v1553 = vunpack.c.h.b16 %v1415
      %v1554 = vunpack.c.l.b16 %v1416
      %v1555 = vunpack.c.h.b16 %v1416
      %v1556 = vunpack.c.l.b16 %v1417
      %v1557 = vunpack.c.h.b16 %v1417
      %v1558 = vunpack.c.l.b16 %v1418
      %v1559 = vunpack.c.h.b16 %v1418
      %v1560 = vunpack.c.l.b16 %v1419
      %v1561 = vunpack.c.h.b16 %v1419
      %v1562 = vunpack.c.l.b16 %v1420
      %v1563 = vunpack.c.h.b16 %v1420
      %v1564 = vunpack.c.l.b16 %v1421
      %v1565 = vunpack.c.h.b16 %v1421
      %v1566 = vunpack.c.l.b16 %v1422
      %v1567 = vunpack.c.h.b16 %v1422
      %v1568 = vunpack.c.l.b16 %v1423
      %v1569 = vunpack.c.h.b16 %v1423
      %v1570 = vunpack.c.l.b16 %v1424
      %v1571 = vunpack.c.h.b16 %v1424
      %v1572 = vunpack.c.l.b16 %v1425
      %v1573 = vunpack.c.h.b16 %v1425
      %v1574 = vunpack.c.l.b16 %v1426
      %v1575 = vunpack.c.h.b16 %v1426
      %v1576 = vunpack.c.l.b16 %v1427
      %v1577 = vunpack.c.h.b16 %v1427
      %v1578 = vunpack.c.l.b16 %v1428
      %v1579 = vunpack.c.h.b16 %v1428
      %v1580 = vunpack.c.l.b16 %v1429
      %v1581 = vunpack.c.h.b16 %v1429
      %v1582 = vunpack.c.l.b16 %v1430
      %v1583 = vunpack.c.h.b16 %v1430
      %v1584 = vunpack.c.l.b16 %v1431
      %v1585 = vunpack.c.h.b16 %v1431
      %v1586 = vunpack.c.l.b16 %v1432
      %v1587 = vunpack.c.h.b16 %v1432
      %v1588 = vunpack.c.l.b16 %v1433
      %v1589 = vunpack.c.h.b16 %v1433
      %v1590 = vunpack.c.l.b16 %v1434
      %v1591 = vunpack.c.h.b16 %v1434
      %v1592 = vunpack.c.l.b16 %v1435
      %v1593 = vunpack.c.h.b16 %v1435
      %v1594 = vunpack.c.l.b16 %v1436
      %v1595 = vunpack.c.h.b16 %v1436
      %v1596 = vunpack.c.l.b16 %v1437
      %v1597 = vunpack.c.h.b16 %v1437
      %v1598 = vunpack.c.l.b16 %v1438
      %v1599 = vunpack.c.h.b16 %v1438
      %v1600 = vunpack.c.l.b16 %v1439
      %v1601 = vunpack.c.h.b16 %v1439
      %v1602 = vunpack.c.l.b16 %v1440
      %v1603 = vunpack.c.h.b16 %v1440
      %v1604 = vunpack.c.l.b16 %v1441
      %v1605 = vunpack.c.h.b16 %v1441
      %v1606 = vunpack.c.l.b16 %v1442
      %v1607 = vunpack.c.h.b16 %v1442
      %v1608 = vunpack.c.l.b16 %v1443
      %v1609 = vunpack.c.h.b16 %v1443
      %v1610 = vunpack.c.l.b16 %v1444
      %v1611 = vunpack.c.h.b16 %v1444
      %v1612 = vunpack.c.l.b16 %v1445
      %v1613 = vunpack.c.h.b16 %v1445
      %v1614 = vunpack.c.l.b16 %v1446
      %v1615 = vunpack.c.h.b16 %v1446
      %v1616 = vunpack.c.l.b16 %v1447
      %v1617 = vunpack.c.h.b16 %v1447
      %v1618 = vunpack.c.l.b16 %v1448
      %v1619 = vunpack.c.h.b16 %v1448
      %v1620 = vunpack.c.l.b16 %v1449
      %v1621 = vunpack.c.h.b16 %v1449
      %v1622 = vunpack.c.l.b16 %v1450
      %v1623 = vunpack.c.h.b16 %v1450
      %v1624 = vunpack.c.l.b16 %v1451
      %v1625 = vunpack.c.h.b16 %v1451
      %v1626 = vunpack.c.l.b16 %v1452
      %v1627 = vunpack.c.h.b16 %v1452
      %v1628 = vunpack.c.l.b16 %v1453
      %v1629 = vunpack.c.h.b16 %v1453
      %v1630 = vunpack.c.l.b16 %v1454
      %v1631 = vunpack.c.h.b16 %v1454
      %v1632 = vunpack.c.l.b16 %v1455
      %v1633 = vunpack.c.h.b16 %v1455
      %v1634 = vunpack.c.l.b16 %v1456
      %v1635 = vunpack.c.h.b16 %v1456
      %v1636 = vunpack.c.l.b16 %v1457
      %v1637 = vunpack.c.h.b16 %v1457
      %v1638 = vunpack.c.l.b16 %v1458
      %v1639 = vunpack.c.h.b16 %v1458
      %v1640 = vunpack.c.l.b16 %v1459
      %v1641 = vunpack.c.h.b16 %v1459
      %v1642 = vunpack.c.l.b16 %v1460
      %v1643 = vunpack.c.h.b16 %v1460
      %v1644 = vunpack.c.l.b16 %v1461
      %v1645 = vunpack.c.h.b16 %v1461
      %v1646 = vunpack.c.l.b16 %v1462
      %v1647 = vunpack.c.h.b16 %v1462
      %v1648 = vunpack.c.l.b16 %v1463
      %v1649 = vunpack.c.h.b16 %v1463
      %v1650 = vunpack.c.l.b16 %v1464
      %v1651 = vunpack.c.h.b16 %v1464
      %v1652 = vunpack.c.l.b16 %v1465
      %v1653 = vunpack.c.h.b16 %v1465
      %v1654 = vunpack.c.l.b16 %v1466
      %v1655 = vunpack.c.h.b16 %v1466
      %v1656 = vunpack.c.l.b16 %v1467
      %v1657 = vunpack.c.h.b16 %v1467
      %v1658 = vunpack.c.l.b16 %v1468
      %v1659 = vunpack.c.h.b16 %v1468
      %v1660 = vunpack.c.l.b16 %v1469
      %v1661 = vunpack.c.h.b16 %v1469
      %v1662 = vpack.c.b16 %v1534, %v1534
      %v1663 = vpack.c.b16 %v1535, %v1535
      %v1664 = vpack.c.b16 %v1536, %v1536
      %v1665 = vpack.c.b16 %v1537, %v1537
      %v1666 = vpack.c.b16 %v1538, %v1538
      %v1667 = vpack.c.b16 %v1539, %v1539
      %v1668 = vpack.c.b16 %v1540, %v1540
      %v1669 = vpack.c.b16 %v1541, %v1541
      %v1670 = vpack.c.b16 %v1542, %v1542
      %v1671 = vpack.c.b16 %v1543, %v1543
      %v1672 = vpack.c.b16 %v1544, %v1544
      %v1673 = vpack.c.b16 %v1545, %v1545
      %v1674 = vpack.c.b16 %v1546, %v1546
      %v1675 = vpack.c.b16 %v1547, %v1547
      %v1676 = vpack.c.b16 %v1548, %v1548
      %v1677 = vpack.c.b16 %v1549, %v1549
      %v1678 = vpack.c.b16 %v1550, %v1550
      %v1679 = vpack.c.b16 %v1551, %v1551
      %v1680 = vpack.c.b16 %v1552, %v1552
      %v1681 = vpack.c.b16 %v1553, %v1553
      %v1682 = vpack.c.b16 %v1554, %v1554
      %v1683 = vpack.c.b16 %v1555, %v1555
      %v1684 = vpack.c.b16 %v1556, %v1556
      %v1685 = vpack.c.b16 %v1557, %v1557
      %v1686 = vpack.c.b16 %v1558, %v1558
      %v1687 = vpack.c.b16 %v1559, %v1559
      %v1688 = vpack.c.b16 %v1560, %v1560
      %v1689 = vpack.c.b16 %v1561, %v1561
      %v1690 = vpack.c.b16 %v1562, %v1562
      %v1691 = vpack.c.b16 %v1563, %v1563
      %v1692 = vpack.c.b16 %v1564, %v1564
      %v1693 = vpack.c.b16 %v1565, %v1565
      %v1694 = vpack.c.b16 %v1566, %v1566
      %v1695 = vpack.c.b16 %v1567, %v1567
      %v1696 = vpack.c.b16 %v1568, %v1568
      %v1697 = vpack.c.b16 %v1569, %v1569
      %v1698 = vpack.c.b16 %v1570, %v1570
      %v1699 = vpack.c.b16 %v1571, %v1571
      %v1700 = vpack.c.b16 %v1572, %v1572
      %v1701 = vpack.c.b16 %v1573, %v1573
      %v1702 = vpack.c.b16 %v1574, %v1574
      %v1703 = vpack.c.b16 %v1575, %v1575
      %v1704 = vpack.c.b16 %v1576, %v1576
      %v1705 = vpack.c.b16 %v1577, %v1577
      %v1706 = vpack.c.b16 %v1578, %v1578
      %v1707 = vpack.c.b16 %v1579, %v1579
      %v1708 = vpack.c.b16 %v1580, %v1580
      %v1709 = vpack.c.b16 %v1581, %v1581
      %v1710 = vpack.c.b16 %v1582, %v1582
      %v1711 = vpack.c.b16 %v1583, %v1583
      %v1712 = vpack.c.b16 %v1584, %v1584
      %v1713 = vpack.c.b16 %v1585, %v1585
      %v1714 = vpack.c.b16 %v1586, %v1586
      %v1715 = vpack.c.b16 %v1587, %v1587
      %v1716 = vpack.c.b16 %v1588, %v1588
      %v1717 = vpack.c.b16 %v1589, %v1589
      %v1718 = vpack.c.b16 %v1590, %v1590
      %v1719 = vpack.c.b16 %v1591, %v1591
      %v1720 = vpack.c.b16 %v1592, %v1592
      %v1721 = vpack.c.b16 %v1593, %v1593
      %v1722 = vpack.c.b16 %v1594, %v1594
      %v1723 = vpack.c.b16 %v1595, %v1595
      %v1724 = vpack.c.b16 %v1596, %v1596
      %v1725 = vpack.c.b16 %v1597, %v1597
      %v1726 = vpack.c.b16 %v1598, %v1598
      %v1727 = vpack.c.b16 %v1599, %v1599
      %v1728 = vpack.c.b16 %v1600, %v1600
      %v1729 = vpack.c.b16 %v1601, %v1601
      %v1730 = vpack.c.b16 %v1602, %v1602
      %v1731 = vpack.c.b16 %v1603, %v1603
      %v1732 = vpack.c.b16 %v1604, %v1604
      %v1733 = vpack.c.b16 %v1605, %v1605
      %v1734 = vpack.c.b16 %v1606, %v1606
      %v1735 = vpack.c.b16 %v1607, %v1607
      %v1736 = vpack.c.b16 %v1608, %v1608
      %v1737 = vpack.c.b16 %v1609, %v1609
      %v1738 = vpack.c.b16 %v1610, %v1610
      %v1739 = vpack.c.b16 %v1611, %v1611
      %v1740 = vpack.c.b16 %v1612, %v1612
      %v1741 = vpack.c.b16 %v1613, %v1613
      %v1742 = vpack.c.b16 %v1614, %v1614
      %v1743 = vpack.c.b16 %v1615, %v1615
      %v1744 = vpack.c.b16 %v1616, %v1616
      %v1745 = vpack.c.b16 %v1617, %v1617
      %v1746 = vpack.c.b16 %v1618, %v1618
      %v1747 = vpack.c.b16 %v1619, %v1619
      %v1748 = vpack.c.b16 %v1620, %v1620
      %v1749 = vpack.c.b16 %v1621, %v1621
      %v1750 = vpack.c.b16 %v1622, %v1622
      %v1751 = vpack.c.b16 %v1623, %v1623
      %v1752 = vpack.c.b16 %v1624, %v1624
      %v1753 = vpack.c.b16 %v1625, %v1625
      %v1754 = vpack.c.b16 %v1626, %v1626
      %v1755 = vpack.c.b16 %v1627, %v1627
      %v1756 = vpack.c.b16 %v1628, %v1628
      %v1757 = vpack.c.b16 %v1629, %v1629
      %v1758 = vpack.c.b16 %v1630, %v1630
      %v1759 = vpack.c.b16 %v1631, %v1631
      %v1760 = vpack.c.b16 %v1632, %v1632
      %v1761 = vpack.c.b16 %v1633, %v1633
      %v1762 = vpack.c.b16 %v1634, %v1634
      %v1763 = vpack.c.b16 %v1635, %v1635
      %v1764 = vpack.c.b16 %v1636, %v1636
      %v1765 = vpack.c.b16 %v1637, %v1637
      %v1766 = vpack.c.b16 %v1638, %v1638
      %v1767 = vpack.c.b16 %v1639, %v1639
      %v1768 = vpack.c.b16 %v1640, %v1640
      %v1769 = vpack.c.b16 %v1641, %v1641
      %v1770 = vpack.c.b16 %v1642, %v1642
      %v1771 = vpack.c.b16 %v1643, %v1643
      %v1772 = vpack.c.b16 %v1644, %v1644
      %v1773 = vpack.c.b16 %v1645, %v1645
      %v1774 = vpack.c.b16 %v1646, %v1646
      %v1775 = vpack.c.b16 %v1647, %v1647
      %v1776 = vpack.c.b16 %v1648, %v1648
      %v1777 = vpack.c.b16 %v1649, %v1649
      %v1778 = vpack.c.b16 %v1650, %v1650
      %v1779 = vpack.c.b16 %v1651, %v1651
      %v1780 = vpack.c.b16 %v1652, %v1652
      %v1781 = vpack.c.b16 %v1653, %v1653
      %v1782 = vpack.c.b16 %v1654, %v1654
      %v1783 = vpack.c.b16 %v1655, %v1655
      %v1784 = vpack.c.b16 %v1656, %v1656
      %v1785 = vpack.c.b16 %v1657, %v1657
      %v1786 = vpack.c.b16 %v1658, %v1658
      %v1787 = vpack.c.b16 %v1659, %v1659
      %v1788 = vpack.c.b16 %v1660, %v1660
      %v1789 = vpack.c.b16 %v1661, %v1661
      %1918 = vst [vmem:[%s201] sm:$0xf] %v1662
      %1919 = vst [vmem:[%s201 + $0x4] sm:$0xf] %v1663
      %1920 = vst [vmem:[%s201 + $0x8] sm:$0xf] %v1664
      %1921 = vst [vmem:[%s201 + $0xc] sm:$0xf] %v1665
      %1922 = vst [vmem:[%s201 + $0x10] sm:$0xf] %v1666
      %1923 = vst [vmem:[%s201 + $0x14] sm:$0xf] %v1667
      %1924 = vst [vmem:[%s201 + $0x18] sm:$0xf] %v1668
      %1925 = vst [vmem:[%s201 + $0x1c] sm:$0xf] %v1669
      %1926 = vst [vmem:[%s201 + $0x20] sm:$0xf] %v1670
      %1927 = vst [vmem:[%s201 + $0x24] sm:$0xf] %v1671
      %1928 = vst [vmem:[%s201 + $0x28] sm:$0xf] %v1672
      %1929 = vst [vmem:[%s201 + $0x2c] sm:$0xf] %v1673
      %1930 = vst [vmem:[%s201 + $0x30] sm:$0xf] %v1674
      %1931 = vst [vmem:[%s201 + $0x34] sm:$0xf] %v1675
      %1932 = vst [vmem:[%s201 + $0x38] sm:$0xf] %v1676
      %1933 = vst [vmem:[%s201 + $0x3c] sm:$0xf] %v1677
      %1934 = vst [vmem:[%s201 + $0x40] sm:$0xf] %v1678
      %1935 = vst [vmem:[%s201 + $0x44] sm:$0xf] %v1679
      %1936 = vst [vmem:[%s201 + $0x48] sm:$0xf] %v1680
      %1937 = vst [vmem:[%s201 + $0x4c] sm:$0xf] %v1681
      %1938 = vst [vmem:[%s201 + $0x50] sm:$0xf] %v1682
      %1939 = vst [vmem:[%s201 + $0x54] sm:$0xf] %v1683
      %1940 = vst [vmem:[%s201 + $0x58] sm:$0xf] %v1684
      %1941 = vst [vmem:[%s201 + $0x5c] sm:$0xf] %v1685
      %1942 = vst [vmem:[%s201 + $0x60] sm:$0xf] %v1686
      %1943 = vst [vmem:[%s201 + $0x64] sm:$0xf] %v1687
      %1944 = vst [vmem:[%s201 + $0x68] sm:$0xf] %v1688
      %1945 = vst [vmem:[%s201 + $0x6c] sm:$0xf] %v1689
      %1946 = vst [vmem:[%s201 + $0x70] sm:$0xf] %v1690
      %1947 = vst [vmem:[%s201 + $0x74] sm:$0xf] %v1691
      %1948 = vst [vmem:[%s201 + $0x78] sm:$0xf] %v1692
      %1949 = vst [vmem:[%s201 + $0x7c] sm:$0xf] %v1693
      %1950 = vst [vmem:[%s201 + $0x80] sm:$0xf] %v1694
      %1951 = vst [vmem:[%s201 + $0x84] sm:$0xf] %v1695
      %1952 = vst [vmem:[%s201 + $0x88] sm:$0xf] %v1696
      %1953 = vst [vmem:[%s201 + $0x8c] sm:$0xf] %v1697
      %1954 = vst [vmem:[%s201 + $0x90] sm:$0xf] %v1698
      %1955 = vst [vmem:[%s201 + $0x94] sm:$0xf] %v1699
      %1956 = vst [vmem:[%s201 + $0x98] sm:$0xf] %v1700
      %1957 = vst [vmem:[%s201 + $0x9c] sm:$0xf] %v1701
      %1958 = vst [vmem:[%s201 + $0xa0] sm:$0xf] %v1702
      %1959 = vst [vmem:[%s201 + $0xa4] sm:$0xf] %v1703
      %1960 = vst [vmem:[%s201 + $0xa8] sm:$0xf] %v1704
      %1961 = vst [vmem:[%s201 + $0xac] sm:$0xf] %v1705
      %1962 = vst [vmem:[%s201 + $0xb0] sm:$0xf] %v1706
      %1963 = vst [vmem:[%s201 + $0xb4] sm:$0xf] %v1707
      %1964 = vst [vmem:[%s201 + $0xb8] sm:$0xf] %v1708
      %1965 = vst [vmem:[%s201 + $0xbc] sm:$0xf] %v1709
      %1966 = vst [vmem:[%s201 + $0xc0] sm:$0xf] %v1710
      %1967 = vst [vmem:[%s201 + $0xc4] sm:$0xf] %v1711
      %1968 = vst [vmem:[%s201 + $0xc8] sm:$0xf] %v1712
      %1969 = vst [vmem:[%s201 + $0xcc] sm:$0xf] %v1713
      %1970 = vst [vmem:[%s201 + $0xd0] sm:$0xf] %v1714
      %1971 = vst [vmem:[%s201 + $0xd4] sm:$0xf] %v1715
      %1972 = vst [vmem:[%s201 + $0xd8] sm:$0xf] %v1716
      %1973 = vst [vmem:[%s201 + $0xdc] sm:$0xf] %v1717
      %1974 = vst [vmem:[%s201 + $0xe0] sm:$0xf] %v1718
      %1975 = vst [vmem:[%s201 + $0xe4] sm:$0xf] %v1719
      %1976 = vst [vmem:[%s201 + $0xe8] sm:$0xf] %v1720
      %1977 = vst [vmem:[%s201 + $0xec] sm:$0xf] %v1721
      %1978 = vst [vmem:[%s201 + $0xf0] sm:$0xf] %v1722
      %1979 = vst [vmem:[%s201 + $0xf4] sm:$0xf] %v1723
      %1980 = vst [vmem:[%s201 + $0xf8] sm:$0xf] %v1724
      %1981 = vst [vmem:[%s201 + $0xfc] sm:$0xf] %v1725
      %1982 = vst [vmem:[%s201 + $0x100] sm:$0xf] %v1726
      %1983 = vst [vmem:[%s201 + $0x104] sm:$0xf] %v1727
      %1984 = vst [vmem:[%s201 + $0x108] sm:$0xf] %v1728
      %1985 = vst [vmem:[%s201 + $0x10c] sm:$0xf] %v1729
      %1986 = vst [vmem:[%s201 + $0x110] sm:$0xf] %v1730
      %1987 = vst [vmem:[%s201 + $0x114] sm:$0xf] %v1731
      %1988 = vst [vmem:[%s201 + $0x118] sm:$0xf] %v1732
      %1989 = vst [vmem:[%s201 + $0x11c] sm:$0xf] %v1733
      %1990 = vst [vmem:[%s201 + $0x120] sm:$0xf] %v1734
      %1991 = vst [vmem:[%s201 + $0x124] sm:$0xf] %v1735
      %1992 = vst [vmem:[%s201 + $0x128] sm:$0xf] %v1736
      %1993 = vst [vmem:[%s201 + $0x12c] sm:$0xf] %v1737
      %1994 = vst [vmem:[%s201 + $0x130] sm:$0xf] %v1738
      %1995 = vst [vmem:[%s201 + $0x134] sm:$0xf] %v1739
      %1996 = vst [vmem:[%s201 + $0x138] sm:$0xf] %v1740
      %1997 = vst [vmem:[%s201 + $0x13c] sm:$0xf] %v1741
      %1998 = vst [vmem:[%s201 + $0x140] sm:$0xf] %v1742
      %1999 = vst [vmem:[%s201 + $0x144] sm:$0xf] %v1743
      %2000 = vst [vmem:[%s201 + $0x148] sm:$0xf] %v1744
      %2001 = vst [vmem:[%s201 + $0x14c] sm:$0xf] %v1745
      %2002 = vst [vmem:[%s201 + $0x150] sm:$0xf] %v1746
      %2003 = vst [vmem:[%s201 + $0x154] sm:$0xf] %v1747
      %2004 = vst [vmem:[%s201 + $0x158] sm:$0xf] %v1748
      %2005 = vst [vmem:[%s201 + $0x15c] sm:$0xf] %v1749
      %2006 = vst [vmem:[%s201 + $0x160] sm:$0xf] %v1750
      %2007 = vst [vmem:[%s201 + $0x164] sm:$0xf] %v1751
      %2008 = vst [vmem:[%s201 + $0x168] sm:$0xf] %v1752
      %2009 = vst [vmem:[%s201 + $0x16c] sm:$0xf] %v1753
      %2010 = vst [vmem:[%s201 + $0x170] sm:$0xf] %v1754
      %2011 = vst [vmem:[%s201 + $0x174] sm:$0xf] %v1755
      %2012 = vst [vmem:[%s201 + $0x178] sm:$0xf] %v1756
      %2013 = vst [vmem:[%s201 + $0x17c] sm:$0xf] %v1757
      %2014 = vst [vmem:[%s201 + $0x180] sm:$0xf] %v1758
      %2015 = vst [vmem:[%s201 + $0x184] sm:$0xf] %v1759
      %2016 = vst [vmem:[%s201 + $0x188] sm:$0xf] %v1760
      %2017 = vst [vmem:[%s201 + $0x18c] sm:$0xf] %v1761
      %2018 = vst [vmem:[%s201 + $0x190] sm:$0xf] %v1762
      %2019 = vst [vmem:[%s201 + $0x194] sm:$0xf] %v1763
      %2020 = vst [vmem:[%s201 + $0x198] sm:$0xf] %v1764
      %2021 = vst [vmem:[%s201 + $0x19c] sm:$0xf] %v1765
      %2022 = vst [vmem:[%s201 + $0x1a0] sm:$0xf] %v1766
      %2023 = vst [vmem:[%s201 + $0x1a4] sm:$0xf] %v1767
      %2024 = vst [vmem:[%s201 + $0x1a8] sm:$0xf] %v1768
      %2025 = vst [vmem:[%s201 + $0x1ac] sm:$0xf] %v1769
      %2026 = vst [vmem:[%s201 + $0x1b0] sm:$0xf] %v1770
      %2027 = vst [vmem:[%s201 + $0x1b4] sm:$0xf] %v1771
      %2028 = vst [vmem:[%s201 + $0x1b8] sm:$0xf] %v1772
      %2029 = vst [vmem:[%s201 + $0x1bc] sm:$0xf] %v1773
      %2030 = vst [vmem:[%s201 + $0x1c0] sm:$0xf] %v1774
      %2031 = vst [vmem:[%s201 + $0x1c4] sm:$0xf] %v1775
      %2032 = vst [vmem:[%s201 + $0x1c8] sm:$0xf] %v1776
      %2033 = vst [vmem:[%s201 + $0x1cc] sm:$0xf] %v1777
      %2034 = vst [vmem:[%s201 + $0x1d0] sm:$0xf] %v1778
      %2035 = vst [vmem:[%s201 + $0x1d4] sm:$0xf] %v1779
      %2036 = vst [vmem:[%s201 + $0x1d8] sm:$0xf] %v1780
      %2037 = vst [vmem:[%s201 + $0x1dc] sm:$0xf] %v1781
      %2038 = vst [vmem:[%s201 + $0x1e0] sm:$0xf] %v1782
      %2039 = vst [vmem:[%s201 + $0x1e4] sm:$0xf] %v1783
      %2040 = vst [vmem:[%s201 + $0x1e8] sm:$0xf] %v1784
      %2041 = vst [vmem:[%s201 + $0x1ec] sm:$0xf] %v1785
      %2042 = vst [vmem:[%s201 + $0x1f0] sm:$0xf] %v1786
      %2043 = vst [vmem:[%s201 + $0x1f4] sm:$0xf] %v1787
      %2044 = vst [vmem:[%s201 + $0x1f8] sm:$0xf] %v1788
      %2045 = vst [vmem:[%s201 + $0x1fc] sm:$0xf] %v1789
      %s2046 = smul.u32 128, %s18
      %p2047 = scmp.lt.s32.totalorder %s17, 3
      %s2048 = scalar_select %p2047, %s17, 3
      %p2049 = scmp.lt.s32.totalorder %s2046, 255
      %s2050 = scalar_select %p2049, %s2046, 255
      %s2051 = smul.addr %s2048, 256
      %s2052 = sadd.s32 %s2050, %s2051
      %s2053 = smul.addr %s2052, 4
      %s2054 = scalar_lea.vmem %s2, %s2053
      // Predicated region
      $region29: #{generator_forward.17} parent=27 // pred_check
        %p2055 = pneg %p99
      $region30: #{generator_forward.17} parent=27 // pred_check_branch
        %2057 = sbr.rel (%p2055) target = $region32
      $region31: #{generator_forward.17} parent=27 // pred_region
        %s2058 = smul.u32 128, %s18
      $region32: #{generator_forward.17} parent=27 // pred_fallthru
        _
    $region28: #{generator_forward.17} parent=5 // pred_fallthru
      _
    %p2059 = scmp.le.s32.totalorder 2, %s8
    // Predicated region
    $region33: #{generator_forward.17} parent=5 // pred_check
      %p2060 = pneg %p2059
    $region34: #{generator_forward.17} parent=5 // pred_check_branch
      %2062 = sbr.rel (%p2060) target = $region36
    $region35: #{generator_forward.17} parent=5 // pred_region
      %s2063 = ssub.s32 %s8, 2
      // Predicated region
      $region37: #{generator_forward.17} parent=35 // pred_check
        %p2064 = pneg %p105
      $region38: #{generator_forward.17} parent=35 // pred_check_branch
        %2066 = sbr.rel (%p2064) target = $region40
      $region39: #{generator_forward.17} parent=35 // pred_region
        %s2067 = smul.u32 128, %s20
        %p2068 = scmp.lt.s32.totalorder %s19, 3
        %s2069 = scalar_select %p2068, %s19, 3
        %p2070 = scmp.lt.s32.totalorder %s2067, 255
        %s2071 = scalar_select %p2070, %s2067, 255
        %s2072 = smul.addr %s2069, 256
        %s2073 = sadd.s32 %s2071, %s2072
        %s2074 = smul.addr %s2073, 4
        %s2075 = scalar_lea.vmem %s2, %s2074
      $region40: #{generator_forward.17} parent=35 // pred_fallthru
        _
    $region36: #{generator_forward.17} parent=5 // pred_fallthru
      _
  $region6: #{generator_forward.17} parent=0 // loop_footer
    %s12 = sadd.s32 1, %s8
  $region7: #{generator_forward.17} parent=0 // loop_footer_branch
    %7 = sbr.rel target = $region3
  $region8: #{generator_forward.17} parent=0 // loop_exit
    _

</llo_original>
